<compile_context>
chip_gen: v7x
topology: tpu7x:2x2x1
jax: 0.10.0
libtpu: 0.0.40
codegen_flags: <defaults>
</compile_context>

<pallas_src>
import functools

import jax
import jax.numpy as jnp
import numpy as np
from jax.experimental import pallas as pl
from jax.experimental.pallas import tpu as pltpu

MATMUL_DTYPE = jnp.bfloat16  # MXU operand dtype (f32 accumulation everywhere)


# ----------------------------- fused kernel ---------------------------------
def _fused_gru_fc_kernel(n_layers, unroll, *refs):
    """Fused n_layers GRU + ReLU + Linear over one (time-chunk, batch-block).

    refs layout:
      [x]                                  (CH, BB, I)
      per layer: wih (3,in,H) bf16, whh (3,H,H) bf16, bih (3,1,H), bhh (3,1,H)
      fc_w (H, OP) bf16, fc_b (1, OP)
      outputs: out (CH, BB, OP), h (n_layers, BB, H)
      scratch: gi0 (3, CH, BB, H), hseq (CH, BB, H), h_l (BB, H) x n_layers
    """
    x_ref = refs[0]
    pos = 1
    layer_w = []
    for _ in range(n_layers):
        layer_w.append(refs[pos:pos + 4])
        pos += 4
    fcw_ref, fcb_ref = refs[pos], refs[pos + 1]
    out_ref, h_ref = refs[pos + 2], refs[pos + 3]
    gi0_scr, hseq_scr = refs[pos + 4], refs[pos + 5]
    h_scr = refs[pos + 6: pos + 6 + n_layers]

    CH, BB, I = x_ref.shape
    H = h_scr[0].shape[-1]
    OP = out_ref.shape[-1]
    c = pl.program_id(1)                      # time-chunk axis (sequential)

    @pl.when(c == 0)                          # new batch block -> h = 0
    def _init():
        for hs in h_scr:
            hs[...] = jnp.zeros_like(hs)

    # ---- hoisted layer-0 input projection: one big matmul per gate per chunk
    wih0, _, bih0, _ = layer_w[0]
    x2d = x_ref[...].reshape(CH * BB, I).astype(MATMUL_DTYPE)
    for g in range(3):
        gi = (jnp.dot(x2d, wih0[g], preferred_element_type=jnp.float32)
              + bih0[g])
        gi0_scr[g] = gi.reshape(CH, BB, H)

    def cell(h_prev, gi, whh, bhh):
        hb = h_prev.astype(MATMUL_DTYPE)
        gh = [jnp.dot(hb, whh[g], preferred_element_type=jnp.float32) + bhh[g]
              for g in range(3)]
        r = jax.nn.sigmoid(gi[0] + gh[0])
        z = jax.nn.sigmoid(gi[1] + gh[1])
        n = jnp.tanh(gi[2] + r * gh[2])
        return (1.0 - z) * n + z * h_prev

    def step(t, hs):
        hs = list(hs)
        # layer 0: input projection already precomputed (gate-major scratch)
        _, whh0, _, bhh0 = layer_w[0]
        gi = [gi0_scr[g, t] for g in range(3)]
        hs[0] = cell(hs[0], gi, whh0, bhh0)
        # layers >= 1: input projection from the fresh hidden of layer below
        for l in range(1, n_layers):
            wih, whh, bih, bhh = layer_w[l]
            xb = hs[l - 1].astype(MATMUL_DTYPE)
            gi = [jnp.dot(xb, wih[g], preferred_element_type=jnp.float32)
                  + bih[g] for g in range(3)]
            hs[l] = cell(hs[l], gi, whh, bhh)
        hseq_scr[t] = hs[-1]
        return tuple(hs)

    h0 = tuple(hs[...] for hs in h_scr)
    h_fin = jax.lax.fori_loop(0, CH, step, h0, unroll=unroll)
    for l in range(n_layers):
        h_scr[l][...] = h_fin[l]              # carry across time chunks
        h_ref[l] = h_fin[l]                   # resident output block

    # ---- fused ReLU + Linear over the whole chunk (lane-dense padded output)
    act = jnp.maximum(hseq_scr[...], 0.0).reshape(CH * BB, H).astype(MATMUL_DTYPE)
    y = (jnp.dot(act, fcw_ref[...], preferred_element_type=jnp.float32)
         + fcb_ref[...])
    out_ref[...] = y.reshape(CH, BB, OP)


def _pick_block(n, cap, step=1):
    """Largest multiple of `step` that divides n and is <= cap."""
    best = step
    for d in range(step, min(n, cap) + 1, step):
        if n % d == 0:
            best = d
    return best


# ----------------------------- model wrapper --------------------------------
@jax.jit
def gru_model_forward(x, params):
    """x: (B, S, input) -> (out (B, S, output), h (n_layers, B, hidden))."""
    x = x.astype(jnp.float32)
    B, S, I = x.shape
    layers = params["layers"]
    n_layers = len(layers)
    H = layers[0]["whh"].shape[-1]
    O = params["fc_b"].shape[0]

    # Pad batch to full sublane groups and FC output to full 128 lanes.
    B_pad = ((B + 7) // 8) * 8
    OP = ((O + 127) // 128) * 128

    x_sbi = jnp.transpose(x, (1, 0, 2))                       # (S, B, I)
    if B_pad != B:
        x_sbi = jnp.pad(x_sbi, ((0, 0), (0, B_pad - B), (0, 0)))

    # Block sizes: conservative caps so chunk scratch (3*CH*BB*H f32) + blocks
    # stay well inside v7x's 64 MiB VMEM at realistic sizes too.
    BB = _pick_block(B_pad, cap=64, step=8)                   # batch block
    CH = _pick_block(S, cap=64, step=1)                       # time chunk
    nb, nc = B_pad // BB, S // CH
    unroll = CH <= 16

    fcw_p = jnp.pad(params["fc_w"], ((0, 0), (0, OP - O)))    # (H, OP) bf16
    fcb_p = jnp.pad(params["fc_b"].astype(jnp.float32),
                    (0, OP - O)).reshape(1, OP)               # (1, OP) f32

    inputs = [x_sbi]
    in_specs = [pl.BlockSpec((CH, BB, I), lambda b, c: (c, b, 0))]
    for lp in layers:
        for name in ("wih", "whh", "bih", "bhh"):
            w = lp[name]
            inputs.append(w)
            in_specs.append(pl.BlockSpec(w.shape, lambda b, c: (0, 0, 0)))
    inputs += [fcw_p, fcb_p]
    in_specs += [pl.BlockSpec(fcw_p.shape, lambda b, c: (0, 0)),
                 pl.BlockSpec(fcb_p.shape, lambda b, c: (0, 0))]

    out_shapes = (jax.ShapeDtypeStruct((S, B_pad, OP), jnp.float32),
                  jax.ShapeDtypeStruct((n_layers, B_pad, H), jnp.float32))
    out_specs = [pl.BlockSpec((CH, BB, OP), lambda b, c: (c, b, 0)),
                 pl.BlockSpec((n_layers, BB, H), lambda b, c: (0, b, 0))]

    scratch = [pltpu.VMEM((3, CH, BB, H), jnp.float32),   # hoisted layer-0 gi
               pltpu.VMEM((CH, BB, H), jnp.float32)]      # last-layer h sequence
    scratch += [pltpu.VMEM((BB, H), jnp.float32) for _ in range(n_layers)]

    out_pad, h_pad = pl.pallas_call(
        functools.partial(_fused_gru_fc_kernel, n_layers, unroll),
        out_shape=out_shapes,
        grid_spec=pltpu.PrefetchScalarGridSpec(
            num_scalar_prefetch=0,
            grid=(nb, nc),                       # (batch-parallel, time-serial)
            in_specs=in_specs,
            out_specs=out_specs,
            scratch_shapes=scratch),
        compiler_params=pltpu.CompilerParams(
            dimension_semantics=("parallel", "arbitrary")),
    )(*inputs)

    out = jnp.transpose(out_pad, (1, 0, 2))[:B, :, :O]        # (B, S, O)
    h = h_pad[:, :B, :]                                       # (n_layers, B, H)
    return out, h


# ----------------------------- params / reference ---------------------------
def init_params(key, input_size, output_size, hidden_dim, n_layers):
    """PyTorch-equivalent params in gate-major, transposed layout.

    wih[g] == weight_ih[g*H:(g+1)*H, :].T with gate order [r, z, n]; matmul
    weights stored in bf16, biases in f32.
    """
    params = {"layers": []}
    std = 1.0 / float(np.sqrt(hidden_dim))
    for layer in range(n_layers):
        in_dim = input_size if layer == 0 else hidden_dim
        key, k1, k2, k3, k4 = jax.random.split(key, 5)
        params["layers"].append({
            "wih": jax.random.uniform(k1, (3, in_dim, hidden_dim), jnp.float32,
                                      -std, std).astype(MATMUL_DTYPE),
            "whh": jax.random.uniform(k2, (3, hidden_dim, hidden_dim), jnp.float32,
                                      -std, std).astype(MATMUL_DTYPE),
            "bih": jax.random.uniform(k3, (3, 1, hidden_dim), jnp.float32, -std, std),
            "bhh": jax.random.uniform(k4, (3, 1, hidden_dim), jnp.float32, -std, std),
        })
    key, k5, k6 = jax.random.split(key, 3)
    params["fc_w"] = jax.random.uniform(k5, (hidden_dim, output_size), jnp.float32,
                                        -std, std).astype(MATMUL_DTYPE)
    params["fc_b"] = jax.random.uniform(k6, (output_size,), jnp.float32, -std, std)
    return params


def gru_model_reference(x, params):
    """Pure-JAX (non-Pallas) reference with identical math, for self-check."""
    x = x.astype(jnp.float32)
    B, S, I = x.shape
    H = params["layers"][0]["whh"].shape[-1]
    O = params["fc_b"].shape[0]
    layer_in = jnp.transpose(x, (1, 0, 2))                    # (S, B, I)
    h_final = []
    for lp in params["layers"]:
        h = jnp.zeros((B, H), jnp.float32)
        outs = []
        for t in range(S):
            xb = layer_in[t].astype(MATMUL_DTYPE)
            hb = h.astype(MATMUL_DTYPE)
            gi = [jnp.dot(xb, lp["wih"][g], preferred_element_type=jnp.float32)
                  + lp["bih"][g] for g in range(3)]
            gh = [jnp.dot(hb, lp["whh"][g], preferred_element_type=jnp.float32)
                  + lp["bhh"][g] for g in range(3)]
            r = jax.nn.sigmoid(gi[0] + gh[0])
            z = jax.nn.sigmoid(gi[1] + gh[1])
            n = jnp.tanh(gi[2] + r * gh[2])
            h = (1.0 - z) * n + z * h
            outs.append(h)
        layer_in = jnp.stack(outs, axis=0)                    # (S, B, H)
        h_final.append(h)
    h_all = jnp.stack(h_final, axis=0)                        # (n_layers, B, H)
    act = jnp.maximum(layer_in, 0.0).astype(MATMUL_DTYPE).reshape(S * B, H)
    y = (jnp.dot(act, params["fc_w"], preferred_element_type=jnp.float32)
         + params["fc_b"].astype(jnp.float32)).reshape(S, B, O)
    return jnp.transpose(y, (1, 0, 2)), h_all


# ----------------------------- demo ------------------------------------------
if __name__ == "__main__":
    input_size, output_size, hidden_dim, n_layers = 16, 8, 32, 2
    batch, seq = 2, 8

    key = jax.random.PRNGKey(0)
    key, pkey, xkey = jax.random.split(key, 3)
    params = init_params(pkey, input_size, output_size, hidden_dim, n_layers)
    x = jax.random.normal(xkey, (batch, seq, input_size), jnp.float32)

    out, h = gru_model_forward(x, params)
    jax.block_until_ready((out, h))

    assert out.shape == (batch, seq, output_size)
    assert h.shape == (n_layers, batch, hidden_dim)

    ref_out, ref_h = gru_model_reference(x, params)
    np.testing.assert_allclose(np.asarray(out), np.asarray(ref_out),
                               rtol=2e-3, atol=2e-3)
    np.testing.assert_allclose(np.asarray(h), np.asarray(ref_h),
                               rtol=2e-3, atol=2e-3)
    print("KERNEL_OK")
</pallas_src>

<mosaic_0001>
module attributes {stable_mosaic.version = 11 : i64} {
  func.func @_fused_gru_fc_kernel(%arg0: i32, %arg1: i32, %arg2: memref<8x8x16xf32, #tpu.memory_space<vmem>>, %arg3: memref<3x16x32xbf16, #tpu.memory_space<vmem>>, %arg4: memref<3x32x32xbf16, #tpu.memory_space<vmem>>, %arg5: memref<3x1x32xf32, #tpu.memory_space<vmem>>, %arg6: memref<3x1x32xf32, #tpu.memory_space<vmem>>, %arg7: memref<3x32x32xbf16, #tpu.memory_space<vmem>>, %arg8: memref<3x32x32xbf16, #tpu.memory_space<vmem>>, %arg9: memref<3x1x32xf32, #tpu.memory_space<vmem>>, %arg10: memref<3x1x32xf32, #tpu.memory_space<vmem>>, %arg11: memref<32x128xbf16, #tpu.memory_space<vmem>>, %arg12: memref<1x128xf32, #tpu.memory_space<vmem>>, %arg13: memref<8x8x128xf32, #tpu.memory_space<vmem>>, %arg14: memref<2x8x32xf32, #tpu.memory_space<vmem>>, %arg15: memref<3x8x8x32xf32, #tpu.memory_space<vmem>>, %arg16: memref<8x8x32xf32, #tpu.memory_space<vmem>>, %arg17: memref<8x32xf32, #tpu.memory_space<vmem>>, %arg18: memref<8x32xf32, #tpu.memory_space<vmem>>) attributes {dimension_semantics = [#tpu.dimension_semantics<parallel>, #tpu.dimension_semantics<arbitrary>], iteration_bounds = array<i64: 1, 1>, scalar_prefetch = 0 : i64, scratch_operands = 4 : i64, tpu.core_type = #tpu.core_type<tc>, window_params = [{transform_indices = @transform_0, window_bounds = array<i64: 8, 8, 16>}, {pipeline_mode = #tpu.pipeline_mode<synchronous>, transform_indices = @transform_1, window_bounds = array<i64: 3, 16, 32>}, {pipeline_mode = #tpu.pipeline_mode<synchronous>, transform_indices = @transform_2, window_bounds = array<i64: 3, 32, 32>}, {pipeline_mode = #tpu.pipeline_mode<synchronous>, transform_indices = @transform_3, window_bounds = array<i64: 3, 1, 32>}, {pipeline_mode = #tpu.pipeline_mode<synchronous>, transform_indices = @transform_4, window_bounds = array<i64: 3, 1, 32>}, {pipeline_mode = #tpu.pipeline_mode<synchronous>, transform_indices = @transform_5, window_bounds = array<i64: 3, 32, 32>}, {pipeline_mode = #tpu.pipeline_mode<synchronous>, transform_indices = @transform_6, window_bounds = array<i64: 3, 32, 32>}, {pipeline_mode = #tpu.pipeline_mode<synchronous>, transform_indices = @transform_7, window_bounds = array<i64: 3, 1, 32>}, {pipeline_mode = #tpu.pipeline_mode<synchronous>, transform_indices = @transform_8, window_bounds = array<i64: 3, 1, 32>}, {pipeline_mode = #tpu.pipeline_mode<synchronous>, transform_indices = @transform_9, window_bounds = array<i64: 32, 128>}, {pipeline_mode = #tpu.pipeline_mode<synchronous>, transform_indices = @transform_10, window_bounds = array<i64: 1, 128>}, {transform_indices = @transform_11, window_bounds = array<i64: 8, 8, 128>}, {transform_indices = @transform_12, window_bounds = array<i64: 2, 8, 32>}]} {
    %c0_i32 = arith.constant 0 : i32
    %0 = arith.cmpi eq, %arg1, %c0_i32 : i32
    %1 = arith.extui %0 : i1 to i32
    %c0_i32_0 = arith.constant 0 : i32
    %2 = arith.cmpi ne, %1, %c0_i32_0 : i32
    scf.if %2 {
      %cst_700 = arith.constant 0.000000e+00 : f32
      %1013 = vector.broadcast %cst_700 : f32 to vector<8x32xf32>
      %c0_701 = arith.constant 0 : index
      %c0_702 = arith.constant 0 : index
      %1014 = vector.load %arg17[%c0_701, %c0_702] : memref<8x32xf32, #tpu.memory_space<vmem>>, vector<8x32xf32>
      tpu.vector_store %arg17[%c0_701, %c0_702], %1013 {strides = array<i32>} : memref<8x32xf32, #tpu.memory_space<vmem>>, vector<8x32xf32>,
      %cst_703 = arith.constant 0.000000e+00 : f32
      %1015 = vector.broadcast %cst_703 : f32 to vector<8x32xf32>
      %c0_704 = arith.constant 0 : index
      %c0_705 = arith.constant 0 : index
      %1016 = vector.load %arg18[%c0_704, %c0_705] : memref<8x32xf32, #tpu.memory_space<vmem>>, vector<8x32xf32>
      tpu.vector_store %arg18[%c0_704, %c0_705], %1015 {strides = array<i32>} : memref<8x32xf32, #tpu.memory_space<vmem>>, vector<8x32xf32>,
    } else {
    }
    %c0 = arith.constant 0 : index
    %c0_1 = arith.constant 0 : index
    %c0_2 = arith.constant 0 : index
    %3 = vector.load %arg2[%c0, %c0_1, %c0_2] : memref<8x8x16xf32, #tpu.memory_space<vmem>>, vector<8x8x16xf32>
    %4 = vector.shape_cast %3 : vector<8x8x16xf32> to vector<64x16xf32>
    %5 = arith.truncf %4 : vector<64x16xf32> to vector<64x16xbf16>
    %c0_3 = arith.constant 0 : index
    %c0_4 = arith.constant 0 : index
    %c0_5 = arith.constant 0 : index
    %6 = vector.load %arg3[%c0_3, %c0_4, %c0_5] : memref<3x16x32xbf16, #tpu.memory_space<vmem>>, vector<1x16x32xbf16>
    %7 = vector.shape_cast %6 : vector<1x16x32xbf16> to vector<16x32xbf16>
    %cst = arith.constant dense<0.000000e+00> : vector<64x32xf32>
    %8 = tpu.matmul %5, %7, %cst {dimension_numbers = #tpu.dot_dimension_numbers<[1], [0], [0], [1], [0, 0, 1, 1], [], []>} : vector<64x16xbf16>, vector<16x32xbf16>, vector<64x32xf32> -> vector<64x32xf32>
    %c0_6 = arith.constant 0 : index
    %c0_7 = arith.constant 0 : index
    %c0_8 = arith.constant 0 : index
    %9 = vector.load %arg5[%c0_6, %c0_7, %c0_8] : memref<3x1x32xf32, #tpu.memory_space<vmem>>, vector<1x1x32xf32>
    %10 = vector.shape_cast %9 : vector<1x1x32xf32> to vector<1x32xf32>
    %11 = vector.broadcast %10 : vector<1x32xf32> to vector<64x32xf32>
    %12 = arith.addf %8, %11 : vector<64x32xf32>
    %13 = vector.shape_cast %12 : vector<64x32xf32> to vector<8x8x32xf32>
    %c0_9 = arith.constant 0 : index
    %c0_10 = arith.constant 0 : index
    %c0_11 = arith.constant 0 : index
    %c0_12 = arith.constant 0 : index
    %14 = vector.load %arg15[%c0_9, %c0_10, %c0_11, %c0_12] : memref<3x8x8x32xf32, #tpu.memory_space<vmem>>, vector<1x8x8x32xf32>
    %15 = vector.shape_cast %14 : vector<1x8x8x32xf32> to vector<8x8x32xf32>
    %16 = vector.shape_cast %13 : vector<8x8x32xf32> to vector<1x8x8x32xf32>
    tpu.vector_store %arg15[%c0_9, %c0_10, %c0_11, %c0_12], %16 {strides = array<i32>} : memref<3x8x8x32xf32, #tpu.memory_space<vmem>>, vector<1x8x8x32xf32>,
    %c1 = arith.constant 1 : index
    %c0_13 = arith.constant 0 : index
    %c0_14 = arith.constant 0 : index
    %17 = vector.load %arg3[%c1, %c0_13, %c0_14] : memref<3x16x32xbf16, #tpu.memory_space<vmem>>, vector<1x16x32xbf16>
    %18 = vector.shape_cast %17 : vector<1x16x32xbf16> to vector<16x32xbf16>
    %cst_15 = arith.constant dense<0.000000e+00> : vector<64x32xf32>
    %19 = tpu.matmul %5, %18, %cst_15 {dimension_numbers = #tpu.dot_dimension_numbers<[1], [0], [0], [1], [0, 0, 1, 1], [], []>} : vector<64x16xbf16>, vector<16x32xbf16>, vector<64x32xf32> -> vector<64x32xf32>
    %c1_16 = arith.constant 1 : index
    %c0_17 = arith.constant 0 : index
    %c0_18 = arith.constant 0 : index
    %20 = vector.load %arg5[%c1_16, %c0_17, %c0_18] : memref<3x1x32xf32, #tpu.memory_space<vmem>>, vector<1x1x32xf32>
    %21 = vector.shape_cast %20 : vector<1x1x32xf32> to vector<1x32xf32>
    %22 = vector.broadcast %21 : vector<1x32xf32> to vector<64x32xf32>
    %23 = arith.addf %19, %22 : vector<64x32xf32>
    %24 = vector.shape_cast %23 : vector<64x32xf32> to vector<8x8x32xf32>
    %c1_19 = arith.constant 1 : index
    %c0_20 = arith.constant 0 : index
    %c0_21 = arith.constant 0 : index
    %c0_22 = arith.constant 0 : index
    %25 = vector.load %arg15[%c1_19, %c0_20, %c0_21, %c0_22] : memref<3x8x8x32xf32, #tpu.memory_space<vmem>>, vector<1x8x8x32xf32>
    %26 = vector.shape_cast %25 : vector<1x8x8x32xf32> to vector<8x8x32xf32>
    %27 = vector.shape_cast %24 : vector<8x8x32xf32> to vector<1x8x8x32xf32>
    tpu.vector_store %arg15[%c1_19, %c0_20, %c0_21, %c0_22], %27 {strides = array<i32>} : memref<3x8x8x32xf32, #tpu.memory_space<vmem>>, vector<1x8x8x32xf32>,
    %c2 = arith.constant 2 : index
    %c0_23 = arith.constant 0 : index
    %c0_24 = arith.constant 0 : index
    %28 = vector.load %arg3[%c2, %c0_23, %c0_24] : memref<3x16x32xbf16, #tpu.memory_space<vmem>>, vector<1x16x32xbf16>
    %29 = vector.shape_cast %28 : vector<1x16x32xbf16> to vector<16x32xbf16>
    %cst_25 = arith.constant dense<0.000000e+00> : vector<64x32xf32>
    %30 = tpu.matmul %5, %29, %cst_25 {dimension_numbers = #tpu.dot_dimension_numbers<[1], [0], [0], [1], [0, 0, 1, 1], [], []>} : vector<64x16xbf16>, vector<16x32xbf16>, vector<64x32xf32> -> vector<64x32xf32>
    %c2_26 = arith.constant 2 : index
    %c0_27 = arith.constant 0 : index
    %c0_28 = arith.constant 0 : index
    %31 = vector.load %arg5[%c2_26, %c0_27, %c0_28] : memref<3x1x32xf32, #tpu.memory_space<vmem>>, vector<1x1x32xf32>
    %32 = vector.shape_cast %31 : vector<1x1x32xf32> to vector<1x32xf32>
    %33 = vector.broadcast %32 : vector<1x32xf32> to vector<64x32xf32>
    %34 = arith.addf %30, %33 : vector<64x32xf32>
    %35 = vector.shape_cast %34 : vector<64x32xf32> to vector<8x8x32xf32>
    %c2_29 = arith.constant 2 : index
    %c0_30 = arith.constant 0 : index
    %c0_31 = arith.constant 0 : index
    %c0_32 = arith.constant 0 : index
    %36 = vector.load %arg15[%c2_29, %c0_30, %c0_31, %c0_32] : memref<3x8x8x32xf32, #tpu.memory_space<vmem>>, vector<1x8x8x32xf32>
    %37 = vector.shape_cast %36 : vector<1x8x8x32xf32> to vector<8x8x32xf32>
    %38 = vector.shape_cast %35 : vector<8x8x32xf32> to vector<1x8x8x32xf32>
    tpu.vector_store %arg15[%c2_29, %c0_30, %c0_31, %c0_32], %38 {strides = array<i32>} : memref<3x8x8x32xf32, #tpu.memory_space<vmem>>, vector<1x8x8x32xf32>,
    %c0_33 = arith.constant 0 : index
    %c0_34 = arith.constant 0 : index
    %39 = vector.load %arg17[%c0_33, %c0_34] : memref<8x32xf32, #tpu.memory_space<vmem>>, vector<8x32xf32>
    %c0_35 = arith.constant 0 : index
    %c0_36 = arith.constant 0 : index
    %40 = vector.load %arg18[%c0_35, %c0_36] : memref<8x32xf32, #tpu.memory_space<vmem>>, vector<8x32xf32>
    %c0_i32_37 = arith.constant 0 : i32
    %c0_38 = arith.constant 0 : index
    %41 = arith.index_cast %c0_i32_37 : i32 to index
    %c0_39 = arith.constant 0 : index
    %c0_40 = arith.constant 0 : index
    %42 = vector.load %arg15[%c0_38, %41, %c0_39, %c0_40] : memref<3x8x8x32xf32, #tpu.memory_space<vmem>>, vector<1x1x8x32xf32>
    %43 = vector.shape_cast %42 : vector<1x1x8x32xf32> to vector<8x32xf32>
    %c1_41 = arith.constant 1 : index
    %44 = arith.index_cast %c0_i32_37 : i32 to index
    %c0_42 = arith.constant 0 : index
    %c0_43 = arith.constant 0 : index
    %45 = vector.load %arg15[%c1_41, %44, %c0_42, %c0_43] : memref<3x8x8x32xf32, #tpu.memory_space<vmem>>, vector<1x1x8x32xf32>
    %46 = vector.shape_cast %45 : vector<1x1x8x32xf32> to vector<8x32xf32>
    %c2_44 = arith.constant 2 : index
    %47 = arith.index_cast %c0_i32_37 : i32 to index
    %c0_45 = arith.constant 0 : index
    %c0_46 = arith.constant 0 : index
    %48 = vector.load %arg15[%c2_44, %47, %c0_45, %c0_46] : memref<3x8x8x32xf32, #tpu.memory_space<vmem>>, vector<1x1x8x32xf32>
    %49 = vector.shape_cast %48 : vector<1x1x8x32xf32> to vector<8x32xf32>
    %50 = arith.truncf %39 : vector<8x32xf32> to vector<8x32xbf16>
    %c0_47 = arith.constant 0 : index
    %c0_48 = arith.constant 0 : index
    %c0_49 = arith.constant 0 : index
    %51 = vector.load %arg4[%c0_47, %c0_48, %c0_49] : memref<3x32x32xbf16, #tpu.memory_space<vmem>>, vector<1x32x32xbf16>
    %52 = vector.shape_cast %51 : vector<1x32x32xbf16> to vector<32x32xbf16>
    %cst_50 = arith.constant dense<0.000000e+00> : vector<8x32xf32>
    %53 = tpu.matmul %50, %52, %cst_50 {dimension_numbers = #tpu.dot_dimension_numbers<[1], [0], [0], [1], [0, 0, 1, 1], [], []>} : vector<8x32xbf16>, vector<32x32xbf16>, vector<8x32xf32> -> vector<8x32xf32>
    %c0_51 = arith.constant 0 : index
    %c0_52 = arith.constant 0 : index
    %c0_53 = arith.constant 0 : index
    %54 = vector.load %arg6[%c0_51, %c0_52, %c0_53] : memref<3x1x32xf32, #tpu.memory_space<vmem>>, vector<1x1x32xf32>
    %55 = vector.shape_cast %54 : vector<1x1x32xf32> to vector<1x32xf32>
    %56 = vector.broadcast %55 : vector<1x32xf32> to vector<8x32xf32>
    %57 = arith.addf %53, %56 : vector<8x32xf32>
    %c1_54 = arith.constant 1 : index
    %c0_55 = arith.constant 0 : index
    %c0_56 = arith.constant 0 : index
    %58 = vector.load %arg4[%c1_54, %c0_55, %c0_56] : memref<3x32x32xbf16, #tpu.memory_space<vmem>>, vector<1x32x32xbf16>
    %59 = vector.shape_cast %58 : vector<1x32x32xbf16> to vector<32x32xbf16>
    %cst_57 = arith.constant dense<0.000000e+00> : vector<8x32xf32>
    %60 = tpu.matmul %50, %59, %cst_57 {dimension_numbers = #tpu.dot_dimension_numbers<[1], [0], [0], [1], [0, 0, 1, 1], [], []>} : vector<8x32xbf16>, vector<32x32xbf16>, vector<8x32xf32> -> vector<8x32xf32>
    %c1_58 = arith.constant 1 : index
    %c0_59 = arith.constant 0 : index
    %c0_60 = arith.constant 0 : index
    %61 = vector.load %arg6[%c1_58, %c0_59, %c0_60] : memref<3x1x32xf32, #tpu.memory_space<vmem>>, vector<1x1x32xf32>
    %62 = vector.shape_cast %61 : vector<1x1x32xf32> to vector<1x32xf32>
    %63 = vector.broadcast %62 : vector<1x32xf32> to vector<8x32xf32>
    %64 = arith.addf %60, %63 : vector<8x32xf32>
    %c2_61 = arith.constant 2 : index
    %c0_62 = arith.constant 0 : index
    %c0_63 = arith.constant 0 : index
    %65 = vector.load %arg4[%c2_61, %c0_62, %c0_63] : memref<3x32x32xbf16, #tpu.memory_space<vmem>>, vector<1x32x32xbf16>
    %66 = vector.shape_cast %65 : vector<1x32x32xbf16> to vector<32x32xbf16>
    %cst_64 = arith.constant dense<0.000000e+00> : vector<8x32xf32>
    %67 = tpu.matmul %50, %66, %cst_64 {dimension_numbers = #tpu.dot_dimension_numbers<[1], [0], [0], [1], [0, 0, 1, 1], [], []>} : vector<8x32xbf16>, vector<32x32xbf16>, vector<8x32xf32> -> vector<8x32xf32>
    %c2_65 = arith.constant 2 : index
    %c0_66 = arith.constant 0 : index
    %c0_67 = arith.constant 0 : index
    %68 = vector.load %arg6[%c2_65, %c0_66, %c0_67] : memref<3x1x32xf32, #tpu.memory_space<vmem>>, vector<1x1x32xf32>
    %69 = vector.shape_cast %68 : vector<1x1x32xf32> to vector<1x32xf32>
    %70 = vector.broadcast %69 : vector<1x32xf32> to vector<8x32xf32>
    %71 = arith.addf %67, %70 : vector<8x32xf32>
    %72 = arith.addf %43, %57 : vector<8x32xf32>
    %73 = arith.negf %72 : vector<8x32xf32>
    %74 = math.exp %73 : vector<8x32xf32>
    %cst_68 = arith.constant 1.000000e+00 : f32
    %75 = vector.broadcast %cst_68 : f32 to vector<8x32xf32>
    %76 = arith.addf %75, %74 : vector<8x32xf32>
    %77 = arith.divf %75, %76 : vector<8x32xf32>
    %78 = arith.addf %46, %64 : vector<8x32xf32>
    %79 = arith.negf %78 : vector<8x32xf32>
    %80 = math.exp %79 : vector<8x32xf32>
    %cst_69 = arith.constant 1.000000e+00 : f32
    %81 = vector.broadcast %cst_69 : f32 to vector<8x32xf32>
    %82 = arith.addf %81, %80 : vector<8x32xf32>
    %83 = arith.divf %81, %82 : vector<8x32xf32>
    %84 = arith.mulf %77, %71 : vector<8x32xf32>
    %85 = arith.addf %49, %84 : vector<8x32xf32>
    %86 = math.tanh %85 : vector<8x32xf32>
    %cst_70 = arith.constant 1.000000e+00 : f32
    %87 = vector.broadcast %cst_70 : f32 to vector<8x32xf32>
    %88 = arith.subf %87, %83 : vector<8x32xf32>
    %89 = arith.mulf %88, %86 : vector<8x32xf32>
    %90 = arith.mulf %83, %39 : vector<8x32xf32>
    %91 = arith.addf %89, %90 : vector<8x32xf32>
    %92 = arith.truncf %91 : vector<8x32xf32> to vector<8x32xbf16>
    %c0_71 = arith.constant 0 : index
    %c0_72 = arith.constant 0 : index
    %c0_73 = arith.constant 0 : index
    %93 = vector.load %arg7[%c0_71, %c0_72, %c0_73] : memref<3x32x32xbf16, #tpu.memory_space<vmem>>, vector<1x32x32xbf16>
    %94 = vector.shape_cast %93 : vector<1x32x32xbf16> to vector<32x32xbf16>
    %cst_74 = arith.constant dense<0.000000e+00> : vector<8x32xf32>
    %95 = tpu.matmul %92, %94, %cst_74 {dimension_numbers = #tpu.dot_dimension_numbers<[1], [0], [0], [1], [0, 0, 1, 1], [], []>} : vector<8x32xbf16>, vector<32x32xbf16>, vector<8x32xf32> -> vector<8x32xf32>
    %c0_75 = arith.constant 0 : index
    %c0_76 = arith.constant 0 : index
    %c0_77 = arith.constant 0 : index
    %96 = vector.load %arg9[%c0_75, %c0_76, %c0_77] : memref<3x1x32xf32, #tpu.memory_space<vmem>>, vector<1x1x32xf32>
    %97 = vector.shape_cast %96 : vector<1x1x32xf32> to vector<1x32xf32>
    %98 = vector.broadcast %97 : vector<1x32xf32> to vector<8x32xf32>
    %99 = arith.addf %95, %98 : vector<8x32xf32>
    %c1_78 = arith.constant 1 : index
    %c0_79 = arith.constant 0 : index
    %c0_80 = arith.constant 0 : index
    %100 = vector.load %arg7[%c1_78, %c0_79, %c0_80] : memref<3x32x32xbf16, #tpu.memory_space<vmem>>, vector<1x32x32xbf16>
    %101 = vector.shape_cast %100 : vector<1x32x32xbf16> to vector<32x32xbf16>
    %cst_81 = arith.constant dense<0.000000e+00> : vector<8x32xf32>
    %102 = tpu.matmul %92, %101, %cst_81 {dimension_numbers = #tpu.dot_dimension_numbers<[1], [0], [0], [1], [0, 0, 1, 1], [], []>} : vector<8x32xbf16>, vector<32x32xbf16>, vector<8x32xf32> -> vector<8x32xf32>
    %c1_82 = arith.constant 1 : index
    %c0_83 = arith.constant 0 : index
    %c0_84 = arith.constant 0 : index
    %103 = vector.load %arg9[%c1_82, %c0_83, %c0_84] : memref<3x1x32xf32, #tpu.memory_space<vmem>>, vector<1x1x32xf32>
    %104 = vector.shape_cast %103 : vector<1x1x32xf32> to vector<1x32xf32>
    %105 = vector.broadcast %104 : vector<1x32xf32> to vector<8x32xf32>
    %106 = arith.addf %102, %105 : vector<8x32xf32>
    %c2_85 = arith.constant 2 : index
    %c0_86 = arith.constant 0 : index
    %c0_87 = arith.constant 0 : index
    %107 = vector.load %arg7[%c2_85, %c0_86, %c0_87] : memref<3x32x32xbf16, #tpu.memory_space<vmem>>, vector<1x32x32xbf16>
    %108 = vector.shape_cast %107 : vector<1x32x32xbf16> to vector<32x32xbf16>
    %cst_88 = arith.constant dense<0.000000e+00> : vector<8x32xf32>
    %109 = tpu.matmul %92, %108, %cst_88 {dimension_numbers = #tpu.dot_dimension_numbers<[1], [0], [0], [1], [0, 0, 1, 1], [], []>} : vector<8x32xbf16>, vector<32x32xbf16>, vector<8x32xf32> -> vector<8x32xf32>
    %c2_89 = arith.constant 2 : index
    %c0_90 = arith.constant 0 : index
    %c0_91 = arith.constant 0 : index
    %110 = vector.load %arg9[%c2_89, %c0_90, %c0_91] : memref<3x1x32xf32, #tpu.memory_space<vmem>>, vector<1x1x32xf32>
    %111 = vector.shape_cast %110 : vector<1x1x32xf32> to vector<1x32xf32>
    %112 = vector.broadcast %111 : vector<1x32xf32> to vector<8x32xf32>
    %113 = arith.addf %109, %112 : vector<8x32xf32>
    %114 = arith.truncf %40 : vector<8x32xf32> to vector<8x32xbf16>
    %c0_92 = arith.constant 0 : index
    %c0_93 = arith.constant 0 : index
    %c0_94 = arith.constant 0 : index
    %115 = vector.load %arg8[%c0_92, %c0_93, %c0_94] : memref<3x32x32xbf16, #tpu.memory_space<vmem>>, vector<1x32x32xbf16>
    %116 = vector.shape_cast %115 : vector<1x32x32xbf16> to vector<32x32xbf16>
    %cst_95 = arith.constant dense<0.000000e+00> : vector<8x32xf32>
    %117 = tpu.matmul %114, %116, %cst_95 {dimension_numbers = #tpu.dot_dimension_numbers<[1], [0], [0], [1], [0, 0, 1, 1], [], []>} : vector<8x32xbf16>, vector<32x32xbf16>, vector<8x32xf32> -> vector<8x32xf32>
    %c0_96 = arith.constant 0 : index
    %c0_97 = arith.constant 0 : index
    %c0_98 = arith.constant 0 : index
    %118 = vector.load %arg10[%c0_96, %c0_97, %c0_98] : memref<3x1x32xf32, #tpu.memory_space<vmem>>, vector<1x1x32xf32>
    %119 = vector.shape_cast %118 : vector<1x1x32xf32> to vector<1x32xf32>
    %120 = vector.broadcast %119 : vector<1x32xf32> to vector<8x32xf32>
    %121 = arith.addf %117, %120 : vector<8x32xf32>
    %c1_99 = arith.constant 1 : index
    %c0_100 = arith.constant 0 : index
    %c0_101 = arith.constant 0 : index
    %122 = vector.load %arg8[%c1_99, %c0_100, %c0_101] : memref<3x32x32xbf16, #tpu.memory_space<vmem>>, vector<1x32x32xbf16>
    %123 = vector.shape_cast %122 : vector<1x32x32xbf16> to vector<32x32xbf16>
    %cst_102 = arith.constant dense<0.000000e+00> : vector<8x32xf32>
    %124 = tpu.matmul %114, %123, %cst_102 {dimension_numbers = #tpu.dot_dimension_numbers<[1], [0], [0], [1], [0, 0, 1, 1], [], []>} : vector<8x32xbf16>, vector<32x32xbf16>, vector<8x32xf32> -> vector<8x32xf32>
    %c1_103 = arith.constant 1 : index
    %c0_104 = arith.constant 0 : index
    %c0_105 = arith.constant 0 : index
    %125 = vector.load %arg10[%c1_103, %c0_104, %c0_105] : memref<3x1x32xf32, #tpu.memory_space<vmem>>, vector<1x1x32xf32>
    %126 = vector.shape_cast %125 : vector<1x1x32xf32> to vector<1x32xf32>
    %127 = vector.broadcast %126 : vector<1x32xf32> to vector<8x32xf32>
    %128 = arith.addf %124, %127 : vector<8x32xf32>
    %c2_106 = arith.constant 2 : index
    %c0_107 = arith.constant 0 : index
    %c0_108 = arith.constant 0 : index
    %129 = vector.load %arg8[%c2_106, %c0_107, %c0_108] : memref<3x32x32xbf16, #tpu.memory_space<vmem>>, vector<1x32x32xbf16>
    %130 = vector.shape_cast %129 : vector<1x32x32xbf16> to vector<32x32xbf16>
    %cst_109 = arith.constant dense<0.000000e+00> : vector<8x32xf32>
    %131 = tpu.matmul %114, %130, %cst_109 {dimension_numbers = #tpu.dot_dimension_numbers<[1], [0], [0], [1], [0, 0, 1, 1], [], []>} : vector<8x32xbf16>, vector<32x32xbf16>, vector<8x32xf32> -> vector<8x32xf32>
    %c2_110 = arith.constant 2 : index
    %c0_111 = arith.constant 0 : index
    %c0_112 = arith.constant 0 : index
    %132 = vector.load %arg10[%c2_110, %c0_111, %c0_112] : memref<3x1x32xf32, #tpu.memory_space<vmem>>, vector<1x1x32xf32>
    %133 = vector.shape_cast %132 : vector<1x1x32xf32> to vector<1x32xf32>
    %134 = vector.broadcast %133 : vector<1x32xf32> to vector<8x32xf32>
    %135 = arith.addf %131, %134 : vector<8x32xf32>
    %136 = arith.addf %99, %121 : vector<8x32xf32>
    %137 = arith.negf %136 : vector<8x32xf32>
    %138 = math.exp %137 : vector<8x32xf32>
    %cst_113 = arith.constant 1.000000e+00 : f32
    %139 = vector.broadcast %cst_113 : f32 to vector<8x32xf32>
    %140 = arith.addf %139, %138 : vector<8x32xf32>
    %141 = arith.divf %139, %140 : vector<8x32xf32>
    %142 = arith.addf %106, %128 : vector<8x32xf32>
    %143 = arith.negf %142 : vector<8x32xf32>
    %144 = math.exp %143 : vector<8x32xf32>
    %cst_114 = arith.constant 1.000000e+00 : f32
    %145 = vector.broadcast %cst_114 : f32 to vector<8x32xf32>
    %146 = arith.addf %145, %144 : vector<8x32xf32>
    %147 = arith.divf %145, %146 : vector<8x32xf32>
    %148 = arith.mulf %141, %135 : vector<8x32xf32>
    %149 = arith.addf %113, %148 : vector<8x32xf32>
    %150 = math.tanh %149 : vector<8x32xf32>
    %cst_115 = arith.constant 1.000000e+00 : f32
    %151 = vector.broadcast %cst_115 : f32 to vector<8x32xf32>
    %152 = arith.subf %151, %147 : vector<8x32xf32>
    %153 = arith.mulf %152, %150 : vector<8x32xf32>
    %154 = arith.mulf %147, %40 : vector<8x32xf32>
    %155 = arith.addf %153, %154 : vector<8x32xf32>
    %156 = arith.index_cast %c0_i32_37 : i32 to index
    %c0_116 = arith.constant 0 : index
    %c0_117 = arith.constant 0 : index
    %157 = vector.load %arg16[%156, %c0_116, %c0_117] : memref<8x8x32xf32, #tpu.memory_space<vmem>>, vector<1x8x32xf32>
    %158 = vector.shape_cast %157 : vector<1x8x32xf32> to vector<8x32xf32>
    %159 = vector.shape_cast %155 : vector<8x32xf32> to vector<1x8x32xf32>
    tpu.vector_store %arg16[%156, %c0_116, %c0_117], %159 {strides = array<i32>} : memref<8x8x32xf32, #tpu.memory_space<vmem>>, vector<1x8x32xf32>,
    %c1_i32 = arith.constant 1 : i32
    %c0_118 = arith.constant 0 : index
    %160 = arith.index_cast %c1_i32 : i32 to index
    %c0_119 = arith.constant 0 : index
    %c0_120 = arith.constant 0 : index
    %161 = vector.load %arg15[%c0_118, %160, %c0_119, %c0_120] : memref<3x8x8x32xf32, #tpu.memory_space<vmem>>, vector<1x1x8x32xf32>
    %162 = vector.shape_cast %161 : vector<1x1x8x32xf32> to vector<8x32xf32>
    %c1_121 = arith.constant 1 : index
    %163 = arith.index_cast %c1_i32 : i32 to index
    %c0_122 = arith.constant 0 : index
    %c0_123 = arith.constant 0 : index
    %164 = vector.load %arg15[%c1_121, %163, %c0_122, %c0_123] : memref<3x8x8x32xf32, #tpu.memory_space<vmem>>, vector<1x1x8x32xf32>
    %165 = vector.shape_cast %164 : vector<1x1x8x32xf32> to vector<8x32xf32>
    %c2_124 = arith.constant 2 : index
    %166 = arith.index_cast %c1_i32 : i32 to index
    %c0_125 = arith.constant 0 : index
    %c0_126 = arith.constant 0 : index
    %167 = vector.load %arg15[%c2_124, %166, %c0_125, %c0_126] : memref<3x8x8x32xf32, #tpu.memory_space<vmem>>, vector<1x1x8x32xf32>
    %168 = vector.shape_cast %167 : vector<1x1x8x32xf32> to vector<8x32xf32>
    %169 = arith.truncf %91 : vector<8x32xf32> to vector<8x32xbf16>
    %c0_127 = arith.constant 0 : index
    %c0_128 = arith.constant 0 : index
    %c0_129 = arith.constant 0 : index
    %170 = vector.load %arg4[%c0_127, %c0_128, %c0_129] : memref<3x32x32xbf16, #tpu.memory_space<vmem>>, vector<1x32x32xbf16>
    %171 = vector.shape_cast %170 : vector<1x32x32xbf16> to vector<32x32xbf16>
    %cst_130 = arith.constant dense<0.000000e+00> : vector<8x32xf32>
    %172 = tpu.matmul %169, %171, %cst_130 {dimension_numbers = #tpu.dot_dimension_numbers<[1], [0], [0], [1], [0, 0, 1, 1], [], []>} : vector<8x32xbf16>, vector<32x32xbf16>, vector<8x32xf32> -> vector<8x32xf32>
    %c0_131 = arith.constant 0 : index
    %c0_132 = arith.constant 0 : index
    %c0_133 = arith.constant 0 : index
    %173 = vector.load %arg6[%c0_131, %c0_132, %c0_133] : memref<3x1x32xf32, #tpu.memory_space<vmem>>, vector<1x1x32xf32>
    %174 = vector.shape_cast %173 : vector<1x1x32xf32> to vector<1x32xf32>
    %175 = vector.broadcast %174 : vector<1x32xf32> to vector<8x32xf32>
    %176 = arith.addf %172, %175 : vector<8x32xf32>
    %c1_134 = arith.constant 1 : index
    %c0_135 = arith.constant 0 : index
    %c0_136 = arith.constant 0 : index
    %177 = vector.load %arg4[%c1_134, %c0_135, %c0_136] : memref<3x32x32xbf16, #tpu.memory_space<vmem>>, vector<1x32x32xbf16>
    %178 = vector.shape_cast %177 : vector<1x32x32xbf16> to vector<32x32xbf16>
    %cst_137 = arith.constant dense<0.000000e+00> : vector<8x32xf32>
    %179 = tpu.matmul %169, %178, %cst_137 {dimension_numbers = #tpu.dot_dimension_numbers<[1], [0], [0], [1], [0, 0, 1, 1], [], []>} : vector<8x32xbf16>, vector<32x32xbf16>, vector<8x32xf32> -> vector<8x32xf32>
    %c1_138 = arith.constant 1 : index
    %c0_139 = arith.constant 0 : index
    %c0_140 = arith.constant 0 : index
    %180 = vector.load %arg6[%c1_138, %c0_139, %c0_140] : memref<3x1x32xf32, #tpu.memory_space<vmem>>, vector<1x1x32xf32>
    %181 = vector.shape_cast %180 : vector<1x1x32xf32> to vector<1x32xf32>
    %182 = vector.broadcast %181 : vector<1x32xf32> to vector<8x32xf32>
    %183 = arith.addf %179, %182 : vector<8x32xf32>
    %c2_141 = arith.constant 2 : index
    %c0_142 = arith.constant 0 : index
    %c0_143 = arith.constant 0 : index
    %184 = vector.load %arg4[%c2_141, %c0_142, %c0_143] : memref<3x32x32xbf16, #tpu.memory_space<vmem>>, vector<1x32x32xbf16>
    %185 = vector.shape_cast %184 : vector<1x32x32xbf16> to vector<32x32xbf16>
    %cst_144 = arith.constant dense<0.000000e+00> : vector<8x32xf32>
    %186 = tpu.matmul %169, %185, %cst_144 {dimension_numbers = #tpu.dot_dimension_numbers<[1], [0], [0], [1], [0, 0, 1, 1], [], []>} : vector<8x32xbf16>, vector<32x32xbf16>, vector<8x32xf32> -> vector<8x32xf32>
    %c2_145 = arith.constant 2 : index
    %c0_146 = arith.constant 0 : index
    %c0_147 = arith.constant 0 : index
    %187 = vector.load %arg6[%c2_145, %c0_146, %c0_147] : memref<3x1x32xf32, #tpu.memory_space<vmem>>, vector<1x1x32xf32>
    %188 = vector.shape_cast %187 : vector<1x1x32xf32> to vector<1x32xf32>
    %189 = vector.broadcast %188 : vector<1x32xf32> to vector<8x32xf32>
    %190 = arith.addf %186, %189 : vector<8x32xf32>
    %191 = arith.addf %162, %176 : vector<8x32xf32>
    %192 = arith.negf %191 : vector<8x32xf32>
    %193 = math.exp %192 : vector<8x32xf32>
    %cst_148 = arith.constant 1.000000e+00 : f32
    %194 = vector.broadcast %cst_148 : f32 to vector<8x32xf32>
    %195 = arith.addf %194, %193 : vector<8x32xf32>
    %196 = arith.divf %194, %195 : vector<8x32xf32>
    %197 = arith.addf %165, %183 : vector<8x32xf32>
    %198 = arith.negf %197 : vector<8x32xf32>
    %199 = math.exp %198 : vector<8x32xf32>
    %cst_149 = arith.constant 1.000000e+00 : f32
    %200 = vector.broadcast %cst_149 : f32 to vector<8x32xf32>
    %201 = arith.addf %200, %199 : vector<8x32xf32>
    %202 = arith.divf %200, %201 : vector<8x32xf32>
    %203 = arith.mulf %196, %190 : vector<8x32xf32>
    %204 = arith.addf %168, %203 : vector<8x32xf32>
    %205 = math.tanh %204 : vector<8x32xf32>
    %cst_150 = arith.constant 1.000000e+00 : f32
    %206 = vector.broadcast %cst_150 : f32 to vector<8x32xf32>
    %207 = arith.subf %206, %202 : vector<8x32xf32>
    %208 = arith.mulf %207, %205 : vector<8x32xf32>
    %209 = arith.mulf %202, %91 : vector<8x32xf32>
    %210 = arith.addf %208, %209 : vector<8x32xf32>
    %211 = arith.truncf %210 : vector<8x32xf32> to vector<8x32xbf16>
    %c0_151 = arith.constant 0 : index
    %c0_152 = arith.constant 0 : index
    %c0_153 = arith.constant 0 : index
    %212 = vector.load %arg7[%c0_151, %c0_152, %c0_153] : memref<3x32x32xbf16, #tpu.memory_space<vmem>>, vector<1x32x32xbf16>
    %213 = vector.shape_cast %212 : vector<1x32x32xbf16> to vector<32x32xbf16>
    %cst_154 = arith.constant dense<0.000000e+00> : vector<8x32xf32>
    %214 = tpu.matmul %211, %213, %cst_154 {dimension_numbers = #tpu.dot_dimension_numbers<[1], [0], [0], [1], [0, 0, 1, 1], [], []>} : vector<8x32xbf16>, vector<32x32xbf16>, vector<8x32xf32> -> vector<8x32xf32>
    %c0_155 = arith.constant 0 : index
    %c0_156 = arith.constant 0 : index
    %c0_157 = arith.constant 0 : index
    %215 = vector.load %arg9[%c0_155, %c0_156, %c0_157] : memref<3x1x32xf32, #tpu.memory_space<vmem>>, vector<1x1x32xf32>
    %216 = vector.shape_cast %215 : vector<1x1x32xf32> to vector<1x32xf32>
    %217 = vector.broadcast %216 : vector<1x32xf32> to vector<8x32xf32>
    %218 = arith.addf %214, %217 : vector<8x32xf32>
    %c1_158 = arith.constant 1 : index
    %c0_159 = arith.constant 0 : index
    %c0_160 = arith.constant 0 : index
    %219 = vector.load %arg7[%c1_158, %c0_159, %c0_160] : memref<3x32x32xbf16, #tpu.memory_space<vmem>>, vector<1x32x32xbf16>
    %220 = vector.shape_cast %219 : vector<1x32x32xbf16> to vector<32x32xbf16>
    %cst_161 = arith.constant dense<0.000000e+00> : vector<8x32xf32>
    %221 = tpu.matmul %211, %220, %cst_161 {dimension_numbers = #tpu.dot_dimension_numbers<[1], [0], [0], [1], [0, 0, 1, 1], [], []>} : vector<8x32xbf16>, vector<32x32xbf16>, vector<8x32xf32> -> vector<8x32xf32>
    %c1_162 = arith.constant 1 : index
    %c0_163 = arith.constant 0 : index
    %c0_164 = arith.constant 0 : index
    %222 = vector.load %arg9[%c1_162, %c0_163, %c0_164] : memref<3x1x32xf32, #tpu.memory_space<vmem>>, vector<1x1x32xf32>
    %223 = vector.shape_cast %222 : vector<1x1x32xf32> to vector<1x32xf32>
    %224 = vector.broadcast %223 : vector<1x32xf32> to vector<8x32xf32>
    %225 = arith.addf %221, %224 : vector<8x32xf32>
    %c2_165 = arith.constant 2 : index
    %c0_166 = arith.constant 0 : index
    %c0_167 = arith.constant 0 : index
    %226 = vector.load %arg7[%c2_165, %c0_166, %c0_167] : memref<3x32x32xbf16, #tpu.memory_space<vmem>>, vector<1x32x32xbf16>
    %227 = vector.shape_cast %226 : vector<1x32x32xbf16> to vector<32x32xbf16>
    %cst_168 = arith.constant dense<0.000000e+00> : vector<8x32xf32>
    %228 = tpu.matmul %211, %227, %cst_168 {dimension_numbers = #tpu.dot_dimension_numbers<[1], [0], [0], [1], [0, 0, 1, 1], [], []>} : vector<8x32xbf16>, vector<32x32xbf16>, vector<8x32xf32> -> vector<8x32xf32>
    %c2_169 = arith.constant 2 : index
    %c0_170 = arith.constant 0 : index
    %c0_171 = arith.constant 0 : index
    %229 = vector.load %arg9[%c2_169, %c0_170, %c0_171] : memref<3x1x32xf32, #tpu.memory_space<vmem>>, vector<1x1x32xf32>
    %230 = vector.shape_cast %229 : vector<1x1x32xf32> to vector<1x32xf32>
    %231 = vector.broadcast %230 : vector<1x32xf32> to vector<8x32xf32>
    %232 = arith.addf %228, %231 : vector<8x32xf32>
    %233 = arith.truncf %155 : vector<8x32xf32> to vector<8x32xbf16>
    %c0_172 = arith.constant 0 : index
    %c0_173 = arith.constant 0 : index
    %c0_174 = arith.constant 0 : index
    %234 = vector.load %arg8[%c0_172, %c0_173, %c0_174] : memref<3x32x32xbf16, #tpu.memory_space<vmem>>, vector<1x32x32xbf16>
    %235 = vector.shape_cast %234 : vector<1x32x32xbf16> to vector<32x32xbf16>
    %cst_175 = arith.constant dense<0.000000e+00> : vector<8x32xf32>
    %236 = tpu.matmul %233, %235, %cst_175 {dimension_numbers = #tpu.dot_dimension_numbers<[1], [0], [0], [1], [0, 0, 1, 1], [], []>} : vector<8x32xbf16>, vector<32x32xbf16>, vector<8x32xf32> -> vector<8x32xf32>
    %c0_176 = arith.constant 0 : index
    %c0_177 = arith.constant 0 : index
    %c0_178 = arith.constant 0 : index
    %237 = vector.load %arg10[%c0_176, %c0_177, %c0_178] : memref<3x1x32xf32, #tpu.memory_space<vmem>>, vector<1x1x32xf32>
    %238 = vector.shape_cast %237 : vector<1x1x32xf32> to vector<1x32xf32>
    %239 = vector.broadcast %238 : vector<1x32xf32> to vector<8x32xf32>
    %240 = arith.addf %236, %239 : vector<8x32xf32>
    %c1_179 = arith.constant 1 : index
    %c0_180 = arith.constant 0 : index
    %c0_181 = arith.constant 0 : index
    %241 = vector.load %arg8[%c1_179, %c0_180, %c0_181] : memref<3x32x32xbf16, #tpu.memory_space<vmem>>, vector<1x32x32xbf16>
    %242 = vector.shape_cast %241 : vector<1x32x32xbf16> to vector<32x32xbf16>
    %cst_182 = arith.constant dense<0.000000e+00> : vector<8x32xf32>
    %243 = tpu.matmul %233, %242, %cst_182 {dimension_numbers = #tpu.dot_dimension_numbers<[1], [0], [0], [1], [0, 0, 1, 1], [], []>} : vector<8x32xbf16>, vector<32x32xbf16>, vector<8x32xf32> -> vector<8x32xf32>
    %c1_183 = arith.constant 1 : index
    %c0_184 = arith.constant 0 : index
    %c0_185 = arith.constant 0 : index
    %244 = vector.load %arg10[%c1_183, %c0_184, %c0_185] : memref<3x1x32xf32, #tpu.memory_space<vmem>>, vector<1x1x32xf32>
    %245 = vector.shape_cast %244 : vector<1x1x32xf32> to vector<1x32xf32>
    %246 = vector.broadcast %245 : vector<1x32xf32> to vector<8x32xf32>
    %247 = arith.addf %243, %246 : vector<8x32xf32>
    %c2_186 = arith.constant 2 : index
    %c0_187 = arith.constant 0 : index
    %c0_188 = arith.constant 0 : index
    %248 = vector.load %arg8[%c2_186, %c0_187, %c0_188] : memref<3x32x32xbf16, #tpu.memory_space<vmem>>, vector<1x32x32xbf16>
    %249 = vector.shape_cast %248 : vector<1x32x32xbf16> to vector<32x32xbf16>
    %cst_189 = arith.constant dense<0.000000e+00> : vector<8x32xf32>
    %250 = tpu.matmul %233, %249, %cst_189 {dimension_numbers = #tpu.dot_dimension_numbers<[1], [0], [0], [1], [0, 0, 1, 1], [], []>} : vector<8x32xbf16>, vector<32x32xbf16>, vector<8x32xf32> -> vector<8x32xf32>
    %c2_190 = arith.constant 2 : index
    %c0_191 = arith.constant 0 : index
    %c0_192 = arith.constant 0 : index
    %251 = vector.load %arg10[%c2_190, %c0_191, %c0_192] : memref<3x1x32xf32, #tpu.memory_space<vmem>>, vector<1x1x32xf32>
    %252 = vector.shape_cast %251 : vector<1x1x32xf32> to vector<1x32xf32>
    %253 = vector.broadcast %252 : vector<1x32xf32> to vector<8x32xf32>
    %254 = arith.addf %250, %253 : vector<8x32xf32>
    %255 = arith.addf %218, %240 : vector<8x32xf32>
    %256 = arith.negf %255 : vector<8x32xf32>
    %257 = math.exp %256 : vector<8x32xf32>
    %cst_193 = arith.constant 1.000000e+00 : f32
    %258 = vector.broadcast %cst_193 : f32 to vector<8x32xf32>
    %259 = arith.addf %258, %257 : vector<8x32xf32>
    %260 = arith.divf %258, %259 : vector<8x32xf32>
    %261 = arith.addf %225, %247 : vector<8x32xf32>
    %262 = arith.negf %261 : vector<8x32xf32>
    %263 = math.exp %262 : vector<8x32xf32>
    %cst_194 = arith.constant 1.000000e+00 : f32
    %264 = vector.broadcast %cst_194 : f32 to vector<8x32xf32>
    %265 = arith.addf %264, %263 : vector<8x32xf32>
    %266 = arith.divf %264, %265 : vector<8x32xf32>
    %267 = arith.mulf %260, %254 : vector<8x32xf32>
    %268 = arith.addf %232, %267 : vector<8x32xf32>
    %269 = math.tanh %268 : vector<8x32xf32>
    %cst_195 = arith.constant 1.000000e+00 : f32
    %270 = vector.broadcast %cst_195 : f32 to vector<8x32xf32>
    %271 = arith.subf %270, %266 : vector<8x32xf32>
    %272 = arith.mulf %271, %269 : vector<8x32xf32>
    %273 = arith.mulf %266, %155 : vector<8x32xf32>
    %274 = arith.addf %272, %273 : vector<8x32xf32>
    %275 = arith.index_cast %c1_i32 : i32 to index
    %c0_196 = arith.constant 0 : index
    %c0_197 = arith.constant 0 : index
    %276 = vector.load %arg16[%275, %c0_196, %c0_197] : memref<8x8x32xf32, #tpu.memory_space<vmem>>, vector<1x8x32xf32>
    %277 = vector.shape_cast %276 : vector<1x8x32xf32> to vector<8x32xf32>
    %278 = vector.shape_cast %274 : vector<8x32xf32> to vector<1x8x32xf32>
    tpu.vector_store %arg16[%275, %c0_196, %c0_197], %278 {strides = array<i32>} : memref<8x8x32xf32, #tpu.memory_space<vmem>>, vector<1x8x32xf32>,
    %c2_i32 = arith.constant 2 : i32
    %c0_198 = arith.constant 0 : index
    %279 = arith.index_cast %c2_i32 : i32 to index
    %c0_199 = arith.constant 0 : index
    %c0_200 = arith.constant 0 : index
    %280 = vector.load %arg15[%c0_198, %279, %c0_199, %c0_200] : memref<3x8x8x32xf32, #tpu.memory_space<vmem>>, vector<1x1x8x32xf32>
    %281 = vector.shape_cast %280 : vector<1x1x8x32xf32> to vector<8x32xf32>
    %c1_201 = arith.constant 1 : index
    %282 = arith.index_cast %c2_i32 : i32 to index
    %c0_202 = arith.constant 0 : index
    %c0_203 = arith.constant 0 : index
    %283 = vector.load %arg15[%c1_201, %282, %c0_202, %c0_203] : memref<3x8x8x32xf32, #tpu.memory_space<vmem>>, vector<1x1x8x32xf32>
    %284 = vector.shape_cast %283 : vector<1x1x8x32xf32> to vector<8x32xf32>
    %c2_204 = arith.constant 2 : index
    %285 = arith.index_cast %c2_i32 : i32 to index
    %c0_205 = arith.constant 0 : index
    %c0_206 = arith.constant 0 : index
    %286 = vector.load %arg15[%c2_204, %285, %c0_205, %c0_206] : memref<3x8x8x32xf32, #tpu.memory_space<vmem>>, vector<1x1x8x32xf32>
    %287 = vector.shape_cast %286 : vector<1x1x8x32xf32> to vector<8x32xf32>
    %288 = arith.truncf %210 : vector<8x32xf32> to vector<8x32xbf16>
    %c0_207 = arith.constant 0 : index
    %c0_208 = arith.constant 0 : index
    %c0_209 = arith.constant 0 : index
    %289 = vector.load %arg4[%c0_207, %c0_208, %c0_209] : memref<3x32x32xbf16, #tpu.memory_space<vmem>>, vector<1x32x32xbf16>
    %290 = vector.shape_cast %289 : vector<1x32x32xbf16> to vector<32x32xbf16>
    %cst_210 = arith.constant dense<0.000000e+00> : vector<8x32xf32>
    %291 = tpu.matmul %288, %290, %cst_210 {dimension_numbers = #tpu.dot_dimension_numbers<[1], [0], [0], [1], [0, 0, 1, 1], [], []>} : vector<8x32xbf16>, vector<32x32xbf16>, vector<8x32xf32> -> vector<8x32xf32>
    %c0_211 = arith.constant 0 : index
    %c0_212 = arith.constant 0 : index
    %c0_213 = arith.constant 0 : index
    %292 = vector.load %arg6[%c0_211, %c0_212, %c0_213] : memref<3x1x32xf32, #tpu.memory_space<vmem>>, vector<1x1x32xf32>
    %293 = vector.shape_cast %292 : vector<1x1x32xf32> to vector<1x32xf32>
    %294 = vector.broadcast %293 : vector<1x32xf32> to vector<8x32xf32>
    %295 = arith.addf %291, %294 : vector<8x32xf32>
    %c1_214 = arith.constant 1 : index
    %c0_215 = arith.constant 0 : index
    %c0_216 = arith.constant 0 : index
    %296 = vector.load %arg4[%c1_214, %c0_215, %c0_216] : memref<3x32x32xbf16, #tpu.memory_space<vmem>>, vector<1x32x32xbf16>
    %297 = vector.shape_cast %296 : vector<1x32x32xbf16> to vector<32x32xbf16>
    %cst_217 = arith.constant dense<0.000000e+00> : vector<8x32xf32>
    %298 = tpu.matmul %288, %297, %cst_217 {dimension_numbers = #tpu.dot_dimension_numbers<[1], [0], [0], [1], [0, 0, 1, 1], [], []>} : vector<8x32xbf16>, vector<32x32xbf16>, vector<8x32xf32> -> vector<8x32xf32>
    %c1_218 = arith.constant 1 : index
    %c0_219 = arith.constant 0 : index
    %c0_220 = arith.constant 0 : index
    %299 = vector.load %arg6[%c1_218, %c0_219, %c0_220] : memref<3x1x32xf32, #tpu.memory_space<vmem>>, vector<1x1x32xf32>
    %300 = vector.shape_cast %299 : vector<1x1x32xf32> to vector<1x32xf32>
    %301 = vector.broadcast %300 : vector<1x32xf32> to vector<8x32xf32>
    %302 = arith.addf %298, %301 : vector<8x32xf32>
    %c2_221 = arith.constant 2 : index
    %c0_222 = arith.constant 0 : index
    %c0_223 = arith.constant 0 : index
    %303 = vector.load %arg4[%c2_221, %c0_222, %c0_223] : memref<3x32x32xbf16, #tpu.memory_space<vmem>>, vector<1x32x32xbf16>
    %304 = vector.shape_cast %303 : vector<1x32x32xbf16> to vector<32x32xbf16>
    %cst_224 = arith.constant dense<0.000000e+00> : vector<8x32xf32>
    %305 = tpu.matmul %288, %304, %cst_224 {dimension_numbers = #tpu.dot_dimension_numbers<[1], [0], [0], [1], [0, 0, 1, 1], [], []>} : vector<8x32xbf16>, vector<32x32xbf16>, vector<8x32xf32> -> vector<8x32xf32>
    %c2_225 = arith.constant 2 : index
    %c0_226 = arith.constant 0 : index
    %c0_227 = arith.constant 0 : index
    %306 = vector.load %arg6[%c2_225, %c0_226, %c0_227] : memref<3x1x32xf32, #tpu.memory_space<vmem>>, vector<1x1x32xf32>
    %307 = vector.shape_cast %306 : vector<1x1x32xf32> to vector<1x32xf32>
    %308 = vector.broadcast %307 : vector<1x32xf32> to vector<8x32xf32>
    %309 = arith.addf %305, %308 : vector<8x32xf32>
    %310 = arith.addf %281, %295 : vector<8x32xf32>
    %311 = arith.negf %310 : vector<8x32xf32>
    %312 = math.exp %311 : vector<8x32xf32>
    %cst_228 = arith.constant 1.000000e+00 : f32
    %313 = vector.broadcast %cst_228 : f32 to vector<8x32xf32>
    %314 = arith.addf %313, %312 : vector<8x32xf32>
    %315 = arith.divf %313, %314 : vector<8x32xf32>
    %316 = arith.addf %284, %302 : vector<8x32xf32>
    %317 = arith.negf %316 : vector<8x32xf32>
    %318 = math.exp %317 : vector<8x32xf32>
    %cst_229 = arith.constant 1.000000e+00 : f32
    %319 = vector.broadcast %cst_229 : f32 to vector<8x32xf32>
    %320 = arith.addf %319, %318 : vector<8x32xf32>
    %321 = arith.divf %319, %320 : vector<8x32xf32>
    %322 = arith.mulf %315, %309 : vector<8x32xf32>
    %323 = arith.addf %287, %322 : vector<8x32xf32>
    %324 = math.tanh %323 : vector<8x32xf32>
    %cst_230 = arith.constant 1.000000e+00 : f32
    %325 = vector.broadcast %cst_230 : f32 to vector<8x32xf32>
    %326 = arith.subf %325, %321 : vector<8x32xf32>
    %327 = arith.mulf %326, %324 : vector<8x32xf32>
    %328 = arith.mulf %321, %210 : vector<8x32xf32>
    %329 = arith.addf %327, %328 : vector<8x32xf32>
    %330 = arith.truncf %329 : vector<8x32xf32> to vector<8x32xbf16>
    %c0_231 = arith.constant 0 : index
    %c0_232 = arith.constant 0 : index
    %c0_233 = arith.constant 0 : index
    %331 = vector.load %arg7[%c0_231, %c0_232, %c0_233] : memref<3x32x32xbf16, #tpu.memory_space<vmem>>, vector<1x32x32xbf16>
    %332 = vector.shape_cast %331 : vector<1x32x32xbf16> to vector<32x32xbf16>
    %cst_234 = arith.constant dense<0.000000e+00> : vector<8x32xf32>
    %333 = tpu.matmul %330, %332, %cst_234 {dimension_numbers = #tpu.dot_dimension_numbers<[1], [0], [0], [1], [0, 0, 1, 1], [], []>} : vector<8x32xbf16>, vector<32x32xbf16>, vector<8x32xf32> -> vector<8x32xf32>
    %c0_235 = arith.constant 0 : index
    %c0_236 = arith.constant 0 : index
    %c0_237 = arith.constant 0 : index
    %334 = vector.load %arg9[%c0_235, %c0_236, %c0_237] : memref<3x1x32xf32, #tpu.memory_space<vmem>>, vector<1x1x32xf32>
    %335 = vector.shape_cast %334 : vector<1x1x32xf32> to vector<1x32xf32>
    %336 = vector.broadcast %335 : vector<1x32xf32> to vector<8x32xf32>
    %337 = arith.addf %333, %336 : vector<8x32xf32>
    %c1_238 = arith.constant 1 : index
    %c0_239 = arith.constant 0 : index
    %c0_240 = arith.constant 0 : index
    %338 = vector.load %arg7[%c1_238, %c0_239, %c0_240] : memref<3x32x32xbf16, #tpu.memory_space<vmem>>, vector<1x32x32xbf16>
    %339 = vector.shape_cast %338 : vector<1x32x32xbf16> to vector<32x32xbf16>
    %cst_241 = arith.constant dense<0.000000e+00> : vector<8x32xf32>
    %340 = tpu.matmul %330, %339, %cst_241 {dimension_numbers = #tpu.dot_dimension_numbers<[1], [0], [0], [1], [0, 0, 1, 1], [], []>} : vector<8x32xbf16>, vector<32x32xbf16>, vector<8x32xf32> -> vector<8x32xf32>
    %c1_242 = arith.constant 1 : index
    %c0_243 = arith.constant 0 : index
    %c0_244 = arith.constant 0 : index
    %341 = vector.load %arg9[%c1_242, %c0_243, %c0_244] : memref<3x1x32xf32, #tpu.memory_space<vmem>>, vector<1x1x32xf32>
    %342 = vector.shape_cast %341 : vector<1x1x32xf32> to vector<1x32xf32>
    %343 = vector.broadcast %342 : vector<1x32xf32> to vector<8x32xf32>
    %344 = arith.addf %340, %343 : vector<8x32xf32>
    %c2_245 = arith.constant 2 : index
    %c0_246 = arith.constant 0 : index
    %c0_247 = arith.constant 0 : index
    %345 = vector.load %arg7[%c2_245, %c0_246, %c0_247] : memref<3x32x32xbf16, #tpu.memory_space<vmem>>, vector<1x32x32xbf16>
    %346 = vector.shape_cast %345 : vector<1x32x32xbf16> to vector<32x32xbf16>
    %cst_248 = arith.constant dense<0.000000e+00> : vector<8x32xf32>
    %347 = tpu.matmul %330, %346, %cst_248 {dimension_numbers = #tpu.dot_dimension_numbers<[1], [0], [0], [1], [0, 0, 1, 1], [], []>} : vector<8x32xbf16>, vector<32x32xbf16>, vector<8x32xf32> -> vector<8x32xf32>
    %c2_249 = arith.constant 2 : index
    %c0_250 = arith.constant 0 : index
    %c0_251 = arith.constant 0 : index
    %348 = vector.load %arg9[%c2_249, %c0_250, %c0_251] : memref<3x1x32xf32, #tpu.memory_space<vmem>>, vector<1x1x32xf32>
    %349 = vector.shape_cast %348 : vector<1x1x32xf32> to vector<1x32xf32>
    %350 = vector.broadcast %349 : vector<1x32xf32> to vector<8x32xf32>
    %351 = arith.addf %347, %350 : vector<8x32xf32>
    %352 = arith.truncf %274 : vector<8x32xf32> to vector<8x32xbf16>
    %c0_252 = arith.constant 0 : index
    %c0_253 = arith.constant 0 : index
    %c0_254 = arith.constant 0 : index
    %353 = vector.load %arg8[%c0_252, %c0_253, %c0_254] : memref<3x32x32xbf16, #tpu.memory_space<vmem>>, vector<1x32x32xbf16>
    %354 = vector.shape_cast %353 : vector<1x32x32xbf16> to vector<32x32xbf16>
    %cst_255 = arith.constant dense<0.000000e+00> : vector<8x32xf32>
    %355 = tpu.matmul %352, %354, %cst_255 {dimension_numbers = #tpu.dot_dimension_numbers<[1], [0], [0], [1], [0, 0, 1, 1], [], []>} : vector<8x32xbf16>, vector<32x32xbf16>, vector<8x32xf32> -> vector<8x32xf32>
    %c0_256 = arith.constant 0 : index
    %c0_257 = arith.constant 0 : index
    %c0_258 = arith.constant 0 : index
    %356 = vector.load %arg10[%c0_256, %c0_257, %c0_258] : memref<3x1x32xf32, #tpu.memory_space<vmem>>, vector<1x1x32xf32>
    %357 = vector.shape_cast %356 : vector<1x1x32xf32> to vector<1x32xf32>
    %358 = vector.broadcast %357 : vector<1x32xf32> to vector<8x32xf32>
    %359 = arith.addf %355, %358 : vector<8x32xf32>
    %c1_259 = arith.constant 1 : index
    %c0_260 = arith.constant 0 : index
    %c0_261 = arith.constant 0 : index
    %360 = vector.load %arg8[%c1_259, %c0_260, %c0_261] : memref<3x32x32xbf16, #tpu.memory_space<vmem>>, vector<1x32x32xbf16>
    %361 = vector.shape_cast %360 : vector<1x32x32xbf16> to vector<32x32xbf16>
    %cst_262 = arith.constant dense<0.000000e+00> : vector<8x32xf32>
    %362 = tpu.matmul %352, %361, %cst_262 {dimension_numbers = #tpu.dot_dimension_numbers<[1], [0], [0], [1], [0, 0, 1, 1], [], []>} : vector<8x32xbf16>, vector<32x32xbf16>, vector<8x32xf32> -> vector<8x32xf32>
    %c1_263 = arith.constant 1 : index
    %c0_264 = arith.constant 0 : index
    %c0_265 = arith.constant 0 : index
    %363 = vector.load %arg10[%c1_263, %c0_264, %c0_265] : memref<3x1x32xf32, #tpu.memory_space<vmem>>, vector<1x1x32xf32>
    %364 = vector.shape_cast %363 : vector<1x1x32xf32> to vector<1x32xf32>
    %365 = vector.broadcast %364 : vector<1x32xf32> to vector<8x32xf32>
    %366 = arith.addf %362, %365 : vector<8x32xf32>
    %c2_266 = arith.constant 2 : index
    %c0_267 = arith.constant 0 : index
    %c0_268 = arith.constant 0 : index
    %367 = vector.load %arg8[%c2_266, %c0_267, %c0_268] : memref<3x32x32xbf16, #tpu.memory_space<vmem>>, vector<1x32x32xbf16>
    %368 = vector.shape_cast %367 : vector<1x32x32xbf16> to vector<32x32xbf16>
    %cst_269 = arith.constant dense<0.000000e+00> : vector<8x32xf32>
    %369 = tpu.matmul %352, %368, %cst_269 {dimension_numbers = #tpu.dot_dimension_numbers<[1], [0], [0], [1], [0, 0, 1, 1], [], []>} : vector<8x32xbf16>, vector<32x32xbf16>, vector<8x32xf32> -> vector<8x32xf32>
    %c2_270 = arith.constant 2 : index
    %c0_271 = arith.constant 0 : index
    %c0_272 = arith.constant 0 : index
    %370 = vector.load %arg10[%c2_270, %c0_271, %c0_272] : memref<3x1x32xf32, #tpu.memory_space<vmem>>, vector<1x1x32xf32>
    %371 = vector.shape_cast %370 : vector<1x1x32xf32> to vector<1x32xf32>
    %372 = vector.broadcast %371 : vector<1x32xf32> to vector<8x32xf32>
    %373 = arith.addf %369, %372 : vector<8x32xf32>
    %374 = arith.addf %337, %359 : vector<8x32xf32>
    %375 = arith.negf %374 : vector<8x32xf32>
    %376 = math.exp %375 : vector<8x32xf32>
    %cst_273 = arith.constant 1.000000e+00 : f32
    %377 = vector.broadcast %cst_273 : f32 to vector<8x32xf32>
    %378 = arith.addf %377, %376 : vector<8x32xf32>
    %379 = arith.divf %377, %378 : vector<8x32xf32>
    %380 = arith.addf %344, %366 : vector<8x32xf32>
    %381 = arith.negf %380 : vector<8x32xf32>
    %382 = math.exp %381 : vector<8x32xf32>
    %cst_274 = arith.constant 1.000000e+00 : f32
    %383 = vector.broadcast %cst_274 : f32 to vector<8x32xf32>
    %384 = arith.addf %383, %382 : vector<8x32xf32>
    %385 = arith.divf %383, %384 : vector<8x32xf32>
    %386 = arith.mulf %379, %373 : vector<8x32xf32>
    %387 = arith.addf %351, %386 : vector<8x32xf32>
    %388 = math.tanh %387 : vector<8x32xf32>
    %cst_275 = arith.constant 1.000000e+00 : f32
    %389 = vector.broadcast %cst_275 : f32 to vector<8x32xf32>
    %390 = arith.subf %389, %385 : vector<8x32xf32>
    %391 = arith.mulf %390, %388 : vector<8x32xf32>
    %392 = arith.mulf %385, %274 : vector<8x32xf32>
    %393 = arith.addf %391, %392 : vector<8x32xf32>
    %394 = arith.index_cast %c2_i32 : i32 to index
    %c0_276 = arith.constant 0 : index
    %c0_277 = arith.constant 0 : index
    %395 = vector.load %arg16[%394, %c0_276, %c0_277] : memref<8x8x32xf32, #tpu.memory_space<vmem>>, vector<1x8x32xf32>
    %396 = vector.shape_cast %395 : vector<1x8x32xf32> to vector<8x32xf32>
    %397 = vector.shape_cast %393 : vector<8x32xf32> to vector<1x8x32xf32>
    tpu.vector_store %arg16[%394, %c0_276, %c0_277], %397 {strides = array<i32>} : memref<8x8x32xf32, #tpu.memory_space<vmem>>, vector<1x8x32xf32>,
    %c3_i32 = arith.constant 3 : i32
    %c0_278 = arith.constant 0 : index
    %398 = arith.index_cast %c3_i32 : i32 to index
    %c0_279 = arith.constant 0 : index
    %c0_280 = arith.constant 0 : index
    %399 = vector.load %arg15[%c0_278, %398, %c0_279, %c0_280] : memref<3x8x8x32xf32, #tpu.memory_space<vmem>>, vector<1x1x8x32xf32>
    %400 = vector.shape_cast %399 : vector<1x1x8x32xf32> to vector<8x32xf32>
    %c1_281 = arith.constant 1 : index
    %401 = arith.index_cast %c3_i32 : i32 to index
    %c0_282 = arith.constant 0 : index
    %c0_283 = arith.constant 0 : index
    %402 = vector.load %arg15[%c1_281, %401, %c0_282, %c0_283] : memref<3x8x8x32xf32, #tpu.memory_space<vmem>>, vector<1x1x8x32xf32>
    %403 = vector.shape_cast %402 : vector<1x1x8x32xf32> to vector<8x32xf32>
    %c2_284 = arith.constant 2 : index
    %404 = arith.index_cast %c3_i32 : i32 to index
    %c0_285 = arith.constant 0 : index
    %c0_286 = arith.constant 0 : index
    %405 = vector.load %arg15[%c2_284, %404, %c0_285, %c0_286] : memref<3x8x8x32xf32, #tpu.memory_space<vmem>>, vector<1x1x8x32xf32>
    %406 = vector.shape_cast %405 : vector<1x1x8x32xf32> to vector<8x32xf32>
    %407 = arith.truncf %329 : vector<8x32xf32> to vector<8x32xbf16>
    %c0_287 = arith.constant 0 : index
    %c0_288 = arith.constant 0 : index
    %c0_289 = arith.constant 0 : index
    %408 = vector.load %arg4[%c0_287, %c0_288, %c0_289] : memref<3x32x32xbf16, #tpu.memory_space<vmem>>, vector<1x32x32xbf16>
    %409 = vector.shape_cast %408 : vector<1x32x32xbf16> to vector<32x32xbf16>
    %cst_290 = arith.constant dense<0.000000e+00> : vector<8x32xf32>
    %410 = tpu.matmul %407, %409, %cst_290 {dimension_numbers = #tpu.dot_dimension_numbers<[1], [0], [0], [1], [0, 0, 1, 1], [], []>} : vector<8x32xbf16>, vector<32x32xbf16>, vector<8x32xf32> -> vector<8x32xf32>
    %c0_291 = arith.constant 0 : index
    %c0_292 = arith.constant 0 : index
    %c0_293 = arith.constant 0 : index
    %411 = vector.load %arg6[%c0_291, %c0_292, %c0_293] : memref<3x1x32xf32, #tpu.memory_space<vmem>>, vector<1x1x32xf32>
    %412 = vector.shape_cast %411 : vector<1x1x32xf32> to vector<1x32xf32>
    %413 = vector.broadcast %412 : vector<1x32xf32> to vector<8x32xf32>
    %414 = arith.addf %410, %413 : vector<8x32xf32>
    %c1_294 = arith.constant 1 : index
    %c0_295 = arith.constant 0 : index
    %c0_296 = arith.constant 0 : index
    %415 = vector.load %arg4[%c1_294, %c0_295, %c0_296] : memref<3x32x32xbf16, #tpu.memory_space<vmem>>, vector<1x32x32xbf16>
    %416 = vector.shape_cast %415 : vector<1x32x32xbf16> to vector<32x32xbf16>
    %cst_297 = arith.constant dense<0.000000e+00> : vector<8x32xf32>
    %417 = tpu.matmul %407, %416, %cst_297 {dimension_numbers = #tpu.dot_dimension_numbers<[1], [0], [0], [1], [0, 0, 1, 1], [], []>} : vector<8x32xbf16>, vector<32x32xbf16>, vector<8x32xf32> -> vector<8x32xf32>
    %c1_298 = arith.constant 1 : index
    %c0_299 = arith.constant 0 : index
    %c0_300 = arith.constant 0 : index
    %418 = vector.load %arg6[%c1_298, %c0_299, %c0_300] : memref<3x1x32xf32, #tpu.memory_space<vmem>>, vector<1x1x32xf32>
    %419 = vector.shape_cast %418 : vector<1x1x32xf32> to vector<1x32xf32>
    %420 = vector.broadcast %419 : vector<1x32xf32> to vector<8x32xf32>
    %421 = arith.addf %417, %420 : vector<8x32xf32>
    %c2_301 = arith.constant 2 : index
    %c0_302 = arith.constant 0 : index
    %c0_303 = arith.constant 0 : index
    %422 = vector.load %arg4[%c2_301, %c0_302, %c0_303] : memref<3x32x32xbf16, #tpu.memory_space<vmem>>, vector<1x32x32xbf16>
    %423 = vector.shape_cast %422 : vector<1x32x32xbf16> to vector<32x32xbf16>
    %cst_304 = arith.constant dense<0.000000e+00> : vector<8x32xf32>
    %424 = tpu.matmul %407, %423, %cst_304 {dimension_numbers = #tpu.dot_dimension_numbers<[1], [0], [0], [1], [0, 0, 1, 1], [], []>} : vector<8x32xbf16>, vector<32x32xbf16>, vector<8x32xf32> -> vector<8x32xf32>
    %c2_305 = arith.constant 2 : index
    %c0_306 = arith.constant 0 : index
    %c0_307 = arith.constant 0 : index
    %425 = vector.load %arg6[%c2_305, %c0_306, %c0_307] : memref<3x1x32xf32, #tpu.memory_space<vmem>>, vector<1x1x32xf32>
    %426 = vector.shape_cast %425 : vector<1x1x32xf32> to vector<1x32xf32>
    %427 = vector.broadcast %426 : vector<1x32xf32> to vector<8x32xf32>
    %428 = arith.addf %424, %427 : vector<8x32xf32>
    %429 = arith.addf %400, %414 : vector<8x32xf32>
    %430 = arith.negf %429 : vector<8x32xf32>
    %431 = math.exp %430 : vector<8x32xf32>
    %cst_308 = arith.constant 1.000000e+00 : f32
    %432 = vector.broadcast %cst_308 : f32 to vector<8x32xf32>
    %433 = arith.addf %432, %431 : vector<8x32xf32>
    %434 = arith.divf %432, %433 : vector<8x32xf32>
    %435 = arith.addf %403, %421 : vector<8x32xf32>
    %436 = arith.negf %435 : vector<8x32xf32>
    %437 = math.exp %436 : vector<8x32xf32>
    %cst_309 = arith.constant 1.000000e+00 : f32
    %438 = vector.broadcast %cst_309 : f32 to vector<8x32xf32>
    %439 = arith.addf %438, %437 : vector<8x32xf32>
    %440 = arith.divf %438, %439 : vector<8x32xf32>
    %441 = arith.mulf %434, %428 : vector<8x32xf32>
    %442 = arith.addf %406, %441 : vector<8x32xf32>
    %443 = math.tanh %442 : vector<8x32xf32>
    %cst_310 = arith.constant 1.000000e+00 : f32
    %444 = vector.broadcast %cst_310 : f32 to vector<8x32xf32>
    %445 = arith.subf %444, %440 : vector<8x32xf32>
    %446 = arith.mulf %445, %443 : vector<8x32xf32>
    %447 = arith.mulf %440, %329 : vector<8x32xf32>
    %448 = arith.addf %446, %447 : vector<8x32xf32>
    %449 = arith.truncf %448 : vector<8x32xf32> to vector<8x32xbf16>
    %c0_311 = arith.constant 0 : index
    %c0_312 = arith.constant 0 : index
    %c0_313 = arith.constant 0 : index
    %450 = vector.load %arg7[%c0_311, %c0_312, %c0_313] : memref<3x32x32xbf16, #tpu.memory_space<vmem>>, vector<1x32x32xbf16>
    %451 = vector.shape_cast %450 : vector<1x32x32xbf16> to vector<32x32xbf16>
    %cst_314 = arith.constant dense<0.000000e+00> : vector<8x32xf32>
    %452 = tpu.matmul %449, %451, %cst_314 {dimension_numbers = #tpu.dot_dimension_numbers<[1], [0], [0], [1], [0, 0, 1, 1], [], []>} : vector<8x32xbf16>, vector<32x32xbf16>, vector<8x32xf32> -> vector<8x32xf32>
    %c0_315 = arith.constant 0 : index
    %c0_316 = arith.constant 0 : index
    %c0_317 = arith.constant 0 : index
    %453 = vector.load %arg9[%c0_315, %c0_316, %c0_317] : memref<3x1x32xf32, #tpu.memory_space<vmem>>, vector<1x1x32xf32>
    %454 = vector.shape_cast %453 : vector<1x1x32xf32> to vector<1x32xf32>
    %455 = vector.broadcast %454 : vector<1x32xf32> to vector<8x32xf32>
    %456 = arith.addf %452, %455 : vector<8x32xf32>
    %c1_318 = arith.constant 1 : index
    %c0_319 = arith.constant 0 : index
    %c0_320 = arith.constant 0 : index
    %457 = vector.load %arg7[%c1_318, %c0_319, %c0_320] : memref<3x32x32xbf16, #tpu.memory_space<vmem>>, vector<1x32x32xbf16>
    %458 = vector.shape_cast %457 : vector<1x32x32xbf16> to vector<32x32xbf16>
    %cst_321 = arith.constant dense<0.000000e+00> : vector<8x32xf32>
    %459 = tpu.matmul %449, %458, %cst_321 {dimension_numbers = #tpu.dot_dimension_numbers<[1], [0], [0], [1], [0, 0, 1, 1], [], []>} : vector<8x32xbf16>, vector<32x32xbf16>, vector<8x32xf32> -> vector<8x32xf32>
    %c1_322 = arith.constant 1 : index
    %c0_323 = arith.constant 0 : index
    %c0_324 = arith.constant 0 : index
    %460 = vector.load %arg9[%c1_322, %c0_323, %c0_324] : memref<3x1x32xf32, #tpu.memory_space<vmem>>, vector<1x1x32xf32>
    %461 = vector.shape_cast %460 : vector<1x1x32xf32> to vector<1x32xf32>
    %462 = vector.broadcast %461 : vector<1x32xf32> to vector<8x32xf32>
    %463 = arith.addf %459, %462 : vector<8x32xf32>
    %c2_325 = arith.constant 2 : index
    %c0_326 = arith.constant 0 : index
    %c0_327 = arith.constant 0 : index
    %464 = vector.load %arg7[%c2_325, %c0_326, %c0_327] : memref<3x32x32xbf16, #tpu.memory_space<vmem>>, vector<1x32x32xbf16>
    %465 = vector.shape_cast %464 : vector<1x32x32xbf16> to vector<32x32xbf16>
    %cst_328 = arith.constant dense<0.000000e+00> : vector<8x32xf32>
    %466 = tpu.matmul %449, %465, %cst_328 {dimension_numbers = #tpu.dot_dimension_numbers<[1], [0], [0], [1], [0, 0, 1, 1], [], []>} : vector<8x32xbf16>, vector<32x32xbf16>, vector<8x32xf32> -> vector<8x32xf32>
    %c2_329 = arith.constant 2 : index
    %c0_330 = arith.constant 0 : index
    %c0_331 = arith.constant 0 : index
    %467 = vector.load %arg9[%c2_329, %c0_330, %c0_331] : memref<3x1x32xf32, #tpu.memory_space<vmem>>, vector<1x1x32xf32>
    %468 = vector.shape_cast %467 : vector<1x1x32xf32> to vector<1x32xf32>
    %469 = vector.broadcast %468 : vector<1x32xf32> to vector<8x32xf32>
    %470 = arith.addf %466, %469 : vector<8x32xf32>
    %471 = arith.truncf %393 : vector<8x32xf32> to vector<8x32xbf16>
    %c0_332 = arith.constant 0 : index
    %c0_333 = arith.constant 0 : index
    %c0_334 = arith.constant 0 : index
    %472 = vector.load %arg8[%c0_332, %c0_333, %c0_334] : memref<3x32x32xbf16, #tpu.memory_space<vmem>>, vector<1x32x32xbf16>
    %473 = vector.shape_cast %472 : vector<1x32x32xbf16> to vector<32x32xbf16>
    %cst_335 = arith.constant dense<0.000000e+00> : vector<8x32xf32>
    %474 = tpu.matmul %471, %473, %cst_335 {dimension_numbers = #tpu.dot_dimension_numbers<[1], [0], [0], [1], [0, 0, 1, 1], [], []>} : vector<8x32xbf16>, vector<32x32xbf16>, vector<8x32xf32> -> vector<8x32xf32>
    %c0_336 = arith.constant 0 : index
    %c0_337 = arith.constant 0 : index
    %c0_338 = arith.constant 0 : index
    %475 = vector.load %arg10[%c0_336, %c0_337, %c0_338] : memref<3x1x32xf32, #tpu.memory_space<vmem>>, vector<1x1x32xf32>
    %476 = vector.shape_cast %475 : vector<1x1x32xf32> to vector<1x32xf32>
    %477 = vector.broadcast %476 : vector<1x32xf32> to vector<8x32xf32>
    %478 = arith.addf %474, %477 : vector<8x32xf32>
    %c1_339 = arith.constant 1 : index
    %c0_340 = arith.constant 0 : index
    %c0_341 = arith.constant 0 : index
    %479 = vector.load %arg8[%c1_339, %c0_340, %c0_341] : memref<3x32x32xbf16, #tpu.memory_space<vmem>>, vector<1x32x32xbf16>
    %480 = vector.shape_cast %479 : vector<1x32x32xbf16> to vector<32x32xbf16>
    %cst_342 = arith.constant dense<0.000000e+00> : vector<8x32xf32>
    %481 = tpu.matmul %471, %480, %cst_342 {dimension_numbers = #tpu.dot_dimension_numbers<[1], [0], [0], [1], [0, 0, 1, 1], [], []>} : vector<8x32xbf16>, vector<32x32xbf16>, vector<8x32xf32> -> vector<8x32xf32>
    %c1_343 = arith.constant 1 : index
    %c0_344 = arith.constant 0 : index
    %c0_345 = arith.constant 0 : index
    %482 = vector.load %arg10[%c1_343, %c0_344, %c0_345] : memref<3x1x32xf32, #tpu.memory_space<vmem>>, vector<1x1x32xf32>
    %483 = vector.shape_cast %482 : vector<1x1x32xf32> to vector<1x32xf32>
    %484 = vector.broadcast %483 : vector<1x32xf32> to vector<8x32xf32>
    %485 = arith.addf %481, %484 : vector<8x32xf32>
    %c2_346 = arith.constant 2 : index
    %c0_347 = arith.constant 0 : index
    %c0_348 = arith.constant 0 : index
    %486 = vector.load %arg8[%c2_346, %c0_347, %c0_348] : memref<3x32x32xbf16, #tpu.memory_space<vmem>>, vector<1x32x32xbf16>
    %487 = vector.shape_cast %486 : vector<1x32x32xbf16> to vector<32x32xbf16>
    %cst_349 = arith.constant dense<0.000000e+00> : vector<8x32xf32>
    %488 = tpu.matmul %471, %487, %cst_349 {dimension_numbers = #tpu.dot_dimension_numbers<[1], [0], [0], [1], [0, 0, 1, 1], [], []>} : vector<8x32xbf16>, vector<32x32xbf16>, vector<8x32xf32> -> vector<8x32xf32>
    %c2_350 = arith.constant 2 : index
    %c0_351 = arith.constant 0 : index
    %c0_352 = arith.constant 0 : index
    %489 = vector.load %arg10[%c2_350, %c0_351, %c0_352] : memref<3x1x32xf32, #tpu.memory_space<vmem>>, vector<1x1x32xf32>
    %490 = vector.shape_cast %489 : vector<1x1x32xf32> to vector<1x32xf32>
    %491 = vector.broadcast %490 : vector<1x32xf32> to vector<8x32xf32>
    %492 = arith.addf %488, %491 : vector<8x32xf32>
    %493 = arith.addf %456, %478 : vector<8x32xf32>
    %494 = arith.negf %493 : vector<8x32xf32>
    %495 = math.exp %494 : vector<8x32xf32>
    %cst_353 = arith.constant 1.000000e+00 : f32
    %496 = vector.broadcast %cst_353 : f32 to vector<8x32xf32>
    %497 = arith.addf %496, %495 : vector<8x32xf32>
    %498 = arith.divf %496, %497 : vector<8x32xf32>
    %499 = arith.addf %463, %485 : vector<8x32xf32>
    %500 = arith.negf %499 : vector<8x32xf32>
    %501 = math.exp %500 : vector<8x32xf32>
    %cst_354 = arith.constant 1.000000e+00 : f32
    %502 = vector.broadcast %cst_354 : f32 to vector<8x32xf32>
    %503 = arith.addf %502, %501 : vector<8x32xf32>
    %504 = arith.divf %502, %503 : vector<8x32xf32>
    %505 = arith.mulf %498, %492 : vector<8x32xf32>
    %506 = arith.addf %470, %505 : vector<8x32xf32>
    %507 = math.tanh %506 : vector<8x32xf32>
    %cst_355 = arith.constant 1.000000e+00 : f32
    %508 = vector.broadcast %cst_355 : f32 to vector<8x32xf32>
    %509 = arith.subf %508, %504 : vector<8x32xf32>
    %510 = arith.mulf %509, %507 : vector<8x32xf32>
    %511 = arith.mulf %504, %393 : vector<8x32xf32>
    %512 = arith.addf %510, %511 : vector<8x32xf32>
    %513 = arith.index_cast %c3_i32 : i32 to index
    %c0_356 = arith.constant 0 : index
    %c0_357 = arith.constant 0 : index
    %514 = vector.load %arg16[%513, %c0_356, %c0_357] : memref<8x8x32xf32, #tpu.memory_space<vmem>>, vector<1x8x32xf32>
    %515 = vector.shape_cast %514 : vector<1x8x32xf32> to vector<8x32xf32>
    %516 = vector.shape_cast %512 : vector<8x32xf32> to vector<1x8x32xf32>
    tpu.vector_store %arg16[%513, %c0_356, %c0_357], %516 {strides = array<i32>} : memref<8x8x32xf32, #tpu.memory_space<vmem>>, vector<1x8x32xf32>,
    %c4_i32 = arith.constant 4 : i32
    %c0_358 = arith.constant 0 : index
    %517 = arith.index_cast %c4_i32 : i32 to index
    %c0_359 = arith.constant 0 : index
    %c0_360 = arith.constant 0 : index
    %518 = vector.load %arg15[%c0_358, %517, %c0_359, %c0_360] : memref<3x8x8x32xf32, #tpu.memory_space<vmem>>, vector<1x1x8x32xf32>
    %519 = vector.shape_cast %518 : vector<1x1x8x32xf32> to vector<8x32xf32>
    %c1_361 = arith.constant 1 : index
    %520 = arith.index_cast %c4_i32 : i32 to index
    %c0_362 = arith.constant 0 : index
    %c0_363 = arith.constant 0 : index
    %521 = vector.load %arg15[%c1_361, %520, %c0_362, %c0_363] : memref<3x8x8x32xf32, #tpu.memory_space<vmem>>, vector<1x1x8x32xf32>
    %522 = vector.shape_cast %521 : vector<1x1x8x32xf32> to vector<8x32xf32>
    %c2_364 = arith.constant 2 : index
    %523 = arith.index_cast %c4_i32 : i32 to index
    %c0_365 = arith.constant 0 : index
    %c0_366 = arith.constant 0 : index
    %524 = vector.load %arg15[%c2_364, %523, %c0_365, %c0_366] : memref<3x8x8x32xf32, #tpu.memory_space<vmem>>, vector<1x1x8x32xf32>
    %525 = vector.shape_cast %524 : vector<1x1x8x32xf32> to vector<8x32xf32>
    %526 = arith.truncf %448 : vector<8x32xf32> to vector<8x32xbf16>
    %c0_367 = arith.constant 0 : index
    %c0_368 = arith.constant 0 : index
    %c0_369 = arith.constant 0 : index
    %527 = vector.load %arg4[%c0_367, %c0_368, %c0_369] : memref<3x32x32xbf16, #tpu.memory_space<vmem>>, vector<1x32x32xbf16>
    %528 = vector.shape_cast %527 : vector<1x32x32xbf16> to vector<32x32xbf16>
    %cst_370 = arith.constant dense<0.000000e+00> : vector<8x32xf32>
    %529 = tpu.matmul %526, %528, %cst_370 {dimension_numbers = #tpu.dot_dimension_numbers<[1], [0], [0], [1], [0, 0, 1, 1], [], []>} : vector<8x32xbf16>, vector<32x32xbf16>, vector<8x32xf32> -> vector<8x32xf32>
    %c0_371 = arith.constant 0 : index
    %c0_372 = arith.constant 0 : index
    %c0_373 = arith.constant 0 : index
    %530 = vector.load %arg6[%c0_371, %c0_372, %c0_373] : memref<3x1x32xf32, #tpu.memory_space<vmem>>, vector<1x1x32xf32>
    %531 = vector.shape_cast %530 : vector<1x1x32xf32> to vector<1x32xf32>
    %532 = vector.broadcast %531 : vector<1x32xf32> to vector<8x32xf32>
    %533 = arith.addf %529, %532 : vector<8x32xf32>
    %c1_374 = arith.constant 1 : index
    %c0_375 = arith.constant 0 : index
    %c0_376 = arith.constant 0 : index
    %534 = vector.load %arg4[%c1_374, %c0_375, %c0_376] : memref<3x32x32xbf16, #tpu.memory_space<vmem>>, vector<1x32x32xbf16>
    %535 = vector.shape_cast %534 : vector<1x32x32xbf16> to vector<32x32xbf16>
    %cst_377 = arith.constant dense<0.000000e+00> : vector<8x32xf32>
    %536 = tpu.matmul %526, %535, %cst_377 {dimension_numbers = #tpu.dot_dimension_numbers<[1], [0], [0], [1], [0, 0, 1, 1], [], []>} : vector<8x32xbf16>, vector<32x32xbf16>, vector<8x32xf32> -> vector<8x32xf32>
    %c1_378 = arith.constant 1 : index
    %c0_379 = arith.constant 0 : index
    %c0_380 = arith.constant 0 : index
    %537 = vector.load %arg6[%c1_378, %c0_379, %c0_380] : memref<3x1x32xf32, #tpu.memory_space<vmem>>, vector<1x1x32xf32>
    %538 = vector.shape_cast %537 : vector<1x1x32xf32> to vector<1x32xf32>
    %539 = vector.broadcast %538 : vector<1x32xf32> to vector<8x32xf32>
    %540 = arith.addf %536, %539 : vector<8x32xf32>
    %c2_381 = arith.constant 2 : index
    %c0_382 = arith.constant 0 : index
    %c0_383 = arith.constant 0 : index
    %541 = vector.load %arg4[%c2_381, %c0_382, %c0_383] : memref<3x32x32xbf16, #tpu.memory_space<vmem>>, vector<1x32x32xbf16>
    %542 = vector.shape_cast %541 : vector<1x32x32xbf16> to vector<32x32xbf16>
    %cst_384 = arith.constant dense<0.000000e+00> : vector<8x32xf32>
    %543 = tpu.matmul %526, %542, %cst_384 {dimension_numbers = #tpu.dot_dimension_numbers<[1], [0], [0], [1], [0, 0, 1, 1], [], []>} : vector<8x32xbf16>, vector<32x32xbf16>, vector<8x32xf32> -> vector<8x32xf32>
    %c2_385 = arith.constant 2 : index
    %c0_386 = arith.constant 0 : index
    %c0_387 = arith.constant 0 : index
    %544 = vector.load %arg6[%c2_385, %c0_386, %c0_387] : memref<3x1x32xf32, #tpu.memory_space<vmem>>, vector<1x1x32xf32>
    %545 = vector.shape_cast %544 : vector<1x1x32xf32> to vector<1x32xf32>
    %546 = vector.broadcast %545 : vector<1x32xf32> to vector<8x32xf32>
    %547 = arith.addf %543, %546 : vector<8x32xf32>
    %548 = arith.addf %519, %533 : vector<8x32xf32>
    %549 = arith.negf %548 : vector<8x32xf32>
    %550 = math.exp %549 : vector<8x32xf32>
    %cst_388 = arith.constant 1.000000e+00 : f32
    %551 = vector.broadcast %cst_388 : f32 to vector<8x32xf32>
    %552 = arith.addf %551, %550 : vector<8x32xf32>
    %553 = arith.divf %551, %552 : vector<8x32xf32>
    %554 = arith.addf %522, %540 : vector<8x32xf32>
    %555 = arith.negf %554 : vector<8x32xf32>
    %556 = math.exp %555 : vector<8x32xf32>
    %cst_389 = arith.constant 1.000000e+00 : f32
    %557 = vector.broadcast %cst_389 : f32 to vector<8x32xf32>
    %558 = arith.addf %557, %556 : vector<8x32xf32>
    %559 = arith.divf %557, %558 : vector<8x32xf32>
    %560 = arith.mulf %553, %547 : vector<8x32xf32>
    %561 = arith.addf %525, %560 : vector<8x32xf32>
    %562 = math.tanh %561 : vector<8x32xf32>
    %cst_390 = arith.constant 1.000000e+00 : f32
    %563 = vector.broadcast %cst_390 : f32 to vector<8x32xf32>
    %564 = arith.subf %563, %559 : vector<8x32xf32>
    %565 = arith.mulf %564, %562 : vector<8x32xf32>
    %566 = arith.mulf %559, %448 : vector<8x32xf32>
    %567 = arith.addf %565, %566 : vector<8x32xf32>
    %568 = arith.truncf %567 : vector<8x32xf32> to vector<8x32xbf16>
    %c0_391 = arith.constant 0 : index
    %c0_392 = arith.constant 0 : index
    %c0_393 = arith.constant 0 : index
    %569 = vector.load %arg7[%c0_391, %c0_392, %c0_393] : memref<3x32x32xbf16, #tpu.memory_space<vmem>>, vector<1x32x32xbf16>
    %570 = vector.shape_cast %569 : vector<1x32x32xbf16> to vector<32x32xbf16>
    %cst_394 = arith.constant dense<0.000000e+00> : vector<8x32xf32>
    %571 = tpu.matmul %568, %570, %cst_394 {dimension_numbers = #tpu.dot_dimension_numbers<[1], [0], [0], [1], [0, 0, 1, 1], [], []>} : vector<8x32xbf16>, vector<32x32xbf16>, vector<8x32xf32> -> vector<8x32xf32>
    %c0_395 = arith.constant 0 : index
    %c0_396 = arith.constant 0 : index
    %c0_397 = arith.constant 0 : index
    %572 = vector.load %arg9[%c0_395, %c0_396, %c0_397] : memref<3x1x32xf32, #tpu.memory_space<vmem>>, vector<1x1x32xf32>
    %573 = vector.shape_cast %572 : vector<1x1x32xf32> to vector<1x32xf32>
    %574 = vector.broadcast %573 : vector<1x32xf32> to vector<8x32xf32>
    %575 = arith.addf %571, %574 : vector<8x32xf32>
    %c1_398 = arith.constant 1 : index
    %c0_399 = arith.constant 0 : index
    %c0_400 = arith.constant 0 : index
    %576 = vector.load %arg7[%c1_398, %c0_399, %c0_400] : memref<3x32x32xbf16, #tpu.memory_space<vmem>>, vector<1x32x32xbf16>
    %577 = vector.shape_cast %576 : vector<1x32x32xbf16> to vector<32x32xbf16>
    %cst_401 = arith.constant dense<0.000000e+00> : vector<8x32xf32>
    %578 = tpu.matmul %568, %577, %cst_401 {dimension_numbers = #tpu.dot_dimension_numbers<[1], [0], [0], [1], [0, 0, 1, 1], [], []>} : vector<8x32xbf16>, vector<32x32xbf16>, vector<8x32xf32> -> vector<8x32xf32>
    %c1_402 = arith.constant 1 : index
    %c0_403 = arith.constant 0 : index
    %c0_404 = arith.constant 0 : index
    %579 = vector.load %arg9[%c1_402, %c0_403, %c0_404] : memref<3x1x32xf32, #tpu.memory_space<vmem>>, vector<1x1x32xf32>
    %580 = vector.shape_cast %579 : vector<1x1x32xf32> to vector<1x32xf32>
    %581 = vector.broadcast %580 : vector<1x32xf32> to vector<8x32xf32>
    %582 = arith.addf %578, %581 : vector<8x32xf32>
    %c2_405 = arith.constant 2 : index
    %c0_406 = arith.constant 0 : index
    %c0_407 = arith.constant 0 : index
    %583 = vector.load %arg7[%c2_405, %c0_406, %c0_407] : memref<3x32x32xbf16, #tpu.memory_space<vmem>>, vector<1x32x32xbf16>
    %584 = vector.shape_cast %583 : vector<1x32x32xbf16> to vector<32x32xbf16>
    %cst_408 = arith.constant dense<0.000000e+00> : vector<8x32xf32>
    %585 = tpu.matmul %568, %584, %cst_408 {dimension_numbers = #tpu.dot_dimension_numbers<[1], [0], [0], [1], [0, 0, 1, 1], [], []>} : vector<8x32xbf16>, vector<32x32xbf16>, vector<8x32xf32> -> vector<8x32xf32>
    %c2_409 = arith.constant 2 : index
    %c0_410 = arith.constant 0 : index
    %c0_411 = arith.constant 0 : index
    %586 = vector.load %arg9[%c2_409, %c0_410, %c0_411] : memref<3x1x32xf32, #tpu.memory_space<vmem>>, vector<1x1x32xf32>
    %587 = vector.shape_cast %586 : vector<1x1x32xf32> to vector<1x32xf32>
    %588 = vector.broadcast %587 : vector<1x32xf32> to vector<8x32xf32>
    %589 = arith.addf %585, %588 : vector<8x32xf32>
    %590 = arith.truncf %512 : vector<8x32xf32> to vector<8x32xbf16>
    %c0_412 = arith.constant 0 : index
    %c0_413 = arith.constant 0 : index
    %c0_414 = arith.constant 0 : index
    %591 = vector.load %arg8[%c0_412, %c0_413, %c0_414] : memref<3x32x32xbf16, #tpu.memory_space<vmem>>, vector<1x32x32xbf16>
    %592 = vector.shape_cast %591 : vector<1x32x32xbf16> to vector<32x32xbf16>
    %cst_415 = arith.constant dense<0.000000e+00> : vector<8x32xf32>
    %593 = tpu.matmul %590, %592, %cst_415 {dimension_numbers = #tpu.dot_dimension_numbers<[1], [0], [0], [1], [0, 0, 1, 1], [], []>} : vector<8x32xbf16>, vector<32x32xbf16>, vector<8x32xf32> -> vector<8x32xf32>
    %c0_416 = arith.constant 0 : index
    %c0_417 = arith.constant 0 : index
    %c0_418 = arith.constant 0 : index
    %594 = vector.load %arg10[%c0_416, %c0_417, %c0_418] : memref<3x1x32xf32, #tpu.memory_space<vmem>>, vector<1x1x32xf32>
    %595 = vector.shape_cast %594 : vector<1x1x32xf32> to vector<1x32xf32>
    %596 = vector.broadcast %595 : vector<1x32xf32> to vector<8x32xf32>
    %597 = arith.addf %593, %596 : vector<8x32xf32>
    %c1_419 = arith.constant 1 : index
    %c0_420 = arith.constant 0 : index
    %c0_421 = arith.constant 0 : index
    %598 = vector.load %arg8[%c1_419, %c0_420, %c0_421] : memref<3x32x32xbf16, #tpu.memory_space<vmem>>, vector<1x32x32xbf16>
    %599 = vector.shape_cast %598 : vector<1x32x32xbf16> to vector<32x32xbf16>
    %cst_422 = arith.constant dense<0.000000e+00> : vector<8x32xf32>
    %600 = tpu.matmul %590, %599, %cst_422 {dimension_numbers = #tpu.dot_dimension_numbers<[1], [0], [0], [1], [0, 0, 1, 1], [], []>} : vector<8x32xbf16>, vector<32x32xbf16>, vector<8x32xf32> -> vector<8x32xf32>
    %c1_423 = arith.constant 1 : index
    %c0_424 = arith.constant 0 : index
    %c0_425 = arith.constant 0 : index
    %601 = vector.load %arg10[%c1_423, %c0_424, %c0_425] : memref<3x1x32xf32, #tpu.memory_space<vmem>>, vector<1x1x32xf32>
    %602 = vector.shape_cast %601 : vector<1x1x32xf32> to vector<1x32xf32>
    %603 = vector.broadcast %602 : vector<1x32xf32> to vector<8x32xf32>
    %604 = arith.addf %600, %603 : vector<8x32xf32>
    %c2_426 = arith.constant 2 : index
    %c0_427 = arith.constant 0 : index
    %c0_428 = arith.constant 0 : index
    %605 = vector.load %arg8[%c2_426, %c0_427, %c0_428] : memref<3x32x32xbf16, #tpu.memory_space<vmem>>, vector<1x32x32xbf16>
    %606 = vector.shape_cast %605 : vector<1x32x32xbf16> to vector<32x32xbf16>
    %cst_429 = arith.constant dense<0.000000e+00> : vector<8x32xf32>
    %607 = tpu.matmul %590, %606, %cst_429 {dimension_numbers = #tpu.dot_dimension_numbers<[1], [0], [0], [1], [0, 0, 1, 1], [], []>} : vector<8x32xbf16>, vector<32x32xbf16>, vector<8x32xf32> -> vector<8x32xf32>
    %c2_430 = arith.constant 2 : index
    %c0_431 = arith.constant 0 : index
    %c0_432 = arith.constant 0 : index
    %608 = vector.load %arg10[%c2_430, %c0_431, %c0_432] : memref<3x1x32xf32, #tpu.memory_space<vmem>>, vector<1x1x32xf32>
    %609 = vector.shape_cast %608 : vector<1x1x32xf32> to vector<1x32xf32>
    %610 = vector.broadcast %609 : vector<1x32xf32> to vector<8x32xf32>
    %611 = arith.addf %607, %610 : vector<8x32xf32>
    %612 = arith.addf %575, %597 : vector<8x32xf32>
    %613 = arith.negf %612 : vector<8x32xf32>
    %614 = math.exp %613 : vector<8x32xf32>
    %cst_433 = arith.constant 1.000000e+00 : f32
    %615 = vector.broadcast %cst_433 : f32 to vector<8x32xf32>
    %616 = arith.addf %615, %614 : vector<8x32xf32>
    %617 = arith.divf %615, %616 : vector<8x32xf32>
    %618 = arith.addf %582, %604 : vector<8x32xf32>
    %619 = arith.negf %618 : vector<8x32xf32>
    %620 = math.exp %619 : vector<8x32xf32>
    %cst_434 = arith.constant 1.000000e+00 : f32
    %621 = vector.broadcast %cst_434 : f32 to vector<8x32xf32>
    %622 = arith.addf %621, %620 : vector<8x32xf32>
    %623 = arith.divf %621, %622 : vector<8x32xf32>
    %624 = arith.mulf %617, %611 : vector<8x32xf32>
    %625 = arith.addf %589, %624 : vector<8x32xf32>
    %626 = math.tanh %625 : vector<8x32xf32>
    %cst_435 = arith.constant 1.000000e+00 : f32
    %627 = vector.broadcast %cst_435 : f32 to vector<8x32xf32>
    %628 = arith.subf %627, %623 : vector<8x32xf32>
    %629 = arith.mulf %628, %626 : vector<8x32xf32>
    %630 = arith.mulf %623, %512 : vector<8x32xf32>
    %631 = arith.addf %629, %630 : vector<8x32xf32>
    %632 = arith.index_cast %c4_i32 : i32 to index
    %c0_436 = arith.constant 0 : index
    %c0_437 = arith.constant 0 : index
    %633 = vector.load %arg16[%632, %c0_436, %c0_437] : memref<8x8x32xf32, #tpu.memory_space<vmem>>, vector<1x8x32xf32>
    %634 = vector.shape_cast %633 : vector<1x8x32xf32> to vector<8x32xf32>
    %635 = vector.shape_cast %631 : vector<8x32xf32> to vector<1x8x32xf32>
    tpu.vector_store %arg16[%632, %c0_436, %c0_437], %635 {strides = array<i32>} : memref<8x8x32xf32, #tpu.memory_space<vmem>>, vector<1x8x32xf32>,
    %c5_i32 = arith.constant 5 : i32
    %c0_438 = arith.constant 0 : index
    %636 = arith.index_cast %c5_i32 : i32 to index
    %c0_439 = arith.constant 0 : index
    %c0_440 = arith.constant 0 : index
    %637 = vector.load %arg15[%c0_438, %636, %c0_439, %c0_440] : memref<3x8x8x32xf32, #tpu.memory_space<vmem>>, vector<1x1x8x32xf32>
    %638 = vector.shape_cast %637 : vector<1x1x8x32xf32> to vector<8x32xf32>
    %c1_441 = arith.constant 1 : index
    %639 = arith.index_cast %c5_i32 : i32 to index
    %c0_442 = arith.constant 0 : index
    %c0_443 = arith.constant 0 : index
    %640 = vector.load %arg15[%c1_441, %639, %c0_442, %c0_443] : memref<3x8x8x32xf32, #tpu.memory_space<vmem>>, vector<1x1x8x32xf32>
    %641 = vector.shape_cast %640 : vector<1x1x8x32xf32> to vector<8x32xf32>
    %c2_444 = arith.constant 2 : index
    %642 = arith.index_cast %c5_i32 : i32 to index
    %c0_445 = arith.constant 0 : index
    %c0_446 = arith.constant 0 : index
    %643 = vector.load %arg15[%c2_444, %642, %c0_445, %c0_446] : memref<3x8x8x32xf32, #tpu.memory_space<vmem>>, vector<1x1x8x32xf32>
    %644 = vector.shape_cast %643 : vector<1x1x8x32xf32> to vector<8x32xf32>
    %645 = arith.truncf %567 : vector<8x32xf32> to vector<8x32xbf16>
    %c0_447 = arith.constant 0 : index
    %c0_448 = arith.constant 0 : index
    %c0_449 = arith.constant 0 : index
    %646 = vector.load %arg4[%c0_447, %c0_448, %c0_449] : memref<3x32x32xbf16, #tpu.memory_space<vmem>>, vector<1x32x32xbf16>
    %647 = vector.shape_cast %646 : vector<1x32x32xbf16> to vector<32x32xbf16>
    %cst_450 = arith.constant dense<0.000000e+00> : vector<8x32xf32>
    %648 = tpu.matmul %645, %647, %cst_450 {dimension_numbers = #tpu.dot_dimension_numbers<[1], [0], [0], [1], [0, 0, 1, 1], [], []>} : vector<8x32xbf16>, vector<32x32xbf16>, vector<8x32xf32> -> vector<8x32xf32>
    %c0_451 = arith.constant 0 : index
    %c0_452 = arith.constant 0 : index
    %c0_453 = arith.constant 0 : index
    %649 = vector.load %arg6[%c0_451, %c0_452, %c0_453] : memref<3x1x32xf32, #tpu.memory_space<vmem>>, vector<1x1x32xf32>
    %650 = vector.shape_cast %649 : vector<1x1x32xf32> to vector<1x32xf32>
    %651 = vector.broadcast %650 : vector<1x32xf32> to vector<8x32xf32>
    %652 = arith.addf %648, %651 : vector<8x32xf32>
    %c1_454 = arith.constant 1 : index
    %c0_455 = arith.constant 0 : index
    %c0_456 = arith.constant 0 : index
    %653 = vector.load %arg4[%c1_454, %c0_455, %c0_456] : memref<3x32x32xbf16, #tpu.memory_space<vmem>>, vector<1x32x32xbf16>
    %654 = vector.shape_cast %653 : vector<1x32x32xbf16> to vector<32x32xbf16>
    %cst_457 = arith.constant dense<0.000000e+00> : vector<8x32xf32>
    %655 = tpu.matmul %645, %654, %cst_457 {dimension_numbers = #tpu.dot_dimension_numbers<[1], [0], [0], [1], [0, 0, 1, 1], [], []>} : vector<8x32xbf16>, vector<32x32xbf16>, vector<8x32xf32> -> vector<8x32xf32>
    %c1_458 = arith.constant 1 : index
    %c0_459 = arith.constant 0 : index
    %c0_460 = arith.constant 0 : index
    %656 = vector.load %arg6[%c1_458, %c0_459, %c0_460] : memref<3x1x32xf32, #tpu.memory_space<vmem>>, vector<1x1x32xf32>
    %657 = vector.shape_cast %656 : vector<1x1x32xf32> to vector<1x32xf32>
    %658 = vector.broadcast %657 : vector<1x32xf32> to vector<8x32xf32>
    %659 = arith.addf %655, %658 : vector<8x32xf32>
    %c2_461 = arith.constant 2 : index
    %c0_462 = arith.constant 0 : index
    %c0_463 = arith.constant 0 : index
    %660 = vector.load %arg4[%c2_461, %c0_462, %c0_463] : memref<3x32x32xbf16, #tpu.memory_space<vmem>>, vector<1x32x32xbf16>
    %661 = vector.shape_cast %660 : vector<1x32x32xbf16> to vector<32x32xbf16>
    %cst_464 = arith.constant dense<0.000000e+00> : vector<8x32xf32>
    %662 = tpu.matmul %645, %661, %cst_464 {dimension_numbers = #tpu.dot_dimension_numbers<[1], [0], [0], [1], [0, 0, 1, 1], [], []>} : vector<8x32xbf16>, vector<32x32xbf16>, vector<8x32xf32> -> vector<8x32xf32>
    %c2_465 = arith.constant 2 : index
    %c0_466 = arith.constant 0 : index
    %c0_467 = arith.constant 0 : index
    %663 = vector.load %arg6[%c2_465, %c0_466, %c0_467] : memref<3x1x32xf32, #tpu.memory_space<vmem>>, vector<1x1x32xf32>
    %664 = vector.shape_cast %663 : vector<1x1x32xf32> to vector<1x32xf32>
    %665 = vector.broadcast %664 : vector<1x32xf32> to vector<8x32xf32>
    %666 = arith.addf %662, %665 : vector<8x32xf32>
    %667 = arith.addf %638, %652 : vector<8x32xf32>
    %668 = arith.negf %667 : vector<8x32xf32>
    %669 = math.exp %668 : vector<8x32xf32>
    %cst_468 = arith.constant 1.000000e+00 : f32
    %670 = vector.broadcast %cst_468 : f32 to vector<8x32xf32>
    %671 = arith.addf %670, %669 : vector<8x32xf32>
    %672 = arith.divf %670, %671 : vector<8x32xf32>
    %673 = arith.addf %641, %659 : vector<8x32xf32>
    %674 = arith.negf %673 : vector<8x32xf32>
    %675 = math.exp %674 : vector<8x32xf32>
    %cst_469 = arith.constant 1.000000e+00 : f32
    %676 = vector.broadcast %cst_469 : f32 to vector<8x32xf32>
    %677 = arith.addf %676, %675 : vector<8x32xf32>
    %678 = arith.divf %676, %677 : vector<8x32xf32>
    %679 = arith.mulf %672, %666 : vector<8x32xf32>
    %680 = arith.addf %644, %679 : vector<8x32xf32>
    %681 = math.tanh %680 : vector<8x32xf32>
    %cst_470 = arith.constant 1.000000e+00 : f32
    %682 = vector.broadcast %cst_470 : f32 to vector<8x32xf32>
    %683 = arith.subf %682, %678 : vector<8x32xf32>
    %684 = arith.mulf %683, %681 : vector<8x32xf32>
    %685 = arith.mulf %678, %567 : vector<8x32xf32>
    %686 = arith.addf %684, %685 : vector<8x32xf32>
    %687 = arith.truncf %686 : vector<8x32xf32> to vector<8x32xbf16>
    %c0_471 = arith.constant 0 : index
    %c0_472 = arith.constant 0 : index
    %c0_473 = arith.constant 0 : index
    %688 = vector.load %arg7[%c0_471, %c0_472, %c0_473] : memref<3x32x32xbf16, #tpu.memory_space<vmem>>, vector<1x32x32xbf16>
    %689 = vector.shape_cast %688 : vector<1x32x32xbf16> to vector<32x32xbf16>
    %cst_474 = arith.constant dense<0.000000e+00> : vector<8x32xf32>
    %690 = tpu.matmul %687, %689, %cst_474 {dimension_numbers = #tpu.dot_dimension_numbers<[1], [0], [0], [1], [0, 0, 1, 1], [], []>} : vector<8x32xbf16>, vector<32x32xbf16>, vector<8x32xf32> -> vector<8x32xf32>
    %c0_475 = arith.constant 0 : index
    %c0_476 = arith.constant 0 : index
    %c0_477 = arith.constant 0 : index
    %691 = vector.load %arg9[%c0_475, %c0_476, %c0_477] : memref<3x1x32xf32, #tpu.memory_space<vmem>>, vector<1x1x32xf32>
    %692 = vector.shape_cast %691 : vector<1x1x32xf32> to vector<1x32xf32>
    %693 = vector.broadcast %692 : vector<1x32xf32> to vector<8x32xf32>
    %694 = arith.addf %690, %693 : vector<8x32xf32>
    %c1_478 = arith.constant 1 : index
    %c0_479 = arith.constant 0 : index
    %c0_480 = arith.constant 0 : index
    %695 = vector.load %arg7[%c1_478, %c0_479, %c0_480] : memref<3x32x32xbf16, #tpu.memory_space<vmem>>, vector<1x32x32xbf16>
    %696 = vector.shape_cast %695 : vector<1x32x32xbf16> to vector<32x32xbf16>
    %cst_481 = arith.constant dense<0.000000e+00> : vector<8x32xf32>
    %697 = tpu.matmul %687, %696, %cst_481 {dimension_numbers = #tpu.dot_dimension_numbers<[1], [0], [0], [1], [0, 0, 1, 1], [], []>} : vector<8x32xbf16>, vector<32x32xbf16>, vector<8x32xf32> -> vector<8x32xf32>
    %c1_482 = arith.constant 1 : index
    %c0_483 = arith.constant 0 : index
    %c0_484 = arith.constant 0 : index
    %698 = vector.load %arg9[%c1_482, %c0_483, %c0_484] : memref<3x1x32xf32, #tpu.memory_space<vmem>>, vector<1x1x32xf32>
    %699 = vector.shape_cast %698 : vector<1x1x32xf32> to vector<1x32xf32>
    %700 = vector.broadcast %699 : vector<1x32xf32> to vector<8x32xf32>
    %701 = arith.addf %697, %700 : vector<8x32xf32>
    %c2_485 = arith.constant 2 : index
    %c0_486 = arith.constant 0 : index
    %c0_487 = arith.constant 0 : index
    %702 = vector.load %arg7[%c2_485, %c0_486, %c0_487] : memref<3x32x32xbf16, #tpu.memory_space<vmem>>, vector<1x32x32xbf16>
    %703 = vector.shape_cast %702 : vector<1x32x32xbf16> to vector<32x32xbf16>
    %cst_488 = arith.constant dense<0.000000e+00> : vector<8x32xf32>
    %704 = tpu.matmul %687, %703, %cst_488 {dimension_numbers = #tpu.dot_dimension_numbers<[1], [0], [0], [1], [0, 0, 1, 1], [], []>} : vector<8x32xbf16>, vector<32x32xbf16>, vector<8x32xf32> -> vector<8x32xf32>
    %c2_489 = arith.constant 2 : index
    %c0_490 = arith.constant 0 : index
    %c0_491 = arith.constant 0 : index
    %705 = vector.load %arg9[%c2_489, %c0_490, %c0_491] : memref<3x1x32xf32, #tpu.memory_space<vmem>>, vector<1x1x32xf32>
    %706 = vector.shape_cast %705 : vector<1x1x32xf32> to vector<1x32xf32>
    %707 = vector.broadcast %706 : vector<1x32xf32> to vector<8x32xf32>
    %708 = arith.addf %704, %707 : vector<8x32xf32>
    %709 = arith.truncf %631 : vector<8x32xf32> to vector<8x32xbf16>
    %c0_492 = arith.constant 0 : index
    %c0_493 = arith.constant 0 : index
    %c0_494 = arith.constant 0 : index
    %710 = vector.load %arg8[%c0_492, %c0_493, %c0_494] : memref<3x32x32xbf16, #tpu.memory_space<vmem>>, vector<1x32x32xbf16>
    %711 = vector.shape_cast %710 : vector<1x32x32xbf16> to vector<32x32xbf16>
    %cst_495 = arith.constant dense<0.000000e+00> : vector<8x32xf32>
    %712 = tpu.matmul %709, %711, %cst_495 {dimension_numbers = #tpu.dot_dimension_numbers<[1], [0], [0], [1], [0, 0, 1, 1], [], []>} : vector<8x32xbf16>, vector<32x32xbf16>, vector<8x32xf32> -> vector<8x32xf32>
    %c0_496 = arith.constant 0 : index
    %c0_497 = arith.constant 0 : index
    %c0_498 = arith.constant 0 : index
    %713 = vector.load %arg10[%c0_496, %c0_497, %c0_498] : memref<3x1x32xf32, #tpu.memory_space<vmem>>, vector<1x1x32xf32>
    %714 = vector.shape_cast %713 : vector<1x1x32xf32> to vector<1x32xf32>
    %715 = vector.broadcast %714 : vector<1x32xf32> to vector<8x32xf32>
    %716 = arith.addf %712, %715 : vector<8x32xf32>
    %c1_499 = arith.constant 1 : index
    %c0_500 = arith.constant 0 : index
    %c0_501 = arith.constant 0 : index
    %717 = vector.load %arg8[%c1_499, %c0_500, %c0_501] : memref<3x32x32xbf16, #tpu.memory_space<vmem>>, vector<1x32x32xbf16>
    %718 = vector.shape_cast %717 : vector<1x32x32xbf16> to vector<32x32xbf16>
    %cst_502 = arith.constant dense<0.000000e+00> : vector<8x32xf32>
    %719 = tpu.matmul %709, %718, %cst_502 {dimension_numbers = #tpu.dot_dimension_numbers<[1], [0], [0], [1], [0, 0, 1, 1], [], []>} : vector<8x32xbf16>, vector<32x32xbf16>, vector<8x32xf32> -> vector<8x32xf32>
    %c1_503 = arith.constant 1 : index
    %c0_504 = arith.constant 0 : index
    %c0_505 = arith.constant 0 : index
    %720 = vector.load %arg10[%c1_503, %c0_504, %c0_505] : memref<3x1x32xf32, #tpu.memory_space<vmem>>, vector<1x1x32xf32>
    %721 = vector.shape_cast %720 : vector<1x1x32xf32> to vector<1x32xf32>
    %722 = vector.broadcast %721 : vector<1x32xf32> to vector<8x32xf32>
    %723 = arith.addf %719, %722 : vector<8x32xf32>
    %c2_506 = arith.constant 2 : index
    %c0_507 = arith.constant 0 : index
    %c0_508 = arith.constant 0 : index
    %724 = vector.load %arg8[%c2_506, %c0_507, %c0_508] : memref<3x32x32xbf16, #tpu.memory_space<vmem>>, vector<1x32x32xbf16>
    %725 = vector.shape_cast %724 : vector<1x32x32xbf16> to vector<32x32xbf16>
    %cst_509 = arith.constant dense<0.000000e+00> : vector<8x32xf32>
    %726 = tpu.matmul %709, %725, %cst_509 {dimension_numbers = #tpu.dot_dimension_numbers<[1], [0], [0], [1], [0, 0, 1, 1], [], []>} : vector<8x32xbf16>, vector<32x32xbf16>, vector<8x32xf32> -> vector<8x32xf32>
    %c2_510 = arith.constant 2 : index
    %c0_511 = arith.constant 0 : index
    %c0_512 = arith.constant 0 : index
    %727 = vector.load %arg10[%c2_510, %c0_511, %c0_512] : memref<3x1x32xf32, #tpu.memory_space<vmem>>, vector<1x1x32xf32>
    %728 = vector.shape_cast %727 : vector<1x1x32xf32> to vector<1x32xf32>
    %729 = vector.broadcast %728 : vector<1x32xf32> to vector<8x32xf32>
    %730 = arith.addf %726, %729 : vector<8x32xf32>
    %731 = arith.addf %694, %716 : vector<8x32xf32>
    %732 = arith.negf %731 : vector<8x32xf32>
    %733 = math.exp %732 : vector<8x32xf32>
    %cst_513 = arith.constant 1.000000e+00 : f32
    %734 = vector.broadcast %cst_513 : f32 to vector<8x32xf32>
    %735 = arith.addf %734, %733 : vector<8x32xf32>
    %736 = arith.divf %734, %735 : vector<8x32xf32>
    %737 = arith.addf %701, %723 : vector<8x32xf32>
    %738 = arith.negf %737 : vector<8x32xf32>
    %739 = math.exp %738 : vector<8x32xf32>
    %cst_514 = arith.constant 1.000000e+00 : f32
    %740 = vector.broadcast %cst_514 : f32 to vector<8x32xf32>
    %741 = arith.addf %740, %739 : vector<8x32xf32>
    %742 = arith.divf %740, %741 : vector<8x32xf32>
    %743 = arith.mulf %736, %730 : vector<8x32xf32>
    %744 = arith.addf %708, %743 : vector<8x32xf32>
    %745 = math.tanh %744 : vector<8x32xf32>
    %cst_515 = arith.constant 1.000000e+00 : f32
    %746 = vector.broadcast %cst_515 : f32 to vector<8x32xf32>
    %747 = arith.subf %746, %742 : vector<8x32xf32>
    %748 = arith.mulf %747, %745 : vector<8x32xf32>
    %749 = arith.mulf %742, %631 : vector<8x32xf32>
    %750 = arith.addf %748, %749 : vector<8x32xf32>
    %751 = arith.index_cast %c5_i32 : i32 to index
    %c0_516 = arith.constant 0 : index
    %c0_517 = arith.constant 0 : index
    %752 = vector.load %arg16[%751, %c0_516, %c0_517] : memref<8x8x32xf32, #tpu.memory_space<vmem>>, vector<1x8x32xf32>
    %753 = vector.shape_cast %752 : vector<1x8x32xf32> to vector<8x32xf32>
    %754 = vector.shape_cast %750 : vector<8x32xf32> to vector<1x8x32xf32>
    tpu.vector_store %arg16[%751, %c0_516, %c0_517], %754 {strides = array<i32>} : memref<8x8x32xf32, #tpu.memory_space<vmem>>, vector<1x8x32xf32>,
    %c6_i32 = arith.constant 6 : i32
    %c0_518 = arith.constant 0 : index
    %755 = arith.index_cast %c6_i32 : i32 to index
    %c0_519 = arith.constant 0 : index
    %c0_520 = arith.constant 0 : index
    %756 = vector.load %arg15[%c0_518, %755, %c0_519, %c0_520] : memref<3x8x8x32xf32, #tpu.memory_space<vmem>>, vector<1x1x8x32xf32>
    %757 = vector.shape_cast %756 : vector<1x1x8x32xf32> to vector<8x32xf32>
    %c1_521 = arith.constant 1 : index
    %758 = arith.index_cast %c6_i32 : i32 to index
    %c0_522 = arith.constant 0 : index
    %c0_523 = arith.constant 0 : index
    %759 = vector.load %arg15[%c1_521, %758, %c0_522, %c0_523] : memref<3x8x8x32xf32, #tpu.memory_space<vmem>>, vector<1x1x8x32xf32>
    %760 = vector.shape_cast %759 : vector<1x1x8x32xf32> to vector<8x32xf32>
    %c2_524 = arith.constant 2 : index
    %761 = arith.index_cast %c6_i32 : i32 to index
    %c0_525 = arith.constant 0 : index
    %c0_526 = arith.constant 0 : index
    %762 = vector.load %arg15[%c2_524, %761, %c0_525, %c0_526] : memref<3x8x8x32xf32, #tpu.memory_space<vmem>>, vector<1x1x8x32xf32>
    %763 = vector.shape_cast %762 : vector<1x1x8x32xf32> to vector<8x32xf32>
    %764 = arith.truncf %686 : vector<8x32xf32> to vector<8x32xbf16>
    %c0_527 = arith.constant 0 : index
    %c0_528 = arith.constant 0 : index
    %c0_529 = arith.constant 0 : index
    %765 = vector.load %arg4[%c0_527, %c0_528, %c0_529] : memref<3x32x32xbf16, #tpu.memory_space<vmem>>, vector<1x32x32xbf16>
    %766 = vector.shape_cast %765 : vector<1x32x32xbf16> to vector<32x32xbf16>
    %cst_530 = arith.constant dense<0.000000e+00> : vector<8x32xf32>
    %767 = tpu.matmul %764, %766, %cst_530 {dimension_numbers = #tpu.dot_dimension_numbers<[1], [0], [0], [1], [0, 0, 1, 1], [], []>} : vector<8x32xbf16>, vector<32x32xbf16>, vector<8x32xf32> -> vector<8x32xf32>
    %c0_531 = arith.constant 0 : index
    %c0_532 = arith.constant 0 : index
    %c0_533 = arith.constant 0 : index
    %768 = vector.load %arg6[%c0_531, %c0_532, %c0_533] : memref<3x1x32xf32, #tpu.memory_space<vmem>>, vector<1x1x32xf32>
    %769 = vector.shape_cast %768 : vector<1x1x32xf32> to vector<1x32xf32>
    %770 = vector.broadcast %769 : vector<1x32xf32> to vector<8x32xf32>
    %771 = arith.addf %767, %770 : vector<8x32xf32>
    %c1_534 = arith.constant 1 : index
    %c0_535 = arith.constant 0 : index
    %c0_536 = arith.constant 0 : index
    %772 = vector.load %arg4[%c1_534, %c0_535, %c0_536] : memref<3x32x32xbf16, #tpu.memory_space<vmem>>, vector<1x32x32xbf16>
    %773 = vector.shape_cast %772 : vector<1x32x32xbf16> to vector<32x32xbf16>
    %cst_537 = arith.constant dense<0.000000e+00> : vector<8x32xf32>
    %774 = tpu.matmul %764, %773, %cst_537 {dimension_numbers = #tpu.dot_dimension_numbers<[1], [0], [0], [1], [0, 0, 1, 1], [], []>} : vector<8x32xbf16>, vector<32x32xbf16>, vector<8x32xf32> -> vector<8x32xf32>
    %c1_538 = arith.constant 1 : index
    %c0_539 = arith.constant 0 : index
    %c0_540 = arith.constant 0 : index
    %775 = vector.load %arg6[%c1_538, %c0_539, %c0_540] : memref<3x1x32xf32, #tpu.memory_space<vmem>>, vector<1x1x32xf32>
    %776 = vector.shape_cast %775 : vector<1x1x32xf32> to vector<1x32xf32>
    %777 = vector.broadcast %776 : vector<1x32xf32> to vector<8x32xf32>
    %778 = arith.addf %774, %777 : vector<8x32xf32>
    %c2_541 = arith.constant 2 : index
    %c0_542 = arith.constant 0 : index
    %c0_543 = arith.constant 0 : index
    %779 = vector.load %arg4[%c2_541, %c0_542, %c0_543] : memref<3x32x32xbf16, #tpu.memory_space<vmem>>, vector<1x32x32xbf16>
    %780 = vector.shape_cast %779 : vector<1x32x32xbf16> to vector<32x32xbf16>
    %cst_544 = arith.constant dense<0.000000e+00> : vector<8x32xf32>
    %781 = tpu.matmul %764, %780, %cst_544 {dimension_numbers = #tpu.dot_dimension_numbers<[1], [0], [0], [1], [0, 0, 1, 1], [], []>} : vector<8x32xbf16>, vector<32x32xbf16>, vector<8x32xf32> -> vector<8x32xf32>
    %c2_545 = arith.constant 2 : index
    %c0_546 = arith.constant 0 : index
    %c0_547 = arith.constant 0 : index
    %782 = vector.load %arg6[%c2_545, %c0_546, %c0_547] : memref<3x1x32xf32, #tpu.memory_space<vmem>>, vector<1x1x32xf32>
    %783 = vector.shape_cast %782 : vector<1x1x32xf32> to vector<1x32xf32>
    %784 = vector.broadcast %783 : vector<1x32xf32> to vector<8x32xf32>
    %785 = arith.addf %781, %784 : vector<8x32xf32>
    %786 = arith.addf %757, %771 : vector<8x32xf32>
    %787 = arith.negf %786 : vector<8x32xf32>
    %788 = math.exp %787 : vector<8x32xf32>
    %cst_548 = arith.constant 1.000000e+00 : f32
    %789 = vector.broadcast %cst_548 : f32 to vector<8x32xf32>
    %790 = arith.addf %789, %788 : vector<8x32xf32>
    %791 = arith.divf %789, %790 : vector<8x32xf32>
    %792 = arith.addf %760, %778 : vector<8x32xf32>
    %793 = arith.negf %792 : vector<8x32xf32>
    %794 = math.exp %793 : vector<8x32xf32>
    %cst_549 = arith.constant 1.000000e+00 : f32
    %795 = vector.broadcast %cst_549 : f32 to vector<8x32xf32>
    %796 = arith.addf %795, %794 : vector<8x32xf32>
    %797 = arith.divf %795, %796 : vector<8x32xf32>
    %798 = arith.mulf %791, %785 : vector<8x32xf32>
    %799 = arith.addf %763, %798 : vector<8x32xf32>
    %800 = math.tanh %799 : vector<8x32xf32>
    %cst_550 = arith.constant 1.000000e+00 : f32
    %801 = vector.broadcast %cst_550 : f32 to vector<8x32xf32>
    %802 = arith.subf %801, %797 : vector<8x32xf32>
    %803 = arith.mulf %802, %800 : vector<8x32xf32>
    %804 = arith.mulf %797, %686 : vector<8x32xf32>
    %805 = arith.addf %803, %804 : vector<8x32xf32>
    %806 = arith.truncf %805 : vector<8x32xf32> to vector<8x32xbf16>
    %c0_551 = arith.constant 0 : index
    %c0_552 = arith.constant 0 : index
    %c0_553 = arith.constant 0 : index
    %807 = vector.load %arg7[%c0_551, %c0_552, %c0_553] : memref<3x32x32xbf16, #tpu.memory_space<vmem>>, vector<1x32x32xbf16>
    %808 = vector.shape_cast %807 : vector<1x32x32xbf16> to vector<32x32xbf16>
    %cst_554 = arith.constant dense<0.000000e+00> : vector<8x32xf32>
    %809 = tpu.matmul %806, %808, %cst_554 {dimension_numbers = #tpu.dot_dimension_numbers<[1], [0], [0], [1], [0, 0, 1, 1], [], []>} : vector<8x32xbf16>, vector<32x32xbf16>, vector<8x32xf32> -> vector<8x32xf32>
    %c0_555 = arith.constant 0 : index
    %c0_556 = arith.constant 0 : index
    %c0_557 = arith.constant 0 : index
    %810 = vector.load %arg9[%c0_555, %c0_556, %c0_557] : memref<3x1x32xf32, #tpu.memory_space<vmem>>, vector<1x1x32xf32>
    %811 = vector.shape_cast %810 : vector<1x1x32xf32> to vector<1x32xf32>
    %812 = vector.broadcast %811 : vector<1x32xf32> to vector<8x32xf32>
    %813 = arith.addf %809, %812 : vector<8x32xf32>
    %c1_558 = arith.constant 1 : index
    %c0_559 = arith.constant 0 : index
    %c0_560 = arith.constant 0 : index
    %814 = vector.load %arg7[%c1_558, %c0_559, %c0_560] : memref<3x32x32xbf16, #tpu.memory_space<vmem>>, vector<1x32x32xbf16>
    %815 = vector.shape_cast %814 : vector<1x32x32xbf16> to vector<32x32xbf16>
    %cst_561 = arith.constant dense<0.000000e+00> : vector<8x32xf32>
    %816 = tpu.matmul %806, %815, %cst_561 {dimension_numbers = #tpu.dot_dimension_numbers<[1], [0], [0], [1], [0, 0, 1, 1], [], []>} : vector<8x32xbf16>, vector<32x32xbf16>, vector<8x32xf32> -> vector<8x32xf32>
    %c1_562 = arith.constant 1 : index
    %c0_563 = arith.constant 0 : index
    %c0_564 = arith.constant 0 : index
    %817 = vector.load %arg9[%c1_562, %c0_563, %c0_564] : memref<3x1x32xf32, #tpu.memory_space<vmem>>, vector<1x1x32xf32>
    %818 = vector.shape_cast %817 : vector<1x1x32xf32> to vector<1x32xf32>
    %819 = vector.broadcast %818 : vector<1x32xf32> to vector<8x32xf32>
    %820 = arith.addf %816, %819 : vector<8x32xf32>
    %c2_565 = arith.constant 2 : index
    %c0_566 = arith.constant 0 : index
    %c0_567 = arith.constant 0 : index
    %821 = vector.load %arg7[%c2_565, %c0_566, %c0_567] : memref<3x32x32xbf16, #tpu.memory_space<vmem>>, vector<1x32x32xbf16>
    %822 = vector.shape_cast %821 : vector<1x32x32xbf16> to vector<32x32xbf16>
    %cst_568 = arith.constant dense<0.000000e+00> : vector<8x32xf32>
    %823 = tpu.matmul %806, %822, %cst_568 {dimension_numbers = #tpu.dot_dimension_numbers<[1], [0], [0], [1], [0, 0, 1, 1], [], []>} : vector<8x32xbf16>, vector<32x32xbf16>, vector<8x32xf32> -> vector<8x32xf32>
    %c2_569 = arith.constant 2 : index
    %c0_570 = arith.constant 0 : index
    %c0_571 = arith.constant 0 : index
    %824 = vector.load %arg9[%c2_569, %c0_570, %c0_571] : memref<3x1x32xf32, #tpu.memory_space<vmem>>, vector<1x1x32xf32>
    %825 = vector.shape_cast %824 : vector<1x1x32xf32> to vector<1x32xf32>
    %826 = vector.broadcast %825 : vector<1x32xf32> to vector<8x32xf32>
    %827 = arith.addf %823, %826 : vector<8x32xf32>
    %828 = arith.truncf %750 : vector<8x32xf32> to vector<8x32xbf16>
    %c0_572 = arith.constant 0 : index
    %c0_573 = arith.constant 0 : index
    %c0_574 = arith.constant 0 : index
    %829 = vector.load %arg8[%c0_572, %c0_573, %c0_574] : memref<3x32x32xbf16, #tpu.memory_space<vmem>>, vector<1x32x32xbf16>
    %830 = vector.shape_cast %829 : vector<1x32x32xbf16> to vector<32x32xbf16>
    %cst_575 = arith.constant dense<0.000000e+00> : vector<8x32xf32>
    %831 = tpu.matmul %828, %830, %cst_575 {dimension_numbers = #tpu.dot_dimension_numbers<[1], [0], [0], [1], [0, 0, 1, 1], [], []>} : vector<8x32xbf16>, vector<32x32xbf16>, vector<8x32xf32> -> vector<8x32xf32>
    %c0_576 = arith.constant 0 : index
    %c0_577 = arith.constant 0 : index
    %c0_578 = arith.constant 0 : index
    %832 = vector.load %arg10[%c0_576, %c0_577, %c0_578] : memref<3x1x32xf32, #tpu.memory_space<vmem>>, vector<1x1x32xf32>
    %833 = vector.shape_cast %832 : vector<1x1x32xf32> to vector<1x32xf32>
    %834 = vector.broadcast %833 : vector<1x32xf32> to vector<8x32xf32>
    %835 = arith.addf %831, %834 : vector<8x32xf32>
    %c1_579 = arith.constant 1 : index
    %c0_580 = arith.constant 0 : index
    %c0_581 = arith.constant 0 : index
    %836 = vector.load %arg8[%c1_579, %c0_580, %c0_581] : memref<3x32x32xbf16, #tpu.memory_space<vmem>>, vector<1x32x32xbf16>
    %837 = vector.shape_cast %836 : vector<1x32x32xbf16> to vector<32x32xbf16>
    %cst_582 = arith.constant dense<0.000000e+00> : vector<8x32xf32>
    %838 = tpu.matmul %828, %837, %cst_582 {dimension_numbers = #tpu.dot_dimension_numbers<[1], [0], [0], [1], [0, 0, 1, 1], [], []>} : vector<8x32xbf16>, vector<32x32xbf16>, vector<8x32xf32> -> vector<8x32xf32>
    %c1_583 = arith.constant 1 : index
    %c0_584 = arith.constant 0 : index
    %c0_585 = arith.constant 0 : index
    %839 = vector.load %arg10[%c1_583, %c0_584, %c0_585] : memref<3x1x32xf32, #tpu.memory_space<vmem>>, vector<1x1x32xf32>
    %840 = vector.shape_cast %839 : vector<1x1x32xf32> to vector<1x32xf32>
    %841 = vector.broadcast %840 : vector<1x32xf32> to vector<8x32xf32>
    %842 = arith.addf %838, %841 : vector<8x32xf32>
    %c2_586 = arith.constant 2 : index
    %c0_587 = arith.constant 0 : index
    %c0_588 = arith.constant 0 : index
    %843 = vector.load %arg8[%c2_586, %c0_587, %c0_588] : memref<3x32x32xbf16, #tpu.memory_space<vmem>>, vector<1x32x32xbf16>
    %844 = vector.shape_cast %843 : vector<1x32x32xbf16> to vector<32x32xbf16>
    %cst_589 = arith.constant dense<0.000000e+00> : vector<8x32xf32>
    %845 = tpu.matmul %828, %844, %cst_589 {dimension_numbers = #tpu.dot_dimension_numbers<[1], [0], [0], [1], [0, 0, 1, 1], [], []>} : vector<8x32xbf16>, vector<32x32xbf16>, vector<8x32xf32> -> vector<8x32xf32>
    %c2_590 = arith.constant 2 : index
    %c0_591 = arith.constant 0 : index
    %c0_592 = arith.constant 0 : index
    %846 = vector.load %arg10[%c2_590, %c0_591, %c0_592] : memref<3x1x32xf32, #tpu.memory_space<vmem>>, vector<1x1x32xf32>
    %847 = vector.shape_cast %846 : vector<1x1x32xf32> to vector<1x32xf32>
    %848 = vector.broadcast %847 : vector<1x32xf32> to vector<8x32xf32>
    %849 = arith.addf %845, %848 : vector<8x32xf32>
    %850 = arith.addf %813, %835 : vector<8x32xf32>
    %851 = arith.negf %850 : vector<8x32xf32>
    %852 = math.exp %851 : vector<8x32xf32>
    %cst_593 = arith.constant 1.000000e+00 : f32
    %853 = vector.broadcast %cst_593 : f32 to vector<8x32xf32>
    %854 = arith.addf %853, %852 : vector<8x32xf32>
    %855 = arith.divf %853, %854 : vector<8x32xf32>
    %856 = arith.addf %820, %842 : vector<8x32xf32>
    %857 = arith.negf %856 : vector<8x32xf32>
    %858 = math.exp %857 : vector<8x32xf32>
    %cst_594 = arith.constant 1.000000e+00 : f32
    %859 = vector.broadcast %cst_594 : f32 to vector<8x32xf32>
    %860 = arith.addf %859, %858 : vector<8x32xf32>
    %861 = arith.divf %859, %860 : vector<8x32xf32>
    %862 = arith.mulf %855, %849 : vector<8x32xf32>
    %863 = arith.addf %827, %862 : vector<8x32xf32>
    %864 = math.tanh %863 : vector<8x32xf32>
    %cst_595 = arith.constant 1.000000e+00 : f32
    %865 = vector.broadcast %cst_595 : f32 to vector<8x32xf32>
    %866 = arith.subf %865, %861 : vector<8x32xf32>
    %867 = arith.mulf %866, %864 : vector<8x32xf32>
    %868 = arith.mulf %861, %750 : vector<8x32xf32>
    %869 = arith.addf %867, %868 : vector<8x32xf32>
    %870 = arith.index_cast %c6_i32 : i32 to index
    %c0_596 = arith.constant 0 : index
    %c0_597 = arith.constant 0 : index
    %871 = vector.load %arg16[%870, %c0_596, %c0_597] : memref<8x8x32xf32, #tpu.memory_space<vmem>>, vector<1x8x32xf32>
    %872 = vector.shape_cast %871 : vector<1x8x32xf32> to vector<8x32xf32>
    %873 = vector.shape_cast %869 : vector<8x32xf32> to vector<1x8x32xf32>
    tpu.vector_store %arg16[%870, %c0_596, %c0_597], %873 {strides = array<i32>} : memref<8x8x32xf32, #tpu.memory_space<vmem>>, vector<1x8x32xf32>,
    %c7_i32 = arith.constant 7 : i32
    %c0_598 = arith.constant 0 : index
    %874 = arith.index_cast %c7_i32 : i32 to index
    %c0_599 = arith.constant 0 : index
    %c0_600 = arith.constant 0 : index
    %875 = vector.load %arg15[%c0_598, %874, %c0_599, %c0_600] : memref<3x8x8x32xf32, #tpu.memory_space<vmem>>, vector<1x1x8x32xf32>
    %876 = vector.shape_cast %875 : vector<1x1x8x32xf32> to vector<8x32xf32>
    %c1_601 = arith.constant 1 : index
    %877 = arith.index_cast %c7_i32 : i32 to index
    %c0_602 = arith.constant 0 : index
    %c0_603 = arith.constant 0 : index
    %878 = vector.load %arg15[%c1_601, %877, %c0_602, %c0_603] : memref<3x8x8x32xf32, #tpu.memory_space<vmem>>, vector<1x1x8x32xf32>
    %879 = vector.shape_cast %878 : vector<1x1x8x32xf32> to vector<8x32xf32>
    %c2_604 = arith.constant 2 : index
    %880 = arith.index_cast %c7_i32 : i32 to index
    %c0_605 = arith.constant 0 : index
    %c0_606 = arith.constant 0 : index
    %881 = vector.load %arg15[%c2_604, %880, %c0_605, %c0_606] : memref<3x8x8x32xf32, #tpu.memory_space<vmem>>, vector<1x1x8x32xf32>
    %882 = vector.shape_cast %881 : vector<1x1x8x32xf32> to vector<8x32xf32>
    %883 = arith.truncf %805 : vector<8x32xf32> to vector<8x32xbf16>
    %c0_607 = arith.constant 0 : index
    %c0_608 = arith.constant 0 : index
    %c0_609 = arith.constant 0 : index
    %884 = vector.load %arg4[%c0_607, %c0_608, %c0_609] : memref<3x32x32xbf16, #tpu.memory_space<vmem>>, vector<1x32x32xbf16>
    %885 = vector.shape_cast %884 : vector<1x32x32xbf16> to vector<32x32xbf16>
    %cst_610 = arith.constant dense<0.000000e+00> : vector<8x32xf32>
    %886 = tpu.matmul %883, %885, %cst_610 {dimension_numbers = #tpu.dot_dimension_numbers<[1], [0], [0], [1], [0, 0, 1, 1], [], []>} : vector<8x32xbf16>, vector<32x32xbf16>, vector<8x32xf32> -> vector<8x32xf32>
    %c0_611 = arith.constant 0 : index
    %c0_612 = arith.constant 0 : index
    %c0_613 = arith.constant 0 : index
    %887 = vector.load %arg6[%c0_611, %c0_612, %c0_613] : memref<3x1x32xf32, #tpu.memory_space<vmem>>, vector<1x1x32xf32>
    %888 = vector.shape_cast %887 : vector<1x1x32xf32> to vector<1x32xf32>
    %889 = vector.broadcast %888 : vector<1x32xf32> to vector<8x32xf32>
    %890 = arith.addf %886, %889 : vector<8x32xf32>
    %c1_614 = arith.constant 1 : index
    %c0_615 = arith.constant 0 : index
    %c0_616 = arith.constant 0 : index
    %891 = vector.load %arg4[%c1_614, %c0_615, %c0_616] : memref<3x32x32xbf16, #tpu.memory_space<vmem>>, vector<1x32x32xbf16>
    %892 = vector.shape_cast %891 : vector<1x32x32xbf16> to vector<32x32xbf16>
    %cst_617 = arith.constant dense<0.000000e+00> : vector<8x32xf32>
    %893 = tpu.matmul %883, %892, %cst_617 {dimension_numbers = #tpu.dot_dimension_numbers<[1], [0], [0], [1], [0, 0, 1, 1], [], []>} : vector<8x32xbf16>, vector<32x32xbf16>, vector<8x32xf32> -> vector<8x32xf32>
    %c1_618 = arith.constant 1 : index
    %c0_619 = arith.constant 0 : index
    %c0_620 = arith.constant 0 : index
    %894 = vector.load %arg6[%c1_618, %c0_619, %c0_620] : memref<3x1x32xf32, #tpu.memory_space<vmem>>, vector<1x1x32xf32>
    %895 = vector.shape_cast %894 : vector<1x1x32xf32> to vector<1x32xf32>
    %896 = vector.broadcast %895 : vector<1x32xf32> to vector<8x32xf32>
    %897 = arith.addf %893, %896 : vector<8x32xf32>
    %c2_621 = arith.constant 2 : index
    %c0_622 = arith.constant 0 : index
    %c0_623 = arith.constant 0 : index
    %898 = vector.load %arg4[%c2_621, %c0_622, %c0_623] : memref<3x32x32xbf16, #tpu.memory_space<vmem>>, vector<1x32x32xbf16>
    %899 = vector.shape_cast %898 : vector<1x32x32xbf16> to vector<32x32xbf16>
    %cst_624 = arith.constant dense<0.000000e+00> : vector<8x32xf32>
    %900 = tpu.matmul %883, %899, %cst_624 {dimension_numbers = #tpu.dot_dimension_numbers<[1], [0], [0], [1], [0, 0, 1, 1], [], []>} : vector<8x32xbf16>, vector<32x32xbf16>, vector<8x32xf32> -> vector<8x32xf32>
    %c2_625 = arith.constant 2 : index
    %c0_626 = arith.constant 0 : index
    %c0_627 = arith.constant 0 : index
    %901 = vector.load %arg6[%c2_625, %c0_626, %c0_627] : memref<3x1x32xf32, #tpu.memory_space<vmem>>, vector<1x1x32xf32>
    %902 = vector.shape_cast %901 : vector<1x1x32xf32> to vector<1x32xf32>
    %903 = vector.broadcast %902 : vector<1x32xf32> to vector<8x32xf32>
    %904 = arith.addf %900, %903 : vector<8x32xf32>
    %905 = arith.addf %876, %890 : vector<8x32xf32>
    %906 = arith.negf %905 : vector<8x32xf32>
    %907 = math.exp %906 : vector<8x32xf32>
    %cst_628 = arith.constant 1.000000e+00 : f32
    %908 = vector.broadcast %cst_628 : f32 to vector<8x32xf32>
    %909 = arith.addf %908, %907 : vector<8x32xf32>
    %910 = arith.divf %908, %909 : vector<8x32xf32>
    %911 = arith.addf %879, %897 : vector<8x32xf32>
    %912 = arith.negf %911 : vector<8x32xf32>
    %913 = math.exp %912 : vector<8x32xf32>
    %cst_629 = arith.constant 1.000000e+00 : f32
    %914 = vector.broadcast %cst_629 : f32 to vector<8x32xf32>
    %915 = arith.addf %914, %913 : vector<8x32xf32>
    %916 = arith.divf %914, %915 : vector<8x32xf32>
    %917 = arith.mulf %910, %904 : vector<8x32xf32>
    %918 = arith.addf %882, %917 : vector<8x32xf32>
    %919 = math.tanh %918 : vector<8x32xf32>
    %cst_630 = arith.constant 1.000000e+00 : f32
    %920 = vector.broadcast %cst_630 : f32 to vector<8x32xf32>
    %921 = arith.subf %920, %916 : vector<8x32xf32>
    %922 = arith.mulf %921, %919 : vector<8x32xf32>
    %923 = arith.mulf %916, %805 : vector<8x32xf32>
    %924 = arith.addf %922, %923 : vector<8x32xf32>
    %925 = arith.truncf %924 : vector<8x32xf32> to vector<8x32xbf16>
    %c0_631 = arith.constant 0 : index
    %c0_632 = arith.constant 0 : index
    %c0_633 = arith.constant 0 : index
    %926 = vector.load %arg7[%c0_631, %c0_632, %c0_633] : memref<3x32x32xbf16, #tpu.memory_space<vmem>>, vector<1x32x32xbf16>
    %927 = vector.shape_cast %926 : vector<1x32x32xbf16> to vector<32x32xbf16>
    %cst_634 = arith.constant dense<0.000000e+00> : vector<8x32xf32>
    %928 = tpu.matmul %925, %927, %cst_634 {dimension_numbers = #tpu.dot_dimension_numbers<[1], [0], [0], [1], [0, 0, 1, 1], [], []>} : vector<8x32xbf16>, vector<32x32xbf16>, vector<8x32xf32> -> vector<8x32xf32>
    %c0_635 = arith.constant 0 : index
    %c0_636 = arith.constant 0 : index
    %c0_637 = arith.constant 0 : index
    %929 = vector.load %arg9[%c0_635, %c0_636, %c0_637] : memref<3x1x32xf32, #tpu.memory_space<vmem>>, vector<1x1x32xf32>
    %930 = vector.shape_cast %929 : vector<1x1x32xf32> to vector<1x32xf32>
    %931 = vector.broadcast %930 : vector<1x32xf32> to vector<8x32xf32>
    %932 = arith.addf %928, %931 : vector<8x32xf32>
    %c1_638 = arith.constant 1 : index
    %c0_639 = arith.constant 0 : index
    %c0_640 = arith.constant 0 : index
    %933 = vector.load %arg7[%c1_638, %c0_639, %c0_640] : memref<3x32x32xbf16, #tpu.memory_space<vmem>>, vector<1x32x32xbf16>
    %934 = vector.shape_cast %933 : vector<1x32x32xbf16> to vector<32x32xbf16>
    %cst_641 = arith.constant dense<0.000000e+00> : vector<8x32xf32>
    %935 = tpu.matmul %925, %934, %cst_641 {dimension_numbers = #tpu.dot_dimension_numbers<[1], [0], [0], [1], [0, 0, 1, 1], [], []>} : vector<8x32xbf16>, vector<32x32xbf16>, vector<8x32xf32> -> vector<8x32xf32>
    %c1_642 = arith.constant 1 : index
    %c0_643 = arith.constant 0 : index
    %c0_644 = arith.constant 0 : index
    %936 = vector.load %arg9[%c1_642, %c0_643, %c0_644] : memref<3x1x32xf32, #tpu.memory_space<vmem>>, vector<1x1x32xf32>
    %937 = vector.shape_cast %936 : vector<1x1x32xf32> to vector<1x32xf32>
    %938 = vector.broadcast %937 : vector<1x32xf32> to vector<8x32xf32>
    %939 = arith.addf %935, %938 : vector<8x32xf32>
    %c2_645 = arith.constant 2 : index
    %c0_646 = arith.constant 0 : index
    %c0_647 = arith.constant 0 : index
    %940 = vector.load %arg7[%c2_645, %c0_646, %c0_647] : memref<3x32x32xbf16, #tpu.memory_space<vmem>>, vector<1x32x32xbf16>
    %941 = vector.shape_cast %940 : vector<1x32x32xbf16> to vector<32x32xbf16>
    %cst_648 = arith.constant dense<0.000000e+00> : vector<8x32xf32>
    %942 = tpu.matmul %925, %941, %cst_648 {dimension_numbers = #tpu.dot_dimension_numbers<[1], [0], [0], [1], [0, 0, 1, 1], [], []>} : vector<8x32xbf16>, vector<32x32xbf16>, vector<8x32xf32> -> vector<8x32xf32>
    %c2_649 = arith.constant 2 : index
    %c0_650 = arith.constant 0 : index
    %c0_651 = arith.constant 0 : index
    %943 = vector.load %arg9[%c2_649, %c0_650, %c0_651] : memref<3x1x32xf32, #tpu.memory_space<vmem>>, vector<1x1x32xf32>
    %944 = vector.shape_cast %943 : vector<1x1x32xf32> to vector<1x32xf32>
    %945 = vector.broadcast %944 : vector<1x32xf32> to vector<8x32xf32>
    %946 = arith.addf %942, %945 : vector<8x32xf32>
    %947 = arith.truncf %869 : vector<8x32xf32> to vector<8x32xbf16>
    %c0_652 = arith.constant 0 : index
    %c0_653 = arith.constant 0 : index
    %c0_654 = arith.constant 0 : index
    %948 = vector.load %arg8[%c0_652, %c0_653, %c0_654] : memref<3x32x32xbf16, #tpu.memory_space<vmem>>, vector<1x32x32xbf16>
    %949 = vector.shape_cast %948 : vector<1x32x32xbf16> to vector<32x32xbf16>
    %cst_655 = arith.constant dense<0.000000e+00> : vector<8x32xf32>
    %950 = tpu.matmul %947, %949, %cst_655 {dimension_numbers = #tpu.dot_dimension_numbers<[1], [0], [0], [1], [0, 0, 1, 1], [], []>} : vector<8x32xbf16>, vector<32x32xbf16>, vector<8x32xf32> -> vector<8x32xf32>
    %c0_656 = arith.constant 0 : index
    %c0_657 = arith.constant 0 : index
    %c0_658 = arith.constant 0 : index
    %951 = vector.load %arg10[%c0_656, %c0_657, %c0_658] : memref<3x1x32xf32, #tpu.memory_space<vmem>>, vector<1x1x32xf32>
    %952 = vector.shape_cast %951 : vector<1x1x32xf32> to vector<1x32xf32>
    %953 = vector.broadcast %952 : vector<1x32xf32> to vector<8x32xf32>
    %954 = arith.addf %950, %953 : vector<8x32xf32>
    %c1_659 = arith.constant 1 : index
    %c0_660 = arith.constant 0 : index
    %c0_661 = arith.constant 0 : index
    %955 = vector.load %arg8[%c1_659, %c0_660, %c0_661] : memref<3x32x32xbf16, #tpu.memory_space<vmem>>, vector<1x32x32xbf16>
    %956 = vector.shape_cast %955 : vector<1x32x32xbf16> to vector<32x32xbf16>
    %cst_662 = arith.constant dense<0.000000e+00> : vector<8x32xf32>
    %957 = tpu.matmul %947, %956, %cst_662 {dimension_numbers = #tpu.dot_dimension_numbers<[1], [0], [0], [1], [0, 0, 1, 1], [], []>} : vector<8x32xbf16>, vector<32x32xbf16>, vector<8x32xf32> -> vector<8x32xf32>
    %c1_663 = arith.constant 1 : index
    %c0_664 = arith.constant 0 : index
    %c0_665 = arith.constant 0 : index
    %958 = vector.load %arg10[%c1_663, %c0_664, %c0_665] : memref<3x1x32xf32, #tpu.memory_space<vmem>>, vector<1x1x32xf32>
    %959 = vector.shape_cast %958 : vector<1x1x32xf32> to vector<1x32xf32>
    %960 = vector.broadcast %959 : vector<1x32xf32> to vector<8x32xf32>
    %961 = arith.addf %957, %960 : vector<8x32xf32>
    %c2_666 = arith.constant 2 : index
    %c0_667 = arith.constant 0 : index
    %c0_668 = arith.constant 0 : index
    %962 = vector.load %arg8[%c2_666, %c0_667, %c0_668] : memref<3x32x32xbf16, #tpu.memory_space<vmem>>, vector<1x32x32xbf16>
    %963 = vector.shape_cast %962 : vector<1x32x32xbf16> to vector<32x32xbf16>
    %cst_669 = arith.constant dense<0.000000e+00> : vector<8x32xf32>
    %964 = tpu.matmul %947, %963, %cst_669 {dimension_numbers = #tpu.dot_dimension_numbers<[1], [0], [0], [1], [0, 0, 1, 1], [], []>} : vector<8x32xbf16>, vector<32x32xbf16>, vector<8x32xf32> -> vector<8x32xf32>
    %c2_670 = arith.constant 2 : index
    %c0_671 = arith.constant 0 : index
    %c0_672 = arith.constant 0 : index
    %965 = vector.load %arg10[%c2_670, %c0_671, %c0_672] : memref<3x1x32xf32, #tpu.memory_space<vmem>>, vector<1x1x32xf32>
    %966 = vector.shape_cast %965 : vector<1x1x32xf32> to vector<1x32xf32>
    %967 = vector.broadcast %966 : vector<1x32xf32> to vector<8x32xf32>
    %968 = arith.addf %964, %967 : vector<8x32xf32>
    %969 = arith.addf %932, %954 : vector<8x32xf32>
    %970 = arith.negf %969 : vector<8x32xf32>
    %971 = math.exp %970 : vector<8x32xf32>
    %cst_673 = arith.constant 1.000000e+00 : f32
    %972 = vector.broadcast %cst_673 : f32 to vector<8x32xf32>
    %973 = arith.addf %972, %971 : vector<8x32xf32>
    %974 = arith.divf %972, %973 : vector<8x32xf32>
    %975 = arith.addf %939, %961 : vector<8x32xf32>
    %976 = arith.negf %975 : vector<8x32xf32>
    %977 = math.exp %976 : vector<8x32xf32>
    %cst_674 = arith.constant 1.000000e+00 : f32
    %978 = vector.broadcast %cst_674 : f32 to vector<8x32xf32>
    %979 = arith.addf %978, %977 : vector<8x32xf32>
    %980 = arith.divf %978, %979 : vector<8x32xf32>
    %981 = arith.mulf %974, %968 : vector<8x32xf32>
    %982 = arith.addf %946, %981 : vector<8x32xf32>
    %983 = math.tanh %982 : vector<8x32xf32>
    %cst_675 = arith.constant 1.000000e+00 : f32
    %984 = vector.broadcast %cst_675 : f32 to vector<8x32xf32>
    %985 = arith.subf %984, %980 : vector<8x32xf32>
    %986 = arith.mulf %985, %983 : vector<8x32xf32>
    %987 = arith.mulf %980, %869 : vector<8x32xf32>
    %988 = arith.addf %986, %987 : vector<8x32xf32>
    %989 = arith.index_cast %c7_i32 : i32 to index
    %c0_676 = arith.constant 0 : index
    %c0_677 = arith.constant 0 : index
    %990 = vector.load %arg16[%989, %c0_676, %c0_677] : memref<8x8x32xf32, #tpu.memory_space<vmem>>, vector<1x8x32xf32>
    %991 = vector.shape_cast %990 : vector<1x8x32xf32> to vector<8x32xf32>
    %992 = vector.shape_cast %988 : vector<8x32xf32> to vector<1x8x32xf32>
    tpu.vector_store %arg16[%989, %c0_676, %c0_677], %992 {strides = array<i32>} : memref<8x8x32xf32, #tpu.memory_space<vmem>>, vector<1x8x32xf32>,
    %c8_i32 = arith.constant 8 : i32
    %c0_678 = arith.constant 0 : index
    %c0_679 = arith.constant 0 : index
    %993 = vector.load %arg17[%c0_678, %c0_679] : memref<8x32xf32, #tpu.memory_space<vmem>>, vector<8x32xf32>
    tpu.vector_store %arg17[%c0_678, %c0_679], %924 {strides = array<i32>} : memref<8x32xf32, #tpu.memory_space<vmem>>, vector<8x32xf32>,
    %c0_680 = arith.constant 0 : index
    %c0_681 = arith.constant 0 : index
    %c0_682 = arith.constant 0 : index
    %994 = vector.load %arg14[%c0_680, %c0_681, %c0_682] : memref<2x8x32xf32, #tpu.memory_space<vmem>>, vector<1x8x32xf32>
    %995 = vector.shape_cast %994 : vector<1x8x32xf32> to vector<8x32xf32>
    %996 = vector.shape_cast %924 : vector<8x32xf32> to vector<1x8x32xf32>
    tpu.vector_store %arg14[%c0_680, %c0_681, %c0_682], %996 {strides = array<i32>} : memref<2x8x32xf32, #tpu.memory_space<vmem>>, vector<1x8x32xf32>,
    %c0_683 = arith.constant 0 : index
    %c0_684 = arith.constant 0 : index
    %997 = vector.load %arg18[%c0_683, %c0_684] : memref<8x32xf32, #tpu.memory_space<vmem>>, vector<8x32xf32>
    tpu.vector_store %arg18[%c0_683, %c0_684], %988 {strides = array<i32>} : memref<8x32xf32, #tpu.memory_space<vmem>>, vector<8x32xf32>,
    %c1_685 = arith.constant 1 : index
    %c0_686 = arith.constant 0 : index
    %c0_687 = arith.constant 0 : index
    %998 = vector.load %arg14[%c1_685, %c0_686, %c0_687] : memref<2x8x32xf32, #tpu.memory_space<vmem>>, vector<1x8x32xf32>
    %999 = vector.shape_cast %998 : vector<1x8x32xf32> to vector<8x32xf32>
    %1000 = vector.shape_cast %988 : vector<8x32xf32> to vector<1x8x32xf32>
    tpu.vector_store %arg14[%c1_685, %c0_686, %c0_687], %1000 {strides = array<i32>} : memref<2x8x32xf32, #tpu.memory_space<vmem>>, vector<1x8x32xf32>,
    %c0_688 = arith.constant 0 : index
    %c0_689 = arith.constant 0 : index
    %c0_690 = arith.constant 0 : index
    %1001 = vector.load %arg16[%c0_688, %c0_689, %c0_690] : memref<8x8x32xf32, #tpu.memory_space<vmem>>, vector<8x8x32xf32>
    %cst_691 = arith.constant 0.000000e+00 : f32
    %1002 = vector.broadcast %cst_691 : f32 to vector<8x8x32xf32>
    %1003 = arith.maximumf %1001, %1002 : vector<8x8x32xf32>
    %1004 = vector.shape_cast %1003 : vector<8x8x32xf32> to vector<64x32xf32>
    %1005 = arith.truncf %1004 : vector<64x32xf32> to vector<64x32xbf16>
    %c0_692 = arith.constant 0 : index
    %c0_693 = arith.constant 0 : index
    %1006 = vector.load %arg11[%c0_692, %c0_693] : memref<32x128xbf16, #tpu.memory_space<vmem>>, vector<32x128xbf16>
    %cst_694 = arith.constant dense<0.000000e+00> : vector<64x128xf32>
    %1007 = tpu.matmul %1005, %1006, %cst_694 {dimension_numbers = #tpu.dot_dimension_numbers<[1], [0], [0], [1], [0, 0, 1, 1], [], []>} : vector<64x32xbf16>, vector<32x128xbf16>, vector<64x128xf32> -> vector<64x128xf32>
    %c0_695 = arith.constant 0 : index
    %c0_696 = arith.constant 0 : index
    %1008 = vector.load %arg12[%c0_695, %c0_696] : memref<1x128xf32, #tpu.memory_space<vmem>>, vector<1x128xf32>
    %1009 = vector.broadcast %1008 : vector<1x128xf32> to vector<64x128xf32>
    %1010 = arith.addf %1007, %1009 : vector<64x128xf32>
    %1011 = vector.shape_cast %1010 : vector<64x128xf32> to vector<8x8x128xf32>
    %c0_697 = arith.constant 0 : index
    %c0_698 = arith.constant 0 : index
    %c0_699 = arith.constant 0 : index
    %1012 = vector.load %arg13[%c0_697, %c0_698, %c0_699] : memref<8x8x128xf32, #tpu.memory_space<vmem>>, vector<8x8x128xf32>
    tpu.vector_store %arg13[%c0_697, %c0_698, %c0_699], %1011 {strides = array<i32>} : memref<8x8x128xf32, #tpu.memory_space<vmem>>, vector<8x8x128xf32>,
    return
  }
  func.func @transform_0(%arg0: i32, %arg1: i32) -> (i32, i32, i32) {
    %c0_i32 = arith.constant 0 : i32
    %c0_i32_0 = arith.constant 0 : i32
    return %arg1, %arg0, %c0_i32 : i32, i32, i32
  }
  func.func @transform_1(%arg0: i32, %arg1: i32) -> (i32, i32, i32) {
    %c0_i32 = arith.constant 0 : i32
    %c0_i32_0 = arith.constant 0 : i32
    %c0_i32_1 = arith.constant 0 : i32
    %c0_i32_2 = arith.constant 0 : i32
    return %c0_i32, %c0_i32_0, %c0_i32_1 : i32, i32, i32
  }
  func.func @transform_2(%arg0: i32, %arg1: i32) -> (i32, i32, i32) {
    %c0_i32 = arith.constant 0 : i32
    %c0_i32_0 = arith.constant 0 : i32
    %c0_i32_1 = arith.constant 0 : i32
    %c0_i32_2 = arith.constant 0 : i32
    return %c0_i32, %c0_i32_0, %c0_i32_1 : i32, i32, i32
  }
  func.func @transform_3(%arg0: i32, %arg1: i32) -> (i32, i32, i32) {
    %c0_i32 = arith.constant 0 : i32
    %c0_i32_0 = arith.constant 0 : i32
    %c0_i32_1 = arith.constant 0 : i32
    %c0_i32_2 = arith.constant 0 : i32
    return %c0_i32, %c0_i32_0, %c0_i32_1 : i32, i32, i32
  }
  func.func @transform_4(%arg0: i32, %arg1: i32) -> (i32, i32, i32) {
    %c0_i32 = arith.constant 0 : i32
    %c0_i32_0 = arith.constant 0 : i32
    %c0_i32_1 = arith.constant 0 : i32
    %c0_i32_2 = arith.constant 0 : i32
    return %c0_i32, %c0_i32_0, %c0_i32_1 : i32, i32, i32
  }
  func.func @transform_5(%arg0: i32, %arg1: i32) -> (i32, i32, i32) {
    %c0_i32 = arith.constant 0 : i32
    %c0_i32_0 = arith.constant 0 : i32
    %c0_i32_1 = arith.constant 0 : i32
    %c0_i32_2 = arith.constant 0 : i32
    return %c0_i32, %c0_i32_0, %c0_i32_1 : i32, i32, i32
  }
  func.func @transform_6(%arg0: i32, %arg1: i32) -> (i32, i32, i32) {
    %c0_i32 = arith.constant 0 : i32
    %c0_i32_0 = arith.constant 0 : i32
    %c0_i32_1 = arith.constant 0 : i32
    %c0_i32_2 = arith.constant 0 : i32
    return %c0_i32, %c0_i32_0, %c0_i32_1 : i32, i32, i32
  }
  func.func @transform_7(%arg0: i32, %arg1: i32) -> (i32, i32, i32) {
    %c0_i32 = arith.constant 0 : i32
    %c0_i32_0 = arith.constant 0 : i32
    %c0_i32_1 = arith.constant 0 : i32
    %c0_i32_2 = arith.constant 0 : i32
    return %c0_i32, %c0_i32_0, %c0_i32_1 : i32, i32, i32
  }
  func.func @transform_8(%arg0: i32, %arg1: i32) -> (i32, i32, i32) {
    %c0_i32 = arith.constant 0 : i32
    %c0_i32_0 = arith.constant 0 : i32
    %c0_i32_1 = arith.constant 0 : i32
    %c0_i32_2 = arith.constant 0 : i32
    return %c0_i32, %c0_i32_0, %c0_i32_1 : i32, i32, i32
  }
  func.func @transform_9(%arg0: i32, %arg1: i32) -> (i32, i32) {
    %c0_i32 = arith.constant 0 : i32
    %c0_i32_0 = arith.constant 0 : i32
    %c0_i32_1 = arith.constant 0 : i32
    return %c0_i32, %c0_i32_0 : i32, i32
  }
  func.func @transform_10(%arg0: i32, %arg1: i32) -> (i32, i32) {
    %c0_i32 = arith.constant 0 : i32
    %c0_i32_0 = arith.constant 0 : i32
    %c0_i32_1 = arith.constant 0 : i32
    return %c0_i32, %c0_i32_0 : i32, i32
  }
  func.func @transform_11(%arg0: i32, %arg1: i32) -> (i32, i32, i32) {
    %c0_i32 = arith.constant 0 : i32
    %c0_i32_0 = arith.constant 0 : i32
    return %arg1, %arg0, %c0_i32 : i32, i32, i32
  }
  func.func @transform_12(%arg0: i32, %arg1: i32) -> (i32, i32, i32) {
    %c0_i32 = arith.constant 0 : i32
    %c0_i32_0 = arith.constant 0 : i32
    %c0_i32_1 = arith.constant 0 : i32
    return %c0_i32, %arg0, %c0_i32_0 : i32, i32, i32
  }
}

</mosaic_0001>

<llo_original>
// kernel: gru_model_forward.1
$region0: #{gru_model_forward.1}
  #allocation0 [shape = 'u32[]', space=smem, size = 0x4, offset = 0x4, fixed_abs, tag = 'smem constant byte address 0x4 - core index']
  #allocation1 [shape = 'u32[144,128]{1,0:T(1,128)}', space=vmem, size = 0x12000, scoped, tag = 'internal scratch']
  #allocation2 [shape = 'f32[3,8,8,32]{3,2,1,0:T(8,128)}', space=vmem, size = 0x18000, scoped, tag = 'scratch operand']
  #allocation3 [shape = 'f32[8,8,32]{2,1,0:T(8,128)}', space=vmem, size = 0x8000, scoped, tag = 'scratch operand']
  #allocation4 [shape = 'f32[8,32]{1,0:T(8,128)}', space=vmem, size = 0x1000, scoped, tag = 'scratch operand']
  #allocation5 [shape = 'f32[8,32]{1,0:T(8,128)}', space=vmem, size = 0x1000, scoped, tag = 'scratch operand']
  %s0 = inlined_call_operand.vmem [shape: f32[8,8,16], index: 0, kind: input, shape index: {}]
  %s1 = inlined_call_operand.vmem [shape: bf16[3,16,32], index: 1, kind: input, shape index: {}]
  %s2 = inlined_call_operand.vmem [shape: bf16[3,32,32], index: 2, kind: input, shape index: {}]
  %s3 = inlined_call_operand.vmem [shape: f32[3,1,32], index: 3, kind: input, shape index: {}]
  %s4 = inlined_call_operand.vmem [shape: f32[3,1,32], index: 4, kind: input, shape index: {}]
  %s5 = inlined_call_operand.vmem [shape: bf16[3,32,32], index: 5, kind: input, shape index: {}]
  %s6 = inlined_call_operand.vmem [shape: bf16[3,32,32], index: 6, kind: input, shape index: {}]
  %s7 = inlined_call_operand.vmem [shape: f32[3,1,32], index: 7, kind: input, shape index: {}]
  %s8 = inlined_call_operand.vmem [shape: f32[3,1,32], index: 8, kind: input, shape index: {}]
  %s9 = inlined_call_operand.vmem [shape: bf16[32,128], index: 9, kind: input, shape index: {}]
  %s10 = inlined_call_operand.vmem [shape: f32[1,128], index: 10, kind: input, shape index: {}]
  %s11 = inlined_call_operand.vmem [shape: f32[8,8,128], index: 11, kind: output, shape index: {0}]
  %s12 = inlined_call_operand.vmem [shape: f32[2,8,32], index: 12, kind: output, shape index: {1}]
  %13 = xla_tuple %s11, %s12
  %s14 = sld [smem:[#allocation0]]
  $region66: #{gru_model_forward.1} parent=0
    _
  %s16 = ssub.s32 1, %s14
  %s17 = scalar_select 0, %s16, %s14
  // Predicated region
  $region2: #{gru_model_forward.1} parent=0 // pred_check
    _
  $region3: #{gru_model_forward.1} parent=0 // pred_check_branch
    %19 = sbr.rel (0) target = $region5
  $region4: #{gru_model_forward.1} parent=0 // pred_region
    _
  $region5: #{gru_model_forward.1} parent=0 // pred_fallthru
    _
  // Predicated region
  $region6: #{gru_model_forward.1} parent=0 // pred_check
    _
  $region7: #{gru_model_forward.1} parent=0 // pred_check_branch
    %21 = sbr.rel (0) target = $region9
  $region8: #{gru_model_forward.1} parent=0 // pred_region
    _
  $region9: #{gru_model_forward.1} parent=0 // pred_fallthru
    _
  // Predicated region
  $region10: #{gru_model_forward.1} parent=0 // pred_check
    _
  $region11: #{gru_model_forward.1} parent=0 // pred_check_branch
    %23 = sbr.rel (0) target = $region13
  $region12: #{gru_model_forward.1} parent=0 // pred_region
    _
  $region13: #{gru_model_forward.1} parent=0 // pred_fallthru
    _
  // Predicated region
  $region14: #{gru_model_forward.1} parent=0 // pred_check
    _
  $region15: #{gru_model_forward.1} parent=0 // pred_check_branch
    %25 = sbr.rel (0) target = $region17
  $region16: #{gru_model_forward.1} parent=0 // pred_region
    _
  $region17: #{gru_model_forward.1} parent=0 // pred_fallthru
    _
  // Predicated region
  $region18: #{gru_model_forward.1} parent=0 // pred_check
    _
  $region19: #{gru_model_forward.1} parent=0 // pred_check_branch
    %27 = sbr.rel (0) target = $region21
  $region20: #{gru_model_forward.1} parent=0 // pred_region
    _
  $region21: #{gru_model_forward.1} parent=0 // pred_fallthru
    _
  // Predicated region
  $region22: #{gru_model_forward.1} parent=0 // pred_check
    _
  $region23: #{gru_model_forward.1} parent=0 // pred_check_branch
    %29 = sbr.rel (0) target = $region25
  $region24: #{gru_model_forward.1} parent=0 // pred_region
    _
  $region25: #{gru_model_forward.1} parent=0 // pred_fallthru
    _
  // Predicated region
  $region26: #{gru_model_forward.1} parent=0 // pred_check
    _
  $region27: #{gru_model_forward.1} parent=0 // pred_check_branch
    %31 = sbr.rel (0) target = $region29
  $region28: #{gru_model_forward.1} parent=0 // pred_region
    _
  $region29: #{gru_model_forward.1} parent=0 // pred_fallthru
    _
  // Predicated region
  $region30: #{gru_model_forward.1} parent=0 // pred_check
    _
  $region31: #{gru_model_forward.1} parent=0 // pred_check_branch
    %33 = sbr.rel (0) target = $region33
  $region32: #{gru_model_forward.1} parent=0 // pred_region
    _
  $region33: #{gru_model_forward.1} parent=0 // pred_fallthru
    _
  // Predicated region
  $region34: #{gru_model_forward.1} parent=0 // pred_check
    _
  $region35: #{gru_model_forward.1} parent=0 // pred_check_branch
    %35 = sbr.rel (0) target = $region37
  $region36: #{gru_model_forward.1} parent=0 // pred_region
    _
  $region37: #{gru_model_forward.1} parent=0 // pred_fallthru
    _
  // Predicated region
  $region38: #{gru_model_forward.1} parent=0 // pred_check
    _
  $region39: #{gru_model_forward.1} parent=0 // pred_check_branch
    %37 = sbr.rel (0) target = $region41
  $region40: #{gru_model_forward.1} parent=0 // pred_region
    _
  $region41: #{gru_model_forward.1} parent=0 // pred_fallthru
    _
  // Predicated region
  $region42: #{gru_model_forward.1} parent=0 // pred_check
    _
  $region43: #{gru_model_forward.1} parent=0 // pred_check_branch
    %39 = sbr.rel (0) target = $region45
  $region44: #{gru_model_forward.1} parent=0 // pred_region
    _
  $region45: #{gru_model_forward.1} parent=0 // pred_fallthru
    _
  %p41 = scmp.eq.s32.totalorder 0, 0
  // Predicated region
  $region46: #{gru_model_forward.1} parent=0 // pred_check
    %p42 = pneg %p41
  $region47: #{gru_model_forward.1} parent=0 // pred_check_branch
    %44 = sbr.rel (%p42) target = $region49
  $region48: #{gru_model_forward.1} parent=0 // pred_region
    %vm45 = vcmask 261120
    %46 = vst.msk [vmem:[#allocation4] sm:$0xff] %vm45, 0.0
    %47 = vst.msk [vmem:[#allocation5] sm:$0xff] %vm45, 0.0
  $region49: #{gru_model_forward.1} parent=0 // pred_fallthru
    _
  %v48 = vld [vmem:[%s0] sm:$0xff]
  %v49 = vld [vmem:[%s0 + $0x8] sm:$0xff]
  %v50 = vld [vmem:[%s0 + $0x10] sm:$0xff]
  %v51 = vld [vmem:[%s0 + $0x18] sm:$0xff]
  %v52 = vld [vmem:[%s0 + $0x20] sm:$0xff]
  %v53 = vld [vmem:[%s0 + $0x28] sm:$0xff]
  %v54 = vld [vmem:[%s0 + $0x30] sm:$0xff]
  %v55 = vld [vmem:[%s0 + $0x38] sm:$0xff]
  %v56 = vpack.c.bf16 %v49, %v48
  %v57 = vpack.c.bf16 %v51, %v50
  %v58 = vpack.c.bf16 %v53, %v52
  %v59 = vpack.c.bf16 %v55, %v54
  %v60 = vld [vmem:[%s1] sm:$0xf]
  %v61 = vld [vmem:[%s1 + $0x4] sm:$0xf]
  %v62 = vld [vmem:[%s3] sm:$0x1]
  %v64 = vlaneseq
  %v65 = vshrl.u32 %v64, 7
  %v66 = vsub.s32 0, %v65
  %v67 = vrot.slane %v62, %v66
  %v71 = vunpack.c.l.b16 %v60
  %v72 = vunpack.c.l.b16 %v61
  %v73 = vpack.c.b16 %v72, %v71
  %vm75 = vcmask 130048
  %v77 = vsel %vm75, %v56, 0
  %v80 = vsel %vm75, %v57, 0
  %v83 = vsel %vm75, %v58, 0
  %v86 = vsel %vm75, %v59, 0
  %88 = vmatprep.subr.bf16.mxu0 0
  %89 = vmatpush1.bf16.msra.mxu0 %v73
  %90 = vmatprep.subr.bf16.mxu0 0
  %91 = vmatpush1.bf16.msra.mxu0 0
  %92 = vmatprep.subr.bf16.mxu0 0
  %93 = vmatpush1.bf16.msra.mxu0 0
  %94 = vmatprep.subr.bf16.mxu0 0
  %95 = vmatpush1.bf16.msra.mxu0 0
  %96 = vmatprep.subr.bf16.mxu0 0
  %97 = vmatpush1.bf16.msra.mxu0 0
  %98 = vmatprep.subr.bf16.mxu0 0
  %99 = vmatpush1.bf16.msra.mxu0 0
  %100 = vmatprep.subr.bf16.mxu0 0
  %101 = vmatpush1.bf16.msra.mxu0 0
  %102 = vmatprep.subr.bf16.mxu0 0
  %103 = vmatpush1.bf16.msra.mxu0 0
  %104 = vmatprep.subr.bf16.mxu0 0
  %105 = vmatpush1.bf16.msra.mxu0 0
  %106 = vmatprep.subr.bf16.mxu0 0
  %107 = vmatpush1.bf16.msra.mxu0 0
  %108 = vmatprep.subr.bf16.mxu0 0
  %109 = vmatpush1.bf16.msra.mxu0 0
  %110 = vmatprep.subr.bf16.mxu0 0
  %111 = vmatpush1.bf16.msra.mxu0 0
  %112 = vmatprep.subr.bf16.mxu0 0
  %113 = vmatpush1.bf16.msra.mxu0 0
  %114 = vmatprep.subr.bf16.mxu0 0
  %115 = vmatpush1.bf16.msra.mxu0 0
  %116 = vmatprep.subr.bf16.mxu0 0
  %117 = vmatpush1.bf16.msra.mxu0 0
  %118 = vmatprep.subr.bf16.mxu0 0
  %119 = vmatpush1.bf16.msra.mxu0 0
  %120 = vmatprep.mubr.bf16.mxu0 0
  %121 = vmatmul.mubr.bf16.gmra.mrb[0].mxu0 %v77
  %v122 = vpop.f32.mrb[0].mxu0
  %v123 = vadd.f32 %v67, %v122
  %v124 = vpop.f32.mrb[0].mxu0
  %v125 = vpop.f32.mrb[0].mxu0
  %v126 = vadd.f32 %v67, %v125
  %v127 = vpop.f32.mrb[0].mxu0
  %128 = vmatprep.mubr.bf16.mxu0 0
  %129 = vmatmul.mubr.bf16.gmra.mrb[0].mxu0 %v80
  %v130 = vpop.f32.mrb[0].mxu0
  %v131 = vadd.f32 %v67, %v130
  %v132 = vpop.f32.mrb[0].mxu0
  %v133 = vpop.f32.mrb[0].mxu0
  %v134 = vadd.f32 %v67, %v133
  %v135 = vpop.f32.mrb[0].mxu0
  %136 = vmatprep.mubr.bf16.mxu0 0
  %137 = vmatmul.mubr.bf16.gmra.mrb[0].mxu0 %v83
  %v138 = vpop.f32.mrb[0].mxu0
  %v139 = vadd.f32 %v67, %v138
  %v140 = vpop.f32.mrb[0].mxu0
  %v141 = vpop.f32.mrb[0].mxu0
  %v142 = vadd.f32 %v67, %v141
  %v143 = vpop.f32.mrb[0].mxu0
  %144 = vmatprep.mubr.bf16.mxu0 0
  %145 = vmatmul.mubr.bf16.gmra.mrb[0].mxu0 %v86
  %v146 = vpop.f32.mrb[0].mxu0
  %v147 = vadd.f32 %v67, %v146
  %v148 = vpop.f32.mrb[0].mxu0
  %v149 = vpop.f32.mrb[0].mxu0
  %v150 = vadd.f32 %v67, %v149
  %v151 = vpop.f32.mrb[0].mxu0
  %152 = vdwg.mxu0
  %vm153 = vcmask 261120
  %154 = vst.msk [vmem:[#allocation2] sm:$0xff] %vm153, %v123
  %155 = vst.msk [vmem:[#allocation2 + $0x8] sm:$0xff] %vm153, %v126
  %156 = vst.msk [vmem:[#allocation2 + $0x10] sm:$0xff] %vm153, %v131
  %157 = vst.msk [vmem:[#allocation2 + $0x18] sm:$0xff] %vm153, %v134
  %158 = vst.msk [vmem:[#allocation2 + $0x20] sm:$0xff] %vm153, %v139
  %159 = vst.msk [vmem:[#allocation2 + $0x28] sm:$0xff] %vm153, %v142
  %160 = vst.msk [vmem:[#allocation2 + $0x30] sm:$0xff] %vm153, %v147
  %161 = vst.msk [vmem:[#allocation2 + $0x38] sm:$0xff] %vm153, %v150
  %s162 = scalar_lea.vmem %s1, 8
  %v163 = vld [vmem:[%s162] sm:$0xf]
  %v164 = vld [vmem:[%s162 + $0x4] sm:$0xf]
  %s165 = scalar_lea.vmem %s3, 1
  %v166 = vld [vmem:[%s165] sm:$0x1]
  %v168 = vlaneseq
  %v169 = vshrl.u32 %v168, 7
  %v170 = vsub.s32 0, %v169
  %v171 = vrot.slane %v166, %v170
  %v175 = vunpack.c.l.b16 %v163
  %v176 = vunpack.c.l.b16 %v164
  %v177 = vpack.c.b16 %v176, %v175
  %179 = vmatprep.subr.bf16.mxu0 0
  %180 = vmatpush1.bf16.msra.mxu0 %v177
  %181 = vmatprep.subr.bf16.mxu0 0
  %182 = vmatpush1.bf16.msra.mxu0 0
  %183 = vmatprep.subr.bf16.mxu0 0
  %184 = vmatpush1.bf16.msra.mxu0 0
  %185 = vmatprep.subr.bf16.mxu0 0
  %186 = vmatpush1.bf16.msra.mxu0 0
  %187 = vmatprep.subr.bf16.mxu0 0
  %188 = vmatpush1.bf16.msra.mxu0 0
  %189 = vmatprep.subr.bf16.mxu0 0
  %190 = vmatpush1.bf16.msra.mxu0 0
  %191 = vmatprep.subr.bf16.mxu0 0
  %192 = vmatpush1.bf16.msra.mxu0 0
  %193 = vmatprep.subr.bf16.mxu0 0
  %194 = vmatpush1.bf16.msra.mxu0 0
  %195 = vmatprep.subr.bf16.mxu0 0
  %196 = vmatpush1.bf16.msra.mxu0 0
  %197 = vmatprep.subr.bf16.mxu0 0
  %198 = vmatpush1.bf16.msra.mxu0 0
  %199 = vmatprep.subr.bf16.mxu0 0
  %200 = vmatpush1.bf16.msra.mxu0 0
  %201 = vmatprep.subr.bf16.mxu0 0
  %202 = vmatpush1.bf16.msra.mxu0 0
  %203 = vmatprep.subr.bf16.mxu0 0
  %204 = vmatpush1.bf16.msra.mxu0 0
  %205 = vmatprep.subr.bf16.mxu0 0
  %206 = vmatpush1.bf16.msra.mxu0 0
  %207 = vmatprep.subr.bf16.mxu0 0
  %208 = vmatpush1.bf16.msra.mxu0 0
  %209 = vmatprep.subr.bf16.mxu0 0
  %210 = vmatpush1.bf16.msra.mxu0 0
  %211 = vmatprep.mubr.bf16.mxu0 0
  %212 = vmatmul.mubr.bf16.gmra.mrb[0].mxu0 %v77
  %v213 = vpop.f32.mrb[0].mxu0
  %v214 = vadd.f32 %v171, %v213
  %v215 = vpop.f32.mrb[0].mxu0
  %v216 = vpop.f32.mrb[0].mxu0
  %v217 = vadd.f32 %v171, %v216
  %v218 = vpop.f32.mrb[0].mxu0
  %219 = vmatprep.mubr.bf16.mxu0 0
  %220 = vmatmul.mubr.bf16.gmra.mrb[0].mxu0 %v80
  %v221 = vpop.f32.mrb[0].mxu0
  %v222 = vadd.f32 %v171, %v221
  %v223 = vpop.f32.mrb[0].mxu0
  %v224 = vpop.f32.mrb[0].mxu0
  %v225 = vadd.f32 %v171, %v224
  %v226 = vpop.f32.mrb[0].mxu0
  %227 = vmatprep.mubr.bf16.mxu0 0
  %228 = vmatmul.mubr.bf16.gmra.mrb[0].mxu0 %v83
  %v229 = vpop.f32.mrb[0].mxu0
  %v230 = vadd.f32 %v171, %v229
  %v231 = vpop.f32.mrb[0].mxu0
  %v232 = vpop.f32.mrb[0].mxu0
  %v233 = vadd.f32 %v171, %v232
  %v234 = vpop.f32.mrb[0].mxu0
  %235 = vmatprep.mubr.bf16.mxu0 0
  %236 = vmatmul.mubr.bf16.gmra.mrb[0].mxu0 %v86
  %v237 = vpop.f32.mrb[0].mxu0
  %v238 = vadd.f32 %v171, %v237
  %v239 = vpop.f32.mrb[0].mxu0
  %v240 = vpop.f32.mrb[0].mxu0
  %v241 = vadd.f32 %v171, %v240
  %v242 = vpop.f32.mrb[0].mxu0
  %243 = vdwg.mxu0
  %s244 = scalar_lea.vmem [#allocation2], 64
  %245 = vst.msk [vmem:[%s244] sm:$0xff] %vm153, %v214
  %246 = vst.msk [vmem:[%s244 + $0x8] sm:$0xff] %vm153, %v217
  %247 = vst.msk [vmem:[%s244 + $0x10] sm:$0xff] %vm153, %v222
  %248 = vst.msk [vmem:[%s244 + $0x18] sm:$0xff] %vm153, %v225
  %249 = vst.msk [vmem:[%s244 + $0x20] sm:$0xff] %vm153, %v230
  %250 = vst.msk [vmem:[%s244 + $0x28] sm:$0xff] %vm153, %v233
  %251 = vst.msk [vmem:[%s244 + $0x30] sm:$0xff] %vm153, %v238
  %252 = vst.msk [vmem:[%s244 + $0x38] sm:$0xff] %vm153, %v241
  %s253 = scalar_lea.vmem %s1, 16
  %v254 = vld [vmem:[%s253] sm:$0xf]
  %v255 = vld [vmem:[%s253 + $0x4] sm:$0xf]
  %s256 = scalar_lea.vmem %s3, 2
  %v257 = vld [vmem:[%s256] sm:$0x1]
  %v259 = vlaneseq
  %v260 = vshrl.u32 %v259, 7
  %v261 = vsub.s32 0, %v260
  %v262 = vrot.slane %v257, %v261
  %v266 = vunpack.c.l.b16 %v254
  %v267 = vunpack.c.l.b16 %v255
  %v268 = vpack.c.b16 %v267, %v266
  %270 = vmatprep.subr.bf16.mxu0 0
  %271 = vmatpush1.bf16.msra.mxu0 %v268
  %272 = vmatprep.subr.bf16.mxu0 0
  %273 = vmatpush1.bf16.msra.mxu0 0
  %274 = vmatprep.subr.bf16.mxu0 0
  %275 = vmatpush1.bf16.msra.mxu0 0
  %276 = vmatprep.subr.bf16.mxu0 0
  %277 = vmatpush1.bf16.msra.mxu0 0
  %278 = vmatprep.subr.bf16.mxu0 0
  %279 = vmatpush1.bf16.msra.mxu0 0
  %280 = vmatprep.subr.bf16.mxu0 0
  %281 = vmatpush1.bf16.msra.mxu0 0
  %282 = vmatprep.subr.bf16.mxu0 0
  %283 = vmatpush1.bf16.msra.mxu0 0
  %284 = vmatprep.subr.bf16.mxu0 0
  %285 = vmatpush1.bf16.msra.mxu0 0
  %286 = vmatprep.subr.bf16.mxu0 0
  %287 = vmatpush1.bf16.msra.mxu0 0
  %288 = vmatprep.subr.bf16.mxu0 0
  %289 = vmatpush1.bf16.msra.mxu0 0
  %290 = vmatprep.subr.bf16.mxu0 0
  %291 = vmatpush1.bf16.msra.mxu0 0
  %292 = vmatprep.subr.bf16.mxu0 0
  %293 = vmatpush1.bf16.msra.mxu0 0
  %294 = vmatprep.subr.bf16.mxu0 0
  %295 = vmatpush1.bf16.msra.mxu0 0
  %296 = vmatprep.subr.bf16.mxu0 0
  %297 = vmatpush1.bf16.msra.mxu0 0
  %298 = vmatprep.subr.bf16.mxu0 0
  %299 = vmatpush1.bf16.msra.mxu0 0
  %300 = vmatprep.subr.bf16.mxu0 0
  %301 = vmatpush1.bf16.msra.mxu0 0
  %302 = vmatprep.mubr.bf16.mxu0 0
  %303 = vmatmul.mubr.bf16.gmra.mrb[0].mxu0 %v77
  %v304 = vpop.f32.mrb[0].mxu0
  %v305 = vadd.f32 %v262, %v304
  %v306 = vpop.f32.mrb[0].mxu0
  %v307 = vpop.f32.mrb[0].mxu0
  %v308 = vadd.f32 %v262, %v307
  %v309 = vpop.f32.mrb[0].mxu0
  %310 = vmatprep.mubr.bf16.mxu0 0
  %311 = vmatmul.mubr.bf16.gmra.mrb[0].mxu0 %v80
  %v312 = vpop.f32.mrb[0].mxu0
  %v313 = vadd.f32 %v262, %v312
  %v314 = vpop.f32.mrb[0].mxu0
  %v315 = vpop.f32.mrb[0].mxu0
  %v316 = vadd.f32 %v262, %v315
  %v317 = vpop.f32.mrb[0].mxu0
  %318 = vmatprep.mubr.bf16.mxu0 0
  %319 = vmatmul.mubr.bf16.gmra.mrb[0].mxu0 %v83
  %v320 = vpop.f32.mrb[0].mxu0
  %v321 = vadd.f32 %v262, %v320
  %v322 = vpop.f32.mrb[0].mxu0
  %v323 = vpop.f32.mrb[0].mxu0
  %v324 = vadd.f32 %v262, %v323
  %v325 = vpop.f32.mrb[0].mxu0
  %326 = vmatprep.mubr.bf16.mxu0 0
  %327 = vmatmul.mubr.bf16.gmra.mrb[0].mxu0 %v86
  %v328 = vpop.f32.mrb[0].mxu0
  %v329 = vadd.f32 %v262, %v328
  %v330 = vpop.f32.mrb[0].mxu0
  %v331 = vpop.f32.mrb[0].mxu0
  %v332 = vadd.f32 %v262, %v331
  %v333 = vpop.f32.mrb[0].mxu0
  %334 = vdwg.mxu0
  %s335 = scalar_lea.vmem [#allocation2], 128
  %336 = vst.msk [vmem:[%s335] sm:$0xff] %vm153, %v305
  %337 = vst.msk [vmem:[%s335 + $0x8] sm:$0xff] %vm153, %v308
  %338 = vst.msk [vmem:[%s335 + $0x10] sm:$0xff] %vm153, %v313
  %339 = vst.msk [vmem:[%s335 + $0x18] sm:$0xff] %vm153, %v316
  %340 = vst.msk [vmem:[%s335 + $0x20] sm:$0xff] %vm153, %v321
  %341 = vst.msk [vmem:[%s335 + $0x28] sm:$0xff] %vm153, %v324
  %342 = vst.msk [vmem:[%s335 + $0x30] sm:$0xff] %vm153, %v329
  %343 = vst.msk [vmem:[%s335 + $0x38] sm:$0xff] %vm153, %v332
  %v344 = vld [vmem:[#allocation4] sm:$0xff]
  %v345 = vld [vmem:[#allocation5] sm:$0xff]
  %v346 = vld [vmem:[#allocation2] sm:$0xff]
  %v347 = vld [vmem:[%s244] sm:$0xff]
  %v348 = vld [vmem:[%s335] sm:$0xff]
  %v349 = vpack.c.bf16 %v344, %v344
  %v350 = vld [vmem:[%s2] sm:$0xf]
  %v351 = vld [vmem:[%s2 + $0x4] sm:$0xf]
  %v352 = vld [vmem:[%s2 + $0x8] sm:$0xf]
  %v353 = vld [vmem:[%s2 + $0xc] sm:$0xf]
  %v354 = vld [vmem:[%s4] sm:$0x1]
  %v356 = vlaneseq
  %v357 = vshrl.u32 %v356, 7
  %v358 = vsub.s32 0, %v357
  %v359 = vrot.slane %v354, %v358
  %v365 = vunpack.c.l.b16 %v350
  %v366 = vunpack.c.l.b16 %v351
  %v367 = vunpack.c.l.b16 %v352
  %v368 = vunpack.c.l.b16 %v353
  %v369 = vpack.c.b16 %v366, %v365
  %v370 = vpack.c.b16 %v368, %v367
  %v374 = vsel %vm153, %v349, 0
  %376 = vmatprep.subr.bf16.mxu0 0
  %377 = vmatpush1.bf16.msra.mxu0 %v369
  %378 = vmatprep.subr.bf16.mxu0 0
  %379 = vmatpush1.bf16.msra.mxu0 %v370
  %380 = vmatprep.subr.bf16.mxu0 0
  %381 = vmatpush1.bf16.msra.mxu0 0
  %382 = vmatprep.subr.bf16.mxu0 0
  %383 = vmatpush1.bf16.msra.mxu0 0
  %384 = vmatprep.subr.bf16.mxu0 0
  %385 = vmatpush1.bf16.msra.mxu0 0
  %386 = vmatprep.subr.bf16.mxu0 0
  %387 = vmatpush1.bf16.msra.mxu0 0
  %388 = vmatprep.subr.bf16.mxu0 0
  %389 = vmatpush1.bf16.msra.mxu0 0
  %390 = vmatprep.subr.bf16.mxu0 0
  %391 = vmatpush1.bf16.msra.mxu0 0
  %392 = vmatprep.subr.bf16.mxu0 0
  %393 = vmatpush1.bf16.msra.mxu0 0
  %394 = vmatprep.subr.bf16.mxu0 0
  %395 = vmatpush1.bf16.msra.mxu0 0
  %396 = vmatprep.subr.bf16.mxu0 0
  %397 = vmatpush1.bf16.msra.mxu0 0
  %398 = vmatprep.subr.bf16.mxu0 0
  %399 = vmatpush1.bf16.msra.mxu0 0
  %400 = vmatprep.subr.bf16.mxu0 0
  %401 = vmatpush1.bf16.msra.mxu0 0
  %402 = vmatprep.subr.bf16.mxu0 0
  %403 = vmatpush1.bf16.msra.mxu0 0
  %404 = vmatprep.subr.bf16.mxu0 0
  %405 = vmatpush1.bf16.msra.mxu0 0
  %406 = vmatprep.subr.bf16.mxu0 0
  %407 = vmatpush1.bf16.msra.mxu0 0
  %408 = vmatprep.mubr.bf16.mxu0 0
  %409 = vmatmul.mubr.bf16.gmra.mrb[0].mxu0 %v374
  %v410 = vpop.f32.mrb[0].mxu0
  %v411 = vadd.f32 %v359, %v410
  %v412 = vpop.f32.mrb[0].mxu0
  %v413 = vpop.f32.mrb[0].mxu0
  %v414 = vpop.f32.mrb[0].mxu0
  %415 = vdwg.mxu0
  %s416 = scalar_lea.vmem %s2, 16
  %v417 = vld [vmem:[%s416] sm:$0xf]
  %v418 = vld [vmem:[%s416 + $0x4] sm:$0xf]
  %v419 = vld [vmem:[%s416 + $0x8] sm:$0xf]
  %v420 = vld [vmem:[%s416 + $0xc] sm:$0xf]
  %s421 = scalar_lea.vmem %s4, 1
  %v422 = vld [vmem:[%s421] sm:$0x1]
  %v424 = vlaneseq
  %v425 = vshrl.u32 %v424, 7
  %v426 = vsub.s32 0, %v425
  %v427 = vrot.slane %v422, %v426
  %v433 = vunpack.c.l.b16 %v417
  %v434 = vunpack.c.l.b16 %v418
  %v435 = vunpack.c.l.b16 %v419
  %v436 = vunpack.c.l.b16 %v420
  %v437 = vpack.c.b16 %v434, %v433
  %v438 = vpack.c.b16 %v436, %v435
  %441 = vmatprep.subr.bf16.mxu0 0
  %442 = vmatpush1.bf16.msra.mxu0 %v437
  %443 = vmatprep.subr.bf16.mxu0 0
  %444 = vmatpush1.bf16.msra.mxu0 %v438
  %445 = vmatprep.subr.bf16.mxu0 0
  %446 = vmatpush1.bf16.msra.mxu0 0
  %447 = vmatprep.subr.bf16.mxu0 0
  %448 = vmatpush1.bf16.msra.mxu0 0
  %449 = vmatprep.subr.bf16.mxu0 0
  %450 = vmatpush1.bf16.msra.mxu0 0
  %451 = vmatprep.subr.bf16.mxu0 0
  %452 = vmatpush1.bf16.msra.mxu0 0
  %453 = vmatprep.subr.bf16.mxu0 0
  %454 = vmatpush1.bf16.msra.mxu0 0
  %455 = vmatprep.subr.bf16.mxu0 0
  %456 = vmatpush1.bf16.msra.mxu0 0
  %457 = vmatprep.subr.bf16.mxu0 0
  %458 = vmatpush1.bf16.msra.mxu0 0
  %459 = vmatprep.subr.bf16.mxu0 0
  %460 = vmatpush1.bf16.msra.mxu0 0
  %461 = vmatprep.subr.bf16.mxu0 0
  %462 = vmatpush1.bf16.msra.mxu0 0
  %463 = vmatprep.subr.bf16.mxu0 0
  %464 = vmatpush1.bf16.msra.mxu0 0
  %465 = vmatprep.subr.bf16.mxu0 0
  %466 = vmatpush1.bf16.msra.mxu0 0
  %467 = vmatprep.subr.bf16.mxu0 0
  %468 = vmatpush1.bf16.msra.mxu0 0
  %469 = vmatprep.subr.bf16.mxu0 0
  %470 = vmatpush1.bf16.msra.mxu0 0
  %471 = vmatprep.subr.bf16.mxu0 0
  %472 = vmatpush1.bf16.msra.mxu0 0
  %473 = vmatprep.mubr.bf16.mxu0 0
  %474 = vmatmul.mubr.bf16.gmra.mrb[0].mxu0 %v374
  %v475 = vpop.f32.mrb[0].mxu0
  %v476 = vadd.f32 %v427, %v475
  %v477 = vpop.f32.mrb[0].mxu0
  %v478 = vpop.f32.mrb[0].mxu0
  %v479 = vpop.f32.mrb[0].mxu0
  %480 = vdwg.mxu0
  %s481 = scalar_lea.vmem %s2, 32
  %v482 = vld [vmem:[%s481] sm:$0xf]
  %v483 = vld [vmem:[%s481 + $0x4] sm:$0xf]
  %v484 = vld [vmem:[%s481 + $0x8] sm:$0xf]
  %v485 = vld [vmem:[%s481 + $0xc] sm:$0xf]
  %s486 = scalar_lea.vmem %s4, 2
  %v487 = vld [vmem:[%s486] sm:$0x1]
  %v489 = vlaneseq
  %v490 = vshrl.u32 %v489, 7
  %v491 = vsub.s32 0, %v490
  %v492 = vrot.slane %v487, %v491
  %v498 = vunpack.c.l.b16 %v482
  %v499 = vunpack.c.l.b16 %v483
  %v500 = vunpack.c.l.b16 %v484
  %v501 = vunpack.c.l.b16 %v485
  %v502 = vpack.c.b16 %v499, %v498
  %v503 = vpack.c.b16 %v501, %v500
  %506 = vmatprep.subr.bf16.mxu0 0
  %507 = vmatpush1.bf16.msra.mxu0 %v502
  %508 = vmatprep.subr.bf16.mxu0 0
  %509 = vmatpush1.bf16.msra.mxu0 %v503
  %510 = vmatprep.subr.bf16.mxu0 0
  %511 = vmatpush1.bf16.msra.mxu0 0
  %512 = vmatprep.subr.bf16.mxu0 0
  %513 = vmatpush1.bf16.msra.mxu0 0
  %514 = vmatprep.subr.bf16.mxu0 0
  %515 = vmatpush1.bf16.msra.mxu0 0
  %516 = vmatprep.subr.bf16.mxu0 0
  %517 = vmatpush1.bf16.msra.mxu0 0
  %518 = vmatprep.subr.bf16.mxu0 0
  %519 = vmatpush1.bf16.msra.mxu0 0
  %520 = vmatprep.subr.bf16.mxu0 0
  %521 = vmatpush1.bf16.msra.mxu0 0
  %522 = vmatprep.subr.bf16.mxu0 0
  %523 = vmatpush1.bf16.msra.mxu0 0
  %524 = vmatprep.subr.bf16.mxu0 0
  %525 = vmatpush1.bf16.msra.mxu0 0
  %526 = vmatprep.subr.bf16.mxu0 0
  %527 = vmatpush1.bf16.msra.mxu0 0
  %528 = vmatprep.subr.bf16.mxu0 0
  %529 = vmatpush1.bf16.msra.mxu0 0
  %530 = vmatprep.subr.bf16.mxu0 0
  %531 = vmatpush1.bf16.msra.mxu0 0
  %532 = vmatprep.subr.bf16.mxu0 0
  %533 = vmatpush1.bf16.msra.mxu0 0
  %534 = vmatprep.subr.bf16.mxu0 0
  %535 = vmatpush1.bf16.msra.mxu0 0
  %536 = vmatprep.subr.bf16.mxu0 0
  %537 = vmatpush1.bf16.msra.mxu0 0
  %538 = vmatprep.mubr.bf16.mxu0 0
  %539 = vmatmul.mubr.bf16.gmra.mrb[0].mxu0 %v374
  %v540 = vpop.f32.mrb[0].mxu0
  %v541 = vadd.f32 %v492, %v540
  %v542 = vpop.f32.mrb[0].mxu0
  %v543 = vpop.f32.mrb[0].mxu0
  %v544 = vpop.f32.mrb[0].mxu0
  %545 = vdwg.mxu0
  %v546 = vadd.f32 %v346, %v411
  %v547 = vxor.u32 %v546, 2147483648
  %v548 = vmul.f32 %v547, 1.442695
  %v549 = vpow.pop %v548
  %v550 = vadd.f32 %v549, 1.0
  %v551 = vrcp.pop %v550
  %v552 = vmul.f32 1.0, %v551
  %v553 = vadd.f32 %v347, %v476
  %v554 = vxor.u32 %v553, 2147483648
  %v555 = vmul.f32 %v554, 1.442695
  %v556 = vpow.pop %v555
  %v557 = vadd.f32 %v556, 1.0
  %v558 = vrcp.pop %v557
  %v559 = vmul.f32 1.0, %v558
  %v560 = vmul.f32 %v552, %v541
  %v561 = vadd.f32 %v348, %v560
  %v562 = vtanh.pop %v561
  %v563 = vsub.f32 1.0, %v559
  %v564 = vmul.f32 %v563, %v562
  %v565 = vmul.f32 %v559, %v344
  %v566 = vadd.f32 %v564, %v565
  %v567 = vpack.c.bf16 %v566, %v566
  %v568 = vld [vmem:[%s5] sm:$0xf]
  %v569 = vld [vmem:[%s5 + $0x4] sm:$0xf]
  %v570 = vld [vmem:[%s5 + $0x8] sm:$0xf]
  %v571 = vld [vmem:[%s5 + $0xc] sm:$0xf]
  %v572 = vld [vmem:[%s7] sm:$0x1]
  %v574 = vlaneseq
  %v575 = vshrl.u32 %v574, 7
  %v576 = vsub.s32 0, %v575
  %v577 = vrot.slane %v572, %v576
  %v583 = vunpack.c.l.b16 %v568
  %v584 = vunpack.c.l.b16 %v569
  %v585 = vunpack.c.l.b16 %v570
  %v586 = vunpack.c.l.b16 %v571
  %v587 = vpack.c.b16 %v584, %v583
  %v588 = vpack.c.b16 %v586, %v585
  %v592 = vsel %vm153, %v567, 0
  %594 = vmatprep.subr.bf16.mxu0 0
  %595 = vmatpush1.bf16.msra.mxu0 %v587
  %596 = vmatprep.subr.bf16.mxu0 0
  %597 = vmatpush1.bf16.msra.mxu0 %v588
  %598 = vmatprep.subr.bf16.mxu0 0
  %599 = vmatpush1.bf16.msra.mxu0 0
  %600 = vmatprep.subr.bf16.mxu0 0
  %601 = vmatpush1.bf16.msra.mxu0 0
  %602 = vmatprep.subr.bf16.mxu0 0
  %603 = vmatpush1.bf16.msra.mxu0 0
  %604 = vmatprep.subr.bf16.mxu0 0
  %605 = vmatpush1.bf16.msra.mxu0 0
  %606 = vmatprep.subr.bf16.mxu0 0
  %607 = vmatpush1.bf16.msra.mxu0 0
  %608 = vmatprep.subr.bf16.mxu0 0
  %609 = vmatpush1.bf16.msra.mxu0 0
  %610 = vmatprep.subr.bf16.mxu0 0
  %611 = vmatpush1.bf16.msra.mxu0 0
  %612 = vmatprep.subr.bf16.mxu0 0
  %613 = vmatpush1.bf16.msra.mxu0 0
  %614 = vmatprep.subr.bf16.mxu0 0
  %615 = vmatpush1.bf16.msra.mxu0 0
  %616 = vmatprep.subr.bf16.mxu0 0
  %617 = vmatpush1.bf16.msra.mxu0 0
  %618 = vmatprep.subr.bf16.mxu0 0
  %619 = vmatpush1.bf16.msra.mxu0 0
  %620 = vmatprep.subr.bf16.mxu0 0
  %621 = vmatpush1.bf16.msra.mxu0 0
  %622 = vmatprep.subr.bf16.mxu0 0
  %623 = vmatpush1.bf16.msra.mxu0 0
  %624 = vmatprep.subr.bf16.mxu0 0
  %625 = vmatpush1.bf16.msra.mxu0 0
  %626 = vmatprep.mubr.bf16.mxu0 0
  %627 = vmatmul.mubr.bf16.gmra.mrb[0].mxu0 %v592
  %v628 = vpop.f32.mrb[0].mxu0
  %v629 = vadd.f32 %v577, %v628
  %v630 = vpop.f32.mrb[0].mxu0
  %v631 = vpop.f32.mrb[0].mxu0
  %v632 = vpop.f32.mrb[0].mxu0
  %633 = vdwg.mxu0
  %s634 = scalar_lea.vmem %s5, 16
  %v635 = vld [vmem:[%s634] sm:$0xf]
  %v636 = vld [vmem:[%s634 + $0x4] sm:$0xf]
  %v637 = vld [vmem:[%s634 + $0x8] sm:$0xf]
  %v638 = vld [vmem:[%s634 + $0xc] sm:$0xf]
  %s639 = scalar_lea.vmem %s7, 1
  %v640 = vld [vmem:[%s639] sm:$0x1]
  %v642 = vlaneseq
  %v643 = vshrl.u32 %v642, 7
  %v644 = vsub.s32 0, %v643
  %v645 = vrot.slane %v640, %v644
  %v651 = vunpack.c.l.b16 %v635
  %v652 = vunpack.c.l.b16 %v636
  %v653 = vunpack.c.l.b16 %v637
  %v654 = vunpack.c.l.b16 %v638
  %v655 = vpack.c.b16 %v652, %v651
  %v656 = vpack.c.b16 %v654, %v653
  %659 = vmatprep.subr.bf16.mxu0 0
  %660 = vmatpush1.bf16.msra.mxu0 %v655
  %661 = vmatprep.subr.bf16.mxu0 0
  %662 = vmatpush1.bf16.msra.mxu0 %v656
  %663 = vmatprep.subr.bf16.mxu0 0
  %664 = vmatpush1.bf16.msra.mxu0 0
  %665 = vmatprep.subr.bf16.mxu0 0
  %666 = vmatpush1.bf16.msra.mxu0 0
  %667 = vmatprep.subr.bf16.mxu0 0
  %668 = vmatpush1.bf16.msra.mxu0 0
  %669 = vmatprep.subr.bf16.mxu0 0
  %670 = vmatpush1.bf16.msra.mxu0 0
  %671 = vmatprep.subr.bf16.mxu0 0
  %672 = vmatpush1.bf16.msra.mxu0 0
  %673 = vmatprep.subr.bf16.mxu0 0
  %674 = vmatpush1.bf16.msra.mxu0 0
  %675 = vmatprep.subr.bf16.mxu0 0
  %676 = vmatpush1.bf16.msra.mxu0 0
  %677 = vmatprep.subr.bf16.mxu0 0
  %678 = vmatpush1.bf16.msra.mxu0 0
  %679 = vmatprep.subr.bf16.mxu0 0
  %680 = vmatpush1.bf16.msra.mxu0 0
  %681 = vmatprep.subr.bf16.mxu0 0
  %682 = vmatpush1.bf16.msra.mxu0 0
  %683 = vmatprep.subr.bf16.mxu0 0
  %684 = vmatpush1.bf16.msra.mxu0 0
  %685 = vmatprep.subr.bf16.mxu0 0
  %686 = vmatpush1.bf16.msra.mxu0 0
  %687 = vmatprep.subr.bf16.mxu0 0
  %688 = vmatpush1.bf16.msra.mxu0 0
  %689 = vmatprep.subr.bf16.mxu0 0
  %690 = vmatpush1.bf16.msra.mxu0 0
  %691 = vmatprep.mubr.bf16.mxu0 0
  %692 = vmatmul.mubr.bf16.gmra.mrb[0].mxu0 %v592
  %v693 = vpop.f32.mrb[0].mxu0
  %v694 = vadd.f32 %v645, %v693
  %v695 = vpop.f32.mrb[0].mxu0
  %v696 = vpop.f32.mrb[0].mxu0
  %v697 = vpop.f32.mrb[0].mxu0
  %698 = vdwg.mxu0
  %s699 = scalar_lea.vmem %s5, 32
  %v700 = vld [vmem:[%s699] sm:$0xf]
  %v701 = vld [vmem:[%s699 + $0x4] sm:$0xf]
  %v702 = vld [vmem:[%s699 + $0x8] sm:$0xf]
  %v703 = vld [vmem:[%s699 + $0xc] sm:$0xf]
  %s704 = scalar_lea.vmem %s7, 2
  %v705 = vld [vmem:[%s704] sm:$0x1]
  %v707 = vlaneseq
  %v708 = vshrl.u32 %v707, 7
  %v709 = vsub.s32 0, %v708
  %v710 = vrot.slane %v705, %v709
  %v716 = vunpack.c.l.b16 %v700
  %v717 = vunpack.c.l.b16 %v701
  %v718 = vunpack.c.l.b16 %v702
  %v719 = vunpack.c.l.b16 %v703
  %v720 = vpack.c.b16 %v717, %v716
  %v721 = vpack.c.b16 %v719, %v718
  %724 = vmatprep.subr.bf16.mxu0 0
  %725 = vmatpush1.bf16.msra.mxu0 %v720
  %726 = vmatprep.subr.bf16.mxu0 0
  %727 = vmatpush1.bf16.msra.mxu0 %v721
  %728 = vmatprep.subr.bf16.mxu0 0
  %729 = vmatpush1.bf16.msra.mxu0 0
  %730 = vmatprep.subr.bf16.mxu0 0
  %731 = vmatpush1.bf16.msra.mxu0 0
  %732 = vmatprep.subr.bf16.mxu0 0
  %733 = vmatpush1.bf16.msra.mxu0 0
  %734 = vmatprep.subr.bf16.mxu0 0
  %735 = vmatpush1.bf16.msra.mxu0 0
  %736 = vmatprep.subr.bf16.mxu0 0
  %737 = vmatpush1.bf16.msra.mxu0 0
  %738 = vmatprep.subr.bf16.mxu0 0
  %739 = vmatpush1.bf16.msra.mxu0 0
  %740 = vmatprep.subr.bf16.mxu0 0
  %741 = vmatpush1.bf16.msra.mxu0 0
  %742 = vmatprep.subr.bf16.mxu0 0
  %743 = vmatpush1.bf16.msra.mxu0 0
  %744 = vmatprep.subr.bf16.mxu0 0
  %745 = vmatpush1.bf16.msra.mxu0 0
  %746 = vmatprep.subr.bf16.mxu0 0
  %747 = vmatpush1.bf16.msra.mxu0 0
  %748 = vmatprep.subr.bf16.mxu0 0
  %749 = vmatpush1.bf16.msra.mxu0 0
  %750 = vmatprep.subr.bf16.mxu0 0
  %751 = vmatpush1.bf16.msra.mxu0 0
  %752 = vmatprep.subr.bf16.mxu0 0
  %753 = vmatpush1.bf16.msra.mxu0 0
  %754 = vmatprep.subr.bf16.mxu0 0
  %755 = vmatpush1.bf16.msra.mxu0 0
  %756 = vmatprep.mubr.bf16.mxu0 0
  %757 = vmatmul.mubr.bf16.gmra.mrb[0].mxu0 %v592
  %v758 = vpop.f32.mrb[0].mxu0
  %v759 = vadd.f32 %v710, %v758
  %v760 = vpop.f32.mrb[0].mxu0
  %v761 = vpop.f32.mrb[0].mxu0
  %v762 = vpop.f32.mrb[0].mxu0
  %763 = vdwg.mxu0
  %v764 = vpack.c.bf16 %v345, %v345
  %v765 = vld [vmem:[%s6] sm:$0xf]
  %v766 = vld [vmem:[%s6 + $0x4] sm:$0xf]
  %v767 = vld [vmem:[%s6 + $0x8] sm:$0xf]
  %v768 = vld [vmem:[%s6 + $0xc] sm:$0xf]
  %v769 = vld [vmem:[%s8] sm:$0x1]
  %v771 = vlaneseq
  %v772 = vshrl.u32 %v771, 7
  %v773 = vsub.s32 0, %v772
  %v774 = vrot.slane %v769, %v773
  %v780 = vunpack.c.l.b16 %v765
  %v781 = vunpack.c.l.b16 %v766
  %v782 = vunpack.c.l.b16 %v767
  %v783 = vunpack.c.l.b16 %v768
  %v784 = vpack.c.b16 %v781, %v780
  %v785 = vpack.c.b16 %v783, %v782
  %v789 = vsel %vm153, %v764, 0
  %791 = vmatprep.subr.bf16.mxu0 0
  %792 = vmatpush1.bf16.msra.mxu0 %v784
  %793 = vmatprep.subr.bf16.mxu0 0
  %794 = vmatpush1.bf16.msra.mxu0 %v785
  %795 = vmatprep.subr.bf16.mxu0 0
  %796 = vmatpush1.bf16.msra.mxu0 0
  %797 = vmatprep.subr.bf16.mxu0 0
  %798 = vmatpush1.bf16.msra.mxu0 0
  %799 = vmatprep.subr.bf16.mxu0 0
  %800 = vmatpush1.bf16.msra.mxu0 0
  %801 = vmatprep.subr.bf16.mxu0 0
  %802 = vmatpush1.bf16.msra.mxu0 0
  %803 = vmatprep.subr.bf16.mxu0 0
  %804 = vmatpush1.bf16.msra.mxu0 0
  %805 = vmatprep.subr.bf16.mxu0 0
  %806 = vmatpush1.bf16.msra.mxu0 0
  %807 = vmatprep.subr.bf16.mxu0 0
  %808 = vmatpush1.bf16.msra.mxu0 0
  %809 = vmatprep.subr.bf16.mxu0 0
  %810 = vmatpush1.bf16.msra.mxu0 0
  %811 = vmatprep.subr.bf16.mxu0 0
  %812 = vmatpush1.bf16.msra.mxu0 0
  %813 = vmatprep.subr.bf16.mxu0 0
  %814 = vmatpush1.bf16.msra.mxu0 0
  %815 = vmatprep.subr.bf16.mxu0 0
  %816 = vmatpush1.bf16.msra.mxu0 0
  %817 = vmatprep.subr.bf16.mxu0 0
  %818 = vmatpush1.bf16.msra.mxu0 0
  %819 = vmatprep.subr.bf16.mxu0 0
  %820 = vmatpush1.bf16.msra.mxu0 0
  %821 = vmatprep.subr.bf16.mxu0 0
  %822 = vmatpush1.bf16.msra.mxu0 0
  %823 = vmatprep.mubr.bf16.mxu0 0
  %824 = vmatmul.mubr.bf16.gmra.mrb[0].mxu0 %v789
  %v825 = vpop.f32.mrb[0].mxu0
  %v826 = vadd.f32 %v774, %v825
  %v827 = vpop.f32.mrb[0].mxu0
  %v828 = vpop.f32.mrb[0].mxu0
  %v829 = vpop.f32.mrb[0].mxu0
  %830 = vdwg.mxu0
  %s831 = scalar_lea.vmem %s6, 16
  %v832 = vld [vmem:[%s831] sm:$0xf]
  %v833 = vld [vmem:[%s831 + $0x4] sm:$0xf]
  %v834 = vld [vmem:[%s831 + $0x8] sm:$0xf]
  %v835 = vld [vmem:[%s831 + $0xc] sm:$0xf]
  %s836 = scalar_lea.vmem %s8, 1
  %v837 = vld [vmem:[%s836] sm:$0x1]
  %v839 = vlaneseq
  %v840 = vshrl.u32 %v839, 7
  %v841 = vsub.s32 0, %v840
  %v842 = vrot.slane %v837, %v841
  %v848 = vunpack.c.l.b16 %v832
  %v849 = vunpack.c.l.b16 %v833
  %v850 = vunpack.c.l.b16 %v834
  %v851 = vunpack.c.l.b16 %v835
  %v852 = vpack.c.b16 %v849, %v848
  %v853 = vpack.c.b16 %v851, %v850
  %856 = vmatprep.subr.bf16.mxu0 0
  %857 = vmatpush1.bf16.msra.mxu0 %v852
  %858 = vmatprep.subr.bf16.mxu0 0
  %859 = vmatpush1.bf16.msra.mxu0 %v853
  %860 = vmatprep.subr.bf16.mxu0 0
  %861 = vmatpush1.bf16.msra.mxu0 0
  %862 = vmatprep.subr.bf16.mxu0 0
  %863 = vmatpush1.bf16.msra.mxu0 0
  %864 = vmatprep.subr.bf16.mxu0 0
  %865 = vmatpush1.bf16.msra.mxu0 0
  %866 = vmatprep.subr.bf16.mxu0 0
  %867 = vmatpush1.bf16.msra.mxu0 0
  %868 = vmatprep.subr.bf16.mxu0 0
  %869 = vmatpush1.bf16.msra.mxu0 0
  %870 = vmatprep.subr.bf16.mxu0 0
  %871 = vmatpush1.bf16.msra.mxu0 0
  %872 = vmatprep.subr.bf16.mxu0 0
  %873 = vmatpush1.bf16.msra.mxu0 0
  %874 = vmatprep.subr.bf16.mxu0 0
  %875 = vmatpush1.bf16.msra.mxu0 0
  %876 = vmatprep.subr.bf16.mxu0 0
  %877 = vmatpush1.bf16.msra.mxu0 0
  %878 = vmatprep.subr.bf16.mxu0 0
  %879 = vmatpush1.bf16.msra.mxu0 0
  %880 = vmatprep.subr.bf16.mxu0 0
  %881 = vmatpush1.bf16.msra.mxu0 0
  %882 = vmatprep.subr.bf16.mxu0 0
  %883 = vmatpush1.bf16.msra.mxu0 0
  %884 = vmatprep.subr.bf16.mxu0 0
  %885 = vmatpush1.bf16.msra.mxu0 0
  %886 = vmatprep.subr.bf16.mxu0 0
  %887 = vmatpush1.bf16.msra.mxu0 0
  %888 = vmatprep.mubr.bf16.mxu0 0
  %889 = vmatmul.mubr.bf16.gmra.mrb[0].mxu0 %v789
  %v890 = vpop.f32.mrb[0].mxu0
  %v891 = vadd.f32 %v842, %v890
  %v892 = vpop.f32.mrb[0].mxu0
  %v893 = vpop.f32.mrb[0].mxu0
  %v894 = vpop.f32.mrb[0].mxu0
  %895 = vdwg.mxu0
  %s896 = scalar_lea.vmem %s6, 32
  %v897 = vld [vmem:[%s896] sm:$0xf]
  %v898 = vld [vmem:[%s896 + $0x4] sm:$0xf]
  %v899 = vld [vmem:[%s896 + $0x8] sm:$0xf]
  %v900 = vld [vmem:[%s896 + $0xc] sm:$0xf]
  %s901 = scalar_lea.vmem %s8, 2
  %v902 = vld [vmem:[%s901] sm:$0x1]
  %v904 = vlaneseq
  %v905 = vshrl.u32 %v904, 7
  %v906 = vsub.s32 0, %v905
  %v907 = vrot.slane %v902, %v906
  %v913 = vunpack.c.l.b16 %v897
  %v914 = vunpack.c.l.b16 %v898
  %v915 = vunpack.c.l.b16 %v899
  %v916 = vunpack.c.l.b16 %v900
  %v917 = vpack.c.b16 %v914, %v913
  %v918 = vpack.c.b16 %v916, %v915
  %921 = vmatprep.subr.bf16.mxu0 0
  %922 = vmatpush1.bf16.msra.mxu0 %v917
  %923 = vmatprep.subr.bf16.mxu0 0
  %924 = vmatpush1.bf16.msra.mxu0 %v918
  %925 = vmatprep.subr.bf16.mxu0 0
  %926 = vmatpush1.bf16.msra.mxu0 0
  %927 = vmatprep.subr.bf16.mxu0 0
  %928 = vmatpush1.bf16.msra.mxu0 0
  %929 = vmatprep.subr.bf16.mxu0 0
  %930 = vmatpush1.bf16.msra.mxu0 0
  %931 = vmatprep.subr.bf16.mxu0 0
  %932 = vmatpush1.bf16.msra.mxu0 0
  %933 = vmatprep.subr.bf16.mxu0 0
  %934 = vmatpush1.bf16.msra.mxu0 0
  %935 = vmatprep.subr.bf16.mxu0 0
  %936 = vmatpush1.bf16.msra.mxu0 0
  %937 = vmatprep.subr.bf16.mxu0 0
  %938 = vmatpush1.bf16.msra.mxu0 0
  %939 = vmatprep.subr.bf16.mxu0 0
  %940 = vmatpush1.bf16.msra.mxu0 0
  %941 = vmatprep.subr.bf16.mxu0 0
  %942 = vmatpush1.bf16.msra.mxu0 0
  %943 = vmatprep.subr.bf16.mxu0 0
  %944 = vmatpush1.bf16.msra.mxu0 0
  %945 = vmatprep.subr.bf16.mxu0 0
  %946 = vmatpush1.bf16.msra.mxu0 0
  %947 = vmatprep.subr.bf16.mxu0 0
  %948 = vmatpush1.bf16.msra.mxu0 0
  %949 = vmatprep.subr.bf16.mxu0 0
  %950 = vmatpush1.bf16.msra.mxu0 0
  %951 = vmatprep.subr.bf16.mxu0 0
  %952 = vmatpush1.bf16.msra.mxu0 0
  %953 = vmatprep.mubr.bf16.mxu0 0
  %954 = vmatmul.mubr.bf16.gmra.mrb[0].mxu0 %v789
  %v955 = vpop.f32.mrb[0].mxu0
  %v956 = vadd.f32 %v907, %v955
  %v957 = vpop.f32.mrb[0].mxu0
  %v958 = vpop.f32.mrb[0].mxu0
  %v959 = vpop.f32.mrb[0].mxu0
  %960 = vdwg.mxu0
  %v961 = vadd.f32 %v629, %v826
  %v962 = vxor.u32 %v961, 2147483648
  %v963 = vmul.f32 %v962, 1.442695
  %v964 = vpow.pop %v963
  %v965 = vadd.f32 %v964, 1.0
  %v966 = vrcp.pop %v965
  %v967 = vmul.f32 1.0, %v966
  %v968 = vadd.f32 %v694, %v891
  %v969 = vxor.u32 %v968, 2147483648
  %v970 = vmul.f32 %v969, 1.442695
  %v971 = vpow.pop %v970
  %v972 = vadd.f32 %v971, 1.0
  %v973 = vrcp.pop %v972
  %v974 = vmul.f32 1.0, %v973
  %v975 = vmul.f32 %v967, %v956
  %v976 = vadd.f32 %v759, %v975
  %v977 = vtanh.pop %v976
  %v978 = vsub.f32 1.0, %v974
  %v979 = vmul.f32 %v978, %v977
  %v980 = vmul.f32 %v974, %v345
  %v981 = vadd.f32 %v979, %v980
  %982 = vst.msk [vmem:[#allocation3] sm:$0xff] %vm153, %v981
  %s983 = scalar_lea.vmem [#allocation2], 8
  %v984 = vld [vmem:[%s983] sm:$0xff]
  %s985 = scalar_lea.vmem [#allocation2], 72
  %v986 = vld [vmem:[%s985] sm:$0xff]
  %s987 = scalar_lea.vmem [#allocation2], 136
  %v988 = vld [vmem:[%s987] sm:$0xff]
  %v989 = vld [vmem:[%s2] sm:$0xf]
  %v990 = vld [vmem:[%s2 + $0x4] sm:$0xf]
  %v991 = vld [vmem:[%s2 + $0x8] sm:$0xf]
  %v992 = vld [vmem:[%s2 + $0xc] sm:$0xf]
  %v993 = vld [vmem:[%s4] sm:$0x1]
  %v995 = vlaneseq
  %v996 = vshrl.u32 %v995, 7
  %v997 = vsub.s32 0, %v996
  %v998 = vrot.slane %v993, %v997
  %v1004 = vunpack.c.l.b16 %v989
  %v1005 = vunpack.c.l.b16 %v990
  %v1006 = vunpack.c.l.b16 %v991
  %v1007 = vunpack.c.l.b16 %v992
  %v1008 = vpack.c.b16 %v1005, %v1004
  %v1009 = vpack.c.b16 %v1007, %v1006
  %1012 = vmatprep.subr.bf16.mxu0 0
  %1013 = vmatpush1.bf16.msra.mxu0 %v1008
  %1014 = vmatprep.subr.bf16.mxu0 0
  %1015 = vmatpush1.bf16.msra.mxu0 %v1009
  %1016 = vmatprep.subr.bf16.mxu0 0
  %1017 = vmatpush1.bf16.msra.mxu0 0
  %1018 = vmatprep.subr.bf16.mxu0 0
  %1019 = vmatpush1.bf16.msra.mxu0 0
  %1020 = vmatprep.subr.bf16.mxu0 0
  %1021 = vmatpush1.bf16.msra.mxu0 0
  %1022 = vmatprep.subr.bf16.mxu0 0
  %1023 = vmatpush1.bf16.msra.mxu0 0
  %1024 = vmatprep.subr.bf16.mxu0 0
  %1025 = vmatpush1.bf16.msra.mxu0 0
  %1026 = vmatprep.subr.bf16.mxu0 0
  %1027 = vmatpush1.bf16.msra.mxu0 0
  %1028 = vmatprep.subr.bf16.mxu0 0
  %1029 = vmatpush1.bf16.msra.mxu0 0
  %1030 = vmatprep.subr.bf16.mxu0 0
  %1031 = vmatpush1.bf16.msra.mxu0 0
  %1032 = vmatprep.subr.bf16.mxu0 0
  %1033 = vmatpush1.bf16.msra.mxu0 0
  %1034 = vmatprep.subr.bf16.mxu0 0
  %1035 = vmatpush1.bf16.msra.mxu0 0
  %1036 = vmatprep.subr.bf16.mxu0 0
  %1037 = vmatpush1.bf16.msra.mxu0 0
  %1038 = vmatprep.subr.bf16.mxu0 0
  %1039 = vmatpush1.bf16.msra.mxu0 0
  %1040 = vmatprep.subr.bf16.mxu0 0
  %1041 = vmatpush1.bf16.msra.mxu0 0
  %1042 = vmatprep.subr.bf16.mxu0 0
  %1043 = vmatpush1.bf16.msra.mxu0 0
  %1044 = vmatprep.mubr.bf16.mxu0 0
  %1045 = vmatmul.mubr.bf16.gmra.mrb[0].mxu0 %v592
  %v1046 = vpop.f32.mrb[0].mxu0
  %v1047 = vadd.f32 %v998, %v1046
  %v1048 = vpop.f32.mrb[0].mxu0
  %v1049 = vpop.f32.mrb[0].mxu0
  %v1050 = vpop.f32.mrb[0].mxu0
  %1051 = vdwg.mxu0
  %v1052 = vld [vmem:[%s416] sm:$0xf]
  %v1053 = vld [vmem:[%s416 + $0x4] sm:$0xf]
  %v1054 = vld [vmem:[%s416 + $0x8] sm:$0xf]
  %v1055 = vld [vmem:[%s416 + $0xc] sm:$0xf]
  %v1056 = vld [vmem:[%s421] sm:$0x1]
  %v1058 = vlaneseq
  %v1059 = vshrl.u32 %v1058, 7
  %v1060 = vsub.s32 0, %v1059
  %v1061 = vrot.slane %v1056, %v1060
  %v1067 = vunpack.c.l.b16 %v1052
  %v1068 = vunpack.c.l.b16 %v1053
  %v1069 = vunpack.c.l.b16 %v1054
  %v1070 = vunpack.c.l.b16 %v1055
  %v1071 = vpack.c.b16 %v1068, %v1067
  %v1072 = vpack.c.b16 %v1070, %v1069
  %1075 = vmatprep.subr.bf16.mxu0 0
  %1076 = vmatpush1.bf16.msra.mxu0 %v1071
  %1077 = vmatprep.subr.bf16.mxu0 0
  %1078 = vmatpush1.bf16.msra.mxu0 %v1072
  %1079 = vmatprep.subr.bf16.mxu0 0
  %1080 = vmatpush1.bf16.msra.mxu0 0
  %1081 = vmatprep.subr.bf16.mxu0 0
  %1082 = vmatpush1.bf16.msra.mxu0 0
  %1083 = vmatprep.subr.bf16.mxu0 0
  %1084 = vmatpush1.bf16.msra.mxu0 0
  %1085 = vmatprep.subr.bf16.mxu0 0
  %1086 = vmatpush1.bf16.msra.mxu0 0
  %1087 = vmatprep.subr.bf16.mxu0 0
  %1088 = vmatpush1.bf16.msra.mxu0 0
  %1089 = vmatprep.subr.bf16.mxu0 0
  %1090 = vmatpush1.bf16.msra.mxu0 0
  %1091 = vmatprep.subr.bf16.mxu0 0
  %1092 = vmatpush1.bf16.msra.mxu0 0
  %1093 = vmatprep.subr.bf16.mxu0 0
  %1094 = vmatpush1.bf16.msra.mxu0 0
  %1095 = vmatprep.subr.bf16.mxu0 0
  %1096 = vmatpush1.bf16.msra.mxu0 0
  %1097 = vmatprep.subr.bf16.mxu0 0
  %1098 = vmatpush1.bf16.msra.mxu0 0
  %1099 = vmatprep.subr.bf16.mxu0 0
  %1100 = vmatpush1.bf16.msra.mxu0 0
  %1101 = vmatprep.subr.bf16.mxu0 0
  %1102 = vmatpush1.bf16.msra.mxu0 0
  %1103 = vmatprep.subr.bf16.mxu0 0
  %1104 = vmatpush1.bf16.msra.mxu0 0
  %1105 = vmatprep.subr.bf16.mxu0 0
  %1106 = vmatpush1.bf16.msra.mxu0 0
  %1107 = vmatprep.mubr.bf16.mxu0 0
  %1108 = vmatmul.mubr.bf16.gmra.mrb[0].mxu0 %v592
  %v1109 = vpop.f32.mrb[0].mxu0
  %v1110 = vadd.f32 %v1061, %v1109
  %v1111 = vpop.f32.mrb[0].mxu0
  %v1112 = vpop.f32.mrb[0].mxu0
  %v1113 = vpop.f32.mrb[0].mxu0
  %1114 = vdwg.mxu0
  %v1115 = vld [vmem:[%s481] sm:$0xf]
  %v1116 = vld [vmem:[%s481 + $0x4] sm:$0xf]
  %v1117 = vld [vmem:[%s481 + $0x8] sm:$0xf]
  %v1118 = vld [vmem:[%s481 + $0xc] sm:$0xf]
  %v1119 = vld [vmem:[%s486] sm:$0x1]
  %v1121 = vlaneseq
  %v1122 = vshrl.u32 %v1121, 7
  %v1123 = vsub.s32 0, %v1122
  %v1124 = vrot.slane %v1119, %v1123
  %v1130 = vunpack.c.l.b16 %v1115
  %v1131 = vunpack.c.l.b16 %v1116
  %v1132 = vunpack.c.l.b16 %v1117
  %v1133 = vunpack.c.l.b16 %v1118
  %v1134 = vpack.c.b16 %v1131, %v1130
  %v1135 = vpack.c.b16 %v1133, %v1132
  %1138 = vmatprep.subr.bf16.mxu0 0
  %1139 = vmatpush1.bf16.msra.mxu0 %v1134
  %1140 = vmatprep.subr.bf16.mxu0 0
  %1141 = vmatpush1.bf16.msra.mxu0 %v1135
  %1142 = vmatprep.subr.bf16.mxu0 0
  %1143 = vmatpush1.bf16.msra.mxu0 0
  %1144 = vmatprep.subr.bf16.mxu0 0
  %1145 = vmatpush1.bf16.msra.mxu0 0
  %1146 = vmatprep.subr.bf16.mxu0 0
  %1147 = vmatpush1.bf16.msra.mxu0 0
  %1148 = vmatprep.subr.bf16.mxu0 0
  %1149 = vmatpush1.bf16.msra.mxu0 0
  %1150 = vmatprep.subr.bf16.mxu0 0
  %1151 = vmatpush1.bf16.msra.mxu0 0
  %1152 = vmatprep.subr.bf16.mxu0 0
  %1153 = vmatpush1.bf16.msra.mxu0 0
  %1154 = vmatprep.subr.bf16.mxu0 0
  %1155 = vmatpush1.bf16.msra.mxu0 0
  %1156 = vmatprep.subr.bf16.mxu0 0
  %1157 = vmatpush1.bf16.msra.mxu0 0
  %1158 = vmatprep.subr.bf16.mxu0 0
  %1159 = vmatpush1.bf16.msra.mxu0 0
  %1160 = vmatprep.subr.bf16.mxu0 0
  %1161 = vmatpush1.bf16.msra.mxu0 0
  %1162 = vmatprep.subr.bf16.mxu0 0
  %1163 = vmatpush1.bf16.msra.mxu0 0
  %1164 = vmatprep.subr.bf16.mxu0 0
  %1165 = vmatpush1.bf16.msra.mxu0 0
  %1166 = vmatprep.subr.bf16.mxu0 0
  %1167 = vmatpush1.bf16.msra.mxu0 0
  %1168 = vmatprep.subr.bf16.mxu0 0
  %1169 = vmatpush1.bf16.msra.mxu0 0
  %1170 = vmatprep.mubr.bf16.mxu0 0
  %1171 = vmatmul.mubr.bf16.gmra.mrb[0].mxu0 %v592
  %v1172 = vpop.f32.mrb[0].mxu0
  %v1173 = vadd.f32 %v1124, %v1172
  %v1174 = vpop.f32.mrb[0].mxu0
  %v1175 = vpop.f32.mrb[0].mxu0
  %v1176 = vpop.f32.mrb[0].mxu0
  %1177 = vdwg.mxu0
  %v1178 = vadd.f32 %v984, %v1047
  %v1179 = vxor.u32 %v1178, 2147483648
  %v1180 = vmul.f32 %v1179, 1.442695
  %v1181 = vpow.pop %v1180
  %v1182 = vadd.f32 %v1181, 1.0
  %v1183 = vrcp.pop %v1182
  %v1184 = vmul.f32 1.0, %v1183
  %v1185 = vadd.f32 %v986, %v1110
  %v1186 = vxor.u32 %v1185, 2147483648
  %v1187 = vmul.f32 %v1186, 1.442695
  %v1188 = vpow.pop %v1187
  %v1189 = vadd.f32 %v1188, 1.0
  %v1190 = vrcp.pop %v1189
  %v1191 = vmul.f32 1.0, %v1190
  %v1192 = vmul.f32 %v1184, %v1173
  %v1193 = vadd.f32 %v988, %v1192
  %v1194 = vtanh.pop %v1193
  %v1195 = vsub.f32 1.0, %v1191
  %v1196 = vmul.f32 %v1195, %v1194
  %v1197 = vmul.f32 %v1191, %v566
  %v1198 = vadd.f32 %v1196, %v1197
  %v1199 = vpack.c.bf16 %v1198, %v1198
  %v1200 = vld [vmem:[%s5] sm:$0xf]
  %v1201 = vld [vmem:[%s5 + $0x4] sm:$0xf]
  %v1202 = vld [vmem:[%s5 + $0x8] sm:$0xf]
  %v1203 = vld [vmem:[%s5 + $0xc] sm:$0xf]
  %v1204 = vld [vmem:[%s7] sm:$0x1]
  %v1206 = vlaneseq
  %v1207 = vshrl.u32 %v1206, 7
  %v1208 = vsub.s32 0, %v1207
  %v1209 = vrot.slane %v1204, %v1208
  %v1215 = vunpack.c.l.b16 %v1200
  %v1216 = vunpack.c.l.b16 %v1201
  %v1217 = vunpack.c.l.b16 %v1202
  %v1218 = vunpack.c.l.b16 %v1203
  %v1219 = vpack.c.b16 %v1216, %v1215
  %v1220 = vpack.c.b16 %v1218, %v1217
  %v1224 = vsel %vm153, %v1199, 0
  %1226 = vmatprep.subr.bf16.mxu0 0
  %1227 = vmatpush1.bf16.msra.mxu0 %v1219
  %1228 = vmatprep.subr.bf16.mxu0 0
  %1229 = vmatpush1.bf16.msra.mxu0 %v1220
  %1230 = vmatprep.subr.bf16.mxu0 0
  %1231 = vmatpush1.bf16.msra.mxu0 0
  %1232 = vmatprep.subr.bf16.mxu0 0
  %1233 = vmatpush1.bf16.msra.mxu0 0
  %1234 = vmatprep.subr.bf16.mxu0 0
  %1235 = vmatpush1.bf16.msra.mxu0 0
  %1236 = vmatprep.subr.bf16.mxu0 0
  %1237 = vmatpush1.bf16.msra.mxu0 0
  %1238 = vmatprep.subr.bf16.mxu0 0
  %1239 = vmatpush1.bf16.msra.mxu0 0
  %1240 = vmatprep.subr.bf16.mxu0 0
  %1241 = vmatpush1.bf16.msra.mxu0 0
  %1242 = vmatprep.subr.bf16.mxu0 0
  %1243 = vmatpush1.bf16.msra.mxu0 0
  %1244 = vmatprep.subr.bf16.mxu0 0
  %1245 = vmatpush1.bf16.msra.mxu0 0
  %1246 = vmatprep.subr.bf16.mxu0 0
  %1247 = vmatpush1.bf16.msra.mxu0 0
  %1248 = vmatprep.subr.bf16.mxu0 0
  %1249 = vmatpush1.bf16.msra.mxu0 0
  %1250 = vmatprep.subr.bf16.mxu0 0
  %1251 = vmatpush1.bf16.msra.mxu0 0
  %1252 = vmatprep.subr.bf16.mxu0 0
  %1253 = vmatpush1.bf16.msra.mxu0 0
  %1254 = vmatprep.subr.bf16.mxu0 0
  %1255 = vmatpush1.bf16.msra.mxu0 0
  %1256 = vmatprep.subr.bf16.mxu0 0
  %1257 = vmatpush1.bf16.msra.mxu0 0
  %1258 = vmatprep.mubr.bf16.mxu0 0
  %1259 = vmatmul.mubr.bf16.gmra.mrb[0].mxu0 %v1224
  %v1260 = vpop.f32.mrb[0].mxu0
  %v1261 = vadd.f32 %v1209, %v1260
  %v1262 = vpop.f32.mrb[0].mxu0
  %v1263 = vpop.f32.mrb[0].mxu0
  %v1264 = vpop.f32.mrb[0].mxu0
  %1265 = vdwg.mxu0
  %v1266 = vld [vmem:[%s634] sm:$0xf]
  %v1267 = vld [vmem:[%s634 + $0x4] sm:$0xf]
  %v1268 = vld [vmem:[%s634 + $0x8] sm:$0xf]
  %v1269 = vld [vmem:[%s634 + $0xc] sm:$0xf]
  %v1270 = vld [vmem:[%s639] sm:$0x1]
  %v1272 = vlaneseq
  %v1273 = vshrl.u32 %v1272, 7
  %v1274 = vsub.s32 0, %v1273
  %v1275 = vrot.slane %v1270, %v1274
  %v1281 = vunpack.c.l.b16 %v1266
  %v1282 = vunpack.c.l.b16 %v1267
  %v1283 = vunpack.c.l.b16 %v1268
  %v1284 = vunpack.c.l.b16 %v1269
  %v1285 = vpack.c.b16 %v1282, %v1281
  %v1286 = vpack.c.b16 %v1284, %v1283
  %1289 = vmatprep.subr.bf16.mxu0 0
  %1290 = vmatpush1.bf16.msra.mxu0 %v1285
  %1291 = vmatprep.subr.bf16.mxu0 0
  %1292 = vmatpush1.bf16.msra.mxu0 %v1286
  %1293 = vmatprep.subr.bf16.mxu0 0
  %1294 = vmatpush1.bf16.msra.mxu0 0
  %1295 = vmatprep.subr.bf16.mxu0 0
  %1296 = vmatpush1.bf16.msra.mxu0 0
  %1297 = vmatprep.subr.bf16.mxu0 0
  %1298 = vmatpush1.bf16.msra.mxu0 0
  %1299 = vmatprep.subr.bf16.mxu0 0
  %1300 = vmatpush1.bf16.msra.mxu0 0
  %1301 = vmatprep.subr.bf16.mxu0 0
  %1302 = vmatpush1.bf16.msra.mxu0 0
  %1303 = vmatprep.subr.bf16.mxu0 0
  %1304 = vmatpush1.bf16.msra.mxu0 0
  %1305 = vmatprep.subr.bf16.mxu0 0
  %1306 = vmatpush1.bf16.msra.mxu0 0
  %1307 = vmatprep.subr.bf16.mxu0 0
  %1308 = vmatpush1.bf16.msra.mxu0 0
  %1309 = vmatprep.subr.bf16.mxu0 0
  %1310 = vmatpush1.bf16.msra.mxu0 0
  %1311 = vmatprep.subr.bf16.mxu0 0
  %1312 = vmatpush1.bf16.msra.mxu0 0
  %1313 = vmatprep.subr.bf16.mxu0 0
  %1314 = vmatpush1.bf16.msra.mxu0 0
  %1315 = vmatprep.subr.bf16.mxu0 0
  %1316 = vmatpush1.bf16.msra.mxu0 0
  %1317 = vmatprep.subr.bf16.mxu0 0
  %1318 = vmatpush1.bf16.msra.mxu0 0
  %1319 = vmatprep.subr.bf16.mxu0 0
  %1320 = vmatpush1.bf16.msra.mxu0 0
  %1321 = vmatprep.mubr.bf16.mxu0 0
  %1322 = vmatmul.mubr.bf16.gmra.mrb[0].mxu0 %v1224
  %v1323 = vpop.f32.mrb[0].mxu0
  %v1324 = vadd.f32 %v1275, %v1323
  %v1325 = vpop.f32.mrb[0].mxu0
  %v1326 = vpop.f32.mrb[0].mxu0
  %v1327 = vpop.f32.mrb[0].mxu0
  %1328 = vdwg.mxu0
  %v1329 = vld [vmem:[%s699] sm:$0xf]
  %v1330 = vld [vmem:[%s699 + $0x4] sm:$0xf]
  %v1331 = vld [vmem:[%s699 + $0x8] sm:$0xf]
  %v1332 = vld [vmem:[%s699 + $0xc] sm:$0xf]
  %v1333 = vld [vmem:[%s704] sm:$0x1]
  %v1335 = vlaneseq
  %v1336 = vshrl.u32 %v1335, 7
  %v1337 = vsub.s32 0, %v1336
  %v1338 = vrot.slane %v1333, %v1337
  %v1344 = vunpack.c.l.b16 %v1329
  %v1345 = vunpack.c.l.b16 %v1330
  %v1346 = vunpack.c.l.b16 %v1331
  %v1347 = vunpack.c.l.b16 %v1332
  %v1348 = vpack.c.b16 %v1345, %v1344
  %v1349 = vpack.c.b16 %v1347, %v1346
  %1352 = vmatprep.subr.bf16.mxu0 0
  %1353 = vmatpush1.bf16.msra.mxu0 %v1348
  %1354 = vmatprep.subr.bf16.mxu0 0
  %1355 = vmatpush1.bf16.msra.mxu0 %v1349
  %1356 = vmatprep.subr.bf16.mxu0 0
  %1357 = vmatpush1.bf16.msra.mxu0 0
  %1358 = vmatprep.subr.bf16.mxu0 0
  %1359 = vmatpush1.bf16.msra.mxu0 0
  %1360 = vmatprep.subr.bf16.mxu0 0
  %1361 = vmatpush1.bf16.msra.mxu0 0
  %1362 = vmatprep.subr.bf16.mxu0 0
  %1363 = vmatpush1.bf16.msra.mxu0 0
  %1364 = vmatprep.subr.bf16.mxu0 0
  %1365 = vmatpush1.bf16.msra.mxu0 0
  %1366 = vmatprep.subr.bf16.mxu0 0
  %1367 = vmatpush1.bf16.msra.mxu0 0
  %1368 = vmatprep.subr.bf16.mxu0 0
  %1369 = vmatpush1.bf16.msra.mxu0 0
  %1370 = vmatprep.subr.bf16.mxu0 0
  %1371 = vmatpush1.bf16.msra.mxu0 0
  %1372 = vmatprep.subr.bf16.mxu0 0
  %1373 = vmatpush1.bf16.msra.mxu0 0
  %1374 = vmatprep.subr.bf16.mxu0 0
  %1375 = vmatpush1.bf16.msra.mxu0 0
  %1376 = vmatprep.subr.bf16.mxu0 0
  %1377 = vmatpush1.bf16.msra.mxu0 0
  %1378 = vmatprep.subr.bf16.mxu0 0
  %1379 = vmatpush1.bf16.msra.mxu0 0
  %1380 = vmatprep.subr.bf16.mxu0 0
  %1381 = vmatpush1.bf16.msra.mxu0 0
  %1382 = vmatprep.subr.bf16.mxu0 0
  %1383 = vmatpush1.bf16.msra.mxu0 0
  %1384 = vmatprep.mubr.bf16.mxu0 0
  %1385 = vmatmul.mubr.bf16.gmra.mrb[0].mxu0 %v1224
  %v1386 = vpop.f32.mrb[0].mxu0
  %v1387 = vadd.f32 %v1338, %v1386
  %v1388 = vpop.f32.mrb[0].mxu0
  %v1389 = vpop.f32.mrb[0].mxu0
  %v1390 = vpop.f32.mrb[0].mxu0
  %1391 = vdwg.mxu0
  %v1392 = vpack.c.bf16 %v981, %v981
  %v1393 = vld [vmem:[%s6] sm:$0xf]
  %v1394 = vld [vmem:[%s6 + $0x4] sm:$0xf]
  %v1395 = vld [vmem:[%s6 + $0x8] sm:$0xf]
  %v1396 = vld [vmem:[%s6 + $0xc] sm:$0xf]
  %v1397 = vld [vmem:[%s8] sm:$0x1]
  %v1399 = vlaneseq
  %v1400 = vshrl.u32 %v1399, 7
  %v1401 = vsub.s32 0, %v1400
  %v1402 = vrot.slane %v1397, %v1401
  %v1408 = vunpack.c.l.b16 %v1393
  %v1409 = vunpack.c.l.b16 %v1394
  %v1410 = vunpack.c.l.b16 %v1395
  %v1411 = vunpack.c.l.b16 %v1396
  %v1412 = vpack.c.b16 %v1409, %v1408
  %v1413 = vpack.c.b16 %v1411, %v1410
  %v1417 = vsel %vm153, %v1392, 0
  %1419 = vmatprep.subr.bf16.mxu0 0
  %1420 = vmatpush1.bf16.msra.mxu0 %v1412
  %1421 = vmatprep.subr.bf16.mxu0 0
  %1422 = vmatpush1.bf16.msra.mxu0 %v1413
  %1423 = vmatprep.subr.bf16.mxu0 0
  %1424 = vmatpush1.bf16.msra.mxu0 0
  %1425 = vmatprep.subr.bf16.mxu0 0
  %1426 = vmatpush1.bf16.msra.mxu0 0
  %1427 = vmatprep.subr.bf16.mxu0 0
  %1428 = vmatpush1.bf16.msra.mxu0 0
  %1429 = vmatprep.subr.bf16.mxu0 0
  %1430 = vmatpush1.bf16.msra.mxu0 0
  %1431 = vmatprep.subr.bf16.mxu0 0
  %1432 = vmatpush1.bf16.msra.mxu0 0
  %1433 = vmatprep.subr.bf16.mxu0 0
  %1434 = vmatpush1.bf16.msra.mxu0 0
  %1435 = vmatprep.subr.bf16.mxu0 0
  %1436 = vmatpush1.bf16.msra.mxu0 0
  %1437 = vmatprep.subr.bf16.mxu0 0
  %1438 = vmatpush1.bf16.msra.mxu0 0
  %1439 = vmatprep.subr.bf16.mxu0 0
  %1440 = vmatpush1.bf16.msra.mxu0 0
  %1441 = vmatprep.subr.bf16.mxu0 0
  %1442 = vmatpush1.bf16.msra.mxu0 0
  %1443 = vmatprep.subr.bf16.mxu0 0
  %1444 = vmatpush1.bf16.msra.mxu0 0
  %1445 = vmatprep.subr.bf16.mxu0 0
  %1446 = vmatpush1.bf16.msra.mxu0 0
  %1447 = vmatprep.subr.bf16.mxu0 0
  %1448 = vmatpush1.bf16.msra.mxu0 0
  %1449 = vmatprep.subr.bf16.mxu0 0
  %1450 = vmatpush1.bf16.msra.mxu0 0
  %1451 = vmatprep.mubr.bf16.mxu0 0
  %1452 = vmatmul.mubr.bf16.gmra.mrb[0].mxu0 %v1417
  %v1453 = vpop.f32.mrb[0].mxu0
  %v1454 = vadd.f32 %v1402, %v1453
  %v1455 = vpop.f32.mrb[0].mxu0
  %v1456 = vpop.f32.mrb[0].mxu0
  %v1457 = vpop.f32.mrb[0].mxu0
  %1458 = vdwg.mxu0
  %v1459 = vld [vmem:[%s831] sm:$0xf]
  %v1460 = vld [vmem:[%s831 + $0x4] sm:$0xf]
  %v1461 = vld [vmem:[%s831 + $0x8] sm:$0xf]
  %v1462 = vld [vmem:[%s831 + $0xc] sm:$0xf]
  %v1463 = vld [vmem:[%s836] sm:$0x1]
  %v1465 = vlaneseq
  %v1466 = vshrl.u32 %v1465, 7
  %v1467 = vsub.s32 0, %v1466
  %v1468 = vrot.slane %v1463, %v1467
  %v1474 = vunpack.c.l.b16 %v1459
  %v1475 = vunpack.c.l.b16 %v1460
  %v1476 = vunpack.c.l.b16 %v1461
  %v1477 = vunpack.c.l.b16 %v1462
  %v1478 = vpack.c.b16 %v1475, %v1474
  %v1479 = vpack.c.b16 %v1477, %v1476
  %1482 = vmatprep.subr.bf16.mxu0 0
  %1483 = vmatpush1.bf16.msra.mxu0 %v1478
  %1484 = vmatprep.subr.bf16.mxu0 0
  %1485 = vmatpush1.bf16.msra.mxu0 %v1479
  %1486 = vmatprep.subr.bf16.mxu0 0
  %1487 = vmatpush1.bf16.msra.mxu0 0
  %1488 = vmatprep.subr.bf16.mxu0 0
  %1489 = vmatpush1.bf16.msra.mxu0 0
  %1490 = vmatprep.subr.bf16.mxu0 0
  %1491 = vmatpush1.bf16.msra.mxu0 0
  %1492 = vmatprep.subr.bf16.mxu0 0
  %1493 = vmatpush1.bf16.msra.mxu0 0
  %1494 = vmatprep.subr.bf16.mxu0 0
  %1495 = vmatpush1.bf16.msra.mxu0 0
  %1496 = vmatprep.subr.bf16.mxu0 0
  %1497 = vmatpush1.bf16.msra.mxu0 0
  %1498 = vmatprep.subr.bf16.mxu0 0
  %1499 = vmatpush1.bf16.msra.mxu0 0
  %1500 = vmatprep.subr.bf16.mxu0 0
  %1501 = vmatpush1.bf16.msra.mxu0 0
  %1502 = vmatprep.subr.bf16.mxu0 0
  %1503 = vmatpush1.bf16.msra.mxu0 0
  %1504 = vmatprep.subr.bf16.mxu0 0
  %1505 = vmatpush1.bf16.msra.mxu0 0
  %1506 = vmatprep.subr.bf16.mxu0 0
  %1507 = vmatpush1.bf16.msra.mxu0 0
  %1508 = vmatprep.subr.bf16.mxu0 0
  %1509 = vmatpush1.bf16.msra.mxu0 0
  %1510 = vmatprep.subr.bf16.mxu0 0
  %1511 = vmatpush1.bf16.msra.mxu0 0
  %1512 = vmatprep.subr.bf16.mxu0 0
  %1513 = vmatpush1.bf16.msra.mxu0 0
  %1514 = vmatprep.mubr.bf16.mxu0 0
  %1515 = vmatmul.mubr.bf16.gmra.mrb[0].mxu0 %v1417
  %v1516 = vpop.f32.mrb[0].mxu0
  %v1517 = vadd.f32 %v1468, %v1516
  %v1518 = vpop.f32.mrb[0].mxu0
  %v1519 = vpop.f32.mrb[0].mxu0
  %v1520 = vpop.f32.mrb[0].mxu0
  %1521 = vdwg.mxu0
  %v1522 = vld [vmem:[%s896] sm:$0xf]
  %v1523 = vld [vmem:[%s896 + $0x4] sm:$0xf]
  %v1524 = vld [vmem:[%s896 + $0x8] sm:$0xf]
  %v1525 = vld [vmem:[%s896 + $0xc] sm:$0xf]
  %v1526 = vld [vmem:[%s901] sm:$0x1]
  %v1528 = vlaneseq
  %v1529 = vshrl.u32 %v1528, 7
  %v1530 = vsub.s32 0, %v1529
  %v1531 = vrot.slane %v1526, %v1530
  %v1537 = vunpack.c.l.b16 %v1522
  %v1538 = vunpack.c.l.b16 %v1523
  %v1539 = vunpack.c.l.b16 %v1524
  %v1540 = vunpack.c.l.b16 %v1525
  %v1541 = vpack.c.b16 %v1538, %v1537
  %v1542 = vpack.c.b16 %v1540, %v1539
  %1545 = vmatprep.subr.bf16.mxu0 0
  %1546 = vmatpush1.bf16.msra.mxu0 %v1541
  %1547 = vmatprep.subr.bf16.mxu0 0
  %1548 = vmatpush1.bf16.msra.mxu0 %v1542
  %1549 = vmatprep.subr.bf16.mxu0 0
  %1550 = vmatpush1.bf16.msra.mxu0 0
  %1551 = vmatprep.subr.bf16.mxu0 0
  %1552 = vmatpush1.bf16.msra.mxu0 0
  %1553 = vmatprep.subr.bf16.mxu0 0
  %1554 = vmatpush1.bf16.msra.mxu0 0
  %1555 = vmatprep.subr.bf16.mxu0 0
  %1556 = vmatpush1.bf16.msra.mxu0 0
  %1557 = vmatprep.subr.bf16.mxu0 0
  %1558 = vmatpush1.bf16.msra.mxu0 0
  %1559 = vmatprep.subr.bf16.mxu0 0
  %1560 = vmatpush1.bf16.msra.mxu0 0
  %1561 = vmatprep.subr.bf16.mxu0 0
  %1562 = vmatpush1.bf16.msra.mxu0 0
  %1563 = vmatprep.subr.bf16.mxu0 0
  %1564 = vmatpush1.bf16.msra.mxu0 0
  %1565 = vmatprep.subr.bf16.mxu0 0
  %1566 = vmatpush1.bf16.msra.mxu0 0
  %1567 = vmatprep.subr.bf16.mxu0 0
  %1568 = vmatpush1.bf16.msra.mxu0 0
  %1569 = vmatprep.subr.bf16.mxu0 0
  %1570 = vmatpush1.bf16.msra.mxu0 0
  %1571 = vmatprep.subr.bf16.mxu0 0
  %1572 = vmatpush1.bf16.msra.mxu0 0
  %1573 = vmatprep.subr.bf16.mxu0 0
  %1574 = vmatpush1.bf16.msra.mxu0 0
  %1575 = vmatprep.subr.bf16.mxu0 0
  %1576 = vmatpush1.bf16.msra.mxu0 0
  %1577 = vmatprep.mubr.bf16.mxu0 0
  %1578 = vmatmul.mubr.bf16.gmra.mrb[0].mxu0 %v1417
  %v1579 = vpop.f32.mrb[0].mxu0
  %v1580 = vadd.f32 %v1531, %v1579
  %v1581 = vpop.f32.mrb[0].mxu0
  %v1582 = vpop.f32.mrb[0].mxu0
  %v1583 = vpop.f32.mrb[0].mxu0
  %1584 = vdwg.mxu0
  %v1585 = vadd.f32 %v1261, %v1454
  %v1586 = vxor.u32 %v1585, 2147483648
  %v1587 = vmul.f32 %v1586, 1.442695
  %v1588 = vpow.pop %v1587
  %v1589 = vadd.f32 %v1588, 1.0
  %v1590 = vrcp.pop %v1589
  %v1591 = vmul.f32 1.0, %v1590
  %v1592 = vadd.f32 %v1324, %v1517
  %v1593 = vxor.u32 %v1592, 2147483648
  %v1594 = vmul.f32 %v1593, 1.442695
  %v1595 = vpow.pop %v1594
  %v1596 = vadd.f32 %v1595, 1.0
  %v1597 = vrcp.pop %v1596
  %v1598 = vmul.f32 1.0, %v1597
  %v1599 = vmul.f32 %v1591, %v1580
  %v1600 = vadd.f32 %v1387, %v1599
  %v1601 = vtanh.pop %v1600
  %v1602 = vsub.f32 1.0, %v1598
  %v1603 = vmul.f32 %v1602, %v1601
  %v1604 = vmul.f32 %v1598, %v981
  %v1605 = vadd.f32 %v1603, %v1604
  %s1606 = scalar_lea.vmem [#allocation3], 8
  %1607 = vst.msk [vmem:[%s1606] sm:$0xff] %vm153, %v1605
  %s1608 = scalar_lea.vmem [#allocation2], 16
  %v1609 = vld [vmem:[%s1608] sm:$0xff]
  %s1610 = scalar_lea.vmem [#allocation2], 80
  %v1611 = vld [vmem:[%s1610] sm:$0xff]
  %s1612 = scalar_lea.vmem [#allocation2], 144
  %v1613 = vld [vmem:[%s1612] sm:$0xff]
  %v1614 = vld [vmem:[%s2] sm:$0xf]
  %v1615 = vld [vmem:[%s2 + $0x4] sm:$0xf]
  %v1616 = vld [vmem:[%s2 + $0x8] sm:$0xf]
  %v1617 = vld [vmem:[%s2 + $0xc] sm:$0xf]
  %v1618 = vld [vmem:[%s4] sm:$0x1]
  %v1620 = vlaneseq
  %v1621 = vshrl.u32 %v1620, 7
  %v1622 = vsub.s32 0, %v1621
  %v1623 = vrot.slane %v1618, %v1622
  %v1629 = vunpack.c.l.b16 %v1614
  %v1630 = vunpack.c.l.b16 %v1615
  %v1631 = vunpack.c.l.b16 %v1616
  %v1632 = vunpack.c.l.b16 %v1617
  %v1633 = vpack.c.b16 %v1630, %v1629
  %v1634 = vpack.c.b16 %v1632, %v1631
  %1637 = vmatprep.subr.bf16.mxu0 0
  %1638 = vmatpush1.bf16.msra.mxu0 %v1633
  %1639 = vmatprep.subr.bf16.mxu0 0
  %1640 = vmatpush1.bf16.msra.mxu0 %v1634
  %1641 = vmatprep.subr.bf16.mxu0 0
  %1642 = vmatpush1.bf16.msra.mxu0 0
  %1643 = vmatprep.subr.bf16.mxu0 0
  %1644 = vmatpush1.bf16.msra.mxu0 0
  %1645 = vmatprep.subr.bf16.mxu0 0
  %1646 = vmatpush1.bf16.msra.mxu0 0
  %1647 = vmatprep.subr.bf16.mxu0 0
  %1648 = vmatpush1.bf16.msra.mxu0 0
  %1649 = vmatprep.subr.bf16.mxu0 0
  %1650 = vmatpush1.bf16.msra.mxu0 0
  %1651 = vmatprep.subr.bf16.mxu0 0
  %1652 = vmatpush1.bf16.msra.mxu0 0
  %1653 = vmatprep.subr.bf16.mxu0 0
  %1654 = vmatpush1.bf16.msra.mxu0 0
  %1655 = vmatprep.subr.bf16.mxu0 0
  %1656 = vmatpush1.bf16.msra.mxu0 0
  %1657 = vmatprep.subr.bf16.mxu0 0
  %1658 = vmatpush1.bf16.msra.mxu0 0
  %1659 = vmatprep.subr.bf16.mxu0 0
  %1660 = vmatpush1.bf16.msra.mxu0 0
  %1661 = vmatprep.subr.bf16.mxu0 0
  %1662 = vmatpush1.bf16.msra.mxu0 0
  %1663 = vmatprep.subr.bf16.mxu0 0
  %1664 = vmatpush1.bf16.msra.mxu0 0
  %1665 = vmatprep.subr.bf16.mxu0 0
  %1666 = vmatpush1.bf16.msra.mxu0 0
  %1667 = vmatprep.subr.bf16.mxu0 0
  %1668 = vmatpush1.bf16.msra.mxu0 0
  %1669 = vmatprep.mubr.bf16.mxu0 0
  %1670 = vmatmul.mubr.bf16.gmra.mrb[0].mxu0 %v1224
  %v1671 = vpop.f32.mrb[0].mxu0
  %v1672 = vadd.f32 %v1623, %v1671
  %v1673 = vpop.f32.mrb[0].mxu0
  %v1674 = vpop.f32.mrb[0].mxu0
  %v1675 = vpop.f32.mrb[0].mxu0
  %1676 = vdwg.mxu0
  %v1677 = vld [vmem:[%s416] sm:$0xf]
  %v1678 = vld [vmem:[%s416 + $0x4] sm:$0xf]
  %v1679 = vld [vmem:[%s416 + $0x8] sm:$0xf]
  %v1680 = vld [vmem:[%s416 + $0xc] sm:$0xf]
  %v1681 = vld [vmem:[%s421] sm:$0x1]
  %v1683 = vlaneseq
  %v1684 = vshrl.u32 %v1683, 7
  %v1685 = vsub.s32 0, %v1684
  %v1686 = vrot.slane %v1681, %v1685
  %v1692 = vunpack.c.l.b16 %v1677
  %v1693 = vunpack.c.l.b16 %v1678
  %v1694 = vunpack.c.l.b16 %v1679
  %v1695 = vunpack.c.l.b16 %v1680
  %v1696 = vpack.c.b16 %v1693, %v1692
  %v1697 = vpack.c.b16 %v1695, %v1694
  %1700 = vmatprep.subr.bf16.mxu0 0
  %1701 = vmatpush1.bf16.msra.mxu0 %v1696
  %1702 = vmatprep.subr.bf16.mxu0 0
  %1703 = vmatpush1.bf16.msra.mxu0 %v1697
  %1704 = vmatprep.subr.bf16.mxu0 0
  %1705 = vmatpush1.bf16.msra.mxu0 0
  %1706 = vmatprep.subr.bf16.mxu0 0
  %1707 = vmatpush1.bf16.msra.mxu0 0
  %1708 = vmatprep.subr.bf16.mxu0 0
  %1709 = vmatpush1.bf16.msra.mxu0 0
  %1710 = vmatprep.subr.bf16.mxu0 0
  %1711 = vmatpush1.bf16.msra.mxu0 0
  %1712 = vmatprep.subr.bf16.mxu0 0
  %1713 = vmatpush1.bf16.msra.mxu0 0
  %1714 = vmatprep.subr.bf16.mxu0 0
  %1715 = vmatpush1.bf16.msra.mxu0 0
  %1716 = vmatprep.subr.bf16.mxu0 0
  %1717 = vmatpush1.bf16.msra.mxu0 0
  %1718 = vmatprep.subr.bf16.mxu0 0
  %1719 = vmatpush1.bf16.msra.mxu0 0
  %1720 = vmatprep.subr.bf16.mxu0 0
  %1721 = vmatpush1.bf16.msra.mxu0 0
  %1722 = vmatprep.subr.bf16.mxu0 0
  %1723 = vmatpush1.bf16.msra.mxu0 0
  %1724 = vmatprep.subr.bf16.mxu0 0
  %1725 = vmatpush1.bf16.msra.mxu0 0
  %1726 = vmatprep.subr.bf16.mxu0 0
  %1727 = vmatpush1.bf16.msra.mxu0 0
  %1728 = vmatprep.subr.bf16.mxu0 0
  %1729 = vmatpush1.bf16.msra.mxu0 0
  %1730 = vmatprep.subr.bf16.mxu0 0
  %1731 = vmatpush1.bf16.msra.mxu0 0
  %1732 = vmatprep.mubr.bf16.mxu0 0
  %1733 = vmatmul.mubr.bf16.gmra.mrb[0].mxu0 %v1224
  %v1734 = vpop.f32.mrb[0].mxu0
  %v1735 = vadd.f32 %v1686, %v1734
  %v1736 = vpop.f32.mrb[0].mxu0
  %v1737 = vpop.f32.mrb[0].mxu0
  %v1738 = vpop.f32.mrb[0].mxu0
  %1739 = vdwg.mxu0
  %v1740 = vld [vmem:[%s481] sm:$0xf]
  %v1741 = vld [vmem:[%s481 + $0x4] sm:$0xf]
  %v1742 = vld [vmem:[%s481 + $0x8] sm:$0xf]
  %v1743 = vld [vmem:[%s481 + $0xc] sm:$0xf]
  %v1744 = vld [vmem:[%s486] sm:$0x1]
  %v1746 = vlaneseq
  %v1747 = vshrl.u32 %v1746, 7
  %v1748 = vsub.s32 0, %v1747
  %v1749 = vrot.slane %v1744, %v1748
  %v1755 = vunpack.c.l.b16 %v1740
  %v1756 = vunpack.c.l.b16 %v1741
  %v1757 = vunpack.c.l.b16 %v1742
  %v1758 = vunpack.c.l.b16 %v1743
  %v1759 = vpack.c.b16 %v1756, %v1755
  %v1760 = vpack.c.b16 %v1758, %v1757
  %1763 = vmatprep.subr.bf16.mxu0 0
  %1764 = vmatpush1.bf16.msra.mxu0 %v1759
  %1765 = vmatprep.subr.bf16.mxu0 0
  %1766 = vmatpush1.bf16.msra.mxu0 %v1760
  %1767 = vmatprep.subr.bf16.mxu0 0
  %1768 = vmatpush1.bf16.msra.mxu0 0
  %1769 = vmatprep.subr.bf16.mxu0 0
  %1770 = vmatpush1.bf16.msra.mxu0 0
  %1771 = vmatprep.subr.bf16.mxu0 0
  %1772 = vmatpush1.bf16.msra.mxu0 0
  %1773 = vmatprep.subr.bf16.mxu0 0
  %1774 = vmatpush1.bf16.msra.mxu0 0
  %1775 = vmatprep.subr.bf16.mxu0 0
  %1776 = vmatpush1.bf16.msra.mxu0 0
  %1777 = vmatprep.subr.bf16.mxu0 0
  %1778 = vmatpush1.bf16.msra.mxu0 0
  %1779 = vmatprep.subr.bf16.mxu0 0
  %1780 = vmatpush1.bf16.msra.mxu0 0
  %1781 = vmatprep.subr.bf16.mxu0 0
  %1782 = vmatpush1.bf16.msra.mxu0 0
  %1783 = vmatprep.subr.bf16.mxu0 0
  %1784 = vmatpush1.bf16.msra.mxu0 0
  %1785 = vmatprep.subr.bf16.mxu0 0
  %1786 = vmatpush1.bf16.msra.mxu0 0
  %1787 = vmatprep.subr.bf16.mxu0 0
  %1788 = vmatpush1.bf16.msra.mxu0 0
  %1789 = vmatprep.subr.bf16.mxu0 0
  %1790 = vmatpush1.bf16.msra.mxu0 0
  %1791 = vmatprep.subr.bf16.mxu0 0
  %1792 = vmatpush1.bf16.msra.mxu0 0
  %1793 = vmatprep.subr.bf16.mxu0 0
  %1794 = vmatpush1.bf16.msra.mxu0 0
  %1795 = vmatprep.mubr.bf16.mxu0 0
  %1796 = vmatmul.mubr.bf16.gmra.mrb[0].mxu0 %v1224
  %v1797 = vpop.f32.mrb[0].mxu0
  %v1798 = vadd.f32 %v1749, %v1797
  %v1799 = vpop.f32.mrb[0].mxu0
  %v1800 = vpop.f32.mrb[0].mxu0
  %v1801 = vpop.f32.mrb[0].mxu0
  %1802 = vdwg.mxu0
  %v1803 = vadd.f32 %v1609, %v1672
  %v1804 = vxor.u32 %v1803, 2147483648
  %v1805 = vmul.f32 %v1804, 1.442695
  %v1806 = vpow.pop %v1805
  %v1807 = vadd.f32 %v1806, 1.0
  %v1808 = vrcp.pop %v1807
  %v1809 = vmul.f32 1.0, %v1808
  %v1810 = vadd.f32 %v1611, %v1735
  %v1811 = vxor.u32 %v1810, 2147483648
  %v1812 = vmul.f32 %v1811, 1.442695
  %v1813 = vpow.pop %v1812
  %v1814 = vadd.f32 %v1813, 1.0
  %v1815 = vrcp.pop %v1814
  %v1816 = vmul.f32 1.0, %v1815
  %v1817 = vmul.f32 %v1809, %v1798
  %v1818 = vadd.f32 %v1613, %v1817
  %v1819 = vtanh.pop %v1818
  %v1820 = vsub.f32 1.0, %v1816
  %v1821 = vmul.f32 %v1820, %v1819
  %v1822 = vmul.f32 %v1816, %v1198
  %v1823 = vadd.f32 %v1821, %v1822
  %v1824 = vpack.c.bf16 %v1823, %v1823
  %v1825 = vld [vmem:[%s5] sm:$0xf]
  %v1826 = vld [vmem:[%s5 + $0x4] sm:$0xf]
  %v1827 = vld [vmem:[%s5 + $0x8] sm:$0xf]
  %v1828 = vld [vmem:[%s5 + $0xc] sm:$0xf]
  %v1829 = vld [vmem:[%s7] sm:$0x1]
  %v1831 = vlaneseq
  %v1832 = vshrl.u32 %v1831, 7
  %v1833 = vsub.s32 0, %v1832
  %v1834 = vrot.slane %v1829, %v1833
  %v1840 = vunpack.c.l.b16 %v1825
  %v1841 = vunpack.c.l.b16 %v1826
  %v1842 = vunpack.c.l.b16 %v1827
  %v1843 = vunpack.c.l.b16 %v1828
  %v1844 = vpack.c.b16 %v1841, %v1840
  %v1845 = vpack.c.b16 %v1843, %v1842
  %v1849 = vsel %vm153, %v1824, 0
  %1851 = vmatprep.subr.bf16.mxu0 0
  %1852 = vmatpush1.bf16.msra.mxu0 %v1844
  %1853 = vmatprep.subr.bf16.mxu0 0
  %1854 = vmatpush1.bf16.msra.mxu0 %v1845
  %1855 = vmatprep.subr.bf16.mxu0 0
  %1856 = vmatpush1.bf16.msra.mxu0 0
  %1857 = vmatprep.subr.bf16.mxu0 0
  %1858 = vmatpush1.bf16.msra.mxu0 0
  %1859 = vmatprep.subr.bf16.mxu0 0
  %1860 = vmatpush1.bf16.msra.mxu0 0
  %1861 = vmatprep.subr.bf16.mxu0 0
  %1862 = vmatpush1.bf16.msra.mxu0 0
  %1863 = vmatprep.subr.bf16.mxu0 0
  %1864 = vmatpush1.bf16.msra.mxu0 0
  %1865 = vmatprep.subr.bf16.mxu0 0
  %1866 = vmatpush1.bf16.msra.mxu0 0
  %1867 = vmatprep.subr.bf16.mxu0 0
  %1868 = vmatpush1.bf16.msra.mxu0 0
  %1869 = vmatprep.subr.bf16.mxu0 0
  %1870 = vmatpush1.bf16.msra.mxu0 0
  %1871 = vmatprep.subr.bf16.mxu0 0
  %1872 = vmatpush1.bf16.msra.mxu0 0
  %1873 = vmatprep.subr.bf16.mxu0 0
  %1874 = vmatpush1.bf16.msra.mxu0 0
  %1875 = vmatprep.subr.bf16.mxu0 0
  %1876 = vmatpush1.bf16.msra.mxu0 0
  %1877 = vmatprep.subr.bf16.mxu0 0
  %1878 = vmatpush1.bf16.msra.mxu0 0
  %1879 = vmatprep.subr.bf16.mxu0 0
  %1880 = vmatpush1.bf16.msra.mxu0 0
  %1881 = vmatprep.subr.bf16.mxu0 0
  %1882 = vmatpush1.bf16.msra.mxu0 0
  %1883 = vmatprep.mubr.bf16.mxu0 0
  %1884 = vmatmul.mubr.bf16.gmra.mrb[0].mxu0 %v1849
  %v1885 = vpop.f32.mrb[0].mxu0
  %v1886 = vadd.f32 %v1834, %v1885
  %v1887 = vpop.f32.mrb[0].mxu0
  %v1888 = vpop.f32.mrb[0].mxu0
  %v1889 = vpop.f32.mrb[0].mxu0
  %1890 = vdwg.mxu0
  %v1891 = vld [vmem:[%s634] sm:$0xf]
  %v1892 = vld [vmem:[%s634 + $0x4] sm:$0xf]
  %v1893 = vld [vmem:[%s634 + $0x8] sm:$0xf]
  %v1894 = vld [vmem:[%s634 + $0xc] sm:$0xf]
  %v1895 = vld [vmem:[%s639] sm:$0x1]
  %v1897 = vlaneseq
  %v1898 = vshrl.u32 %v1897, 7
  %v1899 = vsub.s32 0, %v1898
  %v1900 = vrot.slane %v1895, %v1899
  %v1906 = vunpack.c.l.b16 %v1891
  %v1907 = vunpack.c.l.b16 %v1892
  %v1908 = vunpack.c.l.b16 %v1893
  %v1909 = vunpack.c.l.b16 %v1894
  %v1910 = vpack.c.b16 %v1907, %v1906
  %v1911 = vpack.c.b16 %v1909, %v1908
  %1914 = vmatprep.subr.bf16.mxu0 0
  %1915 = vmatpush1.bf16.msra.mxu0 %v1910
  %1916 = vmatprep.subr.bf16.mxu0 0
  %1917 = vmatpush1.bf16.msra.mxu0 %v1911
  %1918 = vmatprep.subr.bf16.mxu0 0
  %1919 = vmatpush1.bf16.msra.mxu0 0
  %1920 = vmatprep.subr.bf16.mxu0 0
  %1921 = vmatpush1.bf16.msra.mxu0 0
  %1922 = vmatprep.subr.bf16.mxu0 0
  %1923 = vmatpush1.bf16.msra.mxu0 0
  %1924 = vmatprep.subr.bf16.mxu0 0
  %1925 = vmatpush1.bf16.msra.mxu0 0
  %1926 = vmatprep.subr.bf16.mxu0 0
  %1927 = vmatpush1.bf16.msra.mxu0 0
  %1928 = vmatprep.subr.bf16.mxu0 0
  %1929 = vmatpush1.bf16.msra.mxu0 0
  %1930 = vmatprep.subr.bf16.mxu0 0
  %1931 = vmatpush1.bf16.msra.mxu0 0
  %1932 = vmatprep.subr.bf16.mxu0 0
  %1933 = vmatpush1.bf16.msra.mxu0 0
  %1934 = vmatprep.subr.bf16.mxu0 0
  %1935 = vmatpush1.bf16.msra.mxu0 0
  %1936 = vmatprep.subr.bf16.mxu0 0
  %1937 = vmatpush1.bf16.msra.mxu0 0
  %1938 = vmatprep.subr.bf16.mxu0 0
  %1939 = vmatpush1.bf16.msra.mxu0 0
  %1940 = vmatprep.subr.bf16.mxu0 0
  %1941 = vmatpush1.bf16.msra.mxu0 0
  %1942 = vmatprep.subr.bf16.mxu0 0
  %1943 = vmatpush1.bf16.msra.mxu0 0
  %1944 = vmatprep.subr.bf16.mxu0 0
  %1945 = vmatpush1.bf16.msra.mxu0 0
  %1946 = vmatprep.mubr.bf16.mxu0 0
  %1947 = vmatmul.mubr.bf16.gmra.mrb[0].mxu0 %v1849
  %v1948 = vpop.f32.mrb[0].mxu0
  %v1949 = vadd.f32 %v1900, %v1948
  %v1950 = vpop.f32.mrb[0].mxu0
  %v1951 = vpop.f32.mrb[0].mxu0
  %v1952 = vpop.f32.mrb[0].mxu0
  %1953 = vdwg.mxu0
  %v1954 = vld [vmem:[%s699] sm:$0xf]
  %v1955 = vld [vmem:[%s699 + $0x4] sm:$0xf]
  %v1956 = vld [vmem:[%s699 + $0x8] sm:$0xf]
  %v1957 = vld [vmem:[%s699 + $0xc] sm:$0xf]
  %v1958 = vld [vmem:[%s704] sm:$0x1]
  %v1960 = vlaneseq
  %v1961 = vshrl.u32 %v1960, 7
  %v1962 = vsub.s32 0, %v1961
  %v1963 = vrot.slane %v1958, %v1962
  %v1969 = vunpack.c.l.b16 %v1954
  %v1970 = vunpack.c.l.b16 %v1955
  %v1971 = vunpack.c.l.b16 %v1956
  %v1972 = vunpack.c.l.b16 %v1957
  %v1973 = vpack.c.b16 %v1970, %v1969
  %v1974 = vpack.c.b16 %v1972, %v1971
  %1977 = vmatprep.subr.bf16.mxu0 0
  %1978 = vmatpush1.bf16.msra.mxu0 %v1973
  %1979 = vmatprep.subr.bf16.mxu0 0
  %1980 = vmatpush1.bf16.msra.mxu0 %v1974
  %1981 = vmatprep.subr.bf16.mxu0 0
  %1982 = vmatpush1.bf16.msra.mxu0 0
  %1983 = vmatprep.subr.bf16.mxu0 0
  %1984 = vmatpush1.bf16.msra.mxu0 0
  %1985 = vmatprep.subr.bf16.mxu0 0
  %1986 = vmatpush1.bf16.msra.mxu0 0
  %1987 = vmatprep.subr.bf16.mxu0 0
  %1988 = vmatpush1.bf16.msra.mxu0 0
  %1989 = vmatprep.subr.bf16.mxu0 0
  %1990 = vmatpush1.bf16.msra.mxu0 0
  %1991 = vmatprep.subr.bf16.mxu0 0
  %1992 = vmatpush1.bf16.msra.mxu0 0
  %1993 = vmatprep.subr.bf16.mxu0 0
  %1994 = vmatpush1.bf16.msra.mxu0 0
  %1995 = vmatprep.subr.bf16.mxu0 0
  %1996 = vmatpush1.bf16.msra.mxu0 0
  %1997 = vmatprep.subr.bf16.mxu0 0
  %1998 = vmatpush1.bf16.msra.mxu0 0
  %1999 = vmatprep.subr.bf16.mxu0 0
  %2000 = vmatpush1.bf16.msra.mxu0 0
  %2001 = vmatprep.subr.bf16.mxu0 0
  %2002 = vmatpush1.bf16.msra.mxu0 0
  %2003 = vmatprep.subr.bf16.mxu0 0
  %2004 = vmatpush1.bf16.msra.mxu0 0
  %2005 = vmatprep.subr.bf16.mxu0 0
  %2006 = vmatpush1.bf16.msra.mxu0 0
  %2007 = vmatprep.subr.bf16.mxu0 0
  %2008 = vmatpush1.bf16.msra.mxu0 0
  %2009 = vmatprep.mubr.bf16.mxu0 0
  %2010 = vmatmul.mubr.bf16.gmra.mrb[0].mxu0 %v1849
  %v2011 = vpop.f32.mrb[0].mxu0
  %v2012 = vadd.f32 %v1963, %v2011
  %v2013 = vpop.f32.mrb[0].mxu0
  %v2014 = vpop.f32.mrb[0].mxu0
  %v2015 = vpop.f32.mrb[0].mxu0
  %2016 = vdwg.mxu0
  %v2017 = vpack.c.bf16 %v1605, %v1605
  %v2018 = vld [vmem:[%s6] sm:$0xf]
  %v2019 = vld [vmem:[%s6 + $0x4] sm:$0xf]
  %v2020 = vld [vmem:[%s6 + $0x8] sm:$0xf]
  %v2021 = vld [vmem:[%s6 + $0xc] sm:$0xf]
  %v2022 = vld [vmem:[%s8] sm:$0x1]
  %v2024 = vlaneseq
  %v2025 = vshrl.u32 %v2024, 7
  %v2026 = vsub.s32 0, %v2025
  %v2027 = vrot.slane %v2022, %v2026
  %v2033 = vunpack.c.l.b16 %v2018
  %v2034 = vunpack.c.l.b16 %v2019
  %v2035 = vunpack.c.l.b16 %v2020
  %v2036 = vunpack.c.l.b16 %v2021
  %v2037 = vpack.c.b16 %v2034, %v2033
  %v2038 = vpack.c.b16 %v2036, %v2035
  %v2042 = vsel %vm153, %v2017, 0
  %2044 = vmatprep.subr.bf16.mxu0 0
  %2045 = vmatpush1.bf16.msra.mxu0 %v2037
  %2046 = vmatprep.subr.bf16.mxu0 0
  %2047 = vmatpush1.bf16.msra.mxu0 %v2038
  %2048 = vmatprep.subr.bf16.mxu0 0
  %2049 = vmatpush1.bf16.msra.mxu0 0
  %2050 = vmatprep.subr.bf16.mxu0 0
  %2051 = vmatpush1.bf16.msra.mxu0 0
  %2052 = vmatprep.subr.bf16.mxu0 0
  %2053 = vmatpush1.bf16.msra.mxu0 0
  %2054 = vmatprep.subr.bf16.mxu0 0
  %2055 = vmatpush1.bf16.msra.mxu0 0
  %2056 = vmatprep.subr.bf16.mxu0 0
  %2057 = vmatpush1.bf16.msra.mxu0 0
  %2058 = vmatprep.subr.bf16.mxu0 0
  %2059 = vmatpush1.bf16.msra.mxu0 0
  %2060 = vmatprep.subr.bf16.mxu0 0
  %2061 = vmatpush1.bf16.msra.mxu0 0
  %2062 = vmatprep.subr.bf16.mxu0 0
  %2063 = vmatpush1.bf16.msra.mxu0 0
  %2064 = vmatprep.subr.bf16.mxu0 0
  %2065 = vmatpush1.bf16.msra.mxu0 0
  %2066 = vmatprep.subr.bf16.mxu0 0
  %2067 = vmatpush1.bf16.msra.mxu0 0
  %2068 = vmatprep.subr.bf16.mxu0 0
  %2069 = vmatpush1.bf16.msra.mxu0 0
  %2070 = vmatprep.subr.bf16.mxu0 0
  %2071 = vmatpush1.bf16.msra.mxu0 0
  %2072 = vmatprep.subr.bf16.mxu0 0
  %2073 = vmatpush1.bf16.msra.mxu0 0
  %2074 = vmatprep.subr.bf16.mxu0 0
  %2075 = vmatpush1.bf16.msra.mxu0 0
  %2076 = vmatprep.mubr.bf16.mxu0 0
  %2077 = vmatmul.mubr.bf16.gmra.mrb[0].mxu0 %v2042
  %v2078 = vpop.f32.mrb[0].mxu0
  %v2079 = vadd.f32 %v2027, %v2078
  %v2080 = vpop.f32.mrb[0].mxu0
  %v2081 = vpop.f32.mrb[0].mxu0
  %v2082 = vpop.f32.mrb[0].mxu0
  %2083 = vdwg.mxu0
  %v2084 = vld [vmem:[%s831] sm:$0xf]
  %v2085 = vld [vmem:[%s831 + $0x4] sm:$0xf]
  %v2086 = vld [vmem:[%s831 + $0x8] sm:$0xf]
  %v2087 = vld [vmem:[%s831 + $0xc] sm:$0xf]
  %v2088 = vld [vmem:[%s836] sm:$0x1]
  %v2090 = vlaneseq
  %v2091 = vshrl.u32 %v2090, 7
  %v2092 = vsub.s32 0, %v2091
  %v2093 = vrot.slane %v2088, %v2092
  %v2099 = vunpack.c.l.b16 %v2084
  %v2100 = vunpack.c.l.b16 %v2085
  %v2101 = vunpack.c.l.b16 %v2086
  %v2102 = vunpack.c.l.b16 %v2087
  %v2103 = vpack.c.b16 %v2100, %v2099
  %v2104 = vpack.c.b16 %v2102, %v2101
  %2107 = vmatprep.subr.bf16.mxu0 0
  %2108 = vmatpush1.bf16.msra.mxu0 %v2103
  %2109 = vmatprep.subr.bf16.mxu0 0
  %2110 = vmatpush1.bf16.msra.mxu0 %v2104
  %2111 = vmatprep.subr.bf16.mxu0 0
  %2112 = vmatpush1.bf16.msra.mxu0 0
  %2113 = vmatprep.subr.bf16.mxu0 0
  %2114 = vmatpush1.bf16.msra.mxu0 0
  %2115 = vmatprep.subr.bf16.mxu0 0
  %2116 = vmatpush1.bf16.msra.mxu0 0
  %2117 = vmatprep.subr.bf16.mxu0 0
  %2118 = vmatpush1.bf16.msra.mxu0 0
  %2119 = vmatprep.subr.bf16.mxu0 0
  %2120 = vmatpush1.bf16.msra.mxu0 0
  %2121 = vmatprep.subr.bf16.mxu0 0
  %2122 = vmatpush1.bf16.msra.mxu0 0
  %2123 = vmatprep.subr.bf16.mxu0 0
  %2124 = vmatpush1.bf16.msra.mxu0 0
  %2125 = vmatprep.subr.bf16.mxu0 0
  %2126 = vmatpush1.bf16.msra.mxu0 0
  %2127 = vmatprep.subr.bf16.mxu0 0
  %2128 = vmatpush1.bf16.msra.mxu0 0
  %2129 = vmatprep.subr.bf16.mxu0 0
  %2130 = vmatpush1.bf16.msra.mxu0 0
  %2131 = vmatprep.subr.bf16.mxu0 0
  %2132 = vmatpush1.bf16.msra.mxu0 0
  %2133 = vmatprep.subr.bf16.mxu0 0
  %2134 = vmatpush1.bf16.msra.mxu0 0
  %2135 = vmatprep.subr.bf16.mxu0 0
  %2136 = vmatpush1.bf16.msra.mxu0 0
  %2137 = vmatprep.subr.bf16.mxu0 0
  %2138 = vmatpush1.bf16.msra.mxu0 0
  %2139 = vmatprep.mubr.bf16.mxu0 0
  %2140 = vmatmul.mubr.bf16.gmra.mrb[0].mxu0 %v2042
  %v2141 = vpop.f32.mrb[0].mxu0
  %v2142 = vadd.f32 %v2093, %v2141
  %v2143 = vpop.f32.mrb[0].mxu0
  %v2144 = vpop.f32.mrb[0].mxu0
  %v2145 = vpop.f32.mrb[0].mxu0
  %2146 = vdwg.mxu0
  %v2147 = vld [vmem:[%s896] sm:$0xf]
  %v2148 = vld [vmem:[%s896 + $0x4] sm:$0xf]
  %v2149 = vld [vmem:[%s896 + $0x8] sm:$0xf]
  %v2150 = vld [vmem:[%s896 + $0xc] sm:$0xf]
  %v2151 = vld [vmem:[%s901] sm:$0x1]
  %v2153 = vlaneseq
  %v2154 = vshrl.u32 %v2153, 7
  %v2155 = vsub.s32 0, %v2154
  %v2156 = vrot.slane %v2151, %v2155
  %v2162 = vunpack.c.l.b16 %v2147
  %v2163 = vunpack.c.l.b16 %v2148
  %v2164 = vunpack.c.l.b16 %v2149
  %v2165 = vunpack.c.l.b16 %v2150
  %v2166 = vpack.c.b16 %v2163, %v2162
  %v2167 = vpack.c.b16 %v2165, %v2164
  %2170 = vmatprep.subr.bf16.mxu0 0
  %2171 = vmatpush1.bf16.msra.mxu0 %v2166
  %2172 = vmatprep.subr.bf16.mxu0 0
  %2173 = vmatpush1.bf16.msra.mxu0 %v2167
  %2174 = vmatprep.subr.bf16.mxu0 0
  %2175 = vmatpush1.bf16.msra.mxu0 0
  %2176 = vmatprep.subr.bf16.mxu0 0
  %2177 = vmatpush1.bf16.msra.mxu0 0
  %2178 = vmatprep.subr.bf16.mxu0 0
  %2179 = vmatpush1.bf16.msra.mxu0 0
  %2180 = vmatprep.subr.bf16.mxu0 0
  %2181 = vmatpush1.bf16.msra.mxu0 0
  %2182 = vmatprep.subr.bf16.mxu0 0
  %2183 = vmatpush1.bf16.msra.mxu0 0
  %2184 = vmatprep.subr.bf16.mxu0 0
  %2185 = vmatpush1.bf16.msra.mxu0 0
  %2186 = vmatprep.subr.bf16.mxu0 0
  %2187 = vmatpush1.bf16.msra.mxu0 0
  %2188 = vmatprep.subr.bf16.mxu0 0
  %2189 = vmatpush1.bf16.msra.mxu0 0
  %2190 = vmatprep.subr.bf16.mxu0 0
  %2191 = vmatpush1.bf16.msra.mxu0 0
  %2192 = vmatprep.subr.bf16.mxu0 0
  %2193 = vmatpush1.bf16.msra.mxu0 0
  %2194 = vmatprep.subr.bf16.mxu0 0
  %2195 = vmatpush1.bf16.msra.mxu0 0
  %2196 = vmatprep.subr.bf16.mxu0 0
  %2197 = vmatpush1.bf16.msra.mxu0 0
  %2198 = vmatprep.subr.bf16.mxu0 0
  %2199 = vmatpush1.bf16.msra.mxu0 0
  %2200 = vmatprep.subr.bf16.mxu0 0
  %2201 = vmatpush1.bf16.msra.mxu0 0
  %2202 = vmatprep.mubr.bf16.mxu0 0
  %2203 = vmatmul.mubr.bf16.gmra.mrb[0].mxu0 %v2042
  %v2204 = vpop.f32.mrb[0].mxu0
  %v2205 = vadd.f32 %v2156, %v2204
  %v2206 = vpop.f32.mrb[0].mxu0
  %v2207 = vpop.f32.mrb[0].mxu0
  %v2208 = vpop.f32.mrb[0].mxu0
  %2209 = vdwg.mxu0
  %v2210 = vadd.f32 %v1886, %v2079
  %v2211 = vxor.u32 %v2210, 2147483648
  %v2212 = vmul.f32 %v2211, 1.442695
  %v2213 = vpow.pop %v2212
  %v2214 = vadd.f32 %v2213, 1.0
  %v2215 = vrcp.pop %v2214
  %v2216 = vmul.f32 1.0, %v2215
  %v2217 = vadd.f32 %v1949, %v2142
  %v2218 = vxor.u32 %v2217, 2147483648
  %v2219 = vmul.f32 %v2218, 1.442695
  %v2220 = vpow.pop %v2219
  %v2221 = vadd.f32 %v2220, 1.0
  %v2222 = vrcp.pop %v2221
  %v2223 = vmul.f32 1.0, %v2222
  %v2224 = vmul.f32 %v2216, %v2205
  %v2225 = vadd.f32 %v2012, %v2224
  %v2226 = vtanh.pop %v2225
  %v2227 = vsub.f32 1.0, %v2223
  %v2228 = vmul.f32 %v2227, %v2226
  %v2229 = vmul.f32 %v2223, %v1605
  %v2230 = vadd.f32 %v2228, %v2229
  %s2231 = scalar_lea.vmem [#allocation3], 16
  %2232 = vst.msk [vmem:[%s2231] sm:$0xff] %vm153, %v2230
  %s2233 = scalar_lea.vmem [#allocation2], 24
  %v2234 = vld [vmem:[%s2233] sm:$0xff]
  %s2235 = scalar_lea.vmem [#allocation2], 88
  %v2236 = vld [vmem:[%s2235] sm:$0xff]
  %s2237 = scalar_lea.vmem [#allocation2], 152
  %v2238 = vld [vmem:[%s2237] sm:$0xff]
  %v2239 = vld [vmem:[%s2] sm:$0xf]
  %v2240 = vld [vmem:[%s2 + $0x4] sm:$0xf]
  %v2241 = vld [vmem:[%s2 + $0x8] sm:$0xf]
  %v2242 = vld [vmem:[%s2 + $0xc] sm:$0xf]
  %v2243 = vld [vmem:[%s4] sm:$0x1]
  %v2245 = vlaneseq
  %v2246 = vshrl.u32 %v2245, 7
  %v2247 = vsub.s32 0, %v2246
  %v2248 = vrot.slane %v2243, %v2247
  %v2254 = vunpack.c.l.b16 %v2239
  %v2255 = vunpack.c.l.b16 %v2240
  %v2256 = vunpack.c.l.b16 %v2241
  %v2257 = vunpack.c.l.b16 %v2242
  %v2258 = vpack.c.b16 %v2255, %v2254
  %v2259 = vpack.c.b16 %v2257, %v2256
  %2262 = vmatprep.subr.bf16.mxu0 0
  %2263 = vmatpush1.bf16.msra.mxu0 %v2258
  %2264 = vmatprep.subr.bf16.mxu0 0
  %2265 = vmatpush1.bf16.msra.mxu0 %v2259
  %2266 = vmatprep.subr.bf16.mxu0 0
  %2267 = vmatpush1.bf16.msra.mxu0 0
  %2268 = vmatprep.subr.bf16.mxu0 0
  %2269 = vmatpush1.bf16.msra.mxu0 0
  %2270 = vmatprep.subr.bf16.mxu0 0
  %2271 = vmatpush1.bf16.msra.mxu0 0
  %2272 = vmatprep.subr.bf16.mxu0 0
  %2273 = vmatpush1.bf16.msra.mxu0 0
  %2274 = vmatprep.subr.bf16.mxu0 0
  %2275 = vmatpush1.bf16.msra.mxu0 0
  %2276 = vmatprep.subr.bf16.mxu0 0
  %2277 = vmatpush1.bf16.msra.mxu0 0
  %2278 = vmatprep.subr.bf16.mxu0 0
  %2279 = vmatpush1.bf16.msra.mxu0 0
  %2280 = vmatprep.subr.bf16.mxu0 0
  %2281 = vmatpush1.bf16.msra.mxu0 0
  %2282 = vmatprep.subr.bf16.mxu0 0
  %2283 = vmatpush1.bf16.msra.mxu0 0
  %2284 = vmatprep.subr.bf16.mxu0 0
  %2285 = vmatpush1.bf16.msra.mxu0 0
  %2286 = vmatprep.subr.bf16.mxu0 0
  %2287 = vmatpush1.bf16.msra.mxu0 0
  %2288 = vmatprep.subr.bf16.mxu0 0
  %2289 = vmatpush1.bf16.msra.mxu0 0
  %2290 = vmatprep.subr.bf16.mxu0 0
  %2291 = vmatpush1.bf16.msra.mxu0 0
  %2292 = vmatprep.subr.bf16.mxu0 0
  %2293 = vmatpush1.bf16.msra.mxu0 0
  %2294 = vmatprep.mubr.bf16.mxu0 0
  %2295 = vmatmul.mubr.bf16.gmra.mrb[0].mxu0 %v1849
  %v2296 = vpop.f32.mrb[0].mxu0
  %v2297 = vadd.f32 %v2248, %v2296
  %v2298 = vpop.f32.mrb[0].mxu0
  %v2299 = vpop.f32.mrb[0].mxu0
  %v2300 = vpop.f32.mrb[0].mxu0
  %2301 = vdwg.mxu0
  %v2302 = vld [vmem:[%s416] sm:$0xf]
  %v2303 = vld [vmem:[%s416 + $0x4] sm:$0xf]
  %v2304 = vld [vmem:[%s416 + $0x8] sm:$0xf]
  %v2305 = vld [vmem:[%s416 + $0xc] sm:$0xf]
  %v2306 = vld [vmem:[%s421] sm:$0x1]
  %v2308 = vlaneseq
  %v2309 = vshrl.u32 %v2308, 7
  %v2310 = vsub.s32 0, %v2309
  %v2311 = vrot.slane %v2306, %v2310
  %v2317 = vunpack.c.l.b16 %v2302
  %v2318 = vunpack.c.l.b16 %v2303
  %v2319 = vunpack.c.l.b16 %v2304
  %v2320 = vunpack.c.l.b16 %v2305
  %v2321 = vpack.c.b16 %v2318, %v2317
  %v2322 = vpack.c.b16 %v2320, %v2319
  %2325 = vmatprep.subr.bf16.mxu0 0
  %2326 = vmatpush1.bf16.msra.mxu0 %v2321
  %2327 = vmatprep.subr.bf16.mxu0 0
  %2328 = vmatpush1.bf16.msra.mxu0 %v2322
  %2329 = vmatprep.subr.bf16.mxu0 0
  %2330 = vmatpush1.bf16.msra.mxu0 0
  %2331 = vmatprep.subr.bf16.mxu0 0
  %2332 = vmatpush1.bf16.msra.mxu0 0
  %2333 = vmatprep.subr.bf16.mxu0 0
  %2334 = vmatpush1.bf16.msra.mxu0 0
  %2335 = vmatprep.subr.bf16.mxu0 0
  %2336 = vmatpush1.bf16.msra.mxu0 0
  %2337 = vmatprep.subr.bf16.mxu0 0
  %2338 = vmatpush1.bf16.msra.mxu0 0
  %2339 = vmatprep.subr.bf16.mxu0 0
  %2340 = vmatpush1.bf16.msra.mxu0 0
  %2341 = vmatprep.subr.bf16.mxu0 0
  %2342 = vmatpush1.bf16.msra.mxu0 0
  %2343 = vmatprep.subr.bf16.mxu0 0
  %2344 = vmatpush1.bf16.msra.mxu0 0
  %2345 = vmatprep.subr.bf16.mxu0 0
  %2346 = vmatpush1.bf16.msra.mxu0 0
  %2347 = vmatprep.subr.bf16.mxu0 0
  %2348 = vmatpush1.bf16.msra.mxu0 0
  %2349 = vmatprep.subr.bf16.mxu0 0
  %2350 = vmatpush1.bf16.msra.mxu0 0
  %2351 = vmatprep.subr.bf16.mxu0 0
  %2352 = vmatpush1.bf16.msra.mxu0 0
  %2353 = vmatprep.subr.bf16.mxu0 0
  %2354 = vmatpush1.bf16.msra.mxu0 0
  %2355 = vmatprep.subr.bf16.mxu0 0
  %2356 = vmatpush1.bf16.msra.mxu0 0
  %2357 = vmatprep.mubr.bf16.mxu0 0
  %2358 = vmatmul.mubr.bf16.gmra.mrb[0].mxu0 %v1849
  %v2359 = vpop.f32.mrb[0].mxu0
  %v2360 = vadd.f32 %v2311, %v2359
  %v2361 = vpop.f32.mrb[0].mxu0
  %v2362 = vpop.f32.mrb[0].mxu0
  %v2363 = vpop.f32.mrb[0].mxu0
  %2364 = vdwg.mxu0
  %v2365 = vld [vmem:[%s481] sm:$0xf]
  %v2366 = vld [vmem:[%s481 + $0x4] sm:$0xf]
  %v2367 = vld [vmem:[%s481 + $0x8] sm:$0xf]
  %v2368 = vld [vmem:[%s481 + $0xc] sm:$0xf]
  %v2369 = vld [vmem:[%s486] sm:$0x1]
  %v2371 = vlaneseq
  %v2372 = vshrl.u32 %v2371, 7
  %v2373 = vsub.s32 0, %v2372
  %v2374 = vrot.slane %v2369, %v2373
  %v2380 = vunpack.c.l.b16 %v2365
  %v2381 = vunpack.c.l.b16 %v2366
  %v2382 = vunpack.c.l.b16 %v2367
  %v2383 = vunpack.c.l.b16 %v2368
  %v2384 = vpack.c.b16 %v2381, %v2380
  %v2385 = vpack.c.b16 %v2383, %v2382
  %2388 = vmatprep.subr.bf16.mxu0 0
  %2389 = vmatpush1.bf16.msra.mxu0 %v2384
  %2390 = vmatprep.subr.bf16.mxu0 0
  %2391 = vmatpush1.bf16.msra.mxu0 %v2385
  %2392 = vmatprep.subr.bf16.mxu0 0
  %2393 = vmatpush1.bf16.msra.mxu0 0
  %2394 = vmatprep.subr.bf16.mxu0 0
  %2395 = vmatpush1.bf16.msra.mxu0 0
  %2396 = vmatprep.subr.bf16.mxu0 0
  %2397 = vmatpush1.bf16.msra.mxu0 0
  %2398 = vmatprep.subr.bf16.mxu0 0
  %2399 = vmatpush1.bf16.msra.mxu0 0
  %2400 = vmatprep.subr.bf16.mxu0 0
  %2401 = vmatpush1.bf16.msra.mxu0 0
  %2402 = vmatprep.subr.bf16.mxu0 0
  %2403 = vmatpush1.bf16.msra.mxu0 0
  %2404 = vmatprep.subr.bf16.mxu0 0
  %2405 = vmatpush1.bf16.msra.mxu0 0
  %2406 = vmatprep.subr.bf16.mxu0 0
  %2407 = vmatpush1.bf16.msra.mxu0 0
  %2408 = vmatprep.subr.bf16.mxu0 0
  %2409 = vmatpush1.bf16.msra.mxu0 0
  %2410 = vmatprep.subr.bf16.mxu0 0
  %2411 = vmatpush1.bf16.msra.mxu0 0
  %2412 = vmatprep.subr.bf16.mxu0 0
  %2413 = vmatpush1.bf16.msra.mxu0 0
  %2414 = vmatprep.subr.bf16.mxu0 0
  %2415 = vmatpush1.bf16.msra.mxu0 0
  %2416 = vmatprep.subr.bf16.mxu0 0
  %2417 = vmatpush1.bf16.msra.mxu0 0
  %2418 = vmatprep.subr.bf16.mxu0 0
  %2419 = vmatpush1.bf16.msra.mxu0 0
  %2420 = vmatprep.mubr.bf16.mxu0 0
  %2421 = vmatmul.mubr.bf16.gmra.mrb[0].mxu0 %v1849
  %v2422 = vpop.f32.mrb[0].mxu0
  %v2423 = vadd.f32 %v2374, %v2422
  %v2424 = vpop.f32.mrb[0].mxu0
  %v2425 = vpop.f32.mrb[0].mxu0
  %v2426 = vpop.f32.mrb[0].mxu0
  %2427 = vdwg.mxu0
  %v2428 = vadd.f32 %v2234, %v2297
  %v2429 = vxor.u32 %v2428, 2147483648
  %v2430 = vmul.f32 %v2429, 1.442695
  %v2431 = vpow.pop %v2430
  %v2432 = vadd.f32 %v2431, 1.0
  %v2433 = vrcp.pop %v2432
  %v2434 = vmul.f32 1.0, %v2433
  %v2435 = vadd.f32 %v2236, %v2360
  %v2436 = vxor.u32 %v2435, 2147483648
  %v2437 = vmul.f32 %v2436, 1.442695
  %v2438 = vpow.pop %v2437
  %v2439 = vadd.f32 %v2438, 1.0
  %v2440 = vrcp.pop %v2439
  %v2441 = vmul.f32 1.0, %v2440
  %v2442 = vmul.f32 %v2434, %v2423
  %v2443 = vadd.f32 %v2238, %v2442
  %v2444 = vtanh.pop %v2443
  %v2445 = vsub.f32 1.0, %v2441
  %v2446 = vmul.f32 %v2445, %v2444
  %v2447 = vmul.f32 %v2441, %v1823
  %v2448 = vadd.f32 %v2446, %v2447
  %v2449 = vpack.c.bf16 %v2448, %v2448
  %v2450 = vld [vmem:[%s5] sm:$0xf]
  %v2451 = vld [vmem:[%s5 + $0x4] sm:$0xf]
  %v2452 = vld [vmem:[%s5 + $0x8] sm:$0xf]
  %v2453 = vld [vmem:[%s5 + $0xc] sm:$0xf]
  %v2454 = vld [vmem:[%s7] sm:$0x1]
  %v2456 = vlaneseq
  %v2457 = vshrl.u32 %v2456, 7
  %v2458 = vsub.s32 0, %v2457
  %v2459 = vrot.slane %v2454, %v2458
  %v2465 = vunpack.c.l.b16 %v2450
  %v2466 = vunpack.c.l.b16 %v2451
  %v2467 = vunpack.c.l.b16 %v2452
  %v2468 = vunpack.c.l.b16 %v2453
  %v2469 = vpack.c.b16 %v2466, %v2465
  %v2470 = vpack.c.b16 %v2468, %v2467
  %v2474 = vsel %vm153, %v2449, 0
  %2476 = vmatprep.subr.bf16.mxu0 0
  %2477 = vmatpush1.bf16.msra.mxu0 %v2469
  %2478 = vmatprep.subr.bf16.mxu0 0
  %2479 = vmatpush1.bf16.msra.mxu0 %v2470
  %2480 = vmatprep.subr.bf16.mxu0 0
  %2481 = vmatpush1.bf16.msra.mxu0 0
  %2482 = vmatprep.subr.bf16.mxu0 0
  %2483 = vmatpush1.bf16.msra.mxu0 0
  %2484 = vmatprep.subr.bf16.mxu0 0
  %2485 = vmatpush1.bf16.msra.mxu0 0
  %2486 = vmatprep.subr.bf16.mxu0 0
  %2487 = vmatpush1.bf16.msra.mxu0 0
  %2488 = vmatprep.subr.bf16.mxu0 0
  %2489 = vmatpush1.bf16.msra.mxu0 0
  %2490 = vmatprep.subr.bf16.mxu0 0
  %2491 = vmatpush1.bf16.msra.mxu0 0
  %2492 = vmatprep.subr.bf16.mxu0 0
  %2493 = vmatpush1.bf16.msra.mxu0 0
  %2494 = vmatprep.subr.bf16.mxu0 0
  %2495 = vmatpush1.bf16.msra.mxu0 0
  %2496 = vmatprep.subr.bf16.mxu0 0
  %2497 = vmatpush1.bf16.msra.mxu0 0
  %2498 = vmatprep.subr.bf16.mxu0 0
  %2499 = vmatpush1.bf16.msra.mxu0 0
  %2500 = vmatprep.subr.bf16.mxu0 0
  %2501 = vmatpush1.bf16.msra.mxu0 0
  %2502 = vmatprep.subr.bf16.mxu0 0
  %2503 = vmatpush1.bf16.msra.mxu0 0
  %2504 = vmatprep.subr.bf16.mxu0 0
  %2505 = vmatpush1.bf16.msra.mxu0 0
  %2506 = vmatprep.subr.bf16.mxu0 0
  %2507 = vmatpush1.bf16.msra.mxu0 0
  %2508 = vmatprep.mubr.bf16.mxu0 0
  %2509 = vmatmul.mubr.bf16.gmra.mrb[0].mxu0 %v2474
  %v2510 = vpop.f32.mrb[0].mxu0
  %v2511 = vadd.f32 %v2459, %v2510
  %v2512 = vpop.f32.mrb[0].mxu0
  %v2513 = vpop.f32.mrb[0].mxu0
  %v2514 = vpop.f32.mrb[0].mxu0
  %2515 = vdwg.mxu0
  %v2516 = vld [vmem:[%s634] sm:$0xf]
  %v2517 = vld [vmem:[%s634 + $0x4] sm:$0xf]
  %v2518 = vld [vmem:[%s634 + $0x8] sm:$0xf]
  %v2519 = vld [vmem:[%s634 + $0xc] sm:$0xf]
  %v2520 = vld [vmem:[%s639] sm:$0x1]
  %v2522 = vlaneseq
  %v2523 = vshrl.u32 %v2522, 7
  %v2524 = vsub.s32 0, %v2523
  %v2525 = vrot.slane %v2520, %v2524
  %v2531 = vunpack.c.l.b16 %v2516
  %v2532 = vunpack.c.l.b16 %v2517
  %v2533 = vunpack.c.l.b16 %v2518
  %v2534 = vunpack.c.l.b16 %v2519
  %v2535 = vpack.c.b16 %v2532, %v2531
  %v2536 = vpack.c.b16 %v2534, %v2533
  %2539 = vmatprep.subr.bf16.mxu0 0
  %2540 = vmatpush1.bf16.msra.mxu0 %v2535
  %2541 = vmatprep.subr.bf16.mxu0 0
  %2542 = vmatpush1.bf16.msra.mxu0 %v2536
  %2543 = vmatprep.subr.bf16.mxu0 0
  %2544 = vmatpush1.bf16.msra.mxu0 0
  %2545 = vmatprep.subr.bf16.mxu0 0
  %2546 = vmatpush1.bf16.msra.mxu0 0
  %2547 = vmatprep.subr.bf16.mxu0 0
  %2548 = vmatpush1.bf16.msra.mxu0 0
  %2549 = vmatprep.subr.bf16.mxu0 0
  %2550 = vmatpush1.bf16.msra.mxu0 0
  %2551 = vmatprep.subr.bf16.mxu0 0
  %2552 = vmatpush1.bf16.msra.mxu0 0
  %2553 = vmatprep.subr.bf16.mxu0 0
  %2554 = vmatpush1.bf16.msra.mxu0 0
  %2555 = vmatprep.subr.bf16.mxu0 0
  %2556 = vmatpush1.bf16.msra.mxu0 0
  %2557 = vmatprep.subr.bf16.mxu0 0
  %2558 = vmatpush1.bf16.msra.mxu0 0
  %2559 = vmatprep.subr.bf16.mxu0 0
  %2560 = vmatpush1.bf16.msra.mxu0 0
  %2561 = vmatprep.subr.bf16.mxu0 0
  %2562 = vmatpush1.bf16.msra.mxu0 0
  %2563 = vmatprep.subr.bf16.mxu0 0
  %2564 = vmatpush1.bf16.msra.mxu0 0
  %2565 = vmatprep.subr.bf16.mxu0 0
  %2566 = vmatpush1.bf16.msra.mxu0 0
  %2567 = vmatprep.subr.bf16.mxu0 0
  %2568 = vmatpush1.bf16.msra.mxu0 0
  %2569 = vmatprep.subr.bf16.mxu0 0
  %2570 = vmatpush1.bf16.msra.mxu0 0
  %2571 = vmatprep.mubr.bf16.mxu0 0
  %2572 = vmatmul.mubr.bf16.gmra.mrb[0].mxu0 %v2474
  %v2573 = vpop.f32.mrb[0].mxu0
  %v2574 = vadd.f32 %v2525, %v2573
  %v2575 = vpop.f32.mrb[0].mxu0
  %v2576 = vpop.f32.mrb[0].mxu0
  %v2577 = vpop.f32.mrb[0].mxu0
  %2578 = vdwg.mxu0
  %v2579 = vld [vmem:[%s699] sm:$0xf]
  %v2580 = vld [vmem:[%s699 + $0x4] sm:$0xf]
  %v2581 = vld [vmem:[%s699 + $0x8] sm:$0xf]
  %v2582 = vld [vmem:[%s699 + $0xc] sm:$0xf]
  %v2583 = vld [vmem:[%s704] sm:$0x1]
  %v2585 = vlaneseq
  %v2586 = vshrl.u32 %v2585, 7
  %v2587 = vsub.s32 0, %v2586
  %v2588 = vrot.slane %v2583, %v2587
  %v2594 = vunpack.c.l.b16 %v2579
  %v2595 = vunpack.c.l.b16 %v2580
  %v2596 = vunpack.c.l.b16 %v2581
  %v2597 = vunpack.c.l.b16 %v2582
  %v2598 = vpack.c.b16 %v2595, %v2594
  %v2599 = vpack.c.b16 %v2597, %v2596
  %2602 = vmatprep.subr.bf16.mxu0 0
  %2603 = vmatpush1.bf16.msra.mxu0 %v2598
  %2604 = vmatprep.subr.bf16.mxu0 0
  %2605 = vmatpush1.bf16.msra.mxu0 %v2599
  %2606 = vmatprep.subr.bf16.mxu0 0
  %2607 = vmatpush1.bf16.msra.mxu0 0
  %2608 = vmatprep.subr.bf16.mxu0 0
  %2609 = vmatpush1.bf16.msra.mxu0 0
  %2610 = vmatprep.subr.bf16.mxu0 0
  %2611 = vmatpush1.bf16.msra.mxu0 0
  %2612 = vmatprep.subr.bf16.mxu0 0
  %2613 = vmatpush1.bf16.msra.mxu0 0
  %2614 = vmatprep.subr.bf16.mxu0 0
  %2615 = vmatpush1.bf16.msra.mxu0 0
  %2616 = vmatprep.subr.bf16.mxu0 0
  %2617 = vmatpush1.bf16.msra.mxu0 0
  %2618 = vmatprep.subr.bf16.mxu0 0
  %2619 = vmatpush1.bf16.msra.mxu0 0
  %2620 = vmatprep.subr.bf16.mxu0 0
  %2621 = vmatpush1.bf16.msra.mxu0 0
  %2622 = vmatprep.subr.bf16.mxu0 0
  %2623 = vmatpush1.bf16.msra.mxu0 0
  %2624 = vmatprep.subr.bf16.mxu0 0
  %2625 = vmatpush1.bf16.msra.mxu0 0
  %2626 = vmatprep.subr.bf16.mxu0 0
  %2627 = vmatpush1.bf16.msra.mxu0 0
  %2628 = vmatprep.subr.bf16.mxu0 0
  %2629 = vmatpush1.bf16.msra.mxu0 0
  %2630 = vmatprep.subr.bf16.mxu0 0
  %2631 = vmatpush1.bf16.msra.mxu0 0
  %2632 = vmatprep.subr.bf16.mxu0 0
  %2633 = vmatpush1.bf16.msra.mxu0 0
  %2634 = vmatprep.mubr.bf16.mxu0 0
  %2635 = vmatmul.mubr.bf16.gmra.mrb[0].mxu0 %v2474
  %v2636 = vpop.f32.mrb[0].mxu0
  %v2637 = vadd.f32 %v2588, %v2636
  %v2638 = vpop.f32.mrb[0].mxu0
  %v2639 = vpop.f32.mrb[0].mxu0
  %v2640 = vpop.f32.mrb[0].mxu0
  %2641 = vdwg.mxu0
  %v2642 = vpack.c.bf16 %v2230, %v2230
  %v2643 = vld [vmem:[%s6] sm:$0xf]
  %v2644 = vld [vmem:[%s6 + $0x4] sm:$0xf]
  %v2645 = vld [vmem:[%s6 + $0x8] sm:$0xf]
  %v2646 = vld [vmem:[%s6 + $0xc] sm:$0xf]
  %v2647 = vld [vmem:[%s8] sm:$0x1]
  %v2649 = vlaneseq
  %v2650 = vshrl.u32 %v2649, 7
  %v2651 = vsub.s32 0, %v2650
  %v2652 = vrot.slane %v2647, %v2651
  %v2658 = vunpack.c.l.b16 %v2643
  %v2659 = vunpack.c.l.b16 %v2644
  %v2660 = vunpack.c.l.b16 %v2645
  %v2661 = vunpack.c.l.b16 %v2646
  %v2662 = vpack.c.b16 %v2659, %v2658
  %v2663 = vpack.c.b16 %v2661, %v2660
  %v2667 = vsel %vm153, %v2642, 0
  %2669 = vmatprep.subr.bf16.mxu0 0
  %2670 = vmatpush1.bf16.msra.mxu0 %v2662
  %2671 = vmatprep.subr.bf16.mxu0 0
  %2672 = vmatpush1.bf16.msra.mxu0 %v2663
  %2673 = vmatprep.subr.bf16.mxu0 0
  %2674 = vmatpush1.bf16.msra.mxu0 0
  %2675 = vmatprep.subr.bf16.mxu0 0
  %2676 = vmatpush1.bf16.msra.mxu0 0
  %2677 = vmatprep.subr.bf16.mxu0 0
  %2678 = vmatpush1.bf16.msra.mxu0 0
  %2679 = vmatprep.subr.bf16.mxu0 0
  %2680 = vmatpush1.bf16.msra.mxu0 0
  %2681 = vmatprep.subr.bf16.mxu0 0
  %2682 = vmatpush1.bf16.msra.mxu0 0
  %2683 = vmatprep.subr.bf16.mxu0 0
  %2684 = vmatpush1.bf16.msra.mxu0 0
  %2685 = vmatprep.subr.bf16.mxu0 0
  %2686 = vmatpush1.bf16.msra.mxu0 0
  %2687 = vmatprep.subr.bf16.mxu0 0
  %2688 = vmatpush1.bf16.msra.mxu0 0
  %2689 = vmatprep.subr.bf16.mxu0 0
  %2690 = vmatpush1.bf16.msra.mxu0 0
  %2691 = vmatprep.subr.bf16.mxu0 0
  %2692 = vmatpush1.bf16.msra.mxu0 0
  %2693 = vmatprep.subr.bf16.mxu0 0
  %2694 = vmatpush1.bf16.msra.mxu0 0
  %2695 = vmatprep.subr.bf16.mxu0 0
  %2696 = vmatpush1.bf16.msra.mxu0 0
  %2697 = vmatprep.subr.bf16.mxu0 0
  %2698 = vmatpush1.bf16.msra.mxu0 0
  %2699 = vmatprep.subr.bf16.mxu0 0
  %2700 = vmatpush1.bf16.msra.mxu0 0
  %2701 = vmatprep.mubr.bf16.mxu0 0
  %2702 = vmatmul.mubr.bf16.gmra.mrb[0].mxu0 %v2667
  %v2703 = vpop.f32.mrb[0].mxu0
  %v2704 = vadd.f32 %v2652, %v2703
  %v2705 = vpop.f32.mrb[0].mxu0
  %v2706 = vpop.f32.mrb[0].mxu0
  %v2707 = vpop.f32.mrb[0].mxu0
  %2708 = vdwg.mxu0
  %v2709 = vld [vmem:[%s831] sm:$0xf]
  %v2710 = vld [vmem:[%s831 + $0x4] sm:$0xf]
  %v2711 = vld [vmem:[%s831 + $0x8] sm:$0xf]
  %v2712 = vld [vmem:[%s831 + $0xc] sm:$0xf]
  %v2713 = vld [vmem:[%s836] sm:$0x1]
  %v2715 = vlaneseq
  %v2716 = vshrl.u32 %v2715, 7
  %v2717 = vsub.s32 0, %v2716
  %v2718 = vrot.slane %v2713, %v2717
  %v2724 = vunpack.c.l.b16 %v2709
  %v2725 = vunpack.c.l.b16 %v2710
  %v2726 = vunpack.c.l.b16 %v2711
  %v2727 = vunpack.c.l.b16 %v2712
  %v2728 = vpack.c.b16 %v2725, %v2724
  %v2729 = vpack.c.b16 %v2727, %v2726
  %2732 = vmatprep.subr.bf16.mxu0 0
  %2733 = vmatpush1.bf16.msra.mxu0 %v2728
  %2734 = vmatprep.subr.bf16.mxu0 0
  %2735 = vmatpush1.bf16.msra.mxu0 %v2729
  %2736 = vmatprep.subr.bf16.mxu0 0
  %2737 = vmatpush1.bf16.msra.mxu0 0
  %2738 = vmatprep.subr.bf16.mxu0 0
  %2739 = vmatpush1.bf16.msra.mxu0 0
  %2740 = vmatprep.subr.bf16.mxu0 0
  %2741 = vmatpush1.bf16.msra.mxu0 0
  %2742 = vmatprep.subr.bf16.mxu0 0
  %2743 = vmatpush1.bf16.msra.mxu0 0
  %2744 = vmatprep.subr.bf16.mxu0 0
  %2745 = vmatpush1.bf16.msra.mxu0 0
  %2746 = vmatprep.subr.bf16.mxu0 0
  %2747 = vmatpush1.bf16.msra.mxu0 0
  %2748 = vmatprep.subr.bf16.mxu0 0
  %2749 = vmatpush1.bf16.msra.mxu0 0
  %2750 = vmatprep.subr.bf16.mxu0 0
  %2751 = vmatpush1.bf16.msra.mxu0 0
  %2752 = vmatprep.subr.bf16.mxu0 0
  %2753 = vmatpush1.bf16.msra.mxu0 0
  %2754 = vmatprep.subr.bf16.mxu0 0
  %2755 = vmatpush1.bf16.msra.mxu0 0
  %2756 = vmatprep.subr.bf16.mxu0 0
  %2757 = vmatpush1.bf16.msra.mxu0 0
  %2758 = vmatprep.subr.bf16.mxu0 0
  %2759 = vmatpush1.bf16.msra.mxu0 0
  %2760 = vmatprep.subr.bf16.mxu0 0
  %2761 = vmatpush1.bf16.msra.mxu0 0
  %2762 = vmatprep.subr.bf16.mxu0 0
  %2763 = vmatpush1.bf16.msra.mxu0 0
  %2764 = vmatprep.mubr.bf16.mxu0 0
  %2765 = vmatmul.mubr.bf16.gmra.mrb[0].mxu0 %v2667
  %v2766 = vpop.f32.mrb[0].mxu0
  %v2767 = vadd.f32 %v2718, %v2766
  %v2768 = vpop.f32.mrb[0].mxu0
  %v2769 = vpop.f32.mrb[0].mxu0
  %v2770 = vpop.f32.mrb[0].mxu0
  %2771 = vdwg.mxu0
  %v2772 = vld [vmem:[%s896] sm:$0xf]
  %v2773 = vld [vmem:[%s896 + $0x4] sm:$0xf]
  %v2774 = vld [vmem:[%s896 + $0x8] sm:$0xf]
  %v2775 = vld [vmem:[%s896 + $0xc] sm:$0xf]
  %v2776 = vld [vmem:[%s901] sm:$0x1]
  %v2778 = vlaneseq
  %v2779 = vshrl.u32 %v2778, 7
  %v2780 = vsub.s32 0, %v2779
  %v2781 = vrot.slane %v2776, %v2780
  %v2787 = vunpack.c.l.b16 %v2772
  %v2788 = vunpack.c.l.b16 %v2773
  %v2789 = vunpack.c.l.b16 %v2774
  %v2790 = vunpack.c.l.b16 %v2775
  %v2791 = vpack.c.b16 %v2788, %v2787
  %v2792 = vpack.c.b16 %v2790, %v2789
  %2795 = vmatprep.subr.bf16.mxu0 0
  %2796 = vmatpush1.bf16.msra.mxu0 %v2791
  %2797 = vmatprep.subr.bf16.mxu0 0
  %2798 = vmatpush1.bf16.msra.mxu0 %v2792
  %2799 = vmatprep.subr.bf16.mxu0 0
  %2800 = vmatpush1.bf16.msra.mxu0 0
  %2801 = vmatprep.subr.bf16.mxu0 0
  %2802 = vmatpush1.bf16.msra.mxu0 0
  %2803 = vmatprep.subr.bf16.mxu0 0
  %2804 = vmatpush1.bf16.msra.mxu0 0
  %2805 = vmatprep.subr.bf16.mxu0 0
  %2806 = vmatpush1.bf16.msra.mxu0 0
  %2807 = vmatprep.subr.bf16.mxu0 0
  %2808 = vmatpush1.bf16.msra.mxu0 0
  %2809 = vmatprep.subr.bf16.mxu0 0
  %2810 = vmatpush1.bf16.msra.mxu0 0
  %2811 = vmatprep.subr.bf16.mxu0 0
  %2812 = vmatpush1.bf16.msra.mxu0 0
  %2813 = vmatprep.subr.bf16.mxu0 0
  %2814 = vmatpush1.bf16.msra.mxu0 0
  %2815 = vmatprep.subr.bf16.mxu0 0
  %2816 = vmatpush1.bf16.msra.mxu0 0
  %2817 = vmatprep.subr.bf16.mxu0 0
  %2818 = vmatpush1.bf16.msra.mxu0 0
  %2819 = vmatprep.subr.bf16.mxu0 0
  %2820 = vmatpush1.bf16.msra.mxu0 0
  %2821 = vmatprep.subr.bf16.mxu0 0
  %2822 = vmatpush1.bf16.msra.mxu0 0
  %2823 = vmatprep.subr.bf16.mxu0 0
  %2824 = vmatpush1.bf16.msra.mxu0 0
  %2825 = vmatprep.subr.bf16.mxu0 0
  %2826 = vmatpush1.bf16.msra.mxu0 0
  %2827 = vmatprep.mubr.bf16.mxu0 0
  %2828 = vmatmul.mubr.bf16.gmra.mrb[0].mxu0 %v2667
  %v2829 = vpop.f32.mrb[0].mxu0
  %v2830 = vadd.f32 %v2781, %v2829
  %v2831 = vpop.f32.mrb[0].mxu0
  %v2832 = vpop.f32.mrb[0].mxu0
  %v2833 = vpop.f32.mrb[0].mxu0
  %2834 = vdwg.mxu0
  %v2835 = vadd.f32 %v2511, %v2704
  %v2836 = vxor.u32 %v2835, 2147483648
  %v2837 = vmul.f32 %v2836, 1.442695
  %v2838 = vpow.pop %v2837
  %v2839 = vadd.f32 %v2838, 1.0
  %v2840 = vrcp.pop %v2839
  %v2841 = vmul.f32 1.0, %v2840
  %v2842 = vadd.f32 %v2574, %v2767
  %v2843 = vxor.u32 %v2842, 2147483648
  %v2844 = vmul.f32 %v2843, 1.442695
  %v2845 = vpow.pop %v2844
  %v2846 = vadd.f32 %v2845, 1.0
  %v2847 = vrcp.pop %v2846
  %v2848 = vmul.f32 1.0, %v2847
  %v2849 = vmul.f32 %v2841, %v2830
  %v2850 = vadd.f32 %v2637, %v2849
  %v2851 = vtanh.pop %v2850
  %v2852 = vsub.f32 1.0, %v2848
  %v2853 = vmul.f32 %v2852, %v2851
  %v2854 = vmul.f32 %v2848, %v2230
  %v2855 = vadd.f32 %v2853, %v2854
  %s2856 = scalar_lea.vmem [#allocation3], 24
  %2857 = vst.msk [vmem:[%s2856] sm:$0xff] %vm153, %v2855
  %s2858 = scalar_lea.vmem [#allocation2], 32
  %v2859 = vld [vmem:[%s2858] sm:$0xff]
  %s2860 = scalar_lea.vmem [#allocation2], 96
  %v2861 = vld [vmem:[%s2860] sm:$0xff]
  %s2862 = scalar_lea.vmem [#allocation2], 160
  %v2863 = vld [vmem:[%s2862] sm:$0xff]
  %v2864 = vld [vmem:[%s2] sm:$0xf]
  %v2865 = vld [vmem:[%s2 + $0x4] sm:$0xf]
  %v2866 = vld [vmem:[%s2 + $0x8] sm:$0xf]
  %v2867 = vld [vmem:[%s2 + $0xc] sm:$0xf]
  %v2868 = vld [vmem:[%s4] sm:$0x1]
  %v2870 = vlaneseq
  %v2871 = vshrl.u32 %v2870, 7
  %v2872 = vsub.s32 0, %v2871
  %v2873 = vrot.slane %v2868, %v2872
  %v2879 = vunpack.c.l.b16 %v2864
  %v2880 = vunpack.c.l.b16 %v2865
  %v2881 = vunpack.c.l.b16 %v2866
  %v2882 = vunpack.c.l.b16 %v2867
  %v2883 = vpack.c.b16 %v2880, %v2879
  %v2884 = vpack.c.b16 %v2882, %v2881
  %2887 = vmatprep.subr.bf16.mxu0 0
  %2888 = vmatpush1.bf16.msra.mxu0 %v2883
  %2889 = vmatprep.subr.bf16.mxu0 0
  %2890 = vmatpush1.bf16.msra.mxu0 %v2884
  %2891 = vmatprep.subr.bf16.mxu0 0
  %2892 = vmatpush1.bf16.msra.mxu0 0
  %2893 = vmatprep.subr.bf16.mxu0 0
  %2894 = vmatpush1.bf16.msra.mxu0 0
  %2895 = vmatprep.subr.bf16.mxu0 0
  %2896 = vmatpush1.bf16.msra.mxu0 0
  %2897 = vmatprep.subr.bf16.mxu0 0
  %2898 = vmatpush1.bf16.msra.mxu0 0
  %2899 = vmatprep.subr.bf16.mxu0 0
  %2900 = vmatpush1.bf16.msra.mxu0 0
  %2901 = vmatprep.subr.bf16.mxu0 0
  %2902 = vmatpush1.bf16.msra.mxu0 0
  %2903 = vmatprep.subr.bf16.mxu0 0
  %2904 = vmatpush1.bf16.msra.mxu0 0
  %2905 = vmatprep.subr.bf16.mxu0 0
  %2906 = vmatpush1.bf16.msra.mxu0 0
  %2907 = vmatprep.subr.bf16.mxu0 0
  %2908 = vmatpush1.bf16.msra.mxu0 0
  %2909 = vmatprep.subr.bf16.mxu0 0
  %2910 = vmatpush1.bf16.msra.mxu0 0
  %2911 = vmatprep.subr.bf16.mxu0 0
  %2912 = vmatpush1.bf16.msra.mxu0 0
  %2913 = vmatprep.subr.bf16.mxu0 0
  %2914 = vmatpush1.bf16.msra.mxu0 0
  %2915 = vmatprep.subr.bf16.mxu0 0
  %2916 = vmatpush1.bf16.msra.mxu0 0
  %2917 = vmatprep.subr.bf16.mxu0 0
  %2918 = vmatpush1.bf16.msra.mxu0 0
  %2919 = vmatprep.mubr.bf16.mxu0 0
  %2920 = vmatmul.mubr.bf16.gmra.mrb[0].mxu0 %v2474
  %v2921 = vpop.f32.mrb[0].mxu0
  %v2922 = vadd.f32 %v2873, %v2921
  %v2923 = vpop.f32.mrb[0].mxu0
  %v2924 = vpop.f32.mrb[0].mxu0
  %v2925 = vpop.f32.mrb[0].mxu0
  %2926 = vdwg.mxu0
  %v2927 = vld [vmem:[%s416] sm:$0xf]
  %v2928 = vld [vmem:[%s416 + $0x4] sm:$0xf]
  %v2929 = vld [vmem:[%s416 + $0x8] sm:$0xf]
  %v2930 = vld [vmem:[%s416 + $0xc] sm:$0xf]
  %v2931 = vld [vmem:[%s421] sm:$0x1]
  %v2933 = vlaneseq
  %v2934 = vshrl.u32 %v2933, 7
  %v2935 = vsub.s32 0, %v2934
  %v2936 = vrot.slane %v2931, %v2935
  %v2942 = vunpack.c.l.b16 %v2927
  %v2943 = vunpack.c.l.b16 %v2928
  %v2944 = vunpack.c.l.b16 %v2929
  %v2945 = vunpack.c.l.b16 %v2930
  %v2946 = vpack.c.b16 %v2943, %v2942
  %v2947 = vpack.c.b16 %v2945, %v2944
  %2950 = vmatprep.subr.bf16.mxu0 0
  %2951 = vmatpush1.bf16.msra.mxu0 %v2946
  %2952 = vmatprep.subr.bf16.mxu0 0
  %2953 = vmatpush1.bf16.msra.mxu0 %v2947
  %2954 = vmatprep.subr.bf16.mxu0 0
  %2955 = vmatpush1.bf16.msra.mxu0 0
  %2956 = vmatprep.subr.bf16.mxu0 0
  %2957 = vmatpush1.bf16.msra.mxu0 0
  %2958 = vmatprep.subr.bf16.mxu0 0
  %2959 = vmatpush1.bf16.msra.mxu0 0
  %2960 = vmatprep.subr.bf16.mxu0 0
  %2961 = vmatpush1.bf16.msra.mxu0 0
  %2962 = vmatprep.subr.bf16.mxu0 0
  %2963 = vmatpush1.bf16.msra.mxu0 0
  %2964 = vmatprep.subr.bf16.mxu0 0
  %2965 = vmatpush1.bf16.msra.mxu0 0
  %2966 = vmatprep.subr.bf16.mxu0 0
  %2967 = vmatpush1.bf16.msra.mxu0 0
  %2968 = vmatprep.subr.bf16.mxu0 0
  %2969 = vmatpush1.bf16.msra.mxu0 0
  %2970 = vmatprep.subr.bf16.mxu0 0
  %2971 = vmatpush1.bf16.msra.mxu0 0
  %2972 = vmatprep.subr.bf16.mxu0 0
  %2973 = vmatpush1.bf16.msra.mxu0 0
  %2974 = vmatprep.subr.bf16.mxu0 0
  %2975 = vmatpush1.bf16.msra.mxu0 0
  %2976 = vmatprep.subr.bf16.mxu0 0
  %2977 = vmatpush1.bf16.msra.mxu0 0
  %2978 = vmatprep.subr.bf16.mxu0 0
  %2979 = vmatpush1.bf16.msra.mxu0 0
  %2980 = vmatprep.subr.bf16.mxu0 0
  %2981 = vmatpush1.bf16.msra.mxu0 0
  %2982 = vmatprep.mubr.bf16.mxu0 0
  %2983 = vmatmul.mubr.bf16.gmra.mrb[0].mxu0 %v2474
  %v2984 = vpop.f32.mrb[0].mxu0
  %v2985 = vadd.f32 %v2936, %v2984
  %v2986 = vpop.f32.mrb[0].mxu0
  %v2987 = vpop.f32.mrb[0].mxu0
  %v2988 = vpop.f32.mrb[0].mxu0
  %2989 = vdwg.mxu0
  %v2990 = vld [vmem:[%s481] sm:$0xf]
  %v2991 = vld [vmem:[%s481 + $0x4] sm:$0xf]
  %v2992 = vld [vmem:[%s481 + $0x8] sm:$0xf]
  %v2993 = vld [vmem:[%s481 + $0xc] sm:$0xf]
  %v2994 = vld [vmem:[%s486] sm:$0x1]
  %v2996 = vlaneseq
  %v2997 = vshrl.u32 %v2996, 7
  %v2998 = vsub.s32 0, %v2997
  %v2999 = vrot.slane %v2994, %v2998
  %v3005 = vunpack.c.l.b16 %v2990
  %v3006 = vunpack.c.l.b16 %v2991
  %v3007 = vunpack.c.l.b16 %v2992
  %v3008 = vunpack.c.l.b16 %v2993
  %v3009 = vpack.c.b16 %v3006, %v3005
  %v3010 = vpack.c.b16 %v3008, %v3007
  %3013 = vmatprep.subr.bf16.mxu0 0
  %3014 = vmatpush1.bf16.msra.mxu0 %v3009
  %3015 = vmatprep.subr.bf16.mxu0 0
  %3016 = vmatpush1.bf16.msra.mxu0 %v3010
  %3017 = vmatprep.subr.bf16.mxu0 0
  %3018 = vmatpush1.bf16.msra.mxu0 0
  %3019 = vmatprep.subr.bf16.mxu0 0
  %3020 = vmatpush1.bf16.msra.mxu0 0
  %3021 = vmatprep.subr.bf16.mxu0 0
  %3022 = vmatpush1.bf16.msra.mxu0 0
  %3023 = vmatprep.subr.bf16.mxu0 0
  %3024 = vmatpush1.bf16.msra.mxu0 0
  %3025 = vmatprep.subr.bf16.mxu0 0
  %3026 = vmatpush1.bf16.msra.mxu0 0
  %3027 = vmatprep.subr.bf16.mxu0 0
  %3028 = vmatpush1.bf16.msra.mxu0 0
  %3029 = vmatprep.subr.bf16.mxu0 0
  %3030 = vmatpush1.bf16.msra.mxu0 0
  %3031 = vmatprep.subr.bf16.mxu0 0
  %3032 = vmatpush1.bf16.msra.mxu0 0
  %3033 = vmatprep.subr.bf16.mxu0 0
  %3034 = vmatpush1.bf16.msra.mxu0 0
  %3035 = vmatprep.subr.bf16.mxu0 0
  %3036 = vmatpush1.bf16.msra.mxu0 0
  %3037 = vmatprep.subr.bf16.mxu0 0
  %3038 = vmatpush1.bf16.msra.mxu0 0
  %3039 = vmatprep.subr.bf16.mxu0 0
  %3040 = vmatpush1.bf16.msra.mxu0 0
  %3041 = vmatprep.subr.bf16.mxu0 0
  %3042 = vmatpush1.bf16.msra.mxu0 0
  %3043 = vmatprep.subr.bf16.mxu0 0
  %3044 = vmatpush1.bf16.msra.mxu0 0
  %3045 = vmatprep.mubr.bf16.mxu0 0
  %3046 = vmatmul.mubr.bf16.gmra.mrb[0].mxu0 %v2474
  %v3047 = vpop.f32.mrb[0].mxu0
  %v3048 = vadd.f32 %v2999, %v3047
  %v3049 = vpop.f32.mrb[0].mxu0
  %v3050 = vpop.f32.mrb[0].mxu0
  %v3051 = vpop.f32.mrb[0].mxu0
  %3052 = vdwg.mxu0
  %v3053 = vadd.f32 %v2859, %v2922
  %v3054 = vxor.u32 %v3053, 2147483648
  %v3055 = vmul.f32 %v3054, 1.442695
  %v3056 = vpow.pop %v3055
  %v3057 = vadd.f32 %v3056, 1.0
  %v3058 = vrcp.pop %v3057
  %v3059 = vmul.f32 1.0, %v3058
  %v3060 = vadd.f32 %v2861, %v2985
  %v3061 = vxor.u32 %v3060, 2147483648
  %v3062 = vmul.f32 %v3061, 1.442695
  %v3063 = vpow.pop %v3062
  %v3064 = vadd.f32 %v3063, 1.0
  %v3065 = vrcp.pop %v3064
  %v3066 = vmul.f32 1.0, %v3065
  %v3067 = vmul.f32 %v3059, %v3048
  %v3068 = vadd.f32 %v2863, %v3067
  %v3069 = vtanh.pop %v3068
  %v3070 = vsub.f32 1.0, %v3066
  %v3071 = vmul.f32 %v3070, %v3069
  %v3072 = vmul.f32 %v3066, %v2448
  %v3073 = vadd.f32 %v3071, %v3072
  %v3074 = vpack.c.bf16 %v3073, %v3073
  %v3075 = vld [vmem:[%s5] sm:$0xf]
  %v3076 = vld [vmem:[%s5 + $0x4] sm:$0xf]
  %v3077 = vld [vmem:[%s5 + $0x8] sm:$0xf]
  %v3078 = vld [vmem:[%s5 + $0xc] sm:$0xf]
  %v3079 = vld [vmem:[%s7] sm:$0x1]
  %v3081 = vlaneseq
  %v3082 = vshrl.u32 %v3081, 7
  %v3083 = vsub.s32 0, %v3082
  %v3084 = vrot.slane %v3079, %v3083
  %v3090 = vunpack.c.l.b16 %v3075
  %v3091 = vunpack.c.l.b16 %v3076
  %v3092 = vunpack.c.l.b16 %v3077
  %v3093 = vunpack.c.l.b16 %v3078
  %v3094 = vpack.c.b16 %v3091, %v3090
  %v3095 = vpack.c.b16 %v3093, %v3092
  %v3099 = vsel %vm153, %v3074, 0
  %3101 = vmatprep.subr.bf16.mxu0 0
  %3102 = vmatpush1.bf16.msra.mxu0 %v3094
  %3103 = vmatprep.subr.bf16.mxu0 0
  %3104 = vmatpush1.bf16.msra.mxu0 %v3095
  %3105 = vmatprep.subr.bf16.mxu0 0
  %3106 = vmatpush1.bf16.msra.mxu0 0
  %3107 = vmatprep.subr.bf16.mxu0 0
  %3108 = vmatpush1.bf16.msra.mxu0 0
  %3109 = vmatprep.subr.bf16.mxu0 0
  %3110 = vmatpush1.bf16.msra.mxu0 0
  %3111 = vmatprep.subr.bf16.mxu0 0
  %3112 = vmatpush1.bf16.msra.mxu0 0
  %3113 = vmatprep.subr.bf16.mxu0 0
  %3114 = vmatpush1.bf16.msra.mxu0 0
  %3115 = vmatprep.subr.bf16.mxu0 0
  %3116 = vmatpush1.bf16.msra.mxu0 0
  %3117 = vmatprep.subr.bf16.mxu0 0
  %3118 = vmatpush1.bf16.msra.mxu0 0
  %3119 = vmatprep.subr.bf16.mxu0 0
  %3120 = vmatpush1.bf16.msra.mxu0 0
  %3121 = vmatprep.subr.bf16.mxu0 0
  %3122 = vmatpush1.bf16.msra.mxu0 0
  %3123 = vmatprep.subr.bf16.mxu0 0
  %3124 = vmatpush1.bf16.msra.mxu0 0
  %3125 = vmatprep.subr.bf16.mxu0 0
  %3126 = vmatpush1.bf16.msra.mxu0 0
  %3127 = vmatprep.subr.bf16.mxu0 0
  %3128 = vmatpush1.bf16.msra.mxu0 0
  %3129 = vmatprep.subr.bf16.mxu0 0
  %3130 = vmatpush1.bf16.msra.mxu0 0
  %3131 = vmatprep.subr.bf16.mxu0 0
  %3132 = vmatpush1.bf16.msra.mxu0 0
  %3133 = vmatprep.mubr.bf16.mxu0 0
  %3134 = vmatmul.mubr.bf16.gmra.mrb[0].mxu0 %v3099
  %v3135 = vpop.f32.mrb[0].mxu0
  %v3136 = vadd.f32 %v3084, %v3135
  %v3137 = vpop.f32.mrb[0].mxu0
  %v3138 = vpop.f32.mrb[0].mxu0
  %v3139 = vpop.f32.mrb[0].mxu0
  %3140 = vdwg.mxu0
  %v3141 = vld [vmem:[%s634] sm:$0xf]
  %v3142 = vld [vmem:[%s634 + $0x4] sm:$0xf]
  %v3143 = vld [vmem:[%s634 + $0x8] sm:$0xf]
  %v3144 = vld [vmem:[%s634 + $0xc] sm:$0xf]
  %v3145 = vld [vmem:[%s639] sm:$0x1]
  %v3147 = vlaneseq
  %v3148 = vshrl.u32 %v3147, 7
  %v3149 = vsub.s32 0, %v3148
  %v3150 = vrot.slane %v3145, %v3149
  %v3156 = vunpack.c.l.b16 %v3141
  %v3157 = vunpack.c.l.b16 %v3142
  %v3158 = vunpack.c.l.b16 %v3143
  %v3159 = vunpack.c.l.b16 %v3144
  %v3160 = vpack.c.b16 %v3157, %v3156
  %v3161 = vpack.c.b16 %v3159, %v3158
  %3164 = vmatprep.subr.bf16.mxu0 0
  %3165 = vmatpush1.bf16.msra.mxu0 %v3160
  %3166 = vmatprep.subr.bf16.mxu0 0
  %3167 = vmatpush1.bf16.msra.mxu0 %v3161
  %3168 = vmatprep.subr.bf16.mxu0 0
  %3169 = vmatpush1.bf16.msra.mxu0 0
  %3170 = vmatprep.subr.bf16.mxu0 0
  %3171 = vmatpush1.bf16.msra.mxu0 0
  %3172 = vmatprep.subr.bf16.mxu0 0
  %3173 = vmatpush1.bf16.msra.mxu0 0
  %3174 = vmatprep.subr.bf16.mxu0 0
  %3175 = vmatpush1.bf16.msra.mxu0 0
  %3176 = vmatprep.subr.bf16.mxu0 0
  %3177 = vmatpush1.bf16.msra.mxu0 0
  %3178 = vmatprep.subr.bf16.mxu0 0
  %3179 = vmatpush1.bf16.msra.mxu0 0
  %3180 = vmatprep.subr.bf16.mxu0 0
  %3181 = vmatpush1.bf16.msra.mxu0 0
  %3182 = vmatprep.subr.bf16.mxu0 0
  %3183 = vmatpush1.bf16.msra.mxu0 0
  %3184 = vmatprep.subr.bf16.mxu0 0
  %3185 = vmatpush1.bf16.msra.mxu0 0
  %3186 = vmatprep.subr.bf16.mxu0 0
  %3187 = vmatpush1.bf16.msra.mxu0 0
  %3188 = vmatprep.subr.bf16.mxu0 0
  %3189 = vmatpush1.bf16.msra.mxu0 0
  %3190 = vmatprep.subr.bf16.mxu0 0
  %3191 = vmatpush1.bf16.msra.mxu0 0
  %3192 = vmatprep.subr.bf16.mxu0 0
  %3193 = vmatpush1.bf16.msra.mxu0 0
  %3194 = vmatprep.subr.bf16.mxu0 0
  %3195 = vmatpush1.bf16.msra.mxu0 0
  %3196 = vmatprep.mubr.bf16.mxu0 0
  %3197 = vmatmul.mubr.bf16.gmra.mrb[0].mxu0 %v3099
  %v3198 = vpop.f32.mrb[0].mxu0
  %v3199 = vadd.f32 %v3150, %v3198
  %v3200 = vpop.f32.mrb[0].mxu0
  %v3201 = vpop.f32.mrb[0].mxu0
  %v3202 = vpop.f32.mrb[0].mxu0
  %3203 = vdwg.mxu0
  %v3204 = vld [vmem:[%s699] sm:$0xf]
  %v3205 = vld [vmem:[%s699 + $0x4] sm:$0xf]
  %v3206 = vld [vmem:[%s699 + $0x8] sm:$0xf]
  %v3207 = vld [vmem:[%s699 + $0xc] sm:$0xf]
  %v3208 = vld [vmem:[%s704] sm:$0x1]
  %v3210 = vlaneseq
  %v3211 = vshrl.u32 %v3210, 7
  %v3212 = vsub.s32 0, %v3211
  %v3213 = vrot.slane %v3208, %v3212
  %v3219 = vunpack.c.l.b16 %v3204
  %v3220 = vunpack.c.l.b16 %v3205
  %v3221 = vunpack.c.l.b16 %v3206
  %v3222 = vunpack.c.l.b16 %v3207
  %v3223 = vpack.c.b16 %v3220, %v3219
  %v3224 = vpack.c.b16 %v3222, %v3221
  %3227 = vmatprep.subr.bf16.mxu0 0
  %3228 = vmatpush1.bf16.msra.mxu0 %v3223
  %3229 = vmatprep.subr.bf16.mxu0 0
  %3230 = vmatpush1.bf16.msra.mxu0 %v3224
  %3231 = vmatprep.subr.bf16.mxu0 0
  %3232 = vmatpush1.bf16.msra.mxu0 0
  %3233 = vmatprep.subr.bf16.mxu0 0
  %3234 = vmatpush1.bf16.msra.mxu0 0
  %3235 = vmatprep.subr.bf16.mxu0 0
  %3236 = vmatpush1.bf16.msra.mxu0 0
  %3237 = vmatprep.subr.bf16.mxu0 0
  %3238 = vmatpush1.bf16.msra.mxu0 0
  %3239 = vmatprep.subr.bf16.mxu0 0
  %3240 = vmatpush1.bf16.msra.mxu0 0
  %3241 = vmatprep.subr.bf16.mxu0 0
  %3242 = vmatpush1.bf16.msra.mxu0 0
  %3243 = vmatprep.subr.bf16.mxu0 0
  %3244 = vmatpush1.bf16.msra.mxu0 0
  %3245 = vmatprep.subr.bf16.mxu0 0
  %3246 = vmatpush1.bf16.msra.mxu0 0
  %3247 = vmatprep.subr.bf16.mxu0 0
  %3248 = vmatpush1.bf16.msra.mxu0 0
  %3249 = vmatprep.subr.bf16.mxu0 0
  %3250 = vmatpush1.bf16.msra.mxu0 0
  %3251 = vmatprep.subr.bf16.mxu0 0
  %3252 = vmatpush1.bf16.msra.mxu0 0
  %3253 = vmatprep.subr.bf16.mxu0 0
  %3254 = vmatpush1.bf16.msra.mxu0 0
  %3255 = vmatprep.subr.bf16.mxu0 0
  %3256 = vmatpush1.bf16.msra.mxu0 0
  %3257 = vmatprep.subr.bf16.mxu0 0
  %3258 = vmatpush1.bf16.msra.mxu0 0
  %3259 = vmatprep.mubr.bf16.mxu0 0
  %3260 = vmatmul.mubr.bf16.gmra.mrb[0].mxu0 %v3099
  %v3261 = vpop.f32.mrb[0].mxu0
  %v3262 = vadd.f32 %v3213, %v3261
  %v3263 = vpop.f32.mrb[0].mxu0
  %v3264 = vpop.f32.mrb[0].mxu0
  %v3265 = vpop.f32.mrb[0].mxu0
  %3266 = vdwg.mxu0
  %v3267 = vpack.c.bf16 %v2855, %v2855
  %v3268 = vld [vmem:[%s6] sm:$0xf]
  %v3269 = vld [vmem:[%s6 + $0x4] sm:$0xf]
  %v3270 = vld [vmem:[%s6 + $0x8] sm:$0xf]
  %v3271 = vld [vmem:[%s6 + $0xc] sm:$0xf]
  %v3272 = vld [vmem:[%s8] sm:$0x1]
  %v3274 = vlaneseq
  %v3275 = vshrl.u32 %v3274, 7
  %v3276 = vsub.s32 0, %v3275
  %v3277 = vrot.slane %v3272, %v3276
  %v3283 = vunpack.c.l.b16 %v3268
  %v3284 = vunpack.c.l.b16 %v3269
  %v3285 = vunpack.c.l.b16 %v3270
  %v3286 = vunpack.c.l.b16 %v3271
  %v3287 = vpack.c.b16 %v3284, %v3283
  %v3288 = vpack.c.b16 %v3286, %v3285
  %v3292 = vsel %vm153, %v3267, 0
  %3294 = vmatprep.subr.bf16.mxu0 0
  %3295 = vmatpush1.bf16.msra.mxu0 %v3287
  %3296 = vmatprep.subr.bf16.mxu0 0
  %3297 = vmatpush1.bf16.msra.mxu0 %v3288
  %3298 = vmatprep.subr.bf16.mxu0 0
  %3299 = vmatpush1.bf16.msra.mxu0 0
  %3300 = vmatprep.subr.bf16.mxu0 0
  %3301 = vmatpush1.bf16.msra.mxu0 0
  %3302 = vmatprep.subr.bf16.mxu0 0
  %3303 = vmatpush1.bf16.msra.mxu0 0
  %3304 = vmatprep.subr.bf16.mxu0 0
  %3305 = vmatpush1.bf16.msra.mxu0 0
  %3306 = vmatprep.subr.bf16.mxu0 0
  %3307 = vmatpush1.bf16.msra.mxu0 0
  %3308 = vmatprep.subr.bf16.mxu0 0
  %3309 = vmatpush1.bf16.msra.mxu0 0
  %3310 = vmatprep.subr.bf16.mxu0 0
  %3311 = vmatpush1.bf16.msra.mxu0 0
  %3312 = vmatprep.subr.bf16.mxu0 0
  %3313 = vmatpush1.bf16.msra.mxu0 0
  %3314 = vmatprep.subr.bf16.mxu0 0
  %3315 = vmatpush1.bf16.msra.mxu0 0
  %3316 = vmatprep.subr.bf16.mxu0 0
  %3317 = vmatpush1.bf16.msra.mxu0 0
  %3318 = vmatprep.subr.bf16.mxu0 0
  %3319 = vmatpush1.bf16.msra.mxu0 0
  %3320 = vmatprep.subr.bf16.mxu0 0
  %3321 = vmatpush1.bf16.msra.mxu0 0
  %3322 = vmatprep.subr.bf16.mxu0 0
  %3323 = vmatpush1.bf16.msra.mxu0 0
  %3324 = vmatprep.subr.bf16.mxu0 0
  %3325 = vmatpush1.bf16.msra.mxu0 0
  %3326 = vmatprep.mubr.bf16.mxu0 0
  %3327 = vmatmul.mubr.bf16.gmra.mrb[0].mxu0 %v3292
  %v3328 = vpop.f32.mrb[0].mxu0
  %v3329 = vadd.f32 %v3277, %v3328
  %v3330 = vpop.f32.mrb[0].mxu0
  %v3331 = vpop.f32.mrb[0].mxu0
  %v3332 = vpop.f32.mrb[0].mxu0
  %3333 = vdwg.mxu0
  %v3334 = vld [vmem:[%s831] sm:$0xf]
  %v3335 = vld [vmem:[%s831 + $0x4] sm:$0xf]
  %v3336 = vld [vmem:[%s831 + $0x8] sm:$0xf]
  %v3337 = vld [vmem:[%s831 + $0xc] sm:$0xf]
  %v3338 = vld [vmem:[%s836] sm:$0x1]
  %v3340 = vlaneseq
  %v3341 = vshrl.u32 %v3340, 7
  %v3342 = vsub.s32 0, %v3341
  %v3343 = vrot.slane %v3338, %v3342
  %v3349 = vunpack.c.l.b16 %v3334
  %v3350 = vunpack.c.l.b16 %v3335
  %v3351 = vunpack.c.l.b16 %v3336
  %v3352 = vunpack.c.l.b16 %v3337
  %v3353 = vpack.c.b16 %v3350, %v3349
  %v3354 = vpack.c.b16 %v3352, %v3351
  %3357 = vmatprep.subr.bf16.mxu0 0
  %3358 = vmatpush1.bf16.msra.mxu0 %v3353
  %3359 = vmatprep.subr.bf16.mxu0 0
  %3360 = vmatpush1.bf16.msra.mxu0 %v3354
  %3361 = vmatprep.subr.bf16.mxu0 0
  %3362 = vmatpush1.bf16.msra.mxu0 0
  %3363 = vmatprep.subr.bf16.mxu0 0
  %3364 = vmatpush1.bf16.msra.mxu0 0
  %3365 = vmatprep.subr.bf16.mxu0 0
  %3366 = vmatpush1.bf16.msra.mxu0 0
  %3367 = vmatprep.subr.bf16.mxu0 0
  %3368 = vmatpush1.bf16.msra.mxu0 0
  %3369 = vmatprep.subr.bf16.mxu0 0
  %3370 = vmatpush1.bf16.msra.mxu0 0
  %3371 = vmatprep.subr.bf16.mxu0 0
  %3372 = vmatpush1.bf16.msra.mxu0 0
  %3373 = vmatprep.subr.bf16.mxu0 0
  %3374 = vmatpush1.bf16.msra.mxu0 0
  %3375 = vmatprep.subr.bf16.mxu0 0
  %3376 = vmatpush1.bf16.msra.mxu0 0
  %3377 = vmatprep.subr.bf16.mxu0 0
  %3378 = vmatpush1.bf16.msra.mxu0 0
  %3379 = vmatprep.subr.bf16.mxu0 0
  %3380 = vmatpush1.bf16.msra.mxu0 0
  %3381 = vmatprep.subr.bf16.mxu0 0
  %3382 = vmatpush1.bf16.msra.mxu0 0
  %3383 = vmatprep.subr.bf16.mxu0 0
  %3384 = vmatpush1.bf16.msra.mxu0 0
  %3385 = vmatprep.subr.bf16.mxu0 0
  %3386 = vmatpush1.bf16.msra.mxu0 0
  %3387 = vmatprep.subr.bf16.mxu0 0
  %3388 = vmatpush1.bf16.msra.mxu0 0
  %3389 = vmatprep.mubr.bf16.mxu0 0
  %3390 = vmatmul.mubr.bf16.gmra.mrb[0].mxu0 %v3292
  %v3391 = vpop.f32.mrb[0].mxu0
  %v3392 = vadd.f32 %v3343, %v3391
  %v3393 = vpop.f32.mrb[0].mxu0
  %v3394 = vpop.f32.mrb[0].mxu0
  %v3395 = vpop.f32.mrb[0].mxu0
  %3396 = vdwg.mxu0
  %v3397 = vld [vmem:[%s896] sm:$0xf]
  %v3398 = vld [vmem:[%s896 + $0x4] sm:$0xf]
  %v3399 = vld [vmem:[%s896 + $0x8] sm:$0xf]
  %v3400 = vld [vmem:[%s896 + $0xc] sm:$0xf]
  %v3401 = vld [vmem:[%s901] sm:$0x1]
  %v3403 = vlaneseq
  %v3404 = vshrl.u32 %v3403, 7
  %v3405 = vsub.s32 0, %v3404
  %v3406 = vrot.slane %v3401, %v3405
  %v3412 = vunpack.c.l.b16 %v3397
  %v3413 = vunpack.c.l.b16 %v3398
  %v3414 = vunpack.c.l.b16 %v3399
  %v3415 = vunpack.c.l.b16 %v3400
  %v3416 = vpack.c.b16 %v3413, %v3412
  %v3417 = vpack.c.b16 %v3415, %v3414
  %3420 = vmatprep.subr.bf16.mxu0 0
  %3421 = vmatpush1.bf16.msra.mxu0 %v3416
  %3422 = vmatprep.subr.bf16.mxu0 0
  %3423 = vmatpush1.bf16.msra.mxu0 %v3417
  %3424 = vmatprep.subr.bf16.mxu0 0
  %3425 = vmatpush1.bf16.msra.mxu0 0
  %3426 = vmatprep.subr.bf16.mxu0 0
  %3427 = vmatpush1.bf16.msra.mxu0 0
  %3428 = vmatprep.subr.bf16.mxu0 0
  %3429 = vmatpush1.bf16.msra.mxu0 0
  %3430 = vmatprep.subr.bf16.mxu0 0
  %3431 = vmatpush1.bf16.msra.mxu0 0
  %3432 = vmatprep.subr.bf16.mxu0 0
  %3433 = vmatpush1.bf16.msra.mxu0 0
  %3434 = vmatprep.subr.bf16.mxu0 0
  %3435 = vmatpush1.bf16.msra.mxu0 0
  %3436 = vmatprep.subr.bf16.mxu0 0
  %3437 = vmatpush1.bf16.msra.mxu0 0
  %3438 = vmatprep.subr.bf16.mxu0 0
  %3439 = vmatpush1.bf16.msra.mxu0 0
  %3440 = vmatprep.subr.bf16.mxu0 0
  %3441 = vmatpush1.bf16.msra.mxu0 0
  %3442 = vmatprep.subr.bf16.mxu0 0
  %3443 = vmatpush1.bf16.msra.mxu0 0
  %3444 = vmatprep.subr.bf16.mxu0 0
  %3445 = vmatpush1.bf16.msra.mxu0 0
  %3446 = vmatprep.subr.bf16.mxu0 0
  %3447 = vmatpush1.bf16.msra.mxu0 0
  %3448 = vmatprep.subr.bf16.mxu0 0
  %3449 = vmatpush1.bf16.msra.mxu0 0
  %3450 = vmatprep.subr.bf16.mxu0 0
  %3451 = vmatpush1.bf16.msra.mxu0 0
  %3452 = vmatprep.mubr.bf16.mxu0 0
  %3453 = vmatmul.mubr.bf16.gmra.mrb[0].mxu0 %v3292
  %v3454 = vpop.f32.mrb[0].mxu0
  %v3455 = vadd.f32 %v3406, %v3454
  %v3456 = vpop.f32.mrb[0].mxu0
  %v3457 = vpop.f32.mrb[0].mxu0
  %v3458 = vpop.f32.mrb[0].mxu0
  %3459 = vdwg.mxu0
  %v3460 = vadd.f32 %v3136, %v3329
  %v3461 = vxor.u32 %v3460, 2147483648
  %v3462 = vmul.f32 %v3461, 1.442695
  %v3463 = vpow.pop %v3462
  %v3464 = vadd.f32 %v3463, 1.0
  %v3465 = vrcp.pop %v3464
  %v3466 = vmul.f32 1.0, %v3465
  %v3467 = vadd.f32 %v3199, %v3392
  %v3468 = vxor.u32 %v3467, 2147483648
  %v3469 = vmul.f32 %v3468, 1.442695
  %v3470 = vpow.pop %v3469
  %v3471 = vadd.f32 %v3470, 1.0
  %v3472 = vrcp.pop %v3471
  %v3473 = vmul.f32 1.0, %v3472
  %v3474 = vmul.f32 %v3466, %v3455
  %v3475 = vadd.f32 %v3262, %v3474
  %v3476 = vtanh.pop %v3475
  %v3477 = vsub.f32 1.0, %v3473
  %v3478 = vmul.f32 %v3477, %v3476
  %v3479 = vmul.f32 %v3473, %v2855
  %v3480 = vadd.f32 %v3478, %v3479
  %s3481 = scalar_lea.vmem [#allocation3], 32
  %3482 = vst.msk [vmem:[%s3481] sm:$0xff] %vm153, %v3480
  %s3483 = scalar_lea.vmem [#allocation2], 40
  %v3484 = vld [vmem:[%s3483] sm:$0xff]
  %s3485 = scalar_lea.vmem [#allocation2], 104
  %v3486 = vld [vmem:[%s3485] sm:$0xff]
  %s3487 = scalar_lea.vmem [#allocation2], 168
  %v3488 = vld [vmem:[%s3487] sm:$0xff]
  %v3489 = vld [vmem:[%s2] sm:$0xf]
  %v3490 = vld [vmem:[%s2 + $0x4] sm:$0xf]
  %v3491 = vld [vmem:[%s2 + $0x8] sm:$0xf]
  %v3492 = vld [vmem:[%s2 + $0xc] sm:$0xf]
  %v3493 = vld [vmem:[%s4] sm:$0x1]
  %v3495 = vlaneseq
  %v3496 = vshrl.u32 %v3495, 7
  %v3497 = vsub.s32 0, %v3496
  %v3498 = vrot.slane %v3493, %v3497
  %v3504 = vunpack.c.l.b16 %v3489
  %v3505 = vunpack.c.l.b16 %v3490
  %v3506 = vunpack.c.l.b16 %v3491
  %v3507 = vunpack.c.l.b16 %v3492
  %v3508 = vpack.c.b16 %v3505, %v3504
  %v3509 = vpack.c.b16 %v3507, %v3506
  %3512 = vmatprep.subr.bf16.mxu0 0
  %3513 = vmatpush1.bf16.msra.mxu0 %v3508
  %3514 = vmatprep.subr.bf16.mxu0 0
  %3515 = vmatpush1.bf16.msra.mxu0 %v3509
  %3516 = vmatprep.subr.bf16.mxu0 0
  %3517 = vmatpush1.bf16.msra.mxu0 0
  %3518 = vmatprep.subr.bf16.mxu0 0
  %3519 = vmatpush1.bf16.msra.mxu0 0
  %3520 = vmatprep.subr.bf16.mxu0 0
  %3521 = vmatpush1.bf16.msra.mxu0 0
  %3522 = vmatprep.subr.bf16.mxu0 0
  %3523 = vmatpush1.bf16.msra.mxu0 0
  %3524 = vmatprep.subr.bf16.mxu0 0
  %3525 = vmatpush1.bf16.msra.mxu0 0
  %3526 = vmatprep.subr.bf16.mxu0 0
  %3527 = vmatpush1.bf16.msra.mxu0 0
  %3528 = vmatprep.subr.bf16.mxu0 0
  %3529 = vmatpush1.bf16.msra.mxu0 0
  %3530 = vmatprep.subr.bf16.mxu0 0
  %3531 = vmatpush1.bf16.msra.mxu0 0
  %3532 = vmatprep.subr.bf16.mxu0 0
  %3533 = vmatpush1.bf16.msra.mxu0 0
  %3534 = vmatprep.subr.bf16.mxu0 0
  %3535 = vmatpush1.bf16.msra.mxu0 0
  %3536 = vmatprep.subr.bf16.mxu0 0
  %3537 = vmatpush1.bf16.msra.mxu0 0
  %3538 = vmatprep.subr.bf16.mxu0 0
  %3539 = vmatpush1.bf16.msra.mxu0 0
  %3540 = vmatprep.subr.bf16.mxu0 0
  %3541 = vmatpush1.bf16.msra.mxu0 0
  %3542 = vmatprep.subr.bf16.mxu0 0
  %3543 = vmatpush1.bf16.msra.mxu0 0
  %3544 = vmatprep.mubr.bf16.mxu0 0
  %3545 = vmatmul.mubr.bf16.gmra.mrb[0].mxu0 %v3099
  %v3546 = vpop.f32.mrb[0].mxu0
  %v3547 = vadd.f32 %v3498, %v3546
  %v3548 = vpop.f32.mrb[0].mxu0
  %v3549 = vpop.f32.mrb[0].mxu0
  %v3550 = vpop.f32.mrb[0].mxu0
  %3551 = vdwg.mxu0
  %v3552 = vld [vmem:[%s416] sm:$0xf]
  %v3553 = vld [vmem:[%s416 + $0x4] sm:$0xf]
  %v3554 = vld [vmem:[%s416 + $0x8] sm:$0xf]
  %v3555 = vld [vmem:[%s416 + $0xc] sm:$0xf]
  %v3556 = vld [vmem:[%s421] sm:$0x1]
  %v3558 = vlaneseq
  %v3559 = vshrl.u32 %v3558, 7
  %v3560 = vsub.s32 0, %v3559
  %v3561 = vrot.slane %v3556, %v3560
  %v3567 = vunpack.c.l.b16 %v3552
  %v3568 = vunpack.c.l.b16 %v3553
  %v3569 = vunpack.c.l.b16 %v3554
  %v3570 = vunpack.c.l.b16 %v3555
  %v3571 = vpack.c.b16 %v3568, %v3567
  %v3572 = vpack.c.b16 %v3570, %v3569
  %3575 = vmatprep.subr.bf16.mxu0 0
  %3576 = vmatpush1.bf16.msra.mxu0 %v3571
  %3577 = vmatprep.subr.bf16.mxu0 0
  %3578 = vmatpush1.bf16.msra.mxu0 %v3572
  %3579 = vmatprep.subr.bf16.mxu0 0
  %3580 = vmatpush1.bf16.msra.mxu0 0
  %3581 = vmatprep.subr.bf16.mxu0 0
  %3582 = vmatpush1.bf16.msra.mxu0 0
  %3583 = vmatprep.subr.bf16.mxu0 0
  %3584 = vmatpush1.bf16.msra.mxu0 0
  %3585 = vmatprep.subr.bf16.mxu0 0
  %3586 = vmatpush1.bf16.msra.mxu0 0
  %3587 = vmatprep.subr.bf16.mxu0 0
  %3588 = vmatpush1.bf16.msra.mxu0 0
  %3589 = vmatprep.subr.bf16.mxu0 0
  %3590 = vmatpush1.bf16.msra.mxu0 0
  %3591 = vmatprep.subr.bf16.mxu0 0
  %3592 = vmatpush1.bf16.msra.mxu0 0
  %3593 = vmatprep.subr.bf16.mxu0 0
  %3594 = vmatpush1.bf16.msra.mxu0 0
  %3595 = vmatprep.subr.bf16.mxu0 0
  %3596 = vmatpush1.bf16.msra.mxu0 0
  %3597 = vmatprep.subr.bf16.mxu0 0
  %3598 = vmatpush1.bf16.msra.mxu0 0
  %3599 = vmatprep.subr.bf16.mxu0 0
  %3600 = vmatpush1.bf16.msra.mxu0 0
  %3601 = vmatprep.subr.bf16.mxu0 0
  %3602 = vmatpush1.bf16.msra.mxu0 0
  %3603 = vmatprep.subr.bf16.mxu0 0
  %3604 = vmatpush1.bf16.msra.mxu0 0
  %3605 = vmatprep.subr.bf16.mxu0 0
  %3606 = vmatpush1.bf16.msra.mxu0 0
  %3607 = vmatprep.mubr.bf16.mxu0 0
  %3608 = vmatmul.mubr.bf16.gmra.mrb[0].mxu0 %v3099
  %v3609 = vpop.f32.mrb[0].mxu0
  %v3610 = vadd.f32 %v3561, %v3609
  %v3611 = vpop.f32.mrb[0].mxu0
  %v3612 = vpop.f32.mrb[0].mxu0
  %v3613 = vpop.f32.mrb[0].mxu0
  %3614 = vdwg.mxu0
  %v3615 = vld [vmem:[%s481] sm:$0xf]
  %v3616 = vld [vmem:[%s481 + $0x4] sm:$0xf]
  %v3617 = vld [vmem:[%s481 + $0x8] sm:$0xf]
  %v3618 = vld [vmem:[%s481 + $0xc] sm:$0xf]
  %v3619 = vld [vmem:[%s486] sm:$0x1]
  %v3621 = vlaneseq
  %v3622 = vshrl.u32 %v3621, 7
  %v3623 = vsub.s32 0, %v3622
  %v3624 = vrot.slane %v3619, %v3623
  %v3630 = vunpack.c.l.b16 %v3615
  %v3631 = vunpack.c.l.b16 %v3616
  %v3632 = vunpack.c.l.b16 %v3617
  %v3633 = vunpack.c.l.b16 %v3618
  %v3634 = vpack.c.b16 %v3631, %v3630
  %v3635 = vpack.c.b16 %v3633, %v3632
  %3638 = vmatprep.subr.bf16.mxu0 0
  %3639 = vmatpush1.bf16.msra.mxu0 %v3634
  %3640 = vmatprep.subr.bf16.mxu0 0
  %3641 = vmatpush1.bf16.msra.mxu0 %v3635
  %3642 = vmatprep.subr.bf16.mxu0 0
  %3643 = vmatpush1.bf16.msra.mxu0 0
  %3644 = vmatprep.subr.bf16.mxu0 0
  %3645 = vmatpush1.bf16.msra.mxu0 0
  %3646 = vmatprep.subr.bf16.mxu0 0
  %3647 = vmatpush1.bf16.msra.mxu0 0
  %3648 = vmatprep.subr.bf16.mxu0 0
  %3649 = vmatpush1.bf16.msra.mxu0 0
  %3650 = vmatprep.subr.bf16.mxu0 0
  %3651 = vmatpush1.bf16.msra.mxu0 0
  %3652 = vmatprep.subr.bf16.mxu0 0
  %3653 = vmatpush1.bf16.msra.mxu0 0
  %3654 = vmatprep.subr.bf16.mxu0 0
  %3655 = vmatpush1.bf16.msra.mxu0 0
  %3656 = vmatprep.subr.bf16.mxu0 0
  %3657 = vmatpush1.bf16.msra.mxu0 0
  %3658 = vmatprep.subr.bf16.mxu0 0
  %3659 = vmatpush1.bf16.msra.mxu0 0
  %3660 = vmatprep.subr.bf16.mxu0 0
  %3661 = vmatpush1.bf16.msra.mxu0 0
  %3662 = vmatprep.subr.bf16.mxu0 0
  %3663 = vmatpush1.bf16.msra.mxu0 0
  %3664 = vmatprep.subr.bf16.mxu0 0
  %3665 = vmatpush1.bf16.msra.mxu0 0
  %3666 = vmatprep.subr.bf16.mxu0 0
  %3667 = vmatpush1.bf16.msra.mxu0 0
  %3668 = vmatprep.subr.bf16.mxu0 0
  %3669 = vmatpush1.bf16.msra.mxu0 0
  %3670 = vmatprep.mubr.bf16.mxu0 0
  %3671 = vmatmul.mubr.bf16.gmra.mrb[0].mxu0 %v3099
  %v3672 = vpop.f32.mrb[0].mxu0
  %v3673 = vadd.f32 %v3624, %v3672
  %v3674 = vpop.f32.mrb[0].mxu0
  %v3675 = vpop.f32.mrb[0].mxu0
  %v3676 = vpop.f32.mrb[0].mxu0
  %3677 = vdwg.mxu0
  %v3678 = vadd.f32 %v3484, %v3547
  %v3679 = vxor.u32 %v3678, 2147483648
  %v3680 = vmul.f32 %v3679, 1.442695
  %v3681 = vpow.pop %v3680
  %v3682 = vadd.f32 %v3681, 1.0
  %v3683 = vrcp.pop %v3682
  %v3684 = vmul.f32 1.0, %v3683
  %v3685 = vadd.f32 %v3486, %v3610
  %v3686 = vxor.u32 %v3685, 2147483648
  %v3687 = vmul.f32 %v3686, 1.442695
  %v3688 = vpow.pop %v3687
  %v3689 = vadd.f32 %v3688, 1.0
  %v3690 = vrcp.pop %v3689
  %v3691 = vmul.f32 1.0, %v3690
  %v3692 = vmul.f32 %v3684, %v3673
  %v3693 = vadd.f32 %v3488, %v3692
  %v3694 = vtanh.pop %v3693
  %v3695 = vsub.f32 1.0, %v3691
  %v3696 = vmul.f32 %v3695, %v3694
  %v3697 = vmul.f32 %v3691, %v3073
  %v3698 = vadd.f32 %v3696, %v3697
  %v3699 = vpack.c.bf16 %v3698, %v3698
  %v3700 = vld [vmem:[%s5] sm:$0xf]
  %v3701 = vld [vmem:[%s5 + $0x4] sm:$0xf]
  %v3702 = vld [vmem:[%s5 + $0x8] sm:$0xf]
  %v3703 = vld [vmem:[%s5 + $0xc] sm:$0xf]
  %v3704 = vld [vmem:[%s7] sm:$0x1]
  %v3706 = vlaneseq
  %v3707 = vshrl.u32 %v3706, 7
  %v3708 = vsub.s32 0, %v3707
  %v3709 = vrot.slane %v3704, %v3708
  %v3715 = vunpack.c.l.b16 %v3700
  %v3716 = vunpack.c.l.b16 %v3701
  %v3717 = vunpack.c.l.b16 %v3702
  %v3718 = vunpack.c.l.b16 %v3703
  %v3719 = vpack.c.b16 %v3716, %v3715
  %v3720 = vpack.c.b16 %v3718, %v3717
  %v3724 = vsel %vm153, %v3699, 0
  %3726 = vmatprep.subr.bf16.mxu0 0
  %3727 = vmatpush1.bf16.msra.mxu0 %v3719
  %3728 = vmatprep.subr.bf16.mxu0 0
  %3729 = vmatpush1.bf16.msra.mxu0 %v3720
  %3730 = vmatprep.subr.bf16.mxu0 0
  %3731 = vmatpush1.bf16.msra.mxu0 0
  %3732 = vmatprep.subr.bf16.mxu0 0
  %3733 = vmatpush1.bf16.msra.mxu0 0
  %3734 = vmatprep.subr.bf16.mxu0 0
  %3735 = vmatpush1.bf16.msra.mxu0 0
  %3736 = vmatprep.subr.bf16.mxu0 0
  %3737 = vmatpush1.bf16.msra.mxu0 0
  %3738 = vmatprep.subr.bf16.mxu0 0
  %3739 = vmatpush1.bf16.msra.mxu0 0
  %3740 = vmatprep.subr.bf16.mxu0 0
  %3741 = vmatpush1.bf16.msra.mxu0 0
  %3742 = vmatprep.subr.bf16.mxu0 0
  %3743 = vmatpush1.bf16.msra.mxu0 0
  %3744 = vmatprep.subr.bf16.mxu0 0
  %3745 = vmatpush1.bf16.msra.mxu0 0
  %3746 = vmatprep.subr.bf16.mxu0 0
  %3747 = vmatpush1.bf16.msra.mxu0 0
  %3748 = vmatprep.subr.bf16.mxu0 0
  %3749 = vmatpush1.bf16.msra.mxu0 0
  %3750 = vmatprep.subr.bf16.mxu0 0
  %3751 = vmatpush1.bf16.msra.mxu0 0
  %3752 = vmatprep.subr.bf16.mxu0 0
  %3753 = vmatpush1.bf16.msra.mxu0 0
  %3754 = vmatprep.subr.bf16.mxu0 0
  %3755 = vmatpush1.bf16.msra.mxu0 0
  %3756 = vmatprep.subr.bf16.mxu0 0
  %3757 = vmatpush1.bf16.msra.mxu0 0
  %3758 = vmatprep.mubr.bf16.mxu0 0
  %3759 = vmatmul.mubr.bf16.gmra.mrb[0].mxu0 %v3724
  %v3760 = vpop.f32.mrb[0].mxu0
  %v3761 = vadd.f32 %v3709, %v3760
  %v3762 = vpop.f32.mrb[0].mxu0
  %v3763 = vpop.f32.mrb[0].mxu0
  %v3764 = vpop.f32.mrb[0].mxu0
  %3765 = vdwg.mxu0
  %v3766 = vld [vmem:[%s634] sm:$0xf]
  %v3767 = vld [vmem:[%s634 + $0x4] sm:$0xf]
  %v3768 = vld [vmem:[%s634 + $0x8] sm:$0xf]
  %v3769 = vld [vmem:[%s634 + $0xc] sm:$0xf]
  %v3770 = vld [vmem:[%s639] sm:$0x1]
  %v3772 = vlaneseq
  %v3773 = vshrl.u32 %v3772, 7
  %v3774 = vsub.s32 0, %v3773
  %v3775 = vrot.slane %v3770, %v3774
  %v3781 = vunpack.c.l.b16 %v3766
  %v3782 = vunpack.c.l.b16 %v3767
  %v3783 = vunpack.c.l.b16 %v3768
  %v3784 = vunpack.c.l.b16 %v3769
  %v3785 = vpack.c.b16 %v3782, %v3781
  %v3786 = vpack.c.b16 %v3784, %v3783
  %3789 = vmatprep.subr.bf16.mxu0 0
  %3790 = vmatpush1.bf16.msra.mxu0 %v3785
  %3791 = vmatprep.subr.bf16.mxu0 0
  %3792 = vmatpush1.bf16.msra.mxu0 %v3786
  %3793 = vmatprep.subr.bf16.mxu0 0
  %3794 = vmatpush1.bf16.msra.mxu0 0
  %3795 = vmatprep.subr.bf16.mxu0 0
  %3796 = vmatpush1.bf16.msra.mxu0 0
  %3797 = vmatprep.subr.bf16.mxu0 0
  %3798 = vmatpush1.bf16.msra.mxu0 0
  %3799 = vmatprep.subr.bf16.mxu0 0
  %3800 = vmatpush1.bf16.msra.mxu0 0
  %3801 = vmatprep.subr.bf16.mxu0 0
  %3802 = vmatpush1.bf16.msra.mxu0 0
  %3803 = vmatprep.subr.bf16.mxu0 0
  %3804 = vmatpush1.bf16.msra.mxu0 0
  %3805 = vmatprep.subr.bf16.mxu0 0
  %3806 = vmatpush1.bf16.msra.mxu0 0
  %3807 = vmatprep.subr.bf16.mxu0 0
  %3808 = vmatpush1.bf16.msra.mxu0 0
  %3809 = vmatprep.subr.bf16.mxu0 0
  %3810 = vmatpush1.bf16.msra.mxu0 0
  %3811 = vmatprep.subr.bf16.mxu0 0
  %3812 = vmatpush1.bf16.msra.mxu0 0
  %3813 = vmatprep.subr.bf16.mxu0 0
  %3814 = vmatpush1.bf16.msra.mxu0 0
  %3815 = vmatprep.subr.bf16.mxu0 0
  %3816 = vmatpush1.bf16.msra.mxu0 0
  %3817 = vmatprep.subr.bf16.mxu0 0
  %3818 = vmatpush1.bf16.msra.mxu0 0
  %3819 = vmatprep.subr.bf16.mxu0 0
  %3820 = vmatpush1.bf16.msra.mxu0 0
  %3821 = vmatprep.mubr.bf16.mxu0 0
  %3822 = vmatmul.mubr.bf16.gmra.mrb[0].mxu0 %v3724
  %v3823 = vpop.f32.mrb[0].mxu0
  %v3824 = vadd.f32 %v3775, %v3823
  %v3825 = vpop.f32.mrb[0].mxu0
  %v3826 = vpop.f32.mrb[0].mxu0
  %v3827 = vpop.f32.mrb[0].mxu0
  %3828 = vdwg.mxu0
  %v3829 = vld [vmem:[%s699] sm:$0xf]
  %v3830 = vld [vmem:[%s699 + $0x4] sm:$0xf]
  %v3831 = vld [vmem:[%s699 + $0x8] sm:$0xf]
  %v3832 = vld [vmem:[%s699 + $0xc] sm:$0xf]
  %v3833 = vld [vmem:[%s704] sm:$0x1]
  %v3835 = vlaneseq
  %v3836 = vshrl.u32 %v3835, 7
  %v3837 = vsub.s32 0, %v3836
  %v3838 = vrot.slane %v3833, %v3837
  %v3844 = vunpack.c.l.b16 %v3829
  %v3845 = vunpack.c.l.b16 %v3830
  %v3846 = vunpack.c.l.b16 %v3831
  %v3847 = vunpack.c.l.b16 %v3832
  %v3848 = vpack.c.b16 %v3845, %v3844
  %v3849 = vpack.c.b16 %v3847, %v3846
  %3852 = vmatprep.subr.bf16.mxu0 0
  %3853 = vmatpush1.bf16.msra.mxu0 %v3848
  %3854 = vmatprep.subr.bf16.mxu0 0
  %3855 = vmatpush1.bf16.msra.mxu0 %v3849
  %3856 = vmatprep.subr.bf16.mxu0 0
  %3857 = vmatpush1.bf16.msra.mxu0 0
  %3858 = vmatprep.subr.bf16.mxu0 0
  %3859 = vmatpush1.bf16.msra.mxu0 0
  %3860 = vmatprep.subr.bf16.mxu0 0
  %3861 = vmatpush1.bf16.msra.mxu0 0
  %3862 = vmatprep.subr.bf16.mxu0 0
  %3863 = vmatpush1.bf16.msra.mxu0 0
  %3864 = vmatprep.subr.bf16.mxu0 0
  %3865 = vmatpush1.bf16.msra.mxu0 0
  %3866 = vmatprep.subr.bf16.mxu0 0
  %3867 = vmatpush1.bf16.msra.mxu0 0
  %3868 = vmatprep.subr.bf16.mxu0 0
  %3869 = vmatpush1.bf16.msra.mxu0 0
  %3870 = vmatprep.subr.bf16.mxu0 0
  %3871 = vmatpush1.bf16.msra.mxu0 0
  %3872 = vmatprep.subr.bf16.mxu0 0
  %3873 = vmatpush1.bf16.msra.mxu0 0
  %3874 = vmatprep.subr.bf16.mxu0 0
  %3875 = vmatpush1.bf16.msra.mxu0 0
  %3876 = vmatprep.subr.bf16.mxu0 0
  %3877 = vmatpush1.bf16.msra.mxu0 0
  %3878 = vmatprep.subr.bf16.mxu0 0
  %3879 = vmatpush1.bf16.msra.mxu0 0
  %3880 = vmatprep.subr.bf16.mxu0 0
  %3881 = vmatpush1.bf16.msra.mxu0 0
  %3882 = vmatprep.subr.bf16.mxu0 0
  %3883 = vmatpush1.bf16.msra.mxu0 0
  %3884 = vmatprep.mubr.bf16.mxu0 0
  %3885 = vmatmul.mubr.bf16.gmra.mrb[0].mxu0 %v3724
  %v3886 = vpop.f32.mrb[0].mxu0
  %v3887 = vadd.f32 %v3838, %v3886
  %v3888 = vpop.f32.mrb[0].mxu0
  %v3889 = vpop.f32.mrb[0].mxu0
  %v3890 = vpop.f32.mrb[0].mxu0
  %3891 = vdwg.mxu0
  %v3892 = vpack.c.bf16 %v3480, %v3480
  %v3893 = vld [vmem:[%s6] sm:$0xf]
  %v3894 = vld [vmem:[%s6 + $0x4] sm:$0xf]
  %v3895 = vld [vmem:[%s6 + $0x8] sm:$0xf]
  %v3896 = vld [vmem:[%s6 + $0xc] sm:$0xf]
  %v3897 = vld [vmem:[%s8] sm:$0x1]
  %v3899 = vlaneseq
  %v3900 = vshrl.u32 %v3899, 7
  %v3901 = vsub.s32 0, %v3900
  %v3902 = vrot.slane %v3897, %v3901
  %v3908 = vunpack.c.l.b16 %v3893
  %v3909 = vunpack.c.l.b16 %v3894
  %v3910 = vunpack.c.l.b16 %v3895
  %v3911 = vunpack.c.l.b16 %v3896
  %v3912 = vpack.c.b16 %v3909, %v3908
  %v3913 = vpack.c.b16 %v3911, %v3910
  %v3917 = vsel %vm153, %v3892, 0
  %3919 = vmatprep.subr.bf16.mxu0 0
  %3920 = vmatpush1.bf16.msra.mxu0 %v3912
  %3921 = vmatprep.subr.bf16.mxu0 0
  %3922 = vmatpush1.bf16.msra.mxu0 %v3913
  %3923 = vmatprep.subr.bf16.mxu0 0
  %3924 = vmatpush1.bf16.msra.mxu0 0
  %3925 = vmatprep.subr.bf16.mxu0 0
  %3926 = vmatpush1.bf16.msra.mxu0 0
  %3927 = vmatprep.subr.bf16.mxu0 0
  %3928 = vmatpush1.bf16.msra.mxu0 0
  %3929 = vmatprep.subr.bf16.mxu0 0
  %3930 = vmatpush1.bf16.msra.mxu0 0
  %3931 = vmatprep.subr.bf16.mxu0 0
  %3932 = vmatpush1.bf16.msra.mxu0 0
  %3933 = vmatprep.subr.bf16.mxu0 0
  %3934 = vmatpush1.bf16.msra.mxu0 0
  %3935 = vmatprep.subr.bf16.mxu0 0
  %3936 = vmatpush1.bf16.msra.mxu0 0
  %3937 = vmatprep.subr.bf16.mxu0 0
  %3938 = vmatpush1.bf16.msra.mxu0 0
  %3939 = vmatprep.subr.bf16.mxu0 0
  %3940 = vmatpush1.bf16.msra.mxu0 0
  %3941 = vmatprep.subr.bf16.mxu0 0
  %3942 = vmatpush1.bf16.msra.mxu0 0
  %3943 = vmatprep.subr.bf16.mxu0 0
  %3944 = vmatpush1.bf16.msra.mxu0 0
  %3945 = vmatprep.subr.bf16.mxu0 0
  %3946 = vmatpush1.bf16.msra.mxu0 0
  %3947 = vmatprep.subr.bf16.mxu0 0
  %3948 = vmatpush1.bf16.msra.mxu0 0
  %3949 = vmatprep.subr.bf16.mxu0 0
  %3950 = vmatpush1.bf16.msra.mxu0 0
  %3951 = vmatprep.mubr.bf16.mxu0 0
  %3952 = vmatmul.mubr.bf16.gmra.mrb[0].mxu0 %v3917
  %v3953 = vpop.f32.mrb[0].mxu0
  %v3954 = vadd.f32 %v3902, %v3953
  %v3955 = vpop.f32.mrb[0].mxu0
  %v3956 = vpop.f32.mrb[0].mxu0
  %v3957 = vpop.f32.mrb[0].mxu0
  %3958 = vdwg.mxu0
  %v3959 = vld [vmem:[%s831] sm:$0xf]
  %v3960 = vld [vmem:[%s831 + $0x4] sm:$0xf]
  %v3961 = vld [vmem:[%s831 + $0x8] sm:$0xf]
  %v3962 = vld [vmem:[%s831 + $0xc] sm:$0xf]
  %v3963 = vld [vmem:[%s836] sm:$0x1]
  %v3965 = vlaneseq
  %v3966 = vshrl.u32 %v3965, 7
  %v3967 = vsub.s32 0, %v3966
  %v3968 = vrot.slane %v3963, %v3967
  %v3974 = vunpack.c.l.b16 %v3959
  %v3975 = vunpack.c.l.b16 %v3960
  %v3976 = vunpack.c.l.b16 %v3961
  %v3977 = vunpack.c.l.b16 %v3962
  %v3978 = vpack.c.b16 %v3975, %v3974
  %v3979 = vpack.c.b16 %v3977, %v3976
  %3982 = vmatprep.subr.bf16.mxu0 0
  %3983 = vmatpush1.bf16.msra.mxu0 %v3978
  %3984 = vmatprep.subr.bf16.mxu0 0
  %3985 = vmatpush1.bf16.msra.mxu0 %v3979
  %3986 = vmatprep.subr.bf16.mxu0 0
  %3987 = vmatpush1.bf16.msra.mxu0 0
  %3988 = vmatprep.subr.bf16.mxu0 0
  %3989 = vmatpush1.bf16.msra.mxu0 0
  %3990 = vmatprep.subr.bf16.mxu0 0
  %3991 = vmatpush1.bf16.msra.mxu0 0
  %3992 = vmatprep.subr.bf16.mxu0 0
  %3993 = vmatpush1.bf16.msra.mxu0 0
  %3994 = vmatprep.subr.bf16.mxu0 0
  %3995 = vmatpush1.bf16.msra.mxu0 0
  %3996 = vmatprep.subr.bf16.mxu0 0
  %3997 = vmatpush1.bf16.msra.mxu0 0
  %3998 = vmatprep.subr.bf16.mxu0 0
  %3999 = vmatpush1.bf16.msra.mxu0 0
  %4000 = vmatprep.subr.bf16.mxu0 0
  %4001 = vmatpush1.bf16.msra.mxu0 0
  %4002 = vmatprep.subr.bf16.mxu0 0
  %4003 = vmatpush1.bf16.msra.mxu0 0
  %4004 = vmatprep.subr.bf16.mxu0 0
  %4005 = vmatpush1.bf16.msra.mxu0 0
  %4006 = vmatprep.subr.bf16.mxu0 0
  %4007 = vmatpush1.bf16.msra.mxu0 0
  %4008 = vmatprep.subr.bf16.mxu0 0
  %4009 = vmatpush1.bf16.msra.mxu0 0
  %4010 = vmatprep.subr.bf16.mxu0 0
  %4011 = vmatpush1.bf16.msra.mxu0 0
  %4012 = vmatprep.subr.bf16.mxu0 0
  %4013 = vmatpush1.bf16.msra.mxu0 0
  %4014 = vmatprep.mubr.bf16.mxu0 0
  %4015 = vmatmul.mubr.bf16.gmra.mrb[0].mxu0 %v3917
  %v4016 = vpop.f32.mrb[0].mxu0
  %v4017 = vadd.f32 %v3968, %v4016
  %v4018 = vpop.f32.mrb[0].mxu0
  %v4019 = vpop.f32.mrb[0].mxu0
  %v4020 = vpop.f32.mrb[0].mxu0
  %4021 = vdwg.mxu0
  %v4022 = vld [vmem:[%s896] sm:$0xf]
  %v4023 = vld [vmem:[%s896 + $0x4] sm:$0xf]
  %v4024 = vld [vmem:[%s896 + $0x8] sm:$0xf]
  %v4025 = vld [vmem:[%s896 + $0xc] sm:$0xf]
  %v4026 = vld [vmem:[%s901] sm:$0x1]
  %v4028 = vlaneseq
  %v4029 = vshrl.u32 %v4028, 7
  %v4030 = vsub.s32 0, %v4029
  %v4031 = vrot.slane %v4026, %v4030
  %v4037 = vunpack.c.l.b16 %v4022
  %v4038 = vunpack.c.l.b16 %v4023
  %v4039 = vunpack.c.l.b16 %v4024
  %v4040 = vunpack.c.l.b16 %v4025
  %v4041 = vpack.c.b16 %v4038, %v4037
  %v4042 = vpack.c.b16 %v4040, %v4039
  %4045 = vmatprep.subr.bf16.mxu0 0
  %4046 = vmatpush1.bf16.msra.mxu0 %v4041
  %4047 = vmatprep.subr.bf16.mxu0 0
  %4048 = vmatpush1.bf16.msra.mxu0 %v4042
  %4049 = vmatprep.subr.bf16.mxu0 0
  %4050 = vmatpush1.bf16.msra.mxu0 0
  %4051 = vmatprep.subr.bf16.mxu0 0
  %4052 = vmatpush1.bf16.msra.mxu0 0
  %4053 = vmatprep.subr.bf16.mxu0 0
  %4054 = vmatpush1.bf16.msra.mxu0 0
  %4055 = vmatprep.subr.bf16.mxu0 0
  %4056 = vmatpush1.bf16.msra.mxu0 0
  %4057 = vmatprep.subr.bf16.mxu0 0
  %4058 = vmatpush1.bf16.msra.mxu0 0
  %4059 = vmatprep.subr.bf16.mxu0 0
  %4060 = vmatpush1.bf16.msra.mxu0 0
  %4061 = vmatprep.subr.bf16.mxu0 0
  %4062 = vmatpush1.bf16.msra.mxu0 0
  %4063 = vmatprep.subr.bf16.mxu0 0
  %4064 = vmatpush1.bf16.msra.mxu0 0
  %4065 = vmatprep.subr.bf16.mxu0 0
  %4066 = vmatpush1.bf16.msra.mxu0 0
  %4067 = vmatprep.subr.bf16.mxu0 0
  %4068 = vmatpush1.bf16.msra.mxu0 0
  %4069 = vmatprep.subr.bf16.mxu0 0
  %4070 = vmatpush1.bf16.msra.mxu0 0
  %4071 = vmatprep.subr.bf16.mxu0 0
  %4072 = vmatpush1.bf16.msra.mxu0 0
  %4073 = vmatprep.subr.bf16.mxu0 0
  %4074 = vmatpush1.bf16.msra.mxu0 0
  %4075 = vmatprep.subr.bf16.mxu0 0
  %4076 = vmatpush1.bf16.msra.mxu0 0
  %4077 = vmatprep.mubr.bf16.mxu0 0
  %4078 = vmatmul.mubr.bf16.gmra.mrb[0].mxu0 %v3917
  %v4079 = vpop.f32.mrb[0].mxu0
  %v4080 = vadd.f32 %v4031, %v4079
  %v4081 = vpop.f32.mrb[0].mxu0
  %v4082 = vpop.f32.mrb[0].mxu0
  %v4083 = vpop.f32.mrb[0].mxu0
  %4084 = vdwg.mxu0
  %v4085 = vadd.f32 %v3761, %v3954
  %v4086 = vxor.u32 %v4085, 2147483648
  %v4087 = vmul.f32 %v4086, 1.442695
  %v4088 = vpow.pop %v4087
  %v4089 = vadd.f32 %v4088, 1.0
  %v4090 = vrcp.pop %v4089
  %v4091 = vmul.f32 1.0, %v4090
  %v4092 = vadd.f32 %v3824, %v4017
  %v4093 = vxor.u32 %v4092, 2147483648
  %v4094 = vmul.f32 %v4093, 1.442695
  %v4095 = vpow.pop %v4094
  %v4096 = vadd.f32 %v4095, 1.0
  %v4097 = vrcp.pop %v4096
  %v4098 = vmul.f32 1.0, %v4097
  %v4099 = vmul.f32 %v4091, %v4080
  %v4100 = vadd.f32 %v3887, %v4099
  %v4101 = vtanh.pop %v4100
  %v4102 = vsub.f32 1.0, %v4098
  %v4103 = vmul.f32 %v4102, %v4101
  %v4104 = vmul.f32 %v4098, %v3480
  %v4105 = vadd.f32 %v4103, %v4104
  %s4106 = scalar_lea.vmem [#allocation3], 40
  %4107 = vst.msk [vmem:[%s4106] sm:$0xff] %vm153, %v4105
  %s4108 = scalar_lea.vmem [#allocation2], 48
  %v4109 = vld [vmem:[%s4108] sm:$0xff]
  %s4110 = scalar_lea.vmem [#allocation2], 112
  %v4111 = vld [vmem:[%s4110] sm:$0xff]
  %s4112 = scalar_lea.vmem [#allocation2], 176
  %v4113 = vld [vmem:[%s4112] sm:$0xff]
  %v4114 = vld [vmem:[%s2] sm:$0xf]
  %v4115 = vld [vmem:[%s2 + $0x4] sm:$0xf]
  %v4116 = vld [vmem:[%s2 + $0x8] sm:$0xf]
  %v4117 = vld [vmem:[%s2 + $0xc] sm:$0xf]
  %v4118 = vld [vmem:[%s4] sm:$0x1]
  %v4120 = vlaneseq
  %v4121 = vshrl.u32 %v4120, 7
  %v4122 = vsub.s32 0, %v4121
  %v4123 = vrot.slane %v4118, %v4122
  %v4129 = vunpack.c.l.b16 %v4114
  %v4130 = vunpack.c.l.b16 %v4115
  %v4131 = vunpack.c.l.b16 %v4116
  %v4132 = vunpack.c.l.b16 %v4117
  %v4133 = vpack.c.b16 %v4130, %v4129
  %v4134 = vpack.c.b16 %v4132, %v4131
  %4137 = vmatprep.subr.bf16.mxu0 0
  %4138 = vmatpush1.bf16.msra.mxu0 %v4133
  %4139 = vmatprep.subr.bf16.mxu0 0
  %4140 = vmatpush1.bf16.msra.mxu0 %v4134
  %4141 = vmatprep.subr.bf16.mxu0 0
  %4142 = vmatpush1.bf16.msra.mxu0 0
  %4143 = vmatprep.subr.bf16.mxu0 0
  %4144 = vmatpush1.bf16.msra.mxu0 0
  %4145 = vmatprep.subr.bf16.mxu0 0
  %4146 = vmatpush1.bf16.msra.mxu0 0
  %4147 = vmatprep.subr.bf16.mxu0 0
  %4148 = vmatpush1.bf16.msra.mxu0 0
  %4149 = vmatprep.subr.bf16.mxu0 0
  %4150 = vmatpush1.bf16.msra.mxu0 0
  %4151 = vmatprep.subr.bf16.mxu0 0
  %4152 = vmatpush1.bf16.msra.mxu0 0
  %4153 = vmatprep.subr.bf16.mxu0 0
  %4154 = vmatpush1.bf16.msra.mxu0 0
  %4155 = vmatprep.subr.bf16.mxu0 0
  %4156 = vmatpush1.bf16.msra.mxu0 0
  %4157 = vmatprep.subr.bf16.mxu0 0
  %4158 = vmatpush1.bf16.msra.mxu0 0
  %4159 = vmatprep.subr.bf16.mxu0 0
  %4160 = vmatpush1.bf16.msra.mxu0 0
  %4161 = vmatprep.subr.bf16.mxu0 0
  %4162 = vmatpush1.bf16.msra.mxu0 0
  %4163 = vmatprep.subr.bf16.mxu0 0
  %4164 = vmatpush1.bf16.msra.mxu0 0
  %4165 = vmatprep.subr.bf16.mxu0 0
  %4166 = vmatpush1.bf16.msra.mxu0 0
  %4167 = vmatprep.subr.bf16.mxu0 0
  %4168 = vmatpush1.bf16.msra.mxu0 0
  %4169 = vmatprep.mubr.bf16.mxu0 0
  %4170 = vmatmul.mubr.bf16.gmra.mrb[0].mxu0 %v3724
  %v4171 = vpop.f32.mrb[0].mxu0
  %v4172 = vadd.f32 %v4123, %v4171
  %v4173 = vpop.f32.mrb[0].mxu0
  %v4174 = vpop.f32.mrb[0].mxu0
  %v4175 = vpop.f32.mrb[0].mxu0
  %4176 = vdwg.mxu0
  %v4177 = vld [vmem:[%s416] sm:$0xf]
  %v4178 = vld [vmem:[%s416 + $0x4] sm:$0xf]
  %v4179 = vld [vmem:[%s416 + $0x8] sm:$0xf]
  %v4180 = vld [vmem:[%s416 + $0xc] sm:$0xf]
  %v4181 = vld [vmem:[%s421] sm:$0x1]
  %v4183 = vlaneseq
  %v4184 = vshrl.u32 %v4183, 7
  %v4185 = vsub.s32 0, %v4184
  %v4186 = vrot.slane %v4181, %v4185
  %v4192 = vunpack.c.l.b16 %v4177
  %v4193 = vunpack.c.l.b16 %v4178
  %v4194 = vunpack.c.l.b16 %v4179
  %v4195 = vunpack.c.l.b16 %v4180
  %v4196 = vpack.c.b16 %v4193, %v4192
  %v4197 = vpack.c.b16 %v4195, %v4194
  %4200 = vmatprep.subr.bf16.mxu0 0
  %4201 = vmatpush1.bf16.msra.mxu0 %v4196
  %4202 = vmatprep.subr.bf16.mxu0 0
  %4203 = vmatpush1.bf16.msra.mxu0 %v4197
  %4204 = vmatprep.subr.bf16.mxu0 0
  %4205 = vmatpush1.bf16.msra.mxu0 0
  %4206 = vmatprep.subr.bf16.mxu0 0
  %4207 = vmatpush1.bf16.msra.mxu0 0
  %4208 = vmatprep.subr.bf16.mxu0 0
  %4209 = vmatpush1.bf16.msra.mxu0 0
  %4210 = vmatprep.subr.bf16.mxu0 0
  %4211 = vmatpush1.bf16.msra.mxu0 0
  %4212 = vmatprep.subr.bf16.mxu0 0
  %4213 = vmatpush1.bf16.msra.mxu0 0
  %4214 = vmatprep.subr.bf16.mxu0 0
  %4215 = vmatpush1.bf16.msra.mxu0 0
  %4216 = vmatprep.subr.bf16.mxu0 0
  %4217 = vmatpush1.bf16.msra.mxu0 0
  %4218 = vmatprep.subr.bf16.mxu0 0
  %4219 = vmatpush1.bf16.msra.mxu0 0
  %4220 = vmatprep.subr.bf16.mxu0 0
  %4221 = vmatpush1.bf16.msra.mxu0 0
  %4222 = vmatprep.subr.bf16.mxu0 0
  %4223 = vmatpush1.bf16.msra.mxu0 0
  %4224 = vmatprep.subr.bf16.mxu0 0
  %4225 = vmatpush1.bf16.msra.mxu0 0
  %4226 = vmatprep.subr.bf16.mxu0 0
  %4227 = vmatpush1.bf16.msra.mxu0 0
  %4228 = vmatprep.subr.bf16.mxu0 0
  %4229 = vmatpush1.bf16.msra.mxu0 0
  %4230 = vmatprep.subr.bf16.mxu0 0
  %4231 = vmatpush1.bf16.msra.mxu0 0
  %4232 = vmatprep.mubr.bf16.mxu0 0
  %4233 = vmatmul.mubr.bf16.gmra.mrb[0].mxu0 %v3724
  %v4234 = vpop.f32.mrb[0].mxu0
  %v4235 = vadd.f32 %v4186, %v4234
  %v4236 = vpop.f32.mrb[0].mxu0
  %v4237 = vpop.f32.mrb[0].mxu0
  %v4238 = vpop.f32.mrb[0].mxu0
  %4239 = vdwg.mxu0
  %v4240 = vld [vmem:[%s481] sm:$0xf]
  %v4241 = vld [vmem:[%s481 + $0x4] sm:$0xf]
  %v4242 = vld [vmem:[%s481 + $0x8] sm:$0xf]
  %v4243 = vld [vmem:[%s481 + $0xc] sm:$0xf]
  %v4244 = vld [vmem:[%s486] sm:$0x1]
  %v4246 = vlaneseq
  %v4247 = vshrl.u32 %v4246, 7
  %v4248 = vsub.s32 0, %v4247
  %v4249 = vrot.slane %v4244, %v4248
  %v4255 = vunpack.c.l.b16 %v4240
  %v4256 = vunpack.c.l.b16 %v4241
  %v4257 = vunpack.c.l.b16 %v4242
  %v4258 = vunpack.c.l.b16 %v4243
  %v4259 = vpack.c.b16 %v4256, %v4255
  %v4260 = vpack.c.b16 %v4258, %v4257
  %4263 = vmatprep.subr.bf16.mxu0 0
  %4264 = vmatpush1.bf16.msra.mxu0 %v4259
  %4265 = vmatprep.subr.bf16.mxu0 0
  %4266 = vmatpush1.bf16.msra.mxu0 %v4260
  %4267 = vmatprep.subr.bf16.mxu0 0
  %4268 = vmatpush1.bf16.msra.mxu0 0
  %4269 = vmatprep.subr.bf16.mxu0 0
  %4270 = vmatpush1.bf16.msra.mxu0 0
  %4271 = vmatprep.subr.bf16.mxu0 0
  %4272 = vmatpush1.bf16.msra.mxu0 0
  %4273 = vmatprep.subr.bf16.mxu0 0
  %4274 = vmatpush1.bf16.msra.mxu0 0
  %4275 = vmatprep.subr.bf16.mxu0 0
  %4276 = vmatpush1.bf16.msra.mxu0 0
  %4277 = vmatprep.subr.bf16.mxu0 0
  %4278 = vmatpush1.bf16.msra.mxu0 0
  %4279 = vmatprep.subr.bf16.mxu0 0
  %4280 = vmatpush1.bf16.msra.mxu0 0
  %4281 = vmatprep.subr.bf16.mxu0 0
  %4282 = vmatpush1.bf16.msra.mxu0 0
  %4283 = vmatprep.subr.bf16.mxu0 0
  %4284 = vmatpush1.bf16.msra.mxu0 0
  %4285 = vmatprep.subr.bf16.mxu0 0
  %4286 = vmatpush1.bf16.msra.mxu0 0
  %4287 = vmatprep.subr.bf16.mxu0 0
  %4288 = vmatpush1.bf16.msra.mxu0 0
  %4289 = vmatprep.subr.bf16.mxu0 0
  %4290 = vmatpush1.bf16.msra.mxu0 0
  %4291 = vmatprep.subr.bf16.mxu0 0
  %4292 = vmatpush1.bf16.msra.mxu0 0
  %4293 = vmatprep.subr.bf16.mxu0 0
  %4294 = vmatpush1.bf16.msra.mxu0 0
  %4295 = vmatprep.mubr.bf16.mxu0 0
  %4296 = vmatmul.mubr.bf16.gmra.mrb[0].mxu0 %v3724
  %v4297 = vpop.f32.mrb[0].mxu0
  %v4298 = vadd.f32 %v4249, %v4297
  %v4299 = vpop.f32.mrb[0].mxu0
  %v4300 = vpop.f32.mrb[0].mxu0
  %v4301 = vpop.f32.mrb[0].mxu0
  %4302 = vdwg.mxu0
  %v4303 = vadd.f32 %v4109, %v4172
  %v4304 = vxor.u32 %v4303, 2147483648
  %v4305 = vmul.f32 %v4304, 1.442695
  %v4306 = vpow.pop %v4305
  %v4307 = vadd.f32 %v4306, 1.0
  %v4308 = vrcp.pop %v4307
  %v4309 = vmul.f32 1.0, %v4308
  %v4310 = vadd.f32 %v4111, %v4235
  %v4311 = vxor.u32 %v4310, 2147483648
  %v4312 = vmul.f32 %v4311, 1.442695
  %v4313 = vpow.pop %v4312
  %v4314 = vadd.f32 %v4313, 1.0
  %v4315 = vrcp.pop %v4314
  %v4316 = vmul.f32 1.0, %v4315
  %v4317 = vmul.f32 %v4309, %v4298
  %v4318 = vadd.f32 %v4113, %v4317
  %v4319 = vtanh.pop %v4318
  %v4320 = vsub.f32 1.0, %v4316
  %v4321 = vmul.f32 %v4320, %v4319
  %v4322 = vmul.f32 %v4316, %v3698
  %v4323 = vadd.f32 %v4321, %v4322
  %v4324 = vpack.c.bf16 %v4323, %v4323
  %v4325 = vld [vmem:[%s5] sm:$0xf]
  %v4326 = vld [vmem:[%s5 + $0x4] sm:$0xf]
  %v4327 = vld [vmem:[%s5 + $0x8] sm:$0xf]
  %v4328 = vld [vmem:[%s5 + $0xc] sm:$0xf]
  %v4329 = vld [vmem:[%s7] sm:$0x1]
  %v4331 = vlaneseq
  %v4332 = vshrl.u32 %v4331, 7
  %v4333 = vsub.s32 0, %v4332
  %v4334 = vrot.slane %v4329, %v4333
  %v4340 = vunpack.c.l.b16 %v4325
  %v4341 = vunpack.c.l.b16 %v4326
  %v4342 = vunpack.c.l.b16 %v4327
  %v4343 = vunpack.c.l.b16 %v4328
  %v4344 = vpack.c.b16 %v4341, %v4340
  %v4345 = vpack.c.b16 %v4343, %v4342
  %v4349 = vsel %vm153, %v4324, 0
  %4351 = vmatprep.subr.bf16.mxu0 0
  %4352 = vmatpush1.bf16.msra.mxu0 %v4344
  %4353 = vmatprep.subr.bf16.mxu0 0
  %4354 = vmatpush1.bf16.msra.mxu0 %v4345
  %4355 = vmatprep.subr.bf16.mxu0 0
  %4356 = vmatpush1.bf16.msra.mxu0 0
  %4357 = vmatprep.subr.bf16.mxu0 0
  %4358 = vmatpush1.bf16.msra.mxu0 0
  %4359 = vmatprep.subr.bf16.mxu0 0
  %4360 = vmatpush1.bf16.msra.mxu0 0
  %4361 = vmatprep.subr.bf16.mxu0 0
  %4362 = vmatpush1.bf16.msra.mxu0 0
  %4363 = vmatprep.subr.bf16.mxu0 0
  %4364 = vmatpush1.bf16.msra.mxu0 0
  %4365 = vmatprep.subr.bf16.mxu0 0
  %4366 = vmatpush1.bf16.msra.mxu0 0
  %4367 = vmatprep.subr.bf16.mxu0 0
  %4368 = vmatpush1.bf16.msra.mxu0 0
  %4369 = vmatprep.subr.bf16.mxu0 0
  %4370 = vmatpush1.bf16.msra.mxu0 0
  %4371 = vmatprep.subr.bf16.mxu0 0
  %4372 = vmatpush1.bf16.msra.mxu0 0
  %4373 = vmatprep.subr.bf16.mxu0 0
  %4374 = vmatpush1.bf16.msra.mxu0 0
  %4375 = vmatprep.subr.bf16.mxu0 0
  %4376 = vmatpush1.bf16.msra.mxu0 0
  %4377 = vmatprep.subr.bf16.mxu0 0
  %4378 = vmatpush1.bf16.msra.mxu0 0
  %4379 = vmatprep.subr.bf16.mxu0 0
  %4380 = vmatpush1.bf16.msra.mxu0 0
  %4381 = vmatprep.subr.bf16.mxu0 0
  %4382 = vmatpush1.bf16.msra.mxu0 0
  %4383 = vmatprep.mubr.bf16.mxu0 0
  %4384 = vmatmul.mubr.bf16.gmra.mrb[0].mxu0 %v4349
  %v4385 = vpop.f32.mrb[0].mxu0
  %v4386 = vadd.f32 %v4334, %v4385
  %v4387 = vpop.f32.mrb[0].mxu0
  %v4388 = vpop.f32.mrb[0].mxu0
  %v4389 = vpop.f32.mrb[0].mxu0
  %4390 = vdwg.mxu0
  %v4391 = vld [vmem:[%s634] sm:$0xf]
  %v4392 = vld [vmem:[%s634 + $0x4] sm:$0xf]
  %v4393 = vld [vmem:[%s634 + $0x8] sm:$0xf]
  %v4394 = vld [vmem:[%s634 + $0xc] sm:$0xf]
  %v4395 = vld [vmem:[%s639] sm:$0x1]
  %v4397 = vlaneseq
  %v4398 = vshrl.u32 %v4397, 7
  %v4399 = vsub.s32 0, %v4398
  %v4400 = vrot.slane %v4395, %v4399
  %v4406 = vunpack.c.l.b16 %v4391
  %v4407 = vunpack.c.l.b16 %v4392
  %v4408 = vunpack.c.l.b16 %v4393
  %v4409 = vunpack.c.l.b16 %v4394
  %v4410 = vpack.c.b16 %v4407, %v4406
  %v4411 = vpack.c.b16 %v4409, %v4408
  %4414 = vmatprep.subr.bf16.mxu0 0
  %4415 = vmatpush1.bf16.msra.mxu0 %v4410
  %4416 = vmatprep.subr.bf16.mxu0 0
  %4417 = vmatpush1.bf16.msra.mxu0 %v4411
  %4418 = vmatprep.subr.bf16.mxu0 0
  %4419 = vmatpush1.bf16.msra.mxu0 0
  %4420 = vmatprep.subr.bf16.mxu0 0
  %4421 = vmatpush1.bf16.msra.mxu0 0
  %4422 = vmatprep.subr.bf16.mxu0 0
  %4423 = vmatpush1.bf16.msra.mxu0 0
  %4424 = vmatprep.subr.bf16.mxu0 0
  %4425 = vmatpush1.bf16.msra.mxu0 0
  %4426 = vmatprep.subr.bf16.mxu0 0
  %4427 = vmatpush1.bf16.msra.mxu0 0
  %4428 = vmatprep.subr.bf16.mxu0 0
  %4429 = vmatpush1.bf16.msra.mxu0 0
  %4430 = vmatprep.subr.bf16.mxu0 0
  %4431 = vmatpush1.bf16.msra.mxu0 0
  %4432 = vmatprep.subr.bf16.mxu0 0
  %4433 = vmatpush1.bf16.msra.mxu0 0
  %4434 = vmatprep.subr.bf16.mxu0 0
  %4435 = vmatpush1.bf16.msra.mxu0 0
  %4436 = vmatprep.subr.bf16.mxu0 0
  %4437 = vmatpush1.bf16.msra.mxu0 0
  %4438 = vmatprep.subr.bf16.mxu0 0
  %4439 = vmatpush1.bf16.msra.mxu0 0
  %4440 = vmatprep.subr.bf16.mxu0 0
  %4441 = vmatpush1.bf16.msra.mxu0 0
  %4442 = vmatprep.subr.bf16.mxu0 0
  %4443 = vmatpush1.bf16.msra.mxu0 0
  %4444 = vmatprep.subr.bf16.mxu0 0
  %4445 = vmatpush1.bf16.msra.mxu0 0
  %4446 = vmatprep.mubr.bf16.mxu0 0
  %4447 = vmatmul.mubr.bf16.gmra.mrb[0].mxu0 %v4349
  %v4448 = vpop.f32.mrb[0].mxu0
  %v4449 = vadd.f32 %v4400, %v4448
  %v4450 = vpop.f32.mrb[0].mxu0
  %v4451 = vpop.f32.mrb[0].mxu0
  %v4452 = vpop.f32.mrb[0].mxu0
  %4453 = vdwg.mxu0
  %v4454 = vld [vmem:[%s699] sm:$0xf]
  %v4455 = vld [vmem:[%s699 + $0x4] sm:$0xf]
  %v4456 = vld [vmem:[%s699 + $0x8] sm:$0xf]
  %v4457 = vld [vmem:[%s699 + $0xc] sm:$0xf]
  %v4458 = vld [vmem:[%s704] sm:$0x1]
  %v4460 = vlaneseq
  %v4461 = vshrl.u32 %v4460, 7
  %v4462 = vsub.s32 0, %v4461
  %v4463 = vrot.slane %v4458, %v4462
  %v4469 = vunpack.c.l.b16 %v4454
  %v4470 = vunpack.c.l.b16 %v4455
  %v4471 = vunpack.c.l.b16 %v4456
  %v4472 = vunpack.c.l.b16 %v4457
  %v4473 = vpack.c.b16 %v4470, %v4469
  %v4474 = vpack.c.b16 %v4472, %v4471
  %4477 = vmatprep.subr.bf16.mxu0 0
  %4478 = vmatpush1.bf16.msra.mxu0 %v4473
  %4479 = vmatprep.subr.bf16.mxu0 0
  %4480 = vmatpush1.bf16.msra.mxu0 %v4474
  %4481 = vmatprep.subr.bf16.mxu0 0
  %4482 = vmatpush1.bf16.msra.mxu0 0
  %4483 = vmatprep.subr.bf16.mxu0 0
  %4484 = vmatpush1.bf16.msra.mxu0 0
  %4485 = vmatprep.subr.bf16.mxu0 0
  %4486 = vmatpush1.bf16.msra.mxu0 0
  %4487 = vmatprep.subr.bf16.mxu0 0
  %4488 = vmatpush1.bf16.msra.mxu0 0
  %4489 = vmatprep.subr.bf16.mxu0 0
  %4490 = vmatpush1.bf16.msra.mxu0 0
  %4491 = vmatprep.subr.bf16.mxu0 0
  %4492 = vmatpush1.bf16.msra.mxu0 0
  %4493 = vmatprep.subr.bf16.mxu0 0
  %4494 = vmatpush1.bf16.msra.mxu0 0
  %4495 = vmatprep.subr.bf16.mxu0 0
  %4496 = vmatpush1.bf16.msra.mxu0 0
  %4497 = vmatprep.subr.bf16.mxu0 0
  %4498 = vmatpush1.bf16.msra.mxu0 0
  %4499 = vmatprep.subr.bf16.mxu0 0
  %4500 = vmatpush1.bf16.msra.mxu0 0
  %4501 = vmatprep.subr.bf16.mxu0 0
  %4502 = vmatpush1.bf16.msra.mxu0 0
  %4503 = vmatprep.subr.bf16.mxu0 0
  %4504 = vmatpush1.bf16.msra.mxu0 0
  %4505 = vmatprep.subr.bf16.mxu0 0
  %4506 = vmatpush1.bf16.msra.mxu0 0
  %4507 = vmatprep.subr.bf16.mxu0 0
  %4508 = vmatpush1.bf16.msra.mxu0 0
  %4509 = vmatprep.mubr.bf16.mxu0 0
  %4510 = vmatmul.mubr.bf16.gmra.mrb[0].mxu0 %v4349
  %v4511 = vpop.f32.mrb[0].mxu0
  %v4512 = vadd.f32 %v4463, %v4511
  %v4513 = vpop.f32.mrb[0].mxu0
  %v4514 = vpop.f32.mrb[0].mxu0
  %v4515 = vpop.f32.mrb[0].mxu0
  %4516 = vdwg.mxu0
  %v4517 = vpack.c.bf16 %v4105, %v4105
  %v4518 = vld [vmem:[%s6] sm:$0xf]
  %v4519 = vld [vmem:[%s6 + $0x4] sm:$0xf]
  %v4520 = vld [vmem:[%s6 + $0x8] sm:$0xf]
  %v4521 = vld [vmem:[%s6 + $0xc] sm:$0xf]
  %v4522 = vld [vmem:[%s8] sm:$0x1]
  %v4524 = vlaneseq
  %v4525 = vshrl.u32 %v4524, 7
  %v4526 = vsub.s32 0, %v4525
  %v4527 = vrot.slane %v4522, %v4526
  %v4533 = vunpack.c.l.b16 %v4518
  %v4534 = vunpack.c.l.b16 %v4519
  %v4535 = vunpack.c.l.b16 %v4520
  %v4536 = vunpack.c.l.b16 %v4521
  %v4537 = vpack.c.b16 %v4534, %v4533
  %v4538 = vpack.c.b16 %v4536, %v4535
  %v4542 = vsel %vm153, %v4517, 0
  %4544 = vmatprep.subr.bf16.mxu0 0
  %4545 = vmatpush1.bf16.msra.mxu0 %v4537
  %4546 = vmatprep.subr.bf16.mxu0 0
  %4547 = vmatpush1.bf16.msra.mxu0 %v4538
  %4548 = vmatprep.subr.bf16.mxu0 0
  %4549 = vmatpush1.bf16.msra.mxu0 0
  %4550 = vmatprep.subr.bf16.mxu0 0
  %4551 = vmatpush1.bf16.msra.mxu0 0
  %4552 = vmatprep.subr.bf16.mxu0 0
  %4553 = vmatpush1.bf16.msra.mxu0 0
  %4554 = vmatprep.subr.bf16.mxu0 0
  %4555 = vmatpush1.bf16.msra.mxu0 0
  %4556 = vmatprep.subr.bf16.mxu0 0
  %4557 = vmatpush1.bf16.msra.mxu0 0
  %4558 = vmatprep.subr.bf16.mxu0 0
  %4559 = vmatpush1.bf16.msra.mxu0 0
  %4560 = vmatprep.subr.bf16.mxu0 0
  %4561 = vmatpush1.bf16.msra.mxu0 0
  %4562 = vmatprep.subr.bf16.mxu0 0
  %4563 = vmatpush1.bf16.msra.mxu0 0
  %4564 = vmatprep.subr.bf16.mxu0 0
  %4565 = vmatpush1.bf16.msra.mxu0 0
  %4566 = vmatprep.subr.bf16.mxu0 0
  %4567 = vmatpush1.bf16.msra.mxu0 0
  %4568 = vmatprep.subr.bf16.mxu0 0
  %4569 = vmatpush1.bf16.msra.mxu0 0
  %4570 = vmatprep.subr.bf16.mxu0 0
  %4571 = vmatpush1.bf16.msra.mxu0 0
  %4572 = vmatprep.subr.bf16.mxu0 0
  %4573 = vmatpush1.bf16.msra.mxu0 0
  %4574 = vmatprep.subr.bf16.mxu0 0
  %4575 = vmatpush1.bf16.msra.mxu0 0
  %4576 = vmatprep.mubr.bf16.mxu0 0
  %4577 = vmatmul.mubr.bf16.gmra.mrb[0].mxu0 %v4542
  %v4578 = vpop.f32.mrb[0].mxu0
  %v4579 = vadd.f32 %v4527, %v4578
  %v4580 = vpop.f32.mrb[0].mxu0
  %v4581 = vpop.f32.mrb[0].mxu0
  %v4582 = vpop.f32.mrb[0].mxu0
  %4583 = vdwg.mxu0
  %v4584 = vld [vmem:[%s831] sm:$0xf]
  %v4585 = vld [vmem:[%s831 + $0x4] sm:$0xf]
  %v4586 = vld [vmem:[%s831 + $0x8] sm:$0xf]
  %v4587 = vld [vmem:[%s831 + $0xc] sm:$0xf]
  %v4588 = vld [vmem:[%s836] sm:$0x1]
  %v4590 = vlaneseq
  %v4591 = vshrl.u32 %v4590, 7
  %v4592 = vsub.s32 0, %v4591
  %v4593 = vrot.slane %v4588, %v4592
  %v4599 = vunpack.c.l.b16 %v4584
  %v4600 = vunpack.c.l.b16 %v4585
  %v4601 = vunpack.c.l.b16 %v4586
  %v4602 = vunpack.c.l.b16 %v4587
  %v4603 = vpack.c.b16 %v4600, %v4599
  %v4604 = vpack.c.b16 %v4602, %v4601
  %4607 = vmatprep.subr.bf16.mxu0 0
  %4608 = vmatpush1.bf16.msra.mxu0 %v4603
  %4609 = vmatprep.subr.bf16.mxu0 0
  %4610 = vmatpush1.bf16.msra.mxu0 %v4604
  %4611 = vmatprep.subr.bf16.mxu0 0
  %4612 = vmatpush1.bf16.msra.mxu0 0
  %4613 = vmatprep.subr.bf16.mxu0 0
  %4614 = vmatpush1.bf16.msra.mxu0 0
  %4615 = vmatprep.subr.bf16.mxu0 0
  %4616 = vmatpush1.bf16.msra.mxu0 0
  %4617 = vmatprep.subr.bf16.mxu0 0
  %4618 = vmatpush1.bf16.msra.mxu0 0
  %4619 = vmatprep.subr.bf16.mxu0 0
  %4620 = vmatpush1.bf16.msra.mxu0 0
  %4621 = vmatprep.subr.bf16.mxu0 0
  %4622 = vmatpush1.bf16.msra.mxu0 0
  %4623 = vmatprep.subr.bf16.mxu0 0
  %4624 = vmatpush1.bf16.msra.mxu0 0
  %4625 = vmatprep.subr.bf16.mxu0 0
  %4626 = vmatpush1.bf16.msra.mxu0 0
  %4627 = vmatprep.subr.bf16.mxu0 0
  %4628 = vmatpush1.bf16.msra.mxu0 0
  %4629 = vmatprep.subr.bf16.mxu0 0
  %4630 = vmatpush1.bf16.msra.mxu0 0
  %4631 = vmatprep.subr.bf16.mxu0 0
  %4632 = vmatpush1.bf16.msra.mxu0 0
  %4633 = vmatprep.subr.bf16.mxu0 0
  %4634 = vmatpush1.bf16.msra.mxu0 0
  %4635 = vmatprep.subr.bf16.mxu0 0
  %4636 = vmatpush1.bf16.msra.mxu0 0
  %4637 = vmatprep.subr.bf16.mxu0 0
  %4638 = vmatpush1.bf16.msra.mxu0 0
  %4639 = vmatprep.mubr.bf16.mxu0 0
  %4640 = vmatmul.mubr.bf16.gmra.mrb[0].mxu0 %v4542
  %v4641 = vpop.f32.mrb[0].mxu0
  %v4642 = vadd.f32 %v4593, %v4641
  %v4643 = vpop.f32.mrb[0].mxu0
  %v4644 = vpop.f32.mrb[0].mxu0
  %v4645 = vpop.f32.mrb[0].mxu0
  %4646 = vdwg.mxu0
  %v4647 = vld [vmem:[%s896] sm:$0xf]
  %v4648 = vld [vmem:[%s896 + $0x4] sm:$0xf]
  %v4649 = vld [vmem:[%s896 + $0x8] sm:$0xf]
  %v4650 = vld [vmem:[%s896 + $0xc] sm:$0xf]
  %v4651 = vld [vmem:[%s901] sm:$0x1]
  %v4653 = vlaneseq
  %v4654 = vshrl.u32 %v4653, 7
  %v4655 = vsub.s32 0, %v4654
  %v4656 = vrot.slane %v4651, %v4655
  %v4662 = vunpack.c.l.b16 %v4647
  %v4663 = vunpack.c.l.b16 %v4648
  %v4664 = vunpack.c.l.b16 %v4649
  %v4665 = vunpack.c.l.b16 %v4650
  %v4666 = vpack.c.b16 %v4663, %v4662
  %v4667 = vpack.c.b16 %v4665, %v4664
  %4670 = vmatprep.subr.bf16.mxu0 0
  %4671 = vmatpush1.bf16.msra.mxu0 %v4666
  %4672 = vmatprep.subr.bf16.mxu0 0
  %4673 = vmatpush1.bf16.msra.mxu0 %v4667
  %4674 = vmatprep.subr.bf16.mxu0 0
  %4675 = vmatpush1.bf16.msra.mxu0 0
  %4676 = vmatprep.subr.bf16.mxu0 0
  %4677 = vmatpush1.bf16.msra.mxu0 0
  %4678 = vmatprep.subr.bf16.mxu0 0
  %4679 = vmatpush1.bf16.msra.mxu0 0
  %4680 = vmatprep.subr.bf16.mxu0 0
  %4681 = vmatpush1.bf16.msra.mxu0 0
  %4682 = vmatprep.subr.bf16.mxu0 0
  %4683 = vmatpush1.bf16.msra.mxu0 0
  %4684 = vmatprep.subr.bf16.mxu0 0
  %4685 = vmatpush1.bf16.msra.mxu0 0
  %4686 = vmatprep.subr.bf16.mxu0 0
  %4687 = vmatpush1.bf16.msra.mxu0 0
  %4688 = vmatprep.subr.bf16.mxu0 0
  %4689 = vmatpush1.bf16.msra.mxu0 0
  %4690 = vmatprep.subr.bf16.mxu0 0
  %4691 = vmatpush1.bf16.msra.mxu0 0
  %4692 = vmatprep.subr.bf16.mxu0 0
  %4693 = vmatpush1.bf16.msra.mxu0 0
  %4694 = vmatprep.subr.bf16.mxu0 0
  %4695 = vmatpush1.bf16.msra.mxu0 0
  %4696 = vmatprep.subr.bf16.mxu0 0
  %4697 = vmatpush1.bf16.msra.mxu0 0
  %4698 = vmatprep.subr.bf16.mxu0 0
  %4699 = vmatpush1.bf16.msra.mxu0 0
  %4700 = vmatprep.subr.bf16.mxu0 0
  %4701 = vmatpush1.bf16.msra.mxu0 0
  %4702 = vmatprep.mubr.bf16.mxu0 0
  %4703 = vmatmul.mubr.bf16.gmra.mrb[0].mxu0 %v4542
  %v4704 = vpop.f32.mrb[0].mxu0
  %v4705 = vadd.f32 %v4656, %v4704
  %v4706 = vpop.f32.mrb[0].mxu0
  %v4707 = vpop.f32.mrb[0].mxu0
  %v4708 = vpop.f32.mrb[0].mxu0
  %4709 = vdwg.mxu0
  %v4710 = vadd.f32 %v4386, %v4579
  %v4711 = vxor.u32 %v4710, 2147483648
  %v4712 = vmul.f32 %v4711, 1.442695
  %v4713 = vpow.pop %v4712
  %v4714 = vadd.f32 %v4713, 1.0
  %v4715 = vrcp.pop %v4714
  %v4716 = vmul.f32 1.0, %v4715
  %v4717 = vadd.f32 %v4449, %v4642
  %v4718 = vxor.u32 %v4717, 2147483648
  %v4719 = vmul.f32 %v4718, 1.442695
  %v4720 = vpow.pop %v4719
  %v4721 = vadd.f32 %v4720, 1.0
  %v4722 = vrcp.pop %v4721
  %v4723 = vmul.f32 1.0, %v4722
  %v4724 = vmul.f32 %v4716, %v4705
  %v4725 = vadd.f32 %v4512, %v4724
  %v4726 = vtanh.pop %v4725
  %v4727 = vsub.f32 1.0, %v4723
  %v4728 = vmul.f32 %v4727, %v4726
  %v4729 = vmul.f32 %v4723, %v4105
  %v4730 = vadd.f32 %v4728, %v4729
  %s4731 = scalar_lea.vmem [#allocation3], 48
  %4732 = vst.msk [vmem:[%s4731] sm:$0xff] %vm153, %v4730
  %s4733 = scalar_lea.vmem [#allocation2], 56
  %v4734 = vld [vmem:[%s4733] sm:$0xff]
  %s4735 = scalar_lea.vmem [#allocation2], 120
  %v4736 = vld [vmem:[%s4735] sm:$0xff]
  %s4737 = scalar_lea.vmem [#allocation2], 184
  %v4738 = vld [vmem:[%s4737] sm:$0xff]
  %v4739 = vld [vmem:[%s2] sm:$0xf]
  %v4740 = vld [vmem:[%s2 + $0x4] sm:$0xf]
  %v4741 = vld [vmem:[%s2 + $0x8] sm:$0xf]
  %v4742 = vld [vmem:[%s2 + $0xc] sm:$0xf]
  %v4743 = vld [vmem:[%s4] sm:$0x1]
  %v4745 = vlaneseq
  %v4746 = vshrl.u32 %v4745, 7
  %v4747 = vsub.s32 0, %v4746
  %v4748 = vrot.slane %v4743, %v4747
  %v4754 = vunpack.c.l.b16 %v4739
  %v4755 = vunpack.c.l.b16 %v4740
  %v4756 = vunpack.c.l.b16 %v4741
  %v4757 = vunpack.c.l.b16 %v4742
  %v4758 = vpack.c.b16 %v4755, %v4754
  %v4759 = vpack.c.b16 %v4757, %v4756
  %4762 = vmatprep.subr.bf16.mxu0 0
  %4763 = vmatpush1.bf16.msra.mxu0 %v4758
  %4764 = vmatprep.subr.bf16.mxu0 0
  %4765 = vmatpush1.bf16.msra.mxu0 %v4759
  %4766 = vmatprep.subr.bf16.mxu0 0
  %4767 = vmatpush1.bf16.msra.mxu0 0
  %4768 = vmatprep.subr.bf16.mxu0 0
  %4769 = vmatpush1.bf16.msra.mxu0 0
  %4770 = vmatprep.subr.bf16.mxu0 0
  %4771 = vmatpush1.bf16.msra.mxu0 0
  %4772 = vmatprep.subr.bf16.mxu0 0
  %4773 = vmatpush1.bf16.msra.mxu0 0
  %4774 = vmatprep.subr.bf16.mxu0 0
  %4775 = vmatpush1.bf16.msra.mxu0 0
  %4776 = vmatprep.subr.bf16.mxu0 0
  %4777 = vmatpush1.bf16.msra.mxu0 0
  %4778 = vmatprep.subr.bf16.mxu0 0
  %4779 = vmatpush1.bf16.msra.mxu0 0
  %4780 = vmatprep.subr.bf16.mxu0 0
  %4781 = vmatpush1.bf16.msra.mxu0 0
  %4782 = vmatprep.subr.bf16.mxu0 0
  %4783 = vmatpush1.bf16.msra.mxu0 0
  %4784 = vmatprep.subr.bf16.mxu0 0
  %4785 = vmatpush1.bf16.msra.mxu0 0
  %4786 = vmatprep.subr.bf16.mxu0 0
  %4787 = vmatpush1.bf16.msra.mxu0 0
  %4788 = vmatprep.subr.bf16.mxu0 0
  %4789 = vmatpush1.bf16.msra.mxu0 0
  %4790 = vmatprep.subr.bf16.mxu0 0
  %4791 = vmatpush1.bf16.msra.mxu0 0
  %4792 = vmatprep.subr.bf16.mxu0 0
  %4793 = vmatpush1.bf16.msra.mxu0 0
  %4794 = vmatprep.mubr.bf16.mxu0 0
  %4795 = vmatmul.mubr.bf16.gmra.mrb[0].mxu0 %v4349
  %v4796 = vpop.f32.mrb[0].mxu0
  %v4797 = vadd.f32 %v4748, %v4796
  %v4798 = vpop.f32.mrb[0].mxu0
  %v4799 = vpop.f32.mrb[0].mxu0
  %v4800 = vpop.f32.mrb[0].mxu0
  %4801 = vdwg.mxu0
  %v4802 = vld [vmem:[%s416] sm:$0xf]
  %v4803 = vld [vmem:[%s416 + $0x4] sm:$0xf]
  %v4804 = vld [vmem:[%s416 + $0x8] sm:$0xf]
  %v4805 = vld [vmem:[%s416 + $0xc] sm:$0xf]
  %v4806 = vld [vmem:[%s421] sm:$0x1]
  %v4808 = vlaneseq
  %v4809 = vshrl.u32 %v4808, 7
  %v4810 = vsub.s32 0, %v4809
  %v4811 = vrot.slane %v4806, %v4810
  %v4817 = vunpack.c.l.b16 %v4802
  %v4818 = vunpack.c.l.b16 %v4803
  %v4819 = vunpack.c.l.b16 %v4804
  %v4820 = vunpack.c.l.b16 %v4805
  %v4821 = vpack.c.b16 %v4818, %v4817
  %v4822 = vpack.c.b16 %v4820, %v4819
  %4825 = vmatprep.subr.bf16.mxu0 0
  %4826 = vmatpush1.bf16.msra.mxu0 %v4821
  %4827 = vmatprep.subr.bf16.mxu0 0
  %4828 = vmatpush1.bf16.msra.mxu0 %v4822
  %4829 = vmatprep.subr.bf16.mxu0 0
  %4830 = vmatpush1.bf16.msra.mxu0 0
  %4831 = vmatprep.subr.bf16.mxu0 0
  %4832 = vmatpush1.bf16.msra.mxu0 0
  %4833 = vmatprep.subr.bf16.mxu0 0
  %4834 = vmatpush1.bf16.msra.mxu0 0
  %4835 = vmatprep.subr.bf16.mxu0 0
  %4836 = vmatpush1.bf16.msra.mxu0 0
  %4837 = vmatprep.subr.bf16.mxu0 0
  %4838 = vmatpush1.bf16.msra.mxu0 0
  %4839 = vmatprep.subr.bf16.mxu0 0
  %4840 = vmatpush1.bf16.msra.mxu0 0
  %4841 = vmatprep.subr.bf16.mxu0 0
  %4842 = vmatpush1.bf16.msra.mxu0 0
  %4843 = vmatprep.subr.bf16.mxu0 0
  %4844 = vmatpush1.bf16.msra.mxu0 0
  %4845 = vmatprep.subr.bf16.mxu0 0
  %4846 = vmatpush1.bf16.msra.mxu0 0
  %4847 = vmatprep.subr.bf16.mxu0 0
  %4848 = vmatpush1.bf16.msra.mxu0 0
  %4849 = vmatprep.subr.bf16.mxu0 0
  %4850 = vmatpush1.bf16.msra.mxu0 0
  %4851 = vmatprep.subr.bf16.mxu0 0
  %4852 = vmatpush1.bf16.msra.mxu0 0
  %4853 = vmatprep.subr.bf16.mxu0 0
  %4854 = vmatpush1.bf16.msra.mxu0 0
  %4855 = vmatprep.subr.bf16.mxu0 0
  %4856 = vmatpush1.bf16.msra.mxu0 0
  %4857 = vmatprep.mubr.bf16.mxu0 0
  %4858 = vmatmul.mubr.bf16.gmra.mrb[0].mxu0 %v4349
  %v4859 = vpop.f32.mrb[0].mxu0
  %v4860 = vadd.f32 %v4811, %v4859
  %v4861 = vpop.f32.mrb[0].mxu0
  %v4862 = vpop.f32.mrb[0].mxu0
  %v4863 = vpop.f32.mrb[0].mxu0
  %4864 = vdwg.mxu0
  %v4865 = vld [vmem:[%s481] sm:$0xf]
  %v4866 = vld [vmem:[%s481 + $0x4] sm:$0xf]
  %v4867 = vld [vmem:[%s481 + $0x8] sm:$0xf]
  %v4868 = vld [vmem:[%s481 + $0xc] sm:$0xf]
  %v4869 = vld [vmem:[%s486] sm:$0x1]
  %v4871 = vlaneseq
  %v4872 = vshrl.u32 %v4871, 7
  %v4873 = vsub.s32 0, %v4872
  %v4874 = vrot.slane %v4869, %v4873
  %v4880 = vunpack.c.l.b16 %v4865
  %v4881 = vunpack.c.l.b16 %v4866
  %v4882 = vunpack.c.l.b16 %v4867
  %v4883 = vunpack.c.l.b16 %v4868
  %v4884 = vpack.c.b16 %v4881, %v4880
  %v4885 = vpack.c.b16 %v4883, %v4882
  %4888 = vmatprep.subr.bf16.mxu0 0
  %4889 = vmatpush1.bf16.msra.mxu0 %v4884
  %4890 = vmatprep.subr.bf16.mxu0 0
  %4891 = vmatpush1.bf16.msra.mxu0 %v4885
  %4892 = vmatprep.subr.bf16.mxu0 0
  %4893 = vmatpush1.bf16.msra.mxu0 0
  %4894 = vmatprep.subr.bf16.mxu0 0
  %4895 = vmatpush1.bf16.msra.mxu0 0
  %4896 = vmatprep.subr.bf16.mxu0 0
  %4897 = vmatpush1.bf16.msra.mxu0 0
  %4898 = vmatprep.subr.bf16.mxu0 0
  %4899 = vmatpush1.bf16.msra.mxu0 0
  %4900 = vmatprep.subr.bf16.mxu0 0
  %4901 = vmatpush1.bf16.msra.mxu0 0
  %4902 = vmatprep.subr.bf16.mxu0 0
  %4903 = vmatpush1.bf16.msra.mxu0 0
  %4904 = vmatprep.subr.bf16.mxu0 0
  %4905 = vmatpush1.bf16.msra.mxu0 0
  %4906 = vmatprep.subr.bf16.mxu0 0
  %4907 = vmatpush1.bf16.msra.mxu0 0
  %4908 = vmatprep.subr.bf16.mxu0 0
  %4909 = vmatpush1.bf16.msra.mxu0 0
  %4910 = vmatprep.subr.bf16.mxu0 0
  %4911 = vmatpush1.bf16.msra.mxu0 0
  %4912 = vmatprep.subr.bf16.mxu0 0
  %4913 = vmatpush1.bf16.msra.mxu0 0
  %4914 = vmatprep.subr.bf16.mxu0 0
  %4915 = vmatpush1.bf16.msra.mxu0 0
  %4916 = vmatprep.subr.bf16.mxu0 0
  %4917 = vmatpush1.bf16.msra.mxu0 0
  %4918 = vmatprep.subr.bf16.mxu0 0
  %4919 = vmatpush1.bf16.msra.mxu0 0
  %4920 = vmatprep.mubr.bf16.mxu0 0
  %4921 = vmatmul.mubr.bf16.gmra.mrb[0].mxu0 %v4349
  %v4922 = vpop.f32.mrb[0].mxu0
  %v4923 = vadd.f32 %v4874, %v4922
  %v4924 = vpop.f32.mrb[0].mxu0
  %v4925 = vpop.f32.mrb[0].mxu0
  %v4926 = vpop.f32.mrb[0].mxu0
  %4927 = vdwg.mxu0
  %v4928 = vadd.f32 %v4734, %v4797
  %v4929 = vxor.u32 %v4928, 2147483648
  %v4930 = vmul.f32 %v4929, 1.442695
  %v4931 = vpow.pop %v4930
  %v4932 = vadd.f32 %v4931, 1.0
  %v4933 = vrcp.pop %v4932
  %v4934 = vmul.f32 1.0, %v4933
  %v4935 = vadd.f32 %v4736, %v4860
  %v4936 = vxor.u32 %v4935, 2147483648
  %v4937 = vmul.f32 %v4936, 1.442695
  %v4938 = vpow.pop %v4937
  %v4939 = vadd.f32 %v4938, 1.0
  %v4940 = vrcp.pop %v4939
  %v4941 = vmul.f32 1.0, %v4940
  %v4942 = vmul.f32 %v4934, %v4923
  %v4943 = vadd.f32 %v4738, %v4942
  %v4944 = vtanh.pop %v4943
  %v4945 = vsub.f32 1.0, %v4941
  %v4946 = vmul.f32 %v4945, %v4944
  %v4947 = vmul.f32 %v4941, %v4323
  %v4948 = vadd.f32 %v4946, %v4947
  %v4949 = vpack.c.bf16 %v4948, %v4948
  %v4950 = vld [vmem:[%s5] sm:$0xf]
  %v4951 = vld [vmem:[%s5 + $0x4] sm:$0xf]
  %v4952 = vld [vmem:[%s5 + $0x8] sm:$0xf]
  %v4953 = vld [vmem:[%s5 + $0xc] sm:$0xf]
  %v4954 = vld [vmem:[%s7] sm:$0x1]
  %v4956 = vlaneseq
  %v4957 = vshrl.u32 %v4956, 7
  %v4958 = vsub.s32 0, %v4957
  %v4959 = vrot.slane %v4954, %v4958
  %v4965 = vunpack.c.l.b16 %v4950
  %v4966 = vunpack.c.l.b16 %v4951
  %v4967 = vunpack.c.l.b16 %v4952
  %v4968 = vunpack.c.l.b16 %v4953
  %v4969 = vpack.c.b16 %v4966, %v4965
  %v4970 = vpack.c.b16 %v4968, %v4967
  %v4974 = vsel %vm153, %v4949, 0
  %4976 = vmatprep.subr.bf16.mxu0 0
  %4977 = vmatpush1.bf16.msra.mxu0 %v4969
  %4978 = vmatprep.subr.bf16.mxu0 0
  %4979 = vmatpush1.bf16.msra.mxu0 %v4970
  %4980 = vmatprep.subr.bf16.mxu0 0
  %4981 = vmatpush1.bf16.msra.mxu0 0
  %4982 = vmatprep.subr.bf16.mxu0 0
  %4983 = vmatpush1.bf16.msra.mxu0 0
  %4984 = vmatprep.subr.bf16.mxu0 0
  %4985 = vmatpush1.bf16.msra.mxu0 0
  %4986 = vmatprep.subr.bf16.mxu0 0
  %4987 = vmatpush1.bf16.msra.mxu0 0
  %4988 = vmatprep.subr.bf16.mxu0 0
  %4989 = vmatpush1.bf16.msra.mxu0 0
  %4990 = vmatprep.subr.bf16.mxu0 0
  %4991 = vmatpush1.bf16.msra.mxu0 0
  %4992 = vmatprep.subr.bf16.mxu0 0
  %4993 = vmatpush1.bf16.msra.mxu0 0
  %4994 = vmatprep.subr.bf16.mxu0 0
  %4995 = vmatpush1.bf16.msra.mxu0 0
  %4996 = vmatprep.subr.bf16.mxu0 0
  %4997 = vmatpush1.bf16.msra.mxu0 0
  %4998 = vmatprep.subr.bf16.mxu0 0
  %4999 = vmatpush1.bf16.msra.mxu0 0
  %5000 = vmatprep.subr.bf16.mxu0 0
  %5001 = vmatpush1.bf16.msra.mxu0 0
  %5002 = vmatprep.subr.bf16.mxu0 0
  %5003 = vmatpush1.bf16.msra.mxu0 0
  %5004 = vmatprep.subr.bf16.mxu0 0
  %5005 = vmatpush1.bf16.msra.mxu0 0
  %5006 = vmatprep.subr.bf16.mxu0 0
  %5007 = vmatpush1.bf16.msra.mxu0 0
  %5008 = vmatprep.mubr.bf16.mxu0 0
  %5009 = vmatmul.mubr.bf16.gmra.mrb[0].mxu0 %v4974
  %v5010 = vpop.f32.mrb[0].mxu0
  %v5011 = vadd.f32 %v4959, %v5010
  %v5012 = vpop.f32.mrb[0].mxu0
  %v5013 = vpop.f32.mrb[0].mxu0
  %v5014 = vpop.f32.mrb[0].mxu0
  %5015 = vdwg.mxu0
  %v5016 = vld [vmem:[%s634] sm:$0xf]
  %v5017 = vld [vmem:[%s634 + $0x4] sm:$0xf]
  %v5018 = vld [vmem:[%s634 + $0x8] sm:$0xf]
  %v5019 = vld [vmem:[%s634 + $0xc] sm:$0xf]
  %v5020 = vld [vmem:[%s639] sm:$0x1]
  %v5022 = vlaneseq
  %v5023 = vshrl.u32 %v5022, 7
  %v5024 = vsub.s32 0, %v5023
  %v5025 = vrot.slane %v5020, %v5024
  %v5031 = vunpack.c.l.b16 %v5016
  %v5032 = vunpack.c.l.b16 %v5017
  %v5033 = vunpack.c.l.b16 %v5018
  %v5034 = vunpack.c.l.b16 %v5019
  %v5035 = vpack.c.b16 %v5032, %v5031
  %v5036 = vpack.c.b16 %v5034, %v5033
  %5039 = vmatprep.subr.bf16.mxu0 0
  %5040 = vmatpush1.bf16.msra.mxu0 %v5035
  %5041 = vmatprep.subr.bf16.mxu0 0
  %5042 = vmatpush1.bf16.msra.mxu0 %v5036
  %5043 = vmatprep.subr.bf16.mxu0 0
  %5044 = vmatpush1.bf16.msra.mxu0 0
  %5045 = vmatprep.subr.bf16.mxu0 0
  %5046 = vmatpush1.bf16.msra.mxu0 0
  %5047 = vmatprep.subr.bf16.mxu0 0
  %5048 = vmatpush1.bf16.msra.mxu0 0
  %5049 = vmatprep.subr.bf16.mxu0 0
  %5050 = vmatpush1.bf16.msra.mxu0 0
  %5051 = vmatprep.subr.bf16.mxu0 0
  %5052 = vmatpush1.bf16.msra.mxu0 0
  %5053 = vmatprep.subr.bf16.mxu0 0
  %5054 = vmatpush1.bf16.msra.mxu0 0
  %5055 = vmatprep.subr.bf16.mxu0 0
  %5056 = vmatpush1.bf16.msra.mxu0 0
  %5057 = vmatprep.subr.bf16.mxu0 0
  %5058 = vmatpush1.bf16.msra.mxu0 0
  %5059 = vmatprep.subr.bf16.mxu0 0
  %5060 = vmatpush1.bf16.msra.mxu0 0
  %5061 = vmatprep.subr.bf16.mxu0 0
  %5062 = vmatpush1.bf16.msra.mxu0 0
  %5063 = vmatprep.subr.bf16.mxu0 0
  %5064 = vmatpush1.bf16.msra.mxu0 0
  %5065 = vmatprep.subr.bf16.mxu0 0
  %5066 = vmatpush1.bf16.msra.mxu0 0
  %5067 = vmatprep.subr.bf16.mxu0 0
  %5068 = vmatpush1.bf16.msra.mxu0 0
  %5069 = vmatprep.subr.bf16.mxu0 0
  %5070 = vmatpush1.bf16.msra.mxu0 0
  %5071 = vmatprep.mubr.bf16.mxu0 0
  %5072 = vmatmul.mubr.bf16.gmra.mrb[0].mxu0 %v4974
  %v5073 = vpop.f32.mrb[0].mxu0
  %v5074 = vadd.f32 %v5025, %v5073
  %v5075 = vpop.f32.mrb[0].mxu0
  %v5076 = vpop.f32.mrb[0].mxu0
  %v5077 = vpop.f32.mrb[0].mxu0
  %5078 = vdwg.mxu0
  %v5079 = vld [vmem:[%s699] sm:$0xf]
  %v5080 = vld [vmem:[%s699 + $0x4] sm:$0xf]
  %v5081 = vld [vmem:[%s699 + $0x8] sm:$0xf]
  %v5082 = vld [vmem:[%s699 + $0xc] sm:$0xf]
  %v5083 = vld [vmem:[%s704] sm:$0x1]
  %v5085 = vlaneseq
  %v5086 = vshrl.u32 %v5085, 7
  %v5087 = vsub.s32 0, %v5086
  %v5088 = vrot.slane %v5083, %v5087
  %v5094 = vunpack.c.l.b16 %v5079
  %v5095 = vunpack.c.l.b16 %v5080
  %v5096 = vunpack.c.l.b16 %v5081
  %v5097 = vunpack.c.l.b16 %v5082
  %v5098 = vpack.c.b16 %v5095, %v5094
  %v5099 = vpack.c.b16 %v5097, %v5096
  %5102 = vmatprep.subr.bf16.mxu0 0
  %5103 = vmatpush1.bf16.msra.mxu0 %v5098
  %5104 = vmatprep.subr.bf16.mxu0 0
  %5105 = vmatpush1.bf16.msra.mxu0 %v5099
  %5106 = vmatprep.subr.bf16.mxu0 0
  %5107 = vmatpush1.bf16.msra.mxu0 0
  %5108 = vmatprep.subr.bf16.mxu0 0
  %5109 = vmatpush1.bf16.msra.mxu0 0
  %5110 = vmatprep.subr.bf16.mxu0 0
  %5111 = vmatpush1.bf16.msra.mxu0 0
  %5112 = vmatprep.subr.bf16.mxu0 0
  %5113 = vmatpush1.bf16.msra.mxu0 0
  %5114 = vmatprep.subr.bf16.mxu0 0
  %5115 = vmatpush1.bf16.msra.mxu0 0
  %5116 = vmatprep.subr.bf16.mxu0 0
  %5117 = vmatpush1.bf16.msra.mxu0 0
  %5118 = vmatprep.subr.bf16.mxu0 0
  %5119 = vmatpush1.bf16.msra.mxu0 0
  %5120 = vmatprep.subr.bf16.mxu0 0
  %5121 = vmatpush1.bf16.msra.mxu0 0
  %5122 = vmatprep.subr.bf16.mxu0 0
  %5123 = vmatpush1.bf16.msra.mxu0 0
  %5124 = vmatprep.subr.bf16.mxu0 0
  %5125 = vmatpush1.bf16.msra.mxu0 0
  %5126 = vmatprep.subr.bf16.mxu0 0
  %5127 = vmatpush1.bf16.msra.mxu0 0
  %5128 = vmatprep.subr.bf16.mxu0 0
  %5129 = vmatpush1.bf16.msra.mxu0 0
  %5130 = vmatprep.subr.bf16.mxu0 0
  %5131 = vmatpush1.bf16.msra.mxu0 0
  %5132 = vmatprep.subr.bf16.mxu0 0
  %5133 = vmatpush1.bf16.msra.mxu0 0
  %5134 = vmatprep.mubr.bf16.mxu0 0
  %5135 = vmatmul.mubr.bf16.gmra.mrb[0].mxu0 %v4974
  %v5136 = vpop.f32.mrb[0].mxu0
  %v5137 = vadd.f32 %v5088, %v5136
  %v5138 = vpop.f32.mrb[0].mxu0
  %v5139 = vpop.f32.mrb[0].mxu0
  %v5140 = vpop.f32.mrb[0].mxu0
  %5141 = vdwg.mxu0
  %v5142 = vpack.c.bf16 %v4730, %v4730
  %v5143 = vld [vmem:[%s6] sm:$0xf]
  %v5144 = vld [vmem:[%s6 + $0x4] sm:$0xf]
  %v5145 = vld [vmem:[%s6 + $0x8] sm:$0xf]
  %v5146 = vld [vmem:[%s6 + $0xc] sm:$0xf]
  %v5147 = vld [vmem:[%s8] sm:$0x1]
  %v5149 = vlaneseq
  %v5150 = vshrl.u32 %v5149, 7
  %v5151 = vsub.s32 0, %v5150
  %v5152 = vrot.slane %v5147, %v5151
  %v5158 = vunpack.c.l.b16 %v5143
  %v5159 = vunpack.c.l.b16 %v5144
  %v5160 = vunpack.c.l.b16 %v5145
  %v5161 = vunpack.c.l.b16 %v5146
  %v5162 = vpack.c.b16 %v5159, %v5158
  %v5163 = vpack.c.b16 %v5161, %v5160
  %v5167 = vsel %vm153, %v5142, 0
  %5169 = vmatprep.subr.bf16.mxu0 0
  %5170 = vmatpush1.bf16.msra.mxu0 %v5162
  %5171 = vmatprep.subr.bf16.mxu0 0
  %5172 = vmatpush1.bf16.msra.mxu0 %v5163
  %5173 = vmatprep.subr.bf16.mxu0 0
  %5174 = vmatpush1.bf16.msra.mxu0 0
  %5175 = vmatprep.subr.bf16.mxu0 0
  %5176 = vmatpush1.bf16.msra.mxu0 0
  %5177 = vmatprep.subr.bf16.mxu0 0
  %5178 = vmatpush1.bf16.msra.mxu0 0
  %5179 = vmatprep.subr.bf16.mxu0 0
  %5180 = vmatpush1.bf16.msra.mxu0 0
  %5181 = vmatprep.subr.bf16.mxu0 0
  %5182 = vmatpush1.bf16.msra.mxu0 0
  %5183 = vmatprep.subr.bf16.mxu0 0
  %5184 = vmatpush1.bf16.msra.mxu0 0
  %5185 = vmatprep.subr.bf16.mxu0 0
  %5186 = vmatpush1.bf16.msra.mxu0 0
  %5187 = vmatprep.subr.bf16.mxu0 0
  %5188 = vmatpush1.bf16.msra.mxu0 0
  %5189 = vmatprep.subr.bf16.mxu0 0
  %5190 = vmatpush1.bf16.msra.mxu0 0
  %5191 = vmatprep.subr.bf16.mxu0 0
  %5192 = vmatpush1.bf16.msra.mxu0 0
  %5193 = vmatprep.subr.bf16.mxu0 0
  %5194 = vmatpush1.bf16.msra.mxu0 0
  %5195 = vmatprep.subr.bf16.mxu0 0
  %5196 = vmatpush1.bf16.msra.mxu0 0
  %5197 = vmatprep.subr.bf16.mxu0 0
  %5198 = vmatpush1.bf16.msra.mxu0 0
  %5199 = vmatprep.subr.bf16.mxu0 0
  %5200 = vmatpush1.bf16.msra.mxu0 0
  %5201 = vmatprep.mubr.bf16.mxu0 0
  %5202 = vmatmul.mubr.bf16.gmra.mrb[0].mxu0 %v5167
  %v5203 = vpop.f32.mrb[0].mxu0
  %v5204 = vadd.f32 %v5152, %v5203
  %v5205 = vpop.f32.mrb[0].mxu0
  %v5206 = vpop.f32.mrb[0].mxu0
  %v5207 = vpop.f32.mrb[0].mxu0
  %5208 = vdwg.mxu0
  %v5209 = vld [vmem:[%s831] sm:$0xf]
  %v5210 = vld [vmem:[%s831 + $0x4] sm:$0xf]
  %v5211 = vld [vmem:[%s831 + $0x8] sm:$0xf]
  %v5212 = vld [vmem:[%s831 + $0xc] sm:$0xf]
  %v5213 = vld [vmem:[%s836] sm:$0x1]
  %v5215 = vlaneseq
  %v5216 = vshrl.u32 %v5215, 7
  %v5217 = vsub.s32 0, %v5216
  %v5218 = vrot.slane %v5213, %v5217
  %v5224 = vunpack.c.l.b16 %v5209
  %v5225 = vunpack.c.l.b16 %v5210
  %v5226 = vunpack.c.l.b16 %v5211
  %v5227 = vunpack.c.l.b16 %v5212
  %v5228 = vpack.c.b16 %v5225, %v5224
  %v5229 = vpack.c.b16 %v5227, %v5226
  %5232 = vmatprep.subr.bf16.mxu0 0
  %5233 = vmatpush1.bf16.msra.mxu0 %v5228
  %5234 = vmatprep.subr.bf16.mxu0 0
  %5235 = vmatpush1.bf16.msra.mxu0 %v5229
  %5236 = vmatprep.subr.bf16.mxu0 0
  %5237 = vmatpush1.bf16.msra.mxu0 0
  %5238 = vmatprep.subr.bf16.mxu0 0
  %5239 = vmatpush1.bf16.msra.mxu0 0
  %5240 = vmatprep.subr.bf16.mxu0 0
  %5241 = vmatpush1.bf16.msra.mxu0 0
  %5242 = vmatprep.subr.bf16.mxu0 0
  %5243 = vmatpush1.bf16.msra.mxu0 0
  %5244 = vmatprep.subr.bf16.mxu0 0
  %5245 = vmatpush1.bf16.msra.mxu0 0
  %5246 = vmatprep.subr.bf16.mxu0 0
  %5247 = vmatpush1.bf16.msra.mxu0 0
  %5248 = vmatprep.subr.bf16.mxu0 0
  %5249 = vmatpush1.bf16.msra.mxu0 0
  %5250 = vmatprep.subr.bf16.mxu0 0
  %5251 = vmatpush1.bf16.msra.mxu0 0
  %5252 = vmatprep.subr.bf16.mxu0 0
  %5253 = vmatpush1.bf16.msra.mxu0 0
  %5254 = vmatprep.subr.bf16.mxu0 0
  %5255 = vmatpush1.bf16.msra.mxu0 0
  %5256 = vmatprep.subr.bf16.mxu0 0
  %5257 = vmatpush1.bf16.msra.mxu0 0
  %5258 = vmatprep.subr.bf16.mxu0 0
  %5259 = vmatpush1.bf16.msra.mxu0 0
  %5260 = vmatprep.subr.bf16.mxu0 0
  %5261 = vmatpush1.bf16.msra.mxu0 0
  %5262 = vmatprep.subr.bf16.mxu0 0
  %5263 = vmatpush1.bf16.msra.mxu0 0
  %5264 = vmatprep.mubr.bf16.mxu0 0
  %5265 = vmatmul.mubr.bf16.gmra.mrb[0].mxu0 %v5167
  %v5266 = vpop.f32.mrb[0].mxu0
  %v5267 = vadd.f32 %v5218, %v5266
  %v5268 = vpop.f32.mrb[0].mxu0
  %v5269 = vpop.f32.mrb[0].mxu0
  %v5270 = vpop.f32.mrb[0].mxu0
  %5271 = vdwg.mxu0
  %v5272 = vld [vmem:[%s896] sm:$0xf]
  %v5273 = vld [vmem:[%s896 + $0x4] sm:$0xf]
  %v5274 = vld [vmem:[%s896 + $0x8] sm:$0xf]
  %v5275 = vld [vmem:[%s896 + $0xc] sm:$0xf]
  %v5276 = vld [vmem:[%s901] sm:$0x1]
  %v5278 = vlaneseq
  %v5279 = vshrl.u32 %v5278, 7
  %v5280 = vsub.s32 0, %v5279
  %v5281 = vrot.slane %v5276, %v5280
  %v5287 = vunpack.c.l.b16 %v5272
  %v5288 = vunpack.c.l.b16 %v5273
  %v5289 = vunpack.c.l.b16 %v5274
  %v5290 = vunpack.c.l.b16 %v5275
  %v5291 = vpack.c.b16 %v5288, %v5287
  %v5292 = vpack.c.b16 %v5290, %v5289
  %5295 = vmatprep.subr.bf16.mxu0 0
  %5296 = vmatpush1.bf16.msra.mxu0 %v5291
  %5297 = vmatprep.subr.bf16.mxu0 0
  %5298 = vmatpush1.bf16.msra.mxu0 %v5292
  %5299 = vmatprep.subr.bf16.mxu0 0
  %5300 = vmatpush1.bf16.msra.mxu0 0
  %5301 = vmatprep.subr.bf16.mxu0 0
  %5302 = vmatpush1.bf16.msra.mxu0 0
  %5303 = vmatprep.subr.bf16.mxu0 0
  %5304 = vmatpush1.bf16.msra.mxu0 0
  %5305 = vmatprep.subr.bf16.mxu0 0
  %5306 = vmatpush1.bf16.msra.mxu0 0
  %5307 = vmatprep.subr.bf16.mxu0 0
  %5308 = vmatpush1.bf16.msra.mxu0 0
  %5309 = vmatprep.subr.bf16.mxu0 0
  %5310 = vmatpush1.bf16.msra.mxu0 0
  %5311 = vmatprep.subr.bf16.mxu0 0
  %5312 = vmatpush1.bf16.msra.mxu0 0
  %5313 = vmatprep.subr.bf16.mxu0 0
  %5314 = vmatpush1.bf16.msra.mxu0 0
  %5315 = vmatprep.subr.bf16.mxu0 0
  %5316 = vmatpush1.bf16.msra.mxu0 0
  %5317 = vmatprep.subr.bf16.mxu0 0
  %5318 = vmatpush1.bf16.msra.mxu0 0
  %5319 = vmatprep.subr.bf16.mxu0 0
  %5320 = vmatpush1.bf16.msra.mxu0 0
  %5321 = vmatprep.subr.bf16.mxu0 0
  %5322 = vmatpush1.bf16.msra.mxu0 0
  %5323 = vmatprep.subr.bf16.mxu0 0
  %5324 = vmatpush1.bf16.msra.mxu0 0
  %5325 = vmatprep.subr.bf16.mxu0 0
  %5326 = vmatpush1.bf16.msra.mxu0 0
  %5327 = vmatprep.mubr.bf16.mxu0 0
  %5328 = vmatmul.mubr.bf16.gmra.mrb[0].mxu0 %v5167
  %v5329 = vpop.f32.mrb[0].mxu0
  %v5330 = vadd.f32 %v5281, %v5329
  %v5331 = vpop.f32.mrb[0].mxu0
  %v5332 = vpop.f32.mrb[0].mxu0
  %v5333 = vpop.f32.mrb[0].mxu0
  %5334 = vdwg.mxu0
  %v5335 = vadd.f32 %v5011, %v5204
  %v5336 = vxor.u32 %v5335, 2147483648
  %v5337 = vmul.f32 %v5336, 1.442695
  %v5338 = vpow.pop %v5337
  %v5339 = vadd.f32 %v5338, 1.0
  %v5340 = vrcp.pop %v5339
  %v5341 = vmul.f32 1.0, %v5340
  %v5342 = vadd.f32 %v5074, %v5267
  %v5343 = vxor.u32 %v5342, 2147483648
  %v5344 = vmul.f32 %v5343, 1.442695
  %v5345 = vpow.pop %v5344
  %v5346 = vadd.f32 %v5345, 1.0
  %v5347 = vrcp.pop %v5346
  %v5348 = vmul.f32 1.0, %v5347
  %v5349 = vmul.f32 %v5341, %v5330
  %v5350 = vadd.f32 %v5137, %v5349
  %v5351 = vtanh.pop %v5350
  %v5352 = vsub.f32 1.0, %v5348
  %v5353 = vmul.f32 %v5352, %v5351
  %v5354 = vmul.f32 %v5348, %v4730
  %v5355 = vadd.f32 %v5353, %v5354
  %s5356 = scalar_lea.vmem [#allocation3], 56
  %5357 = vst.msk [vmem:[%s5356] sm:$0xff] %vm153, %v5355
  %5358 = vst.msk [vmem:[#allocation4] sm:$0xff] %vm153, %v4948
  %5359 = vst.msk [vmem:[%s12] sm:$0xff] %vm153, %v4948
  %5360 = vst.msk [vmem:[#allocation5] sm:$0xff] %vm153, %v5355
  %s5361 = scalar_lea.vmem %s12, 8
  %5362 = vst.msk [vmem:[%s5361] sm:$0xff] %vm153, %v5355
  %v5363 = vld [vmem:[#allocation3] sm:$0xff]
  %v5364 = vld [vmem:[#allocation3 + $0x8] sm:$0xff]
  %v5365 = vld [vmem:[#allocation3 + $0x10] sm:$0xff]
  %v5366 = vld [vmem:[#allocation3 + $0x18] sm:$0xff]
  %v5367 = vld [vmem:[#allocation3 + $0x20] sm:$0xff]
  %v5368 = vld [vmem:[#allocation3 + $0x28] sm:$0xff]
  %v5369 = vld [vmem:[#allocation3 + $0x30] sm:$0xff]
  %v5370 = vld [vmem:[#allocation3 + $0x38] sm:$0xff]
  %v5371 = vmax.f32 %v5363, 0.0
  %v5372 = vmax.f32 %v5364, 0.0
  %v5373 = vmax.f32 %v5365, 0.0
  %v5374 = vmax.f32 %v5366, 0.0
  %v5375 = vmax.f32 %v5367, 0.0
  %v5376 = vmax.f32 %v5368, 0.0
  %v5377 = vmax.f32 %v5369, 0.0
  %v5378 = vmax.f32 %v5370, 0.0
  %v5379 = vpack.c.bf16 %v5372, %v5371
  %v5380 = vpack.c.bf16 %v5374, %v5373
  %v5381 = vpack.c.bf16 %v5376, %v5375
  %v5382 = vpack.c.bf16 %v5378, %v5377
  %v5383 = vld [vmem:[%s9] sm:$0xf]
  %v5384 = vld [vmem:[%s9 + $0x4] sm:$0xf]
  %v5385 = vld [vmem:[%s9 + $0x8] sm:$0xf]
  %v5386 = vld [vmem:[%s9 + $0xc] sm:$0xf]
  %v5387 = vld [vmem:[%s10] sm:$0x1]
  %v5389 = vlaneseq
  %v5390 = vshrl.u32 %v5389, 7
  %v5391 = vsub.s32 0, %v5390
  %v5392 = vrot.slane %v5387, %v5391
  %v5398 = vunpack.c.l.b16 %v5383
  %v5399 = vunpack.c.l.b16 %v5384
  %v5400 = vunpack.c.l.b16 %v5385
  %v5401 = vunpack.c.l.b16 %v5386
  %v5402 = vpack.c.b16 %v5399, %v5398
  %v5403 = vpack.c.b16 %v5401, %v5400
  %v5407 = vsel %vm153, %v5379, 0
  %v5410 = vsel %vm153, %v5380, 0
  %v5413 = vsel %vm153, %v5381, 0
  %v5416 = vsel %vm153, %v5382, 0
  %5418 = vmatprep.subr.bf16.mxu0 0
  %5419 = vmatpush1.bf16.msra.mxu0 %v5402
  %5420 = vmatprep.subr.bf16.mxu0 0
  %5421 = vmatpush1.bf16.msra.mxu0 %v5403
  %5422 = vmatprep.subr.bf16.mxu0 0
  %5423 = vmatpush1.bf16.msra.mxu0 0
  %5424 = vmatprep.subr.bf16.mxu0 0
  %5425 = vmatpush1.bf16.msra.mxu0 0
  %5426 = vmatprep.subr.bf16.mxu0 0
  %5427 = vmatpush1.bf16.msra.mxu0 0
  %5428 = vmatprep.subr.bf16.mxu0 0
  %5429 = vmatpush1.bf16.msra.mxu0 0
  %5430 = vmatprep.subr.bf16.mxu0 0
  %5431 = vmatpush1.bf16.msra.mxu0 0
  %5432 = vmatprep.subr.bf16.mxu0 0
  %5433 = vmatpush1.bf16.msra.mxu0 0
  %5434 = vmatprep.subr.bf16.mxu0 0
  %5435 = vmatpush1.bf16.msra.mxu0 0
  %5436 = vmatprep.subr.bf16.mxu0 0
  %5437 = vmatpush1.bf16.msra.mxu0 0
  %5438 = vmatprep.subr.bf16.mxu0 0
  %5439 = vmatpush1.bf16.msra.mxu0 0
  %5440 = vmatprep.subr.bf16.mxu0 0
  %5441 = vmatpush1.bf16.msra.mxu0 0
  %5442 = vmatprep.subr.bf16.mxu0 0
  %5443 = vmatpush1.bf16.msra.mxu0 0
  %5444 = vmatprep.subr.bf16.mxu0 0
  %5445 = vmatpush1.bf16.msra.mxu0 0
  %5446 = vmatprep.subr.bf16.mxu0 0
  %5447 = vmatpush1.bf16.msra.mxu0 0
  %5448 = vmatprep.subr.bf16.mxu0 0
  %5449 = vmatpush1.bf16.msra.mxu0 0
  %5450 = vmatprep.mubr.bf16.mxu0 0
  %5451 = vmatmul.mubr.bf16.gmra.mrb[0].mxu0 %v5407
  %v5452 = vpop.f32.mrb[0].mxu0
  %v5453 = vadd.f32 %v5392, %v5452
  %v5454 = vpop.f32.mrb[0].mxu0
  %v5455 = vpop.f32.mrb[0].mxu0
  %v5456 = vadd.f32 %v5392, %v5455
  %v5457 = vpop.f32.mrb[0].mxu0
  %5458 = vmatprep.mubr.bf16.mxu0 0
  %5459 = vmatmul.mubr.bf16.gmra.mrb[0].mxu0 %v5410
  %v5460 = vpop.f32.mrb[0].mxu0
  %v5461 = vadd.f32 %v5392, %v5460
  %v5462 = vpop.f32.mrb[0].mxu0
  %v5463 = vpop.f32.mrb[0].mxu0
  %v5464 = vadd.f32 %v5392, %v5463
  %v5465 = vpop.f32.mrb[0].mxu0
  %5466 = vmatprep.mubr.bf16.mxu0 0
  %5467 = vmatmul.mubr.bf16.gmra.mrb[0].mxu0 %v5413
  %v5468 = vpop.f32.mrb[0].mxu0
  %v5469 = vadd.f32 %v5392, %v5468
  %v5470 = vpop.f32.mrb[0].mxu0
  %v5471 = vpop.f32.mrb[0].mxu0
  %v5472 = vadd.f32 %v5392, %v5471
  %v5473 = vpop.f32.mrb[0].mxu0
  %5474 = vmatprep.mubr.bf16.mxu0 0
  %5475 = vmatmul.mubr.bf16.gmra.mrb[0].mxu0 %v5416
  %v5476 = vpop.f32.mrb[0].mxu0
  %v5477 = vadd.f32 %v5392, %v5476
  %v5478 = vpop.f32.mrb[0].mxu0
  %v5479 = vpop.f32.mrb[0].mxu0
  %v5480 = vadd.f32 %v5392, %v5479
  %v5481 = vpop.f32.mrb[0].mxu0
  %5482 = vdwg.mxu0
  %5483 = vst [vmem:[%s11] sm:$0xff] %v5453
  %5484 = vst [vmem:[%s11 + $0x8] sm:$0xff] %v5456
  %5485 = vst [vmem:[%s11 + $0x10] sm:$0xff] %v5461
  %5486 = vst [vmem:[%s11 + $0x18] sm:$0xff] %v5464
  %5487 = vst [vmem:[%s11 + $0x20] sm:$0xff] %v5469
  %5488 = vst [vmem:[%s11 + $0x28] sm:$0xff] %v5472
  %5489 = vst [vmem:[%s11 + $0x30] sm:$0xff] %v5477
  %5490 = vst [vmem:[%s11 + $0x38] sm:$0xff] %v5480
  // Predicated region
  $region50: #{gru_model_forward.1} parent=0 // pred_check
    _
  $region51: #{gru_model_forward.1} parent=0 // pred_check_branch
    %5492 = sbr.rel (0) target = $region53
  $region52: #{gru_model_forward.1} parent=0 // pred_region
    _
  $region53: #{gru_model_forward.1} parent=0 // pred_fallthru
    _
  // Predicated region
  $region54: #{gru_model_forward.1} parent=0 // pred_check
    _
  $region55: #{gru_model_forward.1} parent=0 // pred_check_branch
    %5494 = sbr.rel (0) target = $region57
  $region56: #{gru_model_forward.1} parent=0 // pred_region
    _
  $region57: #{gru_model_forward.1} parent=0 // pred_fallthru
    _
  // Predicated region
  $region58: #{gru_model_forward.1} parent=0 // pred_check
    _
  $region59: #{gru_model_forward.1} parent=0 // pred_check_branch
    %5496 = sbr.rel (0) target = $region61
  $region60: #{gru_model_forward.1} parent=0 // pred_region
    _
  $region61: #{gru_model_forward.1} parent=0 // pred_fallthru
    _
  // Predicated region
  $region62: #{gru_model_forward.1} parent=0 // pred_check
    _
  $region63: #{gru_model_forward.1} parent=0 // pred_check_branch
    %5498 = sbr.rel (0) target = $region65
  $region64: #{gru_model_forward.1} parent=0 // pred_region
    _
  $region65: #{gru_model_forward.1} parent=0 // pred_fallthru
    _

</llo_original>
